<compile_context>
chip_gen: v6e
topology: v6e:2x2x1
jax: 0.10.0
libtpu: 0.0.40
codegen_flags: <defaults>
</compile_context>

<pallas_src>
import jax
import jax.numpy as jnp
import numpy as np
from jax import lax
from jax.experimental import pallas as pl
from jax.experimental.pallas import tpu as pltpu

LANE = 128            # TPU lane width; pad out-channels / FC features to this
C1, C2, NCLS = 16, 32, 10
KSIZE, PAD = 5, 2
VMEM_LIMIT = 64 * 1024 * 1024


def _rup(x, m):
    return (x + m - 1) // m * m


# ----------------------------- Pallas kernels ------------------------------ #

def conv_relu_pool_kernel(p_ref, w_ref, b_ref, o_ref):
    """Fused conv (im2col matmul) + bias + ReLU + 2x2 maxpool for one M-tile.

    p_ref: (4, tm, Kp)   4 pooling-offset patch groups (K lane-padded)
    w_ref: (Kp, 128)     conv weight, out-channels zero-padded to 128 lanes
    b_ref: (1, 128)      bias (f32)
    o_ref: (tm, 128)     pooled output rows ordered (n, oh, ow)
    """
    g, tm, k = p_ref.shape
    # Single MXU stream over all 4 pool offsets: (4*tm, Kp) @ (Kp, 128), f32 acc.
    s = jnp.dot(p_ref[...].reshape(g * tm, k), w_ref[...],
                preferred_element_type=jnp.float32)
    out = s[0:tm]
    for i in range(1, g):                       # static unroll, VPU max
        out = jnp.maximum(out, s[i * tm:(i + 1) * tm])
    # relu(max_g(x_g @ W) + b) == maxpool2x2(relu(conv + b))  (relu monotone).
    o_ref[...] = jnp.maximum(out + b_ref[...], 0.0).astype(o_ref.dtype)


def linear_kernel(x_ref, w_ref, b_ref, o_ref):
    z = jnp.dot(x_ref[...], w_ref[...], preferred_element_type=jnp.float32)
    o_ref[...] = (z + b_ref[...]).astype(o_ref.dtype)


# ------------------------------ pallas_call wrappers ----------------------- #

def conv_relu_pool(patches, w_pad, b_pad, *, dot_dtype=jnp.float32, tm=256):
    """patches (4, M, K) f32; w_pad (Kp, 128); b_pad (1, 128)  ->  (M, 128) f32."""
    g, M, K = patches.shape
    Kp, Cp = w_pad.shape
    tm = min(tm, _rup(M, 32))                   # multiple of 32 (bf16/int8 safe)
    Mp = _rup(M, tm)
    p = jnp.pad(patches, ((0, 0), (0, Mp - M), (0, Kp - K))).astype(dot_dtype)
    w = w_pad.astype(dot_dtype)
    out = pl.pallas_call(
        conv_relu_pool_kernel,
        out_shape=jax.ShapeDtypeStruct((Mp, Cp), jnp.float32),
        grid=(Mp // tm,),
        in_specs=[
            pl.BlockSpec((g, tm, Kp), lambda i: (0, i, 0)),
            pl.BlockSpec((Kp, Cp), lambda i: (0, 0)),
            pl.BlockSpec((1, Cp), lambda i: (0, 0)),
        ],
        out_specs=pl.BlockSpec((tm, Cp), lambda i: (i, 0)),
        compiler_params=pltpu.CompilerParams(
            dimension_semantics=("parallel",),
            vmem_limit_bytes=VMEM_LIMIT,
        ),
    )(p, w, b_pad)
    return out[:M]


def linear(x, w_pad, b_pad, *, dot_dtype=jnp.float32, tn=128):
    """x (N, K) f32; w_pad (K, 128); b_pad (1, 128)  ->  (N, 128) f32."""
    N, K = x.shape
    Kp, Fp = w_pad.shape
    assert K == Kp
    tn = min(tn, _rup(N, 32))
    Np = _rup(N, tn)
    xp = jnp.pad(x, ((0, Np - N), (0, 0))).astype(dot_dtype)
    w = w_pad.astype(dot_dtype)
    out = pl.pallas_call(
        linear_kernel,
        out_shape=jax.ShapeDtypeStruct((Np, Fp), jnp.float32),
        grid=(Np // tn,),
        in_specs=[
            pl.BlockSpec((tn, Kp), lambda i: (i, 0)),
            pl.BlockSpec((Kp, Fp), lambda i: (0, 0)),
            pl.BlockSpec((1, Fp), lambda i: (0, 0)),
        ],
        out_specs=pl.BlockSpec((tn, Fp), lambda i: (i, 0)),
        compiler_params=pltpu.CompilerParams(
            dimension_semantics=("parallel",),
            vmem_limit_bytes=VMEM_LIMIT,
        ),
    )(xp, w, b_pad)
    return out[:N]


# ------------------------------ JAX glue ----------------------------------- #

def _im2col_pool_groups(x_nhwc, ksize=KSIZE, pad=PAD):
    """im2col (stride 1, 'same' padding) grouped by 2x2 maxpool offset.

    Returns (4, M, K) with M = N*(H/2)*(W/2) rows ordered (n, oh, ow) and
    K = ksize*ksize*Cin columns ordered (kh, kw, cin).
    """
    N, H, W, Cin = x_nhwc.shape
    xp = jnp.pad(x_nhwc, ((0, 0), (pad, pad), (pad, pad), (0, 0)))
    cols = jnp.stack(
        [xp[:, kh:kh + H, kw:kw + W, :]
         for kh in range(ksize) for kw in range(ksize)], axis=3)   # (N,H,W,K2,Cin)
    cols = cols.reshape(N, H, W, ksize * ksize * Cin)
    Hp, Wp = H // 2, W // 2
    groups = jnp.stack(
        [cols[:, dy::2, dx::2, :].reshape(N * Hp * Wp, -1)
         for dy in range(2) for dx in range(2)], axis=0)            # (4, M, K)
    return groups, (N, Hp, Wp)


def _conv_weight_to_matmul(w_oihw):
    # PyTorch (Cout, Cin, KH, KW) -> (KH*KW*Cin, Cout), matching patch columns.
    return jnp.transpose(w_oihw, (2, 3, 1, 0)).reshape(-1, w_oihw.shape[0])


def prepare_params(params):
    """One-time prep: matmul layout, 128-lane padding, flatten folded into FC."""
    w1, b1, w2, b2, fw, fb = params

    def prep_conv(w, b):
        wm = _conv_weight_to_matmul(w)                               # (K, Cout)
        K, Cout = wm.shape
        wp = jnp.pad(wm, ((0, _rup(K, LANE) - K), (0, LANE - Cout)))
        bp = jnp.pad(b, (0, LANE - Cout)).reshape(1, LANE)
        return wp, bp

    w1p, b1p = prep_conv(w1, b1)
    w2p, b2p = prep_conv(w2, b2)

    # FC: fold the PyTorch NCHW .view flatten into the weight (columns reordered
    # (c,h,w) -> (h,w,c)) and zero-pad channels to the 128-lane conv2 output,
    # so the activation needs no transpose / channel-slice before the FC.
    wf = fw.reshape(NCLS, C2, 7, 7).transpose(2, 3, 1, 0)            # (7,7,C2,F)
    wf = jnp.pad(wf, ((0, 0), (0, 0), (0, LANE - C2), (0, LANE - NCLS)))
    wf = wf.reshape(7 * 7 * LANE, LANE)
    bf = jnp.pad(fb, (0, LANE - NCLS)).reshape(1, LANE)
    return dict(w1=w1p, b1=b1p, w2=w2p, b2=b2p, wf=wf, bf=bf)


def cnn_forward(x_nchw, pp, dot_dtype=jnp.float32):
    x = jnp.transpose(x_nchw, (0, 2, 3, 1))                          # NHWC

    g1, (N, H1, W1) = _im2col_pool_groups(x)                         # (4, N*14*14, 25)
    y1 = conv_relu_pool(g1, pp["w1"], pp["b1"], dot_dtype=dot_dtype) # (M1, 128)
    y1 = y1[:, :C1].reshape(N, H1, W1, C1)                           # (N,14,14,16)

    g2, (_, H2, W2) = _im2col_pool_groups(y1)                        # (4, N*7*7, 400)
    y2 = conv_relu_pool(g2, pp["w2"], pp["b2"], dot_dtype=dot_dtype) # (N*49, 128)

    # Lane-dense flatten in (h, w, c_pad) order; FC weight already matches.
    flat = y2.reshape(N, H2 * W2 * LANE)                             # (N, 6272)
    out = linear(flat, pp["wf"], pp["bf"], dot_dtype=dot_dtype)      # (N, 128)
    return out[:, :NCLS]


# ------------------------- pure-JAX reference check ------------------------ #

def ref_forward(x_nchw, params):
    w1, b1, w2, b2, fw, fb = params
    dn = ('NCHW', 'OIHW', 'NCHW')

    def crp(x, w, b):
        y = lax.conv_general_dilated(x, w, (1, 1), [(2, 2), (2, 2)],
                                     dimension_numbers=dn)
        y = jnp.maximum(y + b[None, :, None, None], 0.0)
        return lax.reduce_window(y, -jnp.inf, lax.max,
                                 (1, 1, 2, 2), (1, 1, 2, 2), 'VALID')

    y = crp(x_nchw, w1, b1)
    y = crp(y, w2, b2)
    flat = y.reshape(y.shape[0], -1)
    return flat @ fw.T + fb[None, :]


def init_params(key):
    k = jax.random.split(key, 6)
    w1 = 0.1 * jax.random.normal(k[0], (C1, 1, 5, 5), jnp.float32)
    b1 = 0.1 * jax.random.normal(k[1], (C1,), jnp.float32)
    w2 = 0.05 * jax.random.normal(k[2], (C2, C1, 5, 5), jnp.float32)
    b2 = 0.1 * jax.random.normal(k[3], (C2,), jnp.float32)
    fw = 0.02 * jax.random.normal(k[4], (NCLS, C2 * 7 * 7), jnp.float32)
    fb = 0.1 * jax.random.normal(k[5], (NCLS,), jnp.float32)
    return (w1, b1, w2, b2, fw, fb)


if __name__ == "__main__":
    key = jax.random.PRNGKey(0)
    kx, kp = jax.random.split(key)
    # fc1 expects 32*7*7 features => 28x28 single-channel input (MNIST-like).
    x = jax.random.normal(kx, (2, 1, 28, 28), jnp.float32)           # NCHW
    params = init_params(kp)
    pp = prepare_params(params)
    ref = np.asarray(ref_forward(x, params))

    # f32 path
    fwd_f32 = jax.jit(lambda xx: cnn_forward(xx, pp, dot_dtype=jnp.float32))
    out = jax.block_until_ready(fwd_f32(x))
    assert out.shape == (2, NCLS) and out.dtype == jnp.float32
    np.testing.assert_allclose(np.asarray(out), ref, rtol=5e-2, atol=5e-2)

    # bf16 MXU-operand path (v6e/v7x fast path), f32 accumulation + epilogue.
    fwd_bf16 = jax.jit(lambda xx: cnn_forward(xx, pp, dot_dtype=jnp.bfloat16))
    out_bf16 = jax.block_until_ready(fwd_bf16(x))
    assert out_bf16.shape == (2, NCLS) and out_bf16.dtype == jnp.float32
    np.testing.assert_allclose(np.asarray(out_bf16), ref, rtol=8e-2, atol=8e-2)

    print("KERNEL_OK")
</pallas_src>

<mosaic_0001>
module attributes {stable_mosaic.version = 11 : i64} {
  func.func @conv_relu_pool_kernel(%arg0: i32, %arg1: memref<4x256x128xf32, #tpu.memory_space<vmem>>, %arg2: memref<128x128xf32, #tpu.memory_space<vmem>>, %arg3: memref<1x128xf32, #tpu.memory_space<vmem>>, %arg4: memref<256x128xf32, #tpu.memory_space<vmem>>) attributes {dimension_semantics = [#tpu.dimension_semantics<parallel>], iteration_bounds = array<i64: 2>, scalar_prefetch = 0 : i64, scratch_operands = 0 : i64, tpu.core_type = #tpu.core_type<tc>, window_params = [{transform_indices = @transform_0, window_bounds = array<i64: 4, 256, 128>}, {pipeline_mode = #tpu.pipeline_mode<synchronous>, transform_indices = @transform_1, window_bounds = array<i64: 128, 128>}, {pipeline_mode = #tpu.pipeline_mode<synchronous>, transform_indices = @transform_2, window_bounds = array<i64: 1, 128>}, {transform_indices = @transform_3, window_bounds = array<i64: 256, 128>}]} {
    %c0 = arith.constant 0 : index
    %c0_0 = arith.constant 0 : index
    %c0_1 = arith.constant 0 : index
    %0 = vector.load %arg1[%c0, %c0_0, %c0_1] : memref<4x256x128xf32, #tpu.memory_space<vmem>>, vector<4x256x128xf32>
    %1 = vector.shape_cast %0 : vector<4x256x128xf32> to vector<1024x128xf32>
    %c0_2 = arith.constant 0 : index
    %c0_3 = arith.constant 0 : index
    %2 = vector.load %arg2[%c0_2, %c0_3] : memref<128x128xf32, #tpu.memory_space<vmem>>, vector<128x128xf32>
    %cst = arith.constant dense<0.000000e+00> : vector<1024x128xf32>
    %3 = tpu.matmul %1, %2, %cst {dimension_numbers = #tpu.dot_dimension_numbers<[1], [0], [0], [1], [0, 0, 1, 1], [], []>} : vector<1024x128xf32>, vector<128x128xf32>, vector<1024x128xf32> -> vector<1024x128xf32>
    %4 = vector.extract_strided_slice %3 {offsets = [0, 0], sizes = [256, 128], strides = [1, 1]} : vector<1024x128xf32> to vector<256x128xf32>
    %5 = vector.extract_strided_slice %3 {offsets = [256, 0], sizes = [256, 128], strides = [1, 1]} : vector<1024x128xf32> to vector<256x128xf32>
    %6 = arith.maximumf %4, %5 : vector<256x128xf32>
    %7 = vector.extract_strided_slice %3 {offsets = [512, 0], sizes = [256, 128], strides = [1, 1]} : vector<1024x128xf32> to vector<256x128xf32>
    %8 = arith.maximumf %6, %7 : vector<256x128xf32>
    %9 = vector.extract_strided_slice %3 {offsets = [768, 0], sizes = [256, 128], strides = [1, 1]} : vector<1024x128xf32> to vector<256x128xf32>
    %10 = arith.maximumf %8, %9 : vector<256x128xf32>
    %c0_4 = arith.constant 0 : index
    %c0_5 = arith.constant 0 : index
    %11 = vector.load %arg3[%c0_4, %c0_5] : memref<1x128xf32, #tpu.memory_space<vmem>>, vector<1x128xf32>
    %12 = vector.broadcast %11 : vector<1x128xf32> to vector<256x128xf32>
    %13 = arith.addf %10, %12 : vector<256x128xf32>
    %cst_6 = arith.constant 0.000000e+00 : f32
    %14 = vector.broadcast %cst_6 : f32 to vector<256x128xf32>
    %15 = arith.maximumf %13, %14 : vector<256x128xf32>
    %c0_7 = arith.constant 0 : index
    %c0_8 = arith.constant 0 : index
    %16 = vector.load %arg4[%c0_7, %c0_8] : memref<256x128xf32, #tpu.memory_space<vmem>>, vector<256x128xf32>
    tpu.vector_store %arg4[%c0_7, %c0_8], %15 {strides = array<i32>} : memref<256x128xf32, #tpu.memory_space<vmem>>, vector<256x128xf32>,
    return
  }
  func.func @transform_0(%arg0: i32) -> (i32, i32, i32) {
    %c0_i32 = arith.constant 0 : i32
    %c0_i32_0 = arith.constant 0 : i32
    %c0_i32_1 = arith.constant 0 : i32
    return %c0_i32, %arg0, %c0_i32_0 : i32, i32, i32
  }
  func.func @transform_1(%arg0: i32) -> (i32, i32) {
    %c0_i32 = arith.constant 0 : i32
    %c0_i32_0 = arith.constant 0 : i32
    %c0_i32_1 = arith.constant 0 : i32
    return %c0_i32, %c0_i32_0 : i32, i32
  }
  func.func @transform_2(%arg0: i32) -> (i32, i32) {
    %c0_i32 = arith.constant 0 : i32
    %c0_i32_0 = arith.constant 0 : i32
    %c0_i32_1 = arith.constant 0 : i32
    return %c0_i32, %c0_i32_0 : i32, i32
  }
  func.func @transform_3(%arg0: i32) -> (i32, i32) {
    %c0_i32 = arith.constant 0 : i32
    %c0_i32_0 = arith.constant 0 : i32
    return %arg0, %c0_i32 : i32, i32
  }
}

module attributes {stable_mosaic.version = 11 : i64} {
  func.func @conv_relu_pool_kernel(%arg0: i32, %arg1: memref<4x128x512xf32, #tpu.memory_space<vmem>>, %arg2: memref<512x128xf32, #tpu.memory_space<vmem>>, %arg3: memref<1x128xf32, #tpu.memory_space<vmem>>, %arg4: memref<128x128xf32, #tpu.memory_space<vmem>>) attributes {dimension_semantics = [#tpu.dimension_semantics<parallel>], iteration_bounds = array<i64: 1>, scalar_prefetch = 0 : i64, scratch_operands = 0 : i64, tpu.core_type = #tpu.core_type<tc>, window_params = [{transform_indices = @transform_0, window_bounds = array<i64: 4, 128, 512>}, {pipeline_mode = #tpu.pipeline_mode<synchronous>, transform_indices = @transform_1, window_bounds = array<i64: 512, 128>}, {pipeline_mode = #tpu.pipeline_mode<synchronous>, transform_indices = @transform_2, window_bounds = array<i64: 1, 128>}, {transform_indices = @transform_3, window_bounds = array<i64: 128, 128>}]} {
    %c0 = arith.constant 0 : index
    %c0_0 = arith.constant 0 : index
    %c0_1 = arith.constant 0 : index
    %0 = vector.load %arg1[%c0, %c0_0, %c0_1] : memref<4x128x512xf32, #tpu.memory_space<vmem>>, vector<4x128x512xf32>
    %1 = vector.shape_cast %0 : vector<4x128x512xf32> to vector<512x512xf32>
    %c0_2 = arith.constant 0 : index
    %c0_3 = arith.constant 0 : index
    %2 = vector.load %arg2[%c0_2, %c0_3] : memref<512x128xf32, #tpu.memory_space<vmem>>, vector<512x128xf32>
    %cst = arith.constant dense<0.000000e+00> : vector<512x128xf32>
    %3 = tpu.matmul %1, %2, %cst {dimension_numbers = #tpu.dot_dimension_numbers<[1], [0], [0], [1], [0, 0, 1, 1], [], []>} : vector<512x512xf32>, vector<512x128xf32>, vector<512x128xf32> -> vector<512x128xf32>
    %4 = vector.extract_strided_slice %3 {offsets = [0, 0], sizes = [128, 128], strides = [1, 1]} : vector<512x128xf32> to vector<128x128xf32>
    %5 = vector.extract_strided_slice %3 {offsets = [128, 0], sizes = [128, 128], strides = [1, 1]} : vector<512x128xf32> to vector<128x128xf32>
    %6 = arith.maximumf %4, %5 : vector<128x128xf32>
    %7 = vector.extract_strided_slice %3 {offsets = [256, 0], sizes = [128, 128], strides = [1, 1]} : vector<512x128xf32> to vector<128x128xf32>
    %8 = arith.maximumf %6, %7 : vector<128x128xf32>
    %9 = vector.extract_strided_slice %3 {offsets = [384, 0], sizes = [128, 128], strides = [1, 1]} : vector<512x128xf32> to vector<128x128xf32>
    %10 = arith.maximumf %8, %9 : vector<128x128xf32>
    %c0_4 = arith.constant 0 : index
    %c0_5 = arith.constant 0 : index
    %11 = vector.load %arg3[%c0_4, %c0_5] : memref<1x128xf32, #tpu.memory_space<vmem>>, vector<1x128xf32>
    %12 = vector.broadcast %11 : vector<1x128xf32> to vector<128x128xf32>
    %13 = arith.addf %10, %12 : vector<128x128xf32>
    %cst_6 = arith.constant 0.000000e+00 : f32
    %14 = vector.broadcast %cst_6 : f32 to vector<128x128xf32>
    %15 = arith.maximumf %13, %14 : vector<128x128xf32>
    %c0_7 = arith.constant 0 : index
    %c0_8 = arith.constant 0 : index
    %16 = vector.load %arg4[%c0_7, %c0_8] : memref<128x128xf32, #tpu.memory_space<vmem>>, vector<128x128xf32>
    tpu.vector_store %arg4[%c0_7, %c0_8], %15 {strides = array<i32>} : memref<128x128xf32, #tpu.memory_space<vmem>>, vector<128x128xf32>,
    return
  }
  func.func @transform_0(%arg0: i32) -> (i32, i32, i32) {
    %c0_i32 = arith.constant 0 : i32
    %c0_i32_0 = arith.constant 0 : i32
    %c0_i32_1 = arith.constant 0 : i32
    return %c0_i32, %arg0, %c0_i32_0 : i32, i32, i32
  }
  func.func @transform_1(%arg0: i32) -> (i32, i32) {
    %c0_i32 = arith.constant 0 : i32
    %c0_i32_0 = arith.constant 0 : i32
    %c0_i32_1 = arith.constant 0 : i32
    return %c0_i32, %c0_i32_0 : i32, i32
  }
  func.func @transform_2(%arg0: i32) -> (i32, i32) {
    %c0_i32 = arith.constant 0 : i32
    %c0_i32_0 = arith.constant 0 : i32
    %c0_i32_1 = arith.constant 0 : i32
    return %c0_i32, %c0_i32_0 : i32, i32
  }
  func.func @transform_3(%arg0: i32) -> (i32, i32) {
    %c0_i32 = arith.constant 0 : i32
    %c0_i32_0 = arith.constant 0 : i32
    return %arg0, %c0_i32 : i32, i32
  }
}

module attributes {stable_mosaic.version = 11 : i64} {
  func.func @linear_kernel(%arg0: i32, %arg1: memref<32x6272xf32, #tpu.memory_space<vmem>>, %arg2: memref<6272x128xf32, #tpu.memory_space<vmem>>, %arg3: memref<1x128xf32, #tpu.memory_space<vmem>>, %arg4: memref<32x128xf32, #tpu.memory_space<vmem>>) attributes {dimension_semantics = [#tpu.dimension_semantics<parallel>], iteration_bounds = array<i64: 1>, scalar_prefetch = 0 : i64, scratch_operands = 0 : i64, tpu.core_type = #tpu.core_type<tc>, window_params = [{transform_indices = @transform_0, window_bounds = array<i64: 32, 6272>}, {pipeline_mode = #tpu.pipeline_mode<synchronous>, transform_indices = @transform_1, window_bounds = array<i64: 6272, 128>}, {pipeline_mode = #tpu.pipeline_mode<synchronous>, transform_indices = @transform_2, window_bounds = array<i64: 1, 128>}, {transform_indices = @transform_3, window_bounds = array<i64: 32, 128>}]} {
    %c0 = arith.constant 0 : index
    %c0_0 = arith.constant 0 : index
    %0 = vector.load %arg1[%c0, %c0_0] : memref<32x6272xf32, #tpu.memory_space<vmem>>, vector<32x6272xf32>
    %c0_1 = arith.constant 0 : index
    %c0_2 = arith.constant 0 : index
    %1 = vector.load %arg2[%c0_1, %c0_2] : memref<6272x128xf32, #tpu.memory_space<vmem>>, vector<6272x128xf32>
    %cst = arith.constant dense<0.000000e+00> : vector<32x128xf32>
    %2 = tpu.matmul %0, %1, %cst {dimension_numbers = #tpu.dot_dimension_numbers<[1], [0], [0], [1], [0, 0, 1, 1], [], []>} : vector<32x6272xf32>, vector<6272x128xf32>, vector<32x128xf32> -> vector<32x128xf32>
    %c0_3 = arith.constant 0 : index
    %c0_4 = arith.constant 0 : index
    %3 = vector.load %arg3[%c0_3, %c0_4] : memref<1x128xf32, #tpu.memory_space<vmem>>, vector<1x128xf32>
    %4 = vector.broadcast %3 : vector<1x128xf32> to vector<32x128xf32>
    %5 = arith.addf %2, %4 : vector<32x128xf32>
    %c0_5 = arith.constant 0 : index
    %c0_6 = arith.constant 0 : index
    %6 = vector.load %arg4[%c0_5, %c0_6] : memref<32x128xf32, #tpu.memory_space<vmem>>, vector<32x128xf32>
    tpu.vector_store %arg4[%c0_5, %c0_6], %5 {strides = array<i32>} : memref<32x128xf32, #tpu.memory_space<vmem>>, vector<32x128xf32>,
    return
  }
  func.func @transform_0(%arg0: i32) -> (i32, i32) {
    %c0_i32 = arith.constant 0 : i32
    %c0_i32_0 = arith.constant 0 : i32
    return %arg0, %c0_i32 : i32, i32
  }
  func.func @transform_1(%arg0: i32) -> (i32, i32) {
    %c0_i32 = arith.constant 0 : i32
    %c0_i32_0 = arith.constant 0 : i32
    %c0_i32_1 = arith.constant 0 : i32
    return %c0_i32, %c0_i32_0 : i32, i32
  }
  func.func @transform_2(%arg0: i32) -> (i32, i32) {
    %c0_i32 = arith.constant 0 : i32
    %c0_i32_0 = arith.constant 0 : i32
    %c0_i32_1 = arith.constant 0 : i32
    return %c0_i32, %c0_i32_0 : i32, i32
  }
  func.func @transform_3(%arg0: i32) -> (i32, i32) {
    %c0_i32 = arith.constant 0 : i32
    %c0_i32_0 = arith.constant 0 : i32
    return %arg0, %c0_i32 : i32, i32
  }
}

</mosaic_0001>

<llo_original>
// kernel: _lambda_.3
$region0: #{_lambda_.3}
  #allocation0 [shape = 'u32[]', space=smem, size = 0x4, offset = 0x4, fixed_abs, tag = 'smem constant byte address 0x4 - core index']
  #allocation1 [shape = 'u32[144,128]{1,0:T(1,128)}', space=vmem, size = 0x12000, scoped, tag = 'internal scratch']
  %s0 = inlined_call_operand.vmem [shape: f32[4,512,128], index: 0, kind: input, shape index: {}]
  %s1 = inlined_call_operand.vmem [shape: f32[128,128], index: 1, kind: input, shape index: {}]
  %s2 = inlined_call_operand.vmem [shape: f32[1,128], index: 2, kind: input, shape index: {}]
  %s3 = inlined_call_operand.vmem [shape: f32[512,128], index: 3, kind: output, shape index: {}]
  %s4 = sld [smem:[#allocation0]]
  $region83: #{_lambda_.3} parent=0
    _
  %s6 = ssub.s32 1, %s4
  %s7 = scalar_select 0, %s6, %s4
  $region1: #{_lambda_.3} parent=0
    #allocation2 [shape = 'u8[1048576]{0}', space=vmem, size = 0x100000, scoped, tag = 'input window, operand 0']
    loop: start=0, step=1, limit=4
    $region2: #{_lambda_.3} parent=1 // loop_pre_header
      _
    $region3: #{_lambda_.3} parent=1 // loop_header
      %s9 = sphi 0, %s13
      %p10 = scmp.ge.s32.totalorder %s9, 4
      %s19 = sphi 0, %s21
      %s22 = sphi 0, %s19
      %s23 = sphi 0, %s22
      %s39 = sphi 0, %s23
      %s43 = sphi 0, %s43
      %s45 = sphi 0, %s43
      %s46 = sphi 0, %s45
      %s60 = sphi 0, %s46
      %s64 = sphi 0, %s64
      %s66 = sphi 0, %s64
      %s67 = sphi 0, %s66
      %s81 = sphi 0, %s67
      %s87 = sphi 0, %s89
      %s90 = sphi 0, %s87
      %s91 = sphi 0, %s90
      %s107 = sphi 0, %s91
    $region4: #{_lambda_.3} parent=1 // loop_header_branch
      %12 = sbr.rel (%p10) target = $region8
    $region5: #{_lambda_.3} parent=1 // loop_body
      %s14 = ssub.s32 %s9, 1
      %s15 = ssub.s32 %s9, 2
      %s16 = sadd.s32 %s9, 1
      %s17 = ssub.s32 %s9, %s16
      %p18 = scmp.eq.s32.totalorder %s17, 0
      %s20 = sadd.s32 %s19, 1
      %s21 = scalar_select %p18, %s19, %s20
      %p24 = pneg %p18
      %p25 = scmp.eq.s32.totalorder %s9, 1
      %p26 = por %p24, %p25
      %p27 = scmp.ne.s32.totalorder %s19, %s22
      %p28 = scmp.eq.s32.totalorder %s9, 0
      %p29 = por %p27, %p28
      %p30 = scmp.ne.s32.totalorder %s19, %s22
      %p31 = scmp.eq.s32.totalorder %s14, 1
      %p32 = por %p30, %p31
      %p33 = scmp.ne.s32.totalorder %s22, %s23
      %p34 = scmp.eq.s32.totalorder %s14, 0
      %p35 = por %p33, %p34
      %p36 = scmp.ne.s32.totalorder %s22, %s23
      %p37 = scmp.eq.s32.totalorder %s15, 1
      %p38 = por %p36, %p37
      %p40 = scmp.ne.s32.totalorder %s23, %s39
      %p41 = scmp.eq.s32.totalorder %s15, 0
      %p42 = por %p40, %p41
      %s44 = sadd.s32 %s43, 1
      %p47 = scmp.eq.s32.totalorder %s9, 1
      %p48 = scmp.ne.s32.totalorder %s43, %s45
      %p49 = scmp.eq.s32.totalorder %s9, 0
      %p50 = por %p48, %p49
      %p51 = scmp.ne.s32.totalorder %s43, %s45
      %p52 = scmp.eq.s32.totalorder %s14, 1
      %p53 = por %p51, %p52
      %p54 = scmp.ne.s32.totalorder %s45, %s46
      %p55 = scmp.eq.s32.totalorder %s14, 0
      %p56 = por %p54, %p55
      %p57 = scmp.ne.s32.totalorder %s45, %s46
      %p58 = scmp.eq.s32.totalorder %s15, 1
      %p59 = por %p57, %p58
      %p61 = scmp.ne.s32.totalorder %s46, %s60
      %p62 = scmp.eq.s32.totalorder %s15, 0
      %p63 = por %p61, %p62
      %s65 = sadd.s32 %s64, 1
      %p68 = scmp.eq.s32.totalorder %s9, 1
      %p69 = scmp.ne.s32.totalorder %s64, %s66
      %p70 = scmp.eq.s32.totalorder %s9, 0
      %p71 = por %p69, %p70
      %p72 = scmp.ne.s32.totalorder %s64, %s66
      %p73 = scmp.eq.s32.totalorder %s14, 1
      %p74 = por %p72, %p73
      %p75 = scmp.ne.s32.totalorder %s66, %s67
      %p76 = scmp.eq.s32.totalorder %s14, 0
      %p77 = por %p75, %p76
      %p78 = scmp.ne.s32.totalorder %s66, %s67
      %p79 = scmp.eq.s32.totalorder %s15, 1
      %p80 = por %p78, %p79
      %p82 = scmp.ne.s32.totalorder %s67, %s81
      %p83 = scmp.eq.s32.totalorder %s15, 0
      %p84 = por %p82, %p83
      %s85 = ssub.s32 %s9, %s16
      %p86 = scmp.eq.s32.totalorder %s85, 0
      %s88 = sadd.s32 %s87, 1
      %s89 = scalar_select %p86, %s87, %s88
      %p92 = pneg %p86
      %p93 = scmp.eq.s32.totalorder %s9, 1
      %p94 = por %p92, %p93
      %p95 = scmp.ne.s32.totalorder %s87, %s90
      %p96 = scmp.eq.s32.totalorder %s9, 0
      %p97 = por %p95, %p96
      %p98 = scmp.ne.s32.totalorder %s87, %s90
      %p99 = scmp.eq.s32.totalorder %s14, 1
      %p100 = por %p98, %p99
      %p101 = scmp.ne.s32.totalorder %s90, %s91
      %p102 = scmp.eq.s32.totalorder %s14, 0
      %p103 = por %p101, %p102
      %p104 = scmp.ne.s32.totalorder %s90, %s91
      %p105 = scmp.eq.s32.totalorder %s15, 1
      %p106 = por %p104, %p105
      %p108 = scmp.ne.s32.totalorder %s91, %s107
      %p109 = scmp.eq.s32.totalorder %s15, 0
      %p110 = por %p108, %p109
      %p111 = scmp.le.s32.totalorder 1, %s9
      %p112 = scmp.lt.s32.totalorder %s9, 3
      %p113 = pnand %p111, %p112
      %p114 = pneg %p113
      // Predicated region
      $region9: #{_lambda_.3} parent=5 // pred_check
        _
      $region10: #{_lambda_.3} parent=5 // pred_check_branch
        %116 = sbr.rel (%p113) target = $region12
      $region11: #{_lambda_.3} parent=5 // pred_region
        %s117 = ssub.s32 %s9, 1
        // Predicated region
        $region13: #{_lambda_.3} parent=11 // pred_check
          %p118 = pneg %p56
        $region14: #{_lambda_.3} parent=11 // pred_check_branch
          %120 = sbr.rel (%p118) target = $region16
        $region15: #{_lambda_.3} parent=11 // pred_region
          _
        $region16: #{_lambda_.3} parent=11 // pred_fallthru
          _
        // Predicated region
        $region17: #{_lambda_.3} parent=11 // pred_check
          %p121 = pneg %p77
        $region18: #{_lambda_.3} parent=11 // pred_check_branch
          %123 = sbr.rel (%p121) target = $region20
        $region19: #{_lambda_.3} parent=11 // pred_region
          _
        $region20: #{_lambda_.3} parent=11 // pred_fallthru
          _
      $region12: #{_lambda_.3} parent=5 // pred_fallthru
        _
      %p124 = scmp.lt.s32.totalorder %s9, 2
      // Predicated region
      $region21: #{_lambda_.3} parent=5 // pred_check
        %p125 = pneg %p124
      $region22: #{_lambda_.3} parent=5 // pred_check_branch
        %127 = sbr.rel (%p125) target = $region24
      $region23: #{_lambda_.3} parent=5 // pred_region
        // Predicated region
        $region25: #{_lambda_.3} parent=23 // pred_check
          %p128 = pneg %p29
        $region26: #{_lambda_.3} parent=23 // pred_check_branch
          %130 = sbr.rel (%p128) target = $region28
        $region27: #{_lambda_.3} parent=23 // pred_region
          %s131 = sand.u32 %s19, 1
          %s132 = sand.u32 %s19, 1
          %s133 = smul.addr %s132, 1024
          %s134 = scalar_lea.vmem [#allocation2], %s133
          %s135 = smul.u32 32, %s9
          %s136 = smul.addr %s135, 8
          %s137 = scalar_lea.vmem %s0, %s136
          // Predicated region
          $region29: #{_lambda_.3} parent=27 // pred_check
            _
          $region30: #{_lambda_.3} parent=27 // pred_check_branch
            %139 = sbr.rel (0) target = $region32
          $region31: #{_lambda_.3} parent=27 // pred_region
            // Predicated region
            $region33: #{_lambda_.3} parent=31 // pred_check
              _
            $region34: #{_lambda_.3} parent=31 // pred_check_branch
              %141 = sbr.rel (0) target = $region36
            $region35: #{_lambda_.3} parent=31 // pred_region
              // Predicated region
              $region48: #{_lambda_.3} parent=35 // pred_check
                _
              $region49: #{_lambda_.3} parent=35 // pred_check_branch
                %411 = sbr.rel (0) target = $region51
              $region50: #{_lambda_.3} parent=35 // pred_region
                loop: start=0, step=1, limit=1
                $region52: #{_lambda_.3} parent=50 // loop_pre_header
                  _
                $region53: #{_lambda_.3} parent=50 // loop_header
                  %s413 = sphi 0, %s417
                  %p414 = scmp.ge.s32.totalorder %s413, 1
                  %s418 = sphi %s137, %s137
                  %s419 = sphi %s134, %s134
                $region54: #{_lambda_.3} parent=50 // loop_header_branch
                  %416 = sbr.rel (%p414) target = $region58
                $region55: #{_lambda_.3} parent=50 // loop_body
                  %v420 = vld [vmem:[%s418] sm:$0xff]
                  %421 = vst [vmem:[%s419] sm:$0xff] %v420
                  %v422 = vld [vmem:[%s418 + $0x8] sm:$0xff]
                  %423 = vst [vmem:[%s419 + $0x8] sm:$0xff] %v422
                  %v424 = vld [vmem:[%s418 + $0x10] sm:$0xff]
                  %425 = vst [vmem:[%s419 + $0x10] sm:$0xff] %v424
                  %v426 = vld [vmem:[%s418 + $0x18] sm:$0xff]
                  %427 = vst [vmem:[%s419 + $0x18] sm:$0xff] %v426
                  %v428 = vld [vmem:[%s418 + $0x20] sm:$0xff]
                  %429 = vst [vmem:[%s419 + $0x20] sm:$0xff] %v428
                  %v430 = vld [vmem:[%s418 + $0x28] sm:$0xff]
                  %431 = vst [vmem:[%s419 + $0x28] sm:$0xff] %v430
                  %v432 = vld [vmem:[%s418 + $0x30] sm:$0xff]
                  %433 = vst [vmem:[%s419 + $0x30] sm:$0xff] %v432
                  %v434 = vld [vmem:[%s418 + $0x38] sm:$0xff]
                  %435 = vst [vmem:[%s419 + $0x38] sm:$0xff] %v434
                  %v436 = vld [vmem:[%s418 + $0x40] sm:$0xff]
                  %437 = vst [vmem:[%s419 + $0x40] sm:$0xff] %v436
                  %v438 = vld [vmem:[%s418 + $0x48] sm:$0xff]
                  %439 = vst [vmem:[%s419 + $0x48] sm:$0xff] %v438
                  %v440 = vld [vmem:[%s418 + $0x50] sm:$0xff]
                  %441 = vst [vmem:[%s419 + $0x50] sm:$0xff] %v440
                  %v442 = vld [vmem:[%s418 + $0x58] sm:$0xff]
                  %443 = vst [vmem:[%s419 + $0x58] sm:$0xff] %v442
                  %v444 = vld [vmem:[%s418 + $0x60] sm:$0xff]
                  %445 = vst [vmem:[%s419 + $0x60] sm:$0xff] %v444
                  %v446 = vld [vmem:[%s418 + $0x68] sm:$0xff]
                  %447 = vst [vmem:[%s419 + $0x68] sm:$0xff] %v446
                  %v448 = vld [vmem:[%s418 + $0x70] sm:$0xff]
                  %449 = vst [vmem:[%s419 + $0x70] sm:$0xff] %v448
                  %v450 = vld [vmem:[%s418 + $0x78] sm:$0xff]
                  %451 = vst [vmem:[%s419 + $0x78] sm:$0xff] %v450
                  %v452 = vld [vmem:[%s418 + $0x80] sm:$0xff]
                  %453 = vst [vmem:[%s419 + $0x80] sm:$0xff] %v452
                  %v454 = vld [vmem:[%s418 + $0x88] sm:$0xff]
                  %455 = vst [vmem:[%s419 + $0x88] sm:$0xff] %v454
                  %v456 = vld [vmem:[%s418 + $0x90] sm:$0xff]
                  %457 = vst [vmem:[%s419 + $0x90] sm:$0xff] %v456
                  %v458 = vld [vmem:[%s418 + $0x98] sm:$0xff]
                  %459 = vst [vmem:[%s419 + $0x98] sm:$0xff] %v458
                  %v460 = vld [vmem:[%s418 + $0xa0] sm:$0xff]
                  %461 = vst [vmem:[%s419 + $0xa0] sm:$0xff] %v460
                  %v462 = vld [vmem:[%s418 + $0xa8] sm:$0xff]
                  %463 = vst [vmem:[%s419 + $0xa8] sm:$0xff] %v462
                  %v464 = vld [vmem:[%s418 + $0xb0] sm:$0xff]
                  %465 = vst [vmem:[%s419 + $0xb0] sm:$0xff] %v464
                  %v466 = vld [vmem:[%s418 + $0xb8] sm:$0xff]
                  %467 = vst [vmem:[%s419 + $0xb8] sm:$0xff] %v466
                  %v468 = vld [vmem:[%s418 + $0xc0] sm:$0xff]
                  %469 = vst [vmem:[%s419 + $0xc0] sm:$0xff] %v468
                  %v470 = vld [vmem:[%s418 + $0xc8] sm:$0xff]
                  %471 = vst [vmem:[%s419 + $0xc8] sm:$0xff] %v470
                  %v472 = vld [vmem:[%s418 + $0xd0] sm:$0xff]
                  %473 = vst [vmem:[%s419 + $0xd0] sm:$0xff] %v472
                  %v474 = vld [vmem:[%s418 + $0xd8] sm:$0xff]
                  %475 = vst [vmem:[%s419 + $0xd8] sm:$0xff] %v474
                  %v476 = vld [vmem:[%s418 + $0xe0] sm:$0xff]
                  %477 = vst [vmem:[%s419 + $0xe0] sm:$0xff] %v476
                  %v478 = vld [vmem:[%s418 + $0xe8] sm:$0xff]
                  %479 = vst [vmem:[%s419 + $0xe8] sm:$0xff] %v478
                  %v480 = vld [vmem:[%s418 + $0xf0] sm:$0xff]
                  %481 = vst [vmem:[%s419 + $0xf0] sm:$0xff] %v480
                  %v482 = vld [vmem:[%s418 + $0xf8] sm:$0xff]
                  %483 = vst [vmem:[%s419 + $0xf8] sm:$0xff] %v482
                  %v484 = vld [vmem:[%s418 + $0x200] sm:$0xff]
                  %485 = vst [vmem:[%s419 + $0x100] sm:$0xff] %v484
                  %v486 = vld [vmem:[%s418 + $0x208] sm:$0xff]
                  %487 = vst [vmem:[%s419 + $0x108] sm:$0xff] %v486
                  %v488 = vld [vmem:[%s418 + $0x210] sm:$0xff]
                  %489 = vst [vmem:[%s419 + $0x110] sm:$0xff] %v488
                  %v490 = vld [vmem:[%s418 + $0x218] sm:$0xff]
                  %491 = vst [vmem:[%s419 + $0x118] sm:$0xff] %v490
                  %v492 = vld [vmem:[%s418 + $0x220] sm:$0xff]
                  %493 = vst [vmem:[%s419 + $0x120] sm:$0xff] %v492
                  %v494 = vld [vmem:[%s418 + $0x228] sm:$0xff]
                  %495 = vst [vmem:[%s419 + $0x128] sm:$0xff] %v494
                  %v496 = vld [vmem:[%s418 + $0x230] sm:$0xff]
                  %497 = vst [vmem:[%s419 + $0x130] sm:$0xff] %v496
                  %v498 = vld [vmem:[%s418 + $0x238] sm:$0xff]
                  %499 = vst [vmem:[%s419 + $0x138] sm:$0xff] %v498
                  %v500 = vld [vmem:[%s418 + $0x240] sm:$0xff]
                  %501 = vst [vmem:[%s419 + $0x140] sm:$0xff] %v500
                  %v502 = vld [vmem:[%s418 + $0x248] sm:$0xff]
                  %503 = vst [vmem:[%s419 + $0x148] sm:$0xff] %v502
                  %v504 = vld [vmem:[%s418 + $0x250] sm:$0xff]
                  %505 = vst [vmem:[%s419 + $0x150] sm:$0xff] %v504
                  %v506 = vld [vmem:[%s418 + $0x258] sm:$0xff]
                  %507 = vst [vmem:[%s419 + $0x158] sm:$0xff] %v506
                  %v508 = vld [vmem:[%s418 + $0x260] sm:$0xff]
                  %509 = vst [vmem:[%s419 + $0x160] sm:$0xff] %v508
                  %v510 = vld [vmem:[%s418 + $0x268] sm:$0xff]
                  %511 = vst [vmem:[%s419 + $0x168] sm:$0xff] %v510
                  %v512 = vld [vmem:[%s418 + $0x270] sm:$0xff]
                  %513 = vst [vmem:[%s419 + $0x170] sm:$0xff] %v512
                  %v514 = vld [vmem:[%s418 + $0x278] sm:$0xff]
                  %515 = vst [vmem:[%s419 + $0x178] sm:$0xff] %v514
                  %v516 = vld [vmem:[%s418 + $0x280] sm:$0xff]
                  %517 = vst [vmem:[%s419 + $0x180] sm:$0xff] %v516
                  %v518 = vld [vmem:[%s418 + $0x288] sm:$0xff]
                  %519 = vst [vmem:[%s419 + $0x188] sm:$0xff] %v518
                  %v520 = vld [vmem:[%s418 + $0x290] sm:$0xff]
                  %521 = vst [vmem:[%s419 + $0x190] sm:$0xff] %v520
                  %v522 = vld [vmem:[%s418 + $0x298] sm:$0xff]
                  %523 = vst [vmem:[%s419 + $0x198] sm:$0xff] %v522
                  %v524 = vld [vmem:[%s418 + $0x2a0] sm:$0xff]
                  %525 = vst [vmem:[%s419 + $0x1a0] sm:$0xff] %v524
                  %v526 = vld [vmem:[%s418 + $0x2a8] sm:$0xff]
                  %527 = vst [vmem:[%s419 + $0x1a8] sm:$0xff] %v526
                  %v528 = vld [vmem:[%s418 + $0x2b0] sm:$0xff]
                  %529 = vst [vmem:[%s419 + $0x1b0] sm:$0xff] %v528
                  %v530 = vld [vmem:[%s418 + $0x2b8] sm:$0xff]
                  %531 = vst [vmem:[%s419 + $0x1b8] sm:$0xff] %v530
                  %v532 = vld [vmem:[%s418 + $0x2c0] sm:$0xff]
                  %533 = vst [vmem:[%s419 + $0x1c0] sm:$0xff] %v532
                  %v534 = vld [vmem:[%s418 + $0x2c8] sm:$0xff]
                  %535 = vst [vmem:[%s419 + $0x1c8] sm:$0xff] %v534
                  %v536 = vld [vmem:[%s418 + $0x2d0] sm:$0xff]
                  %537 = vst [vmem:[%s419 + $0x1d0] sm:$0xff] %v536
                  %v538 = vld [vmem:[%s418 + $0x2d8] sm:$0xff]
                  %539 = vst [vmem:[%s419 + $0x1d8] sm:$0xff] %v538
                  %v540 = vld [vmem:[%s418 + $0x2e0] sm:$0xff]
                  %541 = vst [vmem:[%s419 + $0x1e0] sm:$0xff] %v540
                  %v542 = vld [vmem:[%s418 + $0x2e8] sm:$0xff]
                  %543 = vst [vmem:[%s419 + $0x1e8] sm:$0xff] %v542
                  %v544 = vld [vmem:[%s418 + $0x2f0] sm:$0xff]
                  %545 = vst [vmem:[%s419 + $0x1f0] sm:$0xff] %v544
                  %v546 = vld [vmem:[%s418 + $0x2f8] sm:$0xff]
                  %547 = vst [vmem:[%s419 + $0x1f8] sm:$0xff] %v546
                  %v548 = vld [vmem:[%s418 + $0x400] sm:$0xff]
                  %549 = vst [vmem:[%s419 + $0x200] sm:$0xff] %v548
                  %v550 = vld [vmem:[%s418 + $0x408] sm:$0xff]
                  %551 = vst [vmem:[%s419 + $0x208] sm:$0xff] %v550
                  %v552 = vld [vmem:[%s418 + $0x410] sm:$0xff]
                  %553 = vst [vmem:[%s419 + $0x210] sm:$0xff] %v552
                  %v554 = vld [vmem:[%s418 + $0x418] sm:$0xff]
                  %555 = vst [vmem:[%s419 + $0x218] sm:$0xff] %v554
                  %v556 = vld [vmem:[%s418 + $0x420] sm:$0xff]
                  %557 = vst [vmem:[%s419 + $0x220] sm:$0xff] %v556
                  %v558 = vld [vmem:[%s418 + $0x428] sm:$0xff]
                  %559 = vst [vmem:[%s419 + $0x228] sm:$0xff] %v558
                  %v560 = vld [vmem:[%s418 + $0x430] sm:$0xff]
                  %561 = vst [vmem:[%s419 + $0x230] sm:$0xff] %v560
                  %v562 = vld [vmem:[%s418 + $0x438] sm:$0xff]
                  %563 = vst [vmem:[%s419 + $0x238] sm:$0xff] %v562
                  %v564 = vld [vmem:[%s418 + $0x440] sm:$0xff]
                  %565 = vst [vmem:[%s419 + $0x240] sm:$0xff] %v564
                  %v566 = vld [vmem:[%s418 + $0x448] sm:$0xff]
                  %567 = vst [vmem:[%s419 + $0x248] sm:$0xff] %v566
                  %v568 = vld [vmem:[%s418 + $0x450] sm:$0xff]
                  %569 = vst [vmem:[%s419 + $0x250] sm:$0xff] %v568
                  %v570 = vld [vmem:[%s418 + $0x458] sm:$0xff]
                  %571 = vst [vmem:[%s419 + $0x258] sm:$0xff] %v570
                  %v572 = vld [vmem:[%s418 + $0x460] sm:$0xff]
                  %573 = vst [vmem:[%s419 + $0x260] sm:$0xff] %v572
                  %v574 = vld [vmem:[%s418 + $0x468] sm:$0xff]
                  %575 = vst [vmem:[%s419 + $0x268] sm:$0xff] %v574
                  %v576 = vld [vmem:[%s418 + $0x470] sm:$0xff]
                  %577 = vst [vmem:[%s419 + $0x270] sm:$0xff] %v576
                  %v578 = vld [vmem:[%s418 + $0x478] sm:$0xff]
                  %579 = vst [vmem:[%s419 + $0x278] sm:$0xff] %v578
                  %v580 = vld [vmem:[%s418 + $0x480] sm:$0xff]
                  %581 = vst [vmem:[%s419 + $0x280] sm:$0xff] %v580
                  %v582 = vld [vmem:[%s418 + $0x488] sm:$0xff]
                  %583 = vst [vmem:[%s419 + $0x288] sm:$0xff] %v582
                  %v584 = vld [vmem:[%s418 + $0x490] sm:$0xff]
                  %585 = vst [vmem:[%s419 + $0x290] sm:$0xff] %v584
                  %v586 = vld [vmem:[%s418 + $0x498] sm:$0xff]
                  %587 = vst [vmem:[%s419 + $0x298] sm:$0xff] %v586
                  %v588 = vld [vmem:[%s418 + $0x4a0] sm:$0xff]
                  %589 = vst [vmem:[%s419 + $0x2a0] sm:$0xff] %v588
                  %v590 = vld [vmem:[%s418 + $0x4a8] sm:$0xff]
                  %591 = vst [vmem:[%s419 + $0x2a8] sm:$0xff] %v590
                  %v592 = vld [vmem:[%s418 + $0x4b0] sm:$0xff]
                  %593 = vst [vmem:[%s419 + $0x2b0] sm:$0xff] %v592
                  %v594 = vld [vmem:[%s418 + $0x4b8] sm:$0xff]
                  %595 = vst [vmem:[%s419 + $0x2b8] sm:$0xff] %v594
                  %v596 = vld [vmem:[%s418 + $0x4c0] sm:$0xff]
                  %597 = vst [vmem:[%s419 + $0x2c0] sm:$0xff] %v596
                  %v598 = vld [vmem:[%s418 + $0x4c8] sm:$0xff]
                  %599 = vst [vmem:[%s419 + $0x2c8] sm:$0xff] %v598
                  %v600 = vld [vmem:[%s418 + $0x4d0] sm:$0xff]
                  %601 = vst [vmem:[%s419 + $0x2d0] sm:$0xff] %v600
                  %v602 = vld [vmem:[%s418 + $0x4d8] sm:$0xff]
                  %603 = vst [vmem:[%s419 + $0x2d8] sm:$0xff] %v602
                  %v604 = vld [vmem:[%s418 + $0x4e0] sm:$0xff]
                  %605 = vst [vmem:[%s419 + $0x2e0] sm:$0xff] %v604
                  %v606 = vld [vmem:[%s418 + $0x4e8] sm:$0xff]
                  %607 = vst [vmem:[%s419 + $0x2e8] sm:$0xff] %v606
                  %v608 = vld [vmem:[%s418 + $0x4f0] sm:$0xff]
                  %609 = vst [vmem:[%s419 + $0x2f0] sm:$0xff] %v608
                  %v610 = vld [vmem:[%s418 + $0x4f8] sm:$0xff]
                  %611 = vst [vmem:[%s419 + $0x2f8] sm:$0xff] %v610
                  %v612 = vld [vmem:[%s418 + $0x600] sm:$0xff]
                  %613 = vst [vmem:[%s419 + $0x300] sm:$0xff] %v612
                  %v614 = vld [vmem:[%s418 + $0x608] sm:$0xff]
                  %615 = vst [vmem:[%s419 + $0x308] sm:$0xff] %v614
                  %v616 = vld [vmem:[%s418 + $0x610] sm:$0xff]
                  %617 = vst [vmem:[%s419 + $0x310] sm:$0xff] %v616
                  %v618 = vld [vmem:[%s418 + $0x618] sm:$0xff]
                  %619 = vst [vmem:[%s419 + $0x318] sm:$0xff] %v618
                  %v620 = vld [vmem:[%s418 + $0x620] sm:$0xff]
                  %621 = vst [vmem:[%s419 + $0x320] sm:$0xff] %v620
                  %v622 = vld [vmem:[%s418 + $0x628] sm:$0xff]
                  %623 = vst [vmem:[%s419 + $0x328] sm:$0xff] %v622
                  %v624 = vld [vmem:[%s418 + $0x630] sm:$0xff]
                  %625 = vst [vmem:[%s419 + $0x330] sm:$0xff] %v624
                  %v626 = vld [vmem:[%s418 + $0x638] sm:$0xff]
                  %627 = vst [vmem:[%s419 + $0x338] sm:$0xff] %v626
                  %v628 = vld [vmem:[%s418 + $0x640] sm:$0xff]
                  %629 = vst [vmem:[%s419 + $0x340] sm:$0xff] %v628
                  %v630 = vld [vmem:[%s418 + $0x648] sm:$0xff]
                  %631 = vst [vmem:[%s419 + $0x348] sm:$0xff] %v630
                  %v632 = vld [vmem:[%s418 + $0x650] sm:$0xff]
                  %633 = vst [vmem:[%s419 + $0x350] sm:$0xff] %v632
                  %v634 = vld [vmem:[%s418 + $0x658] sm:$0xff]
                  %635 = vst [vmem:[%s419 + $0x358] sm:$0xff] %v634
                  %v636 = vld [vmem:[%s418 + $0x660] sm:$0xff]
                  %637 = vst [vmem:[%s419 + $0x360] sm:$0xff] %v636
                  %v638 = vld [vmem:[%s418 + $0x668] sm:$0xff]
                  %639 = vst [vmem:[%s419 + $0x368] sm:$0xff] %v638
                  %v640 = vld [vmem:[%s418 + $0x670] sm:$0xff]
                  %641 = vst [vmem:[%s419 + $0x370] sm:$0xff] %v640
                  %v642 = vld [vmem:[%s418 + $0x678] sm:$0xff]
                  %643 = vst [vmem:[%s419 + $0x378] sm:$0xff] %v642
                  %v644 = vld [vmem:[%s418 + $0x680] sm:$0xff]
                  %645 = vst [vmem:[%s419 + $0x380] sm:$0xff] %v644
                  %v646 = vld [vmem:[%s418 + $0x688] sm:$0xff]
                  %647 = vst [vmem:[%s419 + $0x388] sm:$0xff] %v646
                  %v648 = vld [vmem:[%s418 + $0x690] sm:$0xff]
                  %649 = vst [vmem:[%s419 + $0x390] sm:$0xff] %v648
                  %v650 = vld [vmem:[%s418 + $0x698] sm:$0xff]
                  %651 = vst [vmem:[%s419 + $0x398] sm:$0xff] %v650
                  %v652 = vld [vmem:[%s418 + $0x6a0] sm:$0xff]
                  %653 = vst [vmem:[%s419 + $0x3a0] sm:$0xff] %v652
                  %v654 = vld [vmem:[%s418 + $0x6a8] sm:$0xff]
                  %655 = vst [vmem:[%s419 + $0x3a8] sm:$0xff] %v654
                  %v656 = vld [vmem:[%s418 + $0x6b0] sm:$0xff]
                  %657 = vst [vmem:[%s419 + $0x3b0] sm:$0xff] %v656
                  %v658 = vld [vmem:[%s418 + $0x6b8] sm:$0xff]
                  %659 = vst [vmem:[%s419 + $0x3b8] sm:$0xff] %v658
                  %v660 = vld [vmem:[%s418 + $0x6c0] sm:$0xff]
                  %661 = vst [vmem:[%s419 + $0x3c0] sm:$0xff] %v660
                  %v662 = vld [vmem:[%s418 + $0x6c8] sm:$0xff]
                  %663 = vst [vmem:[%s419 + $0x3c8] sm:$0xff] %v662
                  %v664 = vld [vmem:[%s418 + $0x6d0] sm:$0xff]
                  %665 = vst [vmem:[%s419 + $0x3d0] sm:$0xff] %v664
                  %v666 = vld [vmem:[%s418 + $0x6d8] sm:$0xff]
                  %667 = vst [vmem:[%s419 + $0x3d8] sm:$0xff] %v666
                  %v668 = vld [vmem:[%s418 + $0x6e0] sm:$0xff]
                  %669 = vst [vmem:[%s419 + $0x3e0] sm:$0xff] %v668
                  %v670 = vld [vmem:[%s418 + $0x6e8] sm:$0xff]
                  %671 = vst [vmem:[%s419 + $0x3e8] sm:$0xff] %v670
                  %v672 = vld [vmem:[%s418 + $0x6f0] sm:$0xff]
                  %673 = vst [vmem:[%s419 + $0x3f0] sm:$0xff] %v672
                  %v674 = vld [vmem:[%s418 + $0x6f8] sm:$0xff]
                  %675 = vst [vmem:[%s419 + $0x3f8] sm:$0xff] %v674
                $region56: #{_lambda_.3} parent=50 // loop_footer
                  %s417 = sadd.s32 1, %s413
                $region57: #{_lambda_.3} parent=50 // loop_footer_branch
                  %412 = sbr.rel target = $region53
                $region58: #{_lambda_.3} parent=50 // loop_exit
                  _
              $region51: #{_lambda_.3} parent=35 // pred_fallthru
                _
              // Predicated region
              $region59: #{_lambda_.3} parent=35 // pred_check
                _
              $region60: #{_lambda_.3} parent=35 // pred_check_branch
                %677 = sbr.rel target = $region62
              $region61: #{_lambda_.3} parent=35 // pred_region
                _
              $region62: #{_lambda_.3} parent=35 // pred_fallthru
                _
            $region36: #{_lambda_.3} parent=31 // pred_fallthru
              _
            // Predicated region
            $region37: #{_lambda_.3} parent=31 // pred_check
              _
            $region38: #{_lambda_.3} parent=31 // pred_check_branch
              %143 = sbr.rel target = $region40
            $region39: #{_lambda_.3} parent=31 // pred_region
              %s145 = ssub.s32 256, 1
              loop: start=0, step=1, limit=1
              $region41: #{_lambda_.3} parent=39 // loop_pre_header
                _
              $region42: #{_lambda_.3} parent=39 // loop_header
                %s147 = sphi 0, %s151
                %p148 = scmp.ge.s32.totalorder %s147, 1
                %s152 = sphi %s137, %s137
                %s153 = sphi %s134, %s134
              $region43: #{_lambda_.3} parent=39 // loop_header_branch
                %150 = sbr.rel (%p148) target = $region47
              $region44: #{_lambda_.3} parent=39 // loop_body
                %v154 = vld [vmem:[%s152] sm:%s145]
                %155 = vst [vmem:[%s153] sm:%s145] %v154
                %v156 = vld [vmem:[%s152 + $0x8] sm:%s145]
                %157 = vst [vmem:[%s153 + $0x8] sm:%s145] %v156
                %v158 = vld [vmem:[%s152 + $0x10] sm:%s145]
                %159 = vst [vmem:[%s153 + $0x10] sm:%s145] %v158
                %v160 = vld [vmem:[%s152 + $0x18] sm:%s145]
                %161 = vst [vmem:[%s153 + $0x18] sm:%s145] %v160
                %v162 = vld [vmem:[%s152 + $0x20] sm:%s145]
                %163 = vst [vmem:[%s153 + $0x20] sm:%s145] %v162
                %v164 = vld [vmem:[%s152 + $0x28] sm:%s145]
                %165 = vst [vmem:[%s153 + $0x28] sm:%s145] %v164
                %v166 = vld [vmem:[%s152 + $0x30] sm:%s145]
                %167 = vst [vmem:[%s153 + $0x30] sm:%s145] %v166
                %v168 = vld [vmem:[%s152 + $0x38] sm:%s145]
                %169 = vst [vmem:[%s153 + $0x38] sm:%s145] %v168
                %v170 = vld [vmem:[%s152 + $0x40] sm:%s145]
                %171 = vst [vmem:[%s153 + $0x40] sm:%s145] %v170
                %v172 = vld [vmem:[%s152 + $0x48] sm:%s145]
                %173 = vst [vmem:[%s153 + $0x48] sm:%s145] %v172
                %v174 = vld [vmem:[%s152 + $0x50] sm:%s145]
                %175 = vst [vmem:[%s153 + $0x50] sm:%s145] %v174
                %v176 = vld [vmem:[%s152 + $0x58] sm:%s145]
                %177 = vst [vmem:[%s153 + $0x58] sm:%s145] %v176
                %v178 = vld [vmem:[%s152 + $0x60] sm:%s145]
                %179 = vst [vmem:[%s153 + $0x60] sm:%s145] %v178
                %v180 = vld [vmem:[%s152 + $0x68] sm:%s145]
                %181 = vst [vmem:[%s153 + $0x68] sm:%s145] %v180
                %v182 = vld [vmem:[%s152 + $0x70] sm:%s145]
                %183 = vst [vmem:[%s153 + $0x70] sm:%s145] %v182
                %v184 = vld [vmem:[%s152 + $0x78] sm:%s145]
                %185 = vst [vmem:[%s153 + $0x78] sm:%s145] %v184
                %v186 = vld [vmem:[%s152 + $0x80] sm:%s145]
                %187 = vst [vmem:[%s153 + $0x80] sm:%s145] %v186
                %v188 = vld [vmem:[%s152 + $0x88] sm:%s145]
                %189 = vst [vmem:[%s153 + $0x88] sm:%s145] %v188
                %v190 = vld [vmem:[%s152 + $0x90] sm:%s145]
                %191 = vst [vmem:[%s153 + $0x90] sm:%s145] %v190
                %v192 = vld [vmem:[%s152 + $0x98] sm:%s145]
                %193 = vst [vmem:[%s153 + $0x98] sm:%s145] %v192
                %v194 = vld [vmem:[%s152 + $0xa0] sm:%s145]
                %195 = vst [vmem:[%s153 + $0xa0] sm:%s145] %v194
                %v196 = vld [vmem:[%s152 + $0xa8] sm:%s145]
                %197 = vst [vmem:[%s153 + $0xa8] sm:%s145] %v196
                %v198 = vld [vmem:[%s152 + $0xb0] sm:%s145]
                %199 = vst [vmem:[%s153 + $0xb0] sm:%s145] %v198
                %v200 = vld [vmem:[%s152 + $0xb8] sm:%s145]
                %201 = vst [vmem:[%s153 + $0xb8] sm:%s145] %v200
                %v202 = vld [vmem:[%s152 + $0xc0] sm:%s145]
                %203 = vst [vmem:[%s153 + $0xc0] sm:%s145] %v202
                %v204 = vld [vmem:[%s152 + $0xc8] sm:%s145]
                %205 = vst [vmem:[%s153 + $0xc8] sm:%s145] %v204
                %v206 = vld [vmem:[%s152 + $0xd0] sm:%s145]
                %207 = vst [vmem:[%s153 + $0xd0] sm:%s145] %v206
                %v208 = vld [vmem:[%s152 + $0xd8] sm:%s145]
                %209 = vst [vmem:[%s153 + $0xd8] sm:%s145] %v208
                %v210 = vld [vmem:[%s152 + $0xe0] sm:%s145]
                %211 = vst [vmem:[%s153 + $0xe0] sm:%s145] %v210
                %v212 = vld [vmem:[%s152 + $0xe8] sm:%s145]
                %213 = vst [vmem:[%s153 + $0xe8] sm:%s145] %v212
                %v214 = vld [vmem:[%s152 + $0xf0] sm:%s145]
                %215 = vst [vmem:[%s153 + $0xf0] sm:%s145] %v214
                %v216 = vld [vmem:[%s152 + $0xf8] sm:%s145]
                %217 = vst [vmem:[%s153 + $0xf8] sm:%s145] %v216
                %v218 = vld [vmem:[%s152 + $0x200] sm:%s145]
                %219 = vst [vmem:[%s153 + $0x100] sm:%s145] %v218
                %v220 = vld [vmem:[%s152 + $0x208] sm:%s145]
                %221 = vst [vmem:[%s153 + $0x108] sm:%s145] %v220
                %v222 = vld [vmem:[%s152 + $0x210] sm:%s145]
                %223 = vst [vmem:[%s153 + $0x110] sm:%s145] %v222
                %v224 = vld [vmem:[%s152 + $0x218] sm:%s145]
                %225 = vst [vmem:[%s153 + $0x118] sm:%s145] %v224
                %v226 = vld [vmem:[%s152 + $0x220] sm:%s145]
                %227 = vst [vmem:[%s153 + $0x120] sm:%s145] %v226
                %v228 = vld [vmem:[%s152 + $0x228] sm:%s145]
                %229 = vst [vmem:[%s153 + $0x128] sm:%s145] %v228
                %v230 = vld [vmem:[%s152 + $0x230] sm:%s145]
                %231 = vst [vmem:[%s153 + $0x130] sm:%s145] %v230
                %v232 = vld [vmem:[%s152 + $0x238] sm:%s145]
                %233 = vst [vmem:[%s153 + $0x138] sm:%s145] %v232
                %v234 = vld [vmem:[%s152 + $0x240] sm:%s145]
                %235 = vst [vmem:[%s153 + $0x140] sm:%s145] %v234
                %v236 = vld [vmem:[%s152 + $0x248] sm:%s145]
                %237 = vst [vmem:[%s153 + $0x148] sm:%s145] %v236
                %v238 = vld [vmem:[%s152 + $0x250] sm:%s145]
                %239 = vst [vmem:[%s153 + $0x150] sm:%s145] %v238
                %v240 = vld [vmem:[%s152 + $0x258] sm:%s145]
                %241 = vst [vmem:[%s153 + $0x158] sm:%s145] %v240
                %v242 = vld [vmem:[%s152 + $0x260] sm:%s145]
                %243 = vst [vmem:[%s153 + $0x160] sm:%s145] %v242
                %v244 = vld [vmem:[%s152 + $0x268] sm:%s145]
                %245 = vst [vmem:[%s153 + $0x168] sm:%s145] %v244
                %v246 = vld [vmem:[%s152 + $0x270] sm:%s145]
                %247 = vst [vmem:[%s153 + $0x170] sm:%s145] %v246
                %v248 = vld [vmem:[%s152 + $0x278] sm:%s145]
                %249 = vst [vmem:[%s153 + $0x178] sm:%s145] %v248
                %v250 = vld [vmem:[%s152 + $0x280] sm:%s145]
                %251 = vst [vmem:[%s153 + $0x180] sm:%s145] %v250
                %v252 = vld [vmem:[%s152 + $0x288] sm:%s145]
                %253 = vst [vmem:[%s153 + $0x188] sm:%s145] %v252
                %v254 = vld [vmem:[%s152 + $0x290] sm:%s145]
                %255 = vst [vmem:[%s153 + $0x190] sm:%s145] %v254
                %v256 = vld [vmem:[%s152 + $0x298] sm:%s145]
                %257 = vst [vmem:[%s153 + $0x198] sm:%s145] %v256
                %v258 = vld [vmem:[%s152 + $0x2a0] sm:%s145]
                %259 = vst [vmem:[%s153 + $0x1a0] sm:%s145] %v258
                %v260 = vld [vmem:[%s152 + $0x2a8] sm:%s145]
                %261 = vst [vmem:[%s153 + $0x1a8] sm:%s145] %v260
                %v262 = vld [vmem:[%s152 + $0x2b0] sm:%s145]
                %263 = vst [vmem:[%s153 + $0x1b0] sm:%s145] %v262
                %v264 = vld [vmem:[%s152 + $0x2b8] sm:%s145]
                %265 = vst [vmem:[%s153 + $0x1b8] sm:%s145] %v264
                %v266 = vld [vmem:[%s152 + $0x2c0] sm:%s145]
                %267 = vst [vmem:[%s153 + $0x1c0] sm:%s145] %v266
                %v268 = vld [vmem:[%s152 + $0x2c8] sm:%s145]
                %269 = vst [vmem:[%s153 + $0x1c8] sm:%s145] %v268
                %v270 = vld [vmem:[%s152 + $0x2d0] sm:%s145]
                %271 = vst [vmem:[%s153 + $0x1d0] sm:%s145] %v270
                %v272 = vld [vmem:[%s152 + $0x2d8] sm:%s145]
                %273 = vst [vmem:[%s153 + $0x1d8] sm:%s145] %v272
                %v274 = vld [vmem:[%s152 + $0x2e0] sm:%s145]
                %275 = vst [vmem:[%s153 + $0x1e0] sm:%s145] %v274
                %v276 = vld [vmem:[%s152 + $0x2e8] sm:%s145]
                %277 = vst [vmem:[%s153 + $0x1e8] sm:%s145] %v276
                %v278 = vld [vmem:[%s152 + $0x2f0] sm:%s145]
                %279 = vst [vmem:[%s153 + $0x1f0] sm:%s145] %v278
                %v280 = vld [vmem:[%s152 + $0x2f8] sm:%s145]
                %281 = vst [vmem:[%s153 + $0x1f8] sm:%s145] %v280
                %v282 = vld [vmem:[%s152 + $0x400] sm:%s145]
                %283 = vst [vmem:[%s153 + $0x200] sm:%s145] %v282
                %v284 = vld [vmem:[%s152 + $0x408] sm:%s145]
                %285 = vst [vmem:[%s153 + $0x208] sm:%s145] %v284
                %v286 = vld [vmem:[%s152 + $0x410] sm:%s145]
                %287 = vst [vmem:[%s153 + $0x210] sm:%s145] %v286
                %v288 = vld [vmem:[%s152 + $0x418] sm:%s145]
                %289 = vst [vmem:[%s153 + $0x218] sm:%s145] %v288
                %v290 = vld [vmem:[%s152 + $0x420] sm:%s145]
                %291 = vst [vmem:[%s153 + $0x220] sm:%s145] %v290
                %v292 = vld [vmem:[%s152 + $0x428] sm:%s145]
                %293 = vst [vmem:[%s153 + $0x228] sm:%s145] %v292
                %v294 = vld [vmem:[%s152 + $0x430] sm:%s145]
                %295 = vst [vmem:[%s153 + $0x230] sm:%s145] %v294
                %v296 = vld [vmem:[%s152 + $0x438] sm:%s145]
                %297 = vst [vmem:[%s153 + $0x238] sm:%s145] %v296
                %v298 = vld [vmem:[%s152 + $0x440] sm:%s145]
                %299 = vst [vmem:[%s153 + $0x240] sm:%s145] %v298
                %v300 = vld [vmem:[%s152 + $0x448] sm:%s145]
                %301 = vst [vmem:[%s153 + $0x248] sm:%s145] %v300
                %v302 = vld [vmem:[%s152 + $0x450] sm:%s145]
                %303 = vst [vmem:[%s153 + $0x250] sm:%s145] %v302
                %v304 = vld [vmem:[%s152 + $0x458] sm:%s145]
                %305 = vst [vmem:[%s153 + $0x258] sm:%s145] %v304
                %v306 = vld [vmem:[%s152 + $0x460] sm:%s145]
                %307 = vst [vmem:[%s153 + $0x260] sm:%s145] %v306
                %v308 = vld [vmem:[%s152 + $0x468] sm:%s145]
                %309 = vst [vmem:[%s153 + $0x268] sm:%s145] %v308
                %v310 = vld [vmem:[%s152 + $0x470] sm:%s145]
                %311 = vst [vmem:[%s153 + $0x270] sm:%s145] %v310
                %v312 = vld [vmem:[%s152 + $0x478] sm:%s145]
                %313 = vst [vmem:[%s153 + $0x278] sm:%s145] %v312
                %v314 = vld [vmem:[%s152 + $0x480] sm:%s145]
                %315 = vst [vmem:[%s153 + $0x280] sm:%s145] %v314
                %v316 = vld [vmem:[%s152 + $0x488] sm:%s145]
                %317 = vst [vmem:[%s153 + $0x288] sm:%s145] %v316
                %v318 = vld [vmem:[%s152 + $0x490] sm:%s145]
                %319 = vst [vmem:[%s153 + $0x290] sm:%s145] %v318
                %v320 = vld [vmem:[%s152 + $0x498] sm:%s145]
                %321 = vst [vmem:[%s153 + $0x298] sm:%s145] %v320
                %v322 = vld [vmem:[%s152 + $0x4a0] sm:%s145]
                %323 = vst [vmem:[%s153 + $0x2a0] sm:%s145] %v322
                %v324 = vld [vmem:[%s152 + $0x4a8] sm:%s145]
                %325 = vst [vmem:[%s153 + $0x2a8] sm:%s145] %v324
                %v326 = vld [vmem:[%s152 + $0x4b0] sm:%s145]
                %327 = vst [vmem:[%s153 + $0x2b0] sm:%s145] %v326
                %v328 = vld [vmem:[%s152 + $0x4b8] sm:%s145]
                %329 = vst [vmem:[%s153 + $0x2b8] sm:%s145] %v328
                %v330 = vld [vmem:[%s152 + $0x4c0] sm:%s145]
                %331 = vst [vmem:[%s153 + $0x2c0] sm:%s145] %v330
                %v332 = vld [vmem:[%s152 + $0x4c8] sm:%s145]
                %333 = vst [vmem:[%s153 + $0x2c8] sm:%s145] %v332
                %v334 = vld [vmem:[%s152 + $0x4d0] sm:%s145]
                %335 = vst [vmem:[%s153 + $0x2d0] sm:%s145] %v334
                %v336 = vld [vmem:[%s152 + $0x4d8] sm:%s145]
                %337 = vst [vmem:[%s153 + $0x2d8] sm:%s145] %v336
                %v338 = vld [vmem:[%s152 + $0x4e0] sm:%s145]
                %339 = vst [vmem:[%s153 + $0x2e0] sm:%s145] %v338
                %v340 = vld [vmem:[%s152 + $0x4e8] sm:%s145]
                %341 = vst [vmem:[%s153 + $0x2e8] sm:%s145] %v340
                %v342 = vld [vmem:[%s152 + $0x4f0] sm:%s145]
                %343 = vst [vmem:[%s153 + $0x2f0] sm:%s145] %v342
                %v344 = vld [vmem:[%s152 + $0x4f8] sm:%s145]
                %345 = vst [vmem:[%s153 + $0x2f8] sm:%s145] %v344
                %v346 = vld [vmem:[%s152 + $0x600] sm:%s145]
                %347 = vst [vmem:[%s153 + $0x300] sm:%s145] %v346
                %v348 = vld [vmem:[%s152 + $0x608] sm:%s145]
                %349 = vst [vmem:[%s153 + $0x308] sm:%s145] %v348
                %v350 = vld [vmem:[%s152 + $0x610] sm:%s145]
                %351 = vst [vmem:[%s153 + $0x310] sm:%s145] %v350
                %v352 = vld [vmem:[%s152 + $0x618] sm:%s145]
                %353 = vst [vmem:[%s153 + $0x318] sm:%s145] %v352
                %v354 = vld [vmem:[%s152 + $0x620] sm:%s145]
                %355 = vst [vmem:[%s153 + $0x320] sm:%s145] %v354
                %v356 = vld [vmem:[%s152 + $0x628] sm:%s145]
                %357 = vst [vmem:[%s153 + $0x328] sm:%s145] %v356
                %v358 = vld [vmem:[%s152 + $0x630] sm:%s145]
                %359 = vst [vmem:[%s153 + $0x330] sm:%s145] %v358
                %v360 = vld [vmem:[%s152 + $0x638] sm:%s145]
                %361 = vst [vmem:[%s153 + $0x338] sm:%s145] %v360
                %v362 = vld [vmem:[%s152 + $0x640] sm:%s145]
                %363 = vst [vmem:[%s153 + $0x340] sm:%s145] %v362
                %v364 = vld [vmem:[%s152 + $0x648] sm:%s145]
                %365 = vst [vmem:[%s153 + $0x348] sm:%s145] %v364
                %v366 = vld [vmem:[%s152 + $0x650] sm:%s145]
                %367 = vst [vmem:[%s153 + $0x350] sm:%s145] %v366
                %v368 = vld [vmem:[%s152 + $0x658] sm:%s145]
                %369 = vst [vmem:[%s153 + $0x358] sm:%s145] %v368
                %v370 = vld [vmem:[%s152 + $0x660] sm:%s145]
                %371 = vst [vmem:[%s153 + $0x360] sm:%s145] %v370
                %v372 = vld [vmem:[%s152 + $0x668] sm:%s145]
                %373 = vst [vmem:[%s153 + $0x368] sm:%s145] %v372
                %v374 = vld [vmem:[%s152 + $0x670] sm:%s145]
                %375 = vst [vmem:[%s153 + $0x370] sm:%s145] %v374
                %v376 = vld [vmem:[%s152 + $0x678] sm:%s145]
                %377 = vst [vmem:[%s153 + $0x378] sm:%s145] %v376
                %v378 = vld [vmem:[%s152 + $0x680] sm:%s145]
                %379 = vst [vmem:[%s153 + $0x380] sm:%s145] %v378
                %v380 = vld [vmem:[%s152 + $0x688] sm:%s145]
                %381 = vst [vmem:[%s153 + $0x388] sm:%s145] %v380
                %v382 = vld [vmem:[%s152 + $0x690] sm:%s145]
                %383 = vst [vmem:[%s153 + $0x390] sm:%s145] %v382
                %v384 = vld [vmem:[%s152 + $0x698] sm:%s145]
                %385 = vst [vmem:[%s153 + $0x398] sm:%s145] %v384
                %v386 = vld [vmem:[%s152 + $0x6a0] sm:%s145]
                %387 = vst [vmem:[%s153 + $0x3a0] sm:%s145] %v386
                %v388 = vld [vmem:[%s152 + $0x6a8] sm:%s145]
                %389 = vst [vmem:[%s153 + $0x3a8] sm:%s145] %v388
                %v390 = vld [vmem:[%s152 + $0x6b0] sm:%s145]
                %391 = vst [vmem:[%s153 + $0x3b0] sm:%s145] %v390
                %v392 = vld [vmem:[%s152 + $0x6b8] sm:%s145]
                %393 = vst [vmem:[%s153 + $0x3b8] sm:%s145] %v392
                %v394 = vld [vmem:[%s152 + $0x6c0] sm:%s145]
                %395 = vst [vmem:[%s153 + $0x3c0] sm:%s145] %v394
                %v396 = vld [vmem:[%s152 + $0x6c8] sm:%s145]
                %397 = vst [vmem:[%s153 + $0x3c8] sm:%s145] %v396
                %v398 = vld [vmem:[%s152 + $0x6d0] sm:%s145]
                %399 = vst [vmem:[%s153 + $0x3d0] sm:%s145] %v398
                %v400 = vld [vmem:[%s152 + $0x6d8] sm:%s145]
                %401 = vst [vmem:[%s153 + $0x3d8] sm:%s145] %v400
                %v402 = vld [vmem:[%s152 + $0x6e0] sm:%s145]
                %403 = vst [vmem:[%s153 + $0x3e0] sm:%s145] %v402
                %v404 = vld [vmem:[%s152 + $0x6e8] sm:%s145]
                %405 = vst [vmem:[%s153 + $0x3e8] sm:%s145] %v404
                %v406 = vld [vmem:[%s152 + $0x6f0] sm:%s145]
                %407 = vst [vmem:[%s153 + $0x3f0] sm:%s145] %v406
                %v408 = vld [vmem:[%s152 + $0x6f8] sm:%s145]
                %409 = vst [vmem:[%s153 + $0x3f8] sm:%s145] %v408
              $region45: #{_lambda_.3} parent=39 // loop_footer
                %s151 = sadd.s32 1, %s147
              $region46: #{_lambda_.3} parent=39 // loop_footer_branch
                %146 = sbr.rel target = $region42
              $region47: #{_lambda_.3} parent=39 // loop_exit
                _
            $region40: #{_lambda_.3} parent=31 // pred_fallthru
              _
          $region32: #{_lambda_.3} parent=27 // pred_fallthru
            _
          %678 = vnop
        $region28: #{_lambda_.3} parent=23 // pred_fallthru
          _
      $region24: #{_lambda_.3} parent=5 // pred_fallthru
        _
      %p679 = scmp.le.s32.totalorder 1, %s9
      %p680 = scmp.lt.s32.totalorder %s9, 3
      %p681 = pnand %p679, %p680
      %p682 = pneg %p681
      // Predicated region
      $region63: #{_lambda_.3} parent=5 // pred_check
        _
      $region64: #{_lambda_.3} parent=5 // pred_check_branch
        %684 = sbr.rel (%p681) target = $region66
      $region65: #{_lambda_.3} parent=5 // pred_region
        %s685 = ssub.s32 %s9, 1
        %s686 = sand.u32 %s22, 1
        %s687 = sand.u32 %s22, 1
        %s688 = smul.addr %s687, 1024
        %s689 = scalar_lea.vmem [#allocation2], %s688
        // Predicated region
        $region67: #{_lambda_.3} parent=65 // pred_check
          %p690 = pneg %p35
        $region68: #{_lambda_.3} parent=65 // pred_check_branch
          %692 = sbr.rel (%p690) target = $region70
        $region69: #{_lambda_.3} parent=65 // pred_region
          _
        $region70: #{_lambda_.3} parent=65 // pred_fallthru
          _
        %s693 = sand.u32 %s22, 1
        %s694 = sand.u32 %s22, 1
        %s695 = smul.addr %s694, 1024
        %s696 = scalar_lea.vmem [#allocation2], %s695
        %p697 = pneg %p35
        %p698 = pneg %p32
        %p699 = pneg %p56
        %p700 = pneg %p53
        %p701 = pneg %p77
        %p702 = pneg %p74
        %p703 = pneg %p103
        %p704 = pneg %p100
        %s705 = smul.u32 32, %s14
        %p706 = scmp.lt.s32.totalorder %s705, 63
        %s707 = scalar_select %p706, %s705, 63
        %s708 = smul.addr %s707, 8
        %s709 = scalar_lea.vmem %s3, %s708
        %s710 = smul.u32 32, %s14
        %s711 = smul.u32 32, %s14
        %p712 = scmp.lt.s32.totalorder %s711, 63
        %s713 = scalar_select %p712, %s711, 63
        %s714 = smul.addr %s713, 8
        %s715 = scalar_lea.vmem %s3, %s714
        %s716 = smul.u32 32, %s14
        %v717 = vld [vmem:[%s689] sm:$0xff]
        %v718 = vld [vmem:[%s689 + $0x8] sm:$0xff]
        %v719 = vld [vmem:[%s689 + $0x10] sm:$0xff]
        %v720 = vld [vmem:[%s689 + $0x18] sm:$0xff]
        %v721 = vld [vmem:[%s689 + $0x20] sm:$0xff]
        %v722 = vld [vmem:[%s689 + $0x28] sm:$0xff]
        %v723 = vld [vmem:[%s689 + $0x30] sm:$0xff]
        %v724 = vld [vmem:[%s689 + $0x38] sm:$0xff]
        %v725 = vld [vmem:[%s689 + $0x40] sm:$0xff]
        %v726 = vld [vmem:[%s689 + $0x48] sm:$0xff]
        %v727 = vld [vmem:[%s689 + $0x50] sm:$0xff]
        %v728 = vld [vmem:[%s689 + $0x58] sm:$0xff]
        %v729 = vld [vmem:[%s689 + $0x60] sm:$0xff]
        %v730 = vld [vmem:[%s689 + $0x68] sm:$0xff]
        %v731 = vld [vmem:[%s689 + $0x70] sm:$0xff]
        %v732 = vld [vmem:[%s689 + $0x78] sm:$0xff]
        %v733 = vld [vmem:[%s689 + $0x80] sm:$0xff]
        %v734 = vld [vmem:[%s689 + $0x88] sm:$0xff]
        %v735 = vld [vmem:[%s689 + $0x90] sm:$0xff]
        %v736 = vld [vmem:[%s689 + $0x98] sm:$0xff]
        %v737 = vld [vmem:[%s689 + $0xa0] sm:$0xff]
        %v738 = vld [vmem:[%s689 + $0xa8] sm:$0xff]
        %v739 = vld [vmem:[%s689 + $0xb0] sm:$0xff]
        %v740 = vld [vmem:[%s689 + $0xb8] sm:$0xff]
        %v741 = vld [vmem:[%s689 + $0xc0] sm:$0xff]
        %v742 = vld [vmem:[%s689 + $0xc8] sm:$0xff]
        %v743 = vld [vmem:[%s689 + $0xd0] sm:$0xff]
        %v744 = vld [vmem:[%s689 + $0xd8] sm:$0xff]
        %v745 = vld [vmem:[%s689 + $0xe0] sm:$0xff]
        %v746 = vld [vmem:[%s689 + $0xe8] sm:$0xff]
        %v747 = vld [vmem:[%s689 + $0xf0] sm:$0xff]
        %v748 = vld [vmem:[%s689 + $0xf8] sm:$0xff]
        %v749 = vld [vmem:[%s689 + $0x100] sm:$0xff]
        %v750 = vld [vmem:[%s689 + $0x108] sm:$0xff]
        %v751 = vld [vmem:[%s689 + $0x110] sm:$0xff]
        %v752 = vld [vmem:[%s689 + $0x118] sm:$0xff]
        %v753 = vld [vmem:[%s689 + $0x120] sm:$0xff]
        %v754 = vld [vmem:[%s689 + $0x128] sm:$0xff]
        %v755 = vld [vmem:[%s689 + $0x130] sm:$0xff]
        %v756 = vld [vmem:[%s689 + $0x138] sm:$0xff]
        %v757 = vld [vmem:[%s689 + $0x140] sm:$0xff]
        %v758 = vld [vmem:[%s689 + $0x148] sm:$0xff]
        %v759 = vld [vmem:[%s689 + $0x150] sm:$0xff]
        %v760 = vld [vmem:[%s689 + $0x158] sm:$0xff]
        %v761 = vld [vmem:[%s689 + $0x160] sm:$0xff]
        %v762 = vld [vmem:[%s689 + $0x168] sm:$0xff]
        %v763 = vld [vmem:[%s689 + $0x170] sm:$0xff]
        %v764 = vld [vmem:[%s689 + $0x178] sm:$0xff]
        %v765 = vld [vmem:[%s689 + $0x180] sm:$0xff]
        %v766 = vld [vmem:[%s689 + $0x188] sm:$0xff]
        %v767 = vld [vmem:[%s689 + $0x190] sm:$0xff]
        %v768 = vld [vmem:[%s689 + $0x198] sm:$0xff]
        %v769 = vld [vmem:[%s689 + $0x1a0] sm:$0xff]
        %v770 = vld [vmem:[%s689 + $0x1a8] sm:$0xff]
        %v771 = vld [vmem:[%s689 + $0x1b0] sm:$0xff]
        %v772 = vld [vmem:[%s689 + $0x1b8] sm:$0xff]
        %v773 = vld [vmem:[%s689 + $0x1c0] sm:$0xff]
        %v774 = vld [vmem:[%s689 + $0x1c8] sm:$0xff]
        %v775 = vld [vmem:[%s689 + $0x1d0] sm:$0xff]
        %v776 = vld [vmem:[%s689 + $0x1d8] sm:$0xff]
        %v777 = vld [vmem:[%s689 + $0x1e0] sm:$0xff]
        %v778 = vld [vmem:[%s689 + $0x1e8] sm:$0xff]
        %v779 = vld [vmem:[%s689 + $0x1f0] sm:$0xff]
        %v780 = vld [vmem:[%s689 + $0x1f8] sm:$0xff]
        %v781 = vld [vmem:[%s689 + $0x200] sm:$0xff]
        %v782 = vld [vmem:[%s689 + $0x208] sm:$0xff]
        %v783 = vld [vmem:[%s689 + $0x210] sm:$0xff]
        %v784 = vld [vmem:[%s689 + $0x218] sm:$0xff]
        %v785 = vld [vmem:[%s689 + $0x220] sm:$0xff]
        %v786 = vld [vmem:[%s689 + $0x228] sm:$0xff]
        %v787 = vld [vmem:[%s689 + $0x230] sm:$0xff]
        %v788 = vld [vmem:[%s689 + $0x238] sm:$0xff]
        %v789 = vld [vmem:[%s689 + $0x240] sm:$0xff]
        %v790 = vld [vmem:[%s689 + $0x248] sm:$0xff]
        %v791 = vld [vmem:[%s689 + $0x250] sm:$0xff]
        %v792 = vld [vmem:[%s689 + $0x258] sm:$0xff]
        %v793 = vld [vmem:[%s689 + $0x260] sm:$0xff]
        %v794 = vld [vmem:[%s689 + $0x268] sm:$0xff]
        %v795 = vld [vmem:[%s689 + $0x270] sm:$0xff]
        %v796 = vld [vmem:[%s689 + $0x278] sm:$0xff]
        %v797 = vld [vmem:[%s689 + $0x280] sm:$0xff]
        %v798 = vld [vmem:[%s689 + $0x288] sm:$0xff]
        %v799 = vld [vmem:[%s689 + $0x290] sm:$0xff]
        %v800 = vld [vmem:[%s689 + $0x298] sm:$0xff]
        %v801 = vld [vmem:[%s689 + $0x2a0] sm:$0xff]
        %v802 = vld [vmem:[%s689 + $0x2a8] sm:$0xff]
        %v803 = vld [vmem:[%s689 + $0x2b0] sm:$0xff]
        %v804 = vld [vmem:[%s689 + $0x2b8] sm:$0xff]
        %v805 = vld [vmem:[%s689 + $0x2c0] sm:$0xff]
        %v806 = vld [vmem:[%s689 + $0x2c8] sm:$0xff]
        %v807 = vld [vmem:[%s689 + $0x2d0] sm:$0xff]
        %v808 = vld [vmem:[%s689 + $0x2d8] sm:$0xff]
        %v809 = vld [vmem:[%s689 + $0x2e0] sm:$0xff]
        %v810 = vld [vmem:[%s689 + $0x2e8] sm:$0xff]
        %v811 = vld [vmem:[%s689 + $0x2f0] sm:$0xff]
        %v812 = vld [vmem:[%s689 + $0x2f8] sm:$0xff]
        %v813 = vld [vmem:[%s689 + $0x300] sm:$0xff]
        %v814 = vld [vmem:[%s689 + $0x308] sm:$0xff]
        %v815 = vld [vmem:[%s689 + $0x310] sm:$0xff]
        %v816 = vld [vmem:[%s689 + $0x318] sm:$0xff]
        %v817 = vld [vmem:[%s689 + $0x320] sm:$0xff]
        %v818 = vld [vmem:[%s689 + $0x328] sm:$0xff]
        %v819 = vld [vmem:[%s689 + $0x330] sm:$0xff]
        %v820 = vld [vmem:[%s689 + $0x338] sm:$0xff]
        %v821 = vld [vmem:[%s689 + $0x340] sm:$0xff]
        %v822 = vld [vmem:[%s689 + $0x348] sm:$0xff]
        %v823 = vld [vmem:[%s689 + $0x350] sm:$0xff]
        %v824 = vld [vmem:[%s689 + $0x358] sm:$0xff]
        %v825 = vld [vmem:[%s689 + $0x360] sm:$0xff]
        %v826 = vld [vmem:[%s689 + $0x368] sm:$0xff]
        %v827 = vld [vmem:[%s689 + $0x370] sm:$0xff]
        %v828 = vld [vmem:[%s689 + $0x378] sm:$0xff]
        %v829 = vld [vmem:[%s689 + $0x380] sm:$0xff]
        %v830 = vld [vmem:[%s689 + $0x388] sm:$0xff]
        %v831 = vld [vmem:[%s689 + $0x390] sm:$0xff]
        %v832 = vld [vmem:[%s689 + $0x398] sm:$0xff]
        %v833 = vld [vmem:[%s689 + $0x3a0] sm:$0xff]
        %v834 = vld [vmem:[%s689 + $0x3a8] sm:$0xff]
        %v835 = vld [vmem:[%s689 + $0x3b0] sm:$0xff]
        %v836 = vld [vmem:[%s689 + $0x3b8] sm:$0xff]
        %v837 = vld [vmem:[%s689 + $0x3c0] sm:$0xff]
        %v838 = vld [vmem:[%s689 + $0x3c8] sm:$0xff]
        %v839 = vld [vmem:[%s689 + $0x3d0] sm:$0xff]
        %v840 = vld [vmem:[%s689 + $0x3d8] sm:$0xff]
        %v841 = vld [vmem:[%s689 + $0x3e0] sm:$0xff]
        %v842 = vld [vmem:[%s689 + $0x3e8] sm:$0xff]
        %v843 = vld [vmem:[%s689 + $0x3f0] sm:$0xff]
        %v844 = vld [vmem:[%s689 + $0x3f8] sm:$0xff]
        %v845 = vld [vmem:[%s1] sm:$0xff]
        %v846 = vld [vmem:[%s1 + $0x8] sm:$0xff]
        %v847 = vld [vmem:[%s1 + $0x10] sm:$0xff]
        %v848 = vld [vmem:[%s1 + $0x18] sm:$0xff]
        %v849 = vld [vmem:[%s1 + $0x20] sm:$0xff]
        %v850 = vld [vmem:[%s1 + $0x28] sm:$0xff]
        %v851 = vld [vmem:[%s1 + $0x30] sm:$0xff]
        %v852 = vld [vmem:[%s1 + $0x38] sm:$0xff]
        %v853 = vld [vmem:[%s1 + $0x40] sm:$0xff]
        %v854 = vld [vmem:[%s1 + $0x48] sm:$0xff]
        %v855 = vld [vmem:[%s1 + $0x50] sm:$0xff]
        %v856 = vld [vmem:[%s1 + $0x58] sm:$0xff]
        %v857 = vld [vmem:[%s1 + $0x60] sm:$0xff]
        %v858 = vld [vmem:[%s1 + $0x68] sm:$0xff]
        %v859 = vld [vmem:[%s1 + $0x70] sm:$0xff]
        %v860 = vld [vmem:[%s1 + $0x78] sm:$0xff]
        %861 = vmatprep.subr.mxu0 0.0
        %862 = vmatpush1.msra.mxu0 %v860
        %863 = vmatprep.subr.mxu0 0.0
        %864 = vmatpush1.msra.mxu0 %v859
        %865 = vmatprep.subr.mxu0 0.0
        %866 = vmatpush1.msra.mxu0 %v858
        %867 = vmatprep.subr.mxu0 0.0
        %868 = vmatpush1.msra.mxu0 %v857
        %869 = vmatprep.subr.mxu0 0.0
        %870 = vmatpush1.msra.mxu0 %v856
        %871 = vmatprep.subr.mxu0 0.0
        %872 = vmatpush1.msra.mxu0 %v855
        %873 = vmatprep.subr.mxu0 0.0
        %874 = vmatpush1.msra.mxu0 %v854
        %875 = vmatprep.subr.mxu0 0.0
        %876 = vmatpush1.msra.mxu0 %v853
        %877 = vmatprep.subr.mxu0 0.0
        %878 = vmatpush1.msra.mxu0 %v852
        %879 = vmatprep.subr.mxu0 0.0
        %880 = vmatpush1.msra.mxu0 %v851
        %881 = vmatprep.subr.mxu0 0.0
        %882 = vmatpush1.msra.mxu0 %v850
        %883 = vmatprep.subr.mxu0 0.0
        %884 = vmatpush1.msra.mxu0 %v849
        %885 = vmatprep.subr.mxu0 0.0
        %886 = vmatpush1.msra.mxu0 %v848
        %887 = vmatprep.subr.mxu0 0.0
        %888 = vmatpush1.msra.mxu0 %v847
        %889 = vmatprep.subr.mxu0 0.0
        %890 = vmatpush1.msra.mxu0 %v846
        %891 = vmatprep.subr.mxu0 0.0
        %892 = vmatpush1.msra.mxu0 %v845
        %893 = vmatprep.subr.mxu0 0.0
        %894 = vmatpush2.msra.mxu0 0.0
        %895 = vmatprep.subr.mxu0 0.0
        %896 = vmatpush2.msra.mxu0 0.0
        %897 = vmatprep.subr.mxu0 0.0
        %898 = vmatpush2.msra.mxu0 0.0
        %899 = vmatprep.subr.mxu0 0.0
        %900 = vmatpush2.msra.mxu0 0.0
        %901 = vmatprep.subr.mxu0 0.0
        %902 = vmatpush2.msra.mxu0 0.0
        %903 = vmatprep.subr.mxu0 0.0
        %904 = vmatpush2.msra.mxu0 0.0
        %905 = vmatprep.subr.mxu0 0.0
        %906 = vmatpush2.msra.mxu0 0.0
        %907 = vmatprep.subr.mxu0 0.0
        %908 = vmatpush2.msra.mxu0 0.0
        %909 = vmatprep.subr.mxu0 0.0
        %910 = vmatpush2.msra.mxu0 0.0
        %911 = vmatprep.subr.mxu0 0.0
        %912 = vmatpush2.msra.mxu0 0.0
        %913 = vmatprep.subr.mxu0 0.0
        %914 = vmatpush2.msra.mxu0 0.0
        %915 = vmatprep.subr.mxu0 0.0
        %916 = vmatpush2.msra.mxu0 0.0
        %917 = vmatprep.subr.mxu0 0.0
        %918 = vmatpush2.msra.mxu0 0.0
        %919 = vmatprep.subr.mxu0 0.0
        %920 = vmatpush2.msra.mxu0 0.0
        %921 = vmatprep.subr.mxu0 0.0
        %922 = vmatpush2.msra.mxu0 0.0
        %923 = vmatprep.subr.mxu0 0.0
        %924 = vmatpush2.msra.mxu0 0.0
        %925 = vmatprep.mubr.f32.mxu0 0.0
        %926 = vmatmul.mubr.f32.gmra.mxu0 %v717
        %v927 = vpop.f32.mrf.mxu0
        %v928 = vadd.f32 0.0, %v927
        %v929 = vpop.f32.mrf.mxu0
        %930 = vmatprep.mubr.f32.mxu0 0.0
        %931 = vmatmul.mubr.f32.gmra.mxu0 %v718
        %v932 = vpop.f32.mrf.mxu0
        %v933 = vadd.f32 0.0, %v932
        %v934 = vpop.f32.mrf.mxu0
        %935 = vmatprep.mubr.f32.mxu0 0.0
        %936 = vmatmul.mubr.f32.gmra.mxu0 %v719
        %v937 = vpop.f32.mrf.mxu0
        %v938 = vadd.f32 0.0, %v937
        %v939 = vpop.f32.mrf.mxu0
        %940 = vmatprep.mubr.f32.mxu0 0.0
        %941 = vmatmul.mubr.f32.gmra.mxu0 %v720
        %v942 = vpop.f32.mrf.mxu0
        %v943 = vadd.f32 0.0, %v942
        %v944 = vpop.f32.mrf.mxu0
        %945 = vmatprep.mubr.f32.mxu0 0.0
        %946 = vmatmul.mubr.f32.gmra.mxu0 %v721
        %v947 = vpop.f32.mrf.mxu0
        %v948 = vadd.f32 0.0, %v947
        %v949 = vpop.f32.mrf.mxu0
        %950 = vmatprep.mubr.f32.mxu0 0.0
        %951 = vmatmul.mubr.f32.gmra.mxu0 %v722
        %v952 = vpop.f32.mrf.mxu0
        %v953 = vadd.f32 0.0, %v952
        %v954 = vpop.f32.mrf.mxu0
        %955 = vmatprep.mubr.f32.mxu0 0.0
        %956 = vmatmul.mubr.f32.gmra.mxu0 %v723
        %v957 = vpop.f32.mrf.mxu0
        %v958 = vadd.f32 0.0, %v957
        %v959 = vpop.f32.mrf.mxu0
        %960 = vmatprep.mubr.f32.mxu0 0.0
        %961 = vmatmul.mubr.f32.gmra.mxu0 %v724
        %v962 = vpop.f32.mrf.mxu0
        %v963 = vadd.f32 0.0, %v962
        %v964 = vpop.f32.mrf.mxu0
        %965 = vmatprep.mubr.f32.mxu0 0.0
        %966 = vmatmul.mubr.f32.gmra.mxu0 %v725
        %v967 = vpop.f32.mrf.mxu0
        %v968 = vadd.f32 0.0, %v967
        %v969 = vpop.f32.mrf.mxu0
        %970 = vmatprep.mubr.f32.mxu0 0.0
        %971 = vmatmul.mubr.f32.gmra.mxu0 %v726
        %v972 = vpop.f32.mrf.mxu0
        %v973 = vadd.f32 0.0, %v972
        %v974 = vpop.f32.mrf.mxu0
        %975 = vmatprep.mubr.f32.mxu0 0.0
        %976 = vmatmul.mubr.f32.gmra.mxu0 %v727
        %v977 = vpop.f32.mrf.mxu0
        %v978 = vadd.f32 0.0, %v977
        %v979 = vpop.f32.mrf.mxu0
        %980 = vmatprep.mubr.f32.mxu0 0.0
        %981 = vmatmul.mubr.f32.gmra.mxu0 %v728
        %v982 = vpop.f32.mrf.mxu0
        %v983 = vadd.f32 0.0, %v982
        %v984 = vpop.f32.mrf.mxu0
        %985 = vmatprep.mubr.f32.mxu0 0.0
        %986 = vmatmul.mubr.f32.gmra.mxu0 %v729
        %v987 = vpop.f32.mrf.mxu0
        %v988 = vadd.f32 0.0, %v987
        %v989 = vpop.f32.mrf.mxu0
        %990 = vmatprep.mubr.f32.mxu0 0.0
        %991 = vmatmul.mubr.f32.gmra.mxu0 %v730
        %v992 = vpop.f32.mrf.mxu0
        %v993 = vadd.f32 0.0, %v992
        %v994 = vpop.f32.mrf.mxu0
        %995 = vmatprep.mubr.f32.mxu0 0.0
        %996 = vmatmul.mubr.f32.gmra.mxu0 %v731
        %v997 = vpop.f32.mrf.mxu0
        %v998 = vadd.f32 0.0, %v997
        %v999 = vpop.f32.mrf.mxu0
        %1000 = vmatprep.mubr.f32.mxu0 0.0
        %1001 = vmatmul.mubr.f32.gmra.mxu0 %v732
        %v1002 = vpop.f32.mrf.mxu0
        %v1003 = vadd.f32 0.0, %v1002
        %v1004 = vpop.f32.mrf.mxu0
        %1005 = vmatprep.mubr.f32.mxu0 0.0
        %1006 = vmatmul.mubr.f32.gmra.mxu0 %v733
        %v1007 = vpop.f32.mrf.mxu0
        %v1008 = vadd.f32 0.0, %v1007
        %v1009 = vpop.f32.mrf.mxu0
        %1010 = vmatprep.mubr.f32.mxu0 0.0
        %1011 = vmatmul.mubr.f32.gmra.mxu0 %v734
        %v1012 = vpop.f32.mrf.mxu0
        %v1013 = vadd.f32 0.0, %v1012
        %v1014 = vpop.f32.mrf.mxu0
        %1015 = vmatprep.mubr.f32.mxu0 0.0
        %1016 = vmatmul.mubr.f32.gmra.mxu0 %v735
        %v1017 = vpop.f32.mrf.mxu0
        %v1018 = vadd.f32 0.0, %v1017
        %v1019 = vpop.f32.mrf.mxu0
        %1020 = vmatprep.mubr.f32.mxu0 0.0
        %1021 = vmatmul.mubr.f32.gmra.mxu0 %v736
        %v1022 = vpop.f32.mrf.mxu0
        %v1023 = vadd.f32 0.0, %v1022
        %v1024 = vpop.f32.mrf.mxu0
        %1025 = vmatprep.mubr.f32.mxu0 0.0
        %1026 = vmatmul.mubr.f32.gmra.mxu0 %v737
        %v1027 = vpop.f32.mrf.mxu0
        %v1028 = vadd.f32 0.0, %v1027
        %v1029 = vpop.f32.mrf.mxu0
        %1030 = vmatprep.mubr.f32.mxu0 0.0
        %1031 = vmatmul.mubr.f32.gmra.mxu0 %v738
        %v1032 = vpop.f32.mrf.mxu0
        %v1033 = vadd.f32 0.0, %v1032
        %v1034 = vpop.f32.mrf.mxu0
        %1035 = vmatprep.mubr.f32.mxu0 0.0
        %1036 = vmatmul.mubr.f32.gmra.mxu0 %v739
        %v1037 = vpop.f32.mrf.mxu0
        %v1038 = vadd.f32 0.0, %v1037
        %v1039 = vpop.f32.mrf.mxu0
        %1040 = vmatprep.mubr.f32.mxu0 0.0
        %1041 = vmatmul.mubr.f32.gmra.mxu0 %v740
        %v1042 = vpop.f32.mrf.mxu0
        %v1043 = vadd.f32 0.0, %v1042
        %v1044 = vpop.f32.mrf.mxu0
        %1045 = vmatprep.mubr.f32.mxu0 0.0
        %1046 = vmatmul.mubr.f32.gmra.mxu0 %v741
        %v1047 = vpop.f32.mrf.mxu0
        %v1048 = vadd.f32 0.0, %v1047
        %v1049 = vpop.f32.mrf.mxu0
        %1050 = vmatprep.mubr.f32.mxu0 0.0
        %1051 = vmatmul.mubr.f32.gmra.mxu0 %v742
        %v1052 = vpop.f32.mrf.mxu0
        %v1053 = vadd.f32 0.0, %v1052
        %v1054 = vpop.f32.mrf.mxu0
        %1055 = vmatprep.mubr.f32.mxu0 0.0
        %1056 = vmatmul.mubr.f32.gmra.mxu0 %v743
        %v1057 = vpop.f32.mrf.mxu0
        %v1058 = vadd.f32 0.0, %v1057
        %v1059 = vpop.f32.mrf.mxu0
        %1060 = vmatprep.mubr.f32.mxu0 0.0
        %1061 = vmatmul.mubr.f32.gmra.mxu0 %v744
        %v1062 = vpop.f32.mrf.mxu0
        %v1063 = vadd.f32 0.0, %v1062
        %v1064 = vpop.f32.mrf.mxu0
        %1065 = vmatprep.mubr.f32.mxu0 0.0
        %1066 = vmatmul.mubr.f32.gmra.mxu0 %v745
        %v1067 = vpop.f32.mrf.mxu0
        %v1068 = vadd.f32 0.0, %v1067
        %v1069 = vpop.f32.mrf.mxu0
        %1070 = vmatprep.mubr.f32.mxu0 0.0
        %1071 = vmatmul.mubr.f32.gmra.mxu0 %v746
        %v1072 = vpop.f32.mrf.mxu0
        %v1073 = vadd.f32 0.0, %v1072
        %v1074 = vpop.f32.mrf.mxu0
        %1075 = vmatprep.mubr.f32.mxu0 0.0
        %1076 = vmatmul.mubr.f32.gmra.mxu0 %v747
        %v1077 = vpop.f32.mrf.mxu0
        %v1078 = vadd.f32 0.0, %v1077
        %v1079 = vpop.f32.mrf.mxu0
        %1080 = vmatprep.mubr.f32.mxu0 0.0
        %1081 = vmatmul.mubr.f32.gmra.mxu0 %v748
        %v1082 = vpop.f32.mrf.mxu0
        %v1083 = vadd.f32 0.0, %v1082
        %v1084 = vpop.f32.mrf.mxu0
        %1085 = vmatprep.mubr.f32.mxu0 0.0
        %1086 = vmatmul.mubr.f32.gmra.mxu0 %v749
        %v1087 = vpop.f32.mrf.mxu0
        %v1088 = vadd.f32 0.0, %v1087
        %v1089 = vpop.f32.mrf.mxu0
        %1090 = vmatprep.mubr.f32.mxu0 0.0
        %1091 = vmatmul.mubr.f32.gmra.mxu0 %v750
        %v1092 = vpop.f32.mrf.mxu0
        %v1093 = vadd.f32 0.0, %v1092
        %v1094 = vpop.f32.mrf.mxu0
        %1095 = vmatprep.mubr.f32.mxu0 0.0
        %1096 = vmatmul.mubr.f32.gmra.mxu0 %v751
        %v1097 = vpop.f32.mrf.mxu0
        %v1098 = vadd.f32 0.0, %v1097
        %v1099 = vpop.f32.mrf.mxu0
        %1100 = vmatprep.mubr.f32.mxu0 0.0
        %1101 = vmatmul.mubr.f32.gmra.mxu0 %v752
        %v1102 = vpop.f32.mrf.mxu0
        %v1103 = vadd.f32 0.0, %v1102
        %v1104 = vpop.f32.mrf.mxu0
        %1105 = vmatprep.mubr.f32.mxu0 0.0
        %1106 = vmatmul.mubr.f32.gmra.mxu0 %v753
        %v1107 = vpop.f32.mrf.mxu0
        %v1108 = vadd.f32 0.0, %v1107
        %v1109 = vpop.f32.mrf.mxu0
        %1110 = vmatprep.mubr.f32.mxu0 0.0
        %1111 = vmatmul.mubr.f32.gmra.mxu0 %v754
        %v1112 = vpop.f32.mrf.mxu0
        %v1113 = vadd.f32 0.0, %v1112
        %v1114 = vpop.f32.mrf.mxu0
        %1115 = vmatprep.mubr.f32.mxu0 0.0
        %1116 = vmatmul.mubr.f32.gmra.mxu0 %v755
        %v1117 = vpop.f32.mrf.mxu0
        %v1118 = vadd.f32 0.0, %v1117
        %v1119 = vpop.f32.mrf.mxu0
        %1120 = vmatprep.mubr.f32.mxu0 0.0
        %1121 = vmatmul.mubr.f32.gmra.mxu0 %v756
        %v1122 = vpop.f32.mrf.mxu0
        %v1123 = vadd.f32 0.0, %v1122
        %v1124 = vpop.f32.mrf.mxu0
        %1125 = vmatprep.mubr.f32.mxu0 0.0
        %1126 = vmatmul.mubr.f32.gmra.mxu0 %v757
        %v1127 = vpop.f32.mrf.mxu0
        %v1128 = vadd.f32 0.0, %v1127
        %v1129 = vpop.f32.mrf.mxu0
        %1130 = vmatprep.mubr.f32.mxu0 0.0
        %1131 = vmatmul.mubr.f32.gmra.mxu0 %v758
        %v1132 = vpop.f32.mrf.mxu0
        %v1133 = vadd.f32 0.0, %v1132
        %v1134 = vpop.f32.mrf.mxu0
        %1135 = vmatprep.mubr.f32.mxu0 0.0
        %1136 = vmatmul.mubr.f32.gmra.mxu0 %v759
        %v1137 = vpop.f32.mrf.mxu0
        %v1138 = vadd.f32 0.0, %v1137
        %v1139 = vpop.f32.mrf.mxu0
        %1140 = vmatprep.mubr.f32.mxu0 0.0
        %1141 = vmatmul.mubr.f32.gmra.mxu0 %v760
        %v1142 = vpop.f32.mrf.mxu0
        %v1143 = vadd.f32 0.0, %v1142
        %v1144 = vpop.f32.mrf.mxu0
        %1145 = vmatprep.mubr.f32.mxu0 0.0
        %1146 = vmatmul.mubr.f32.gmra.mxu0 %v761
        %v1147 = vpop.f32.mrf.mxu0
        %v1148 = vadd.f32 0.0, %v1147
        %v1149 = vpop.f32.mrf.mxu0
        %1150 = vmatprep.mubr.f32.mxu0 0.0
        %1151 = vmatmul.mubr.f32.gmra.mxu0 %v762
        %v1152 = vpop.f32.mrf.mxu0
        %v1153 = vadd.f32 0.0, %v1152
        %v1154 = vpop.f32.mrf.mxu0
        %1155 = vmatprep.mubr.f32.mxu0 0.0
        %1156 = vmatmul.mubr.f32.gmra.mxu0 %v763
        %v1157 = vpop.f32.mrf.mxu0
        %v1158 = vadd.f32 0.0, %v1157
        %v1159 = vpop.f32.mrf.mxu0
        %1160 = vmatprep.mubr.f32.mxu0 0.0
        %1161 = vmatmul.mubr.f32.gmra.mxu0 %v764
        %v1162 = vpop.f32.mrf.mxu0
        %v1163 = vadd.f32 0.0, %v1162
        %v1164 = vpop.f32.mrf.mxu0
        %1165 = vmatprep.mubr.f32.mxu0 0.0
        %1166 = vmatmul.mubr.f32.gmra.mxu0 %v765
        %v1167 = vpop.f32.mrf.mxu0
        %v1168 = vadd.f32 0.0, %v1167
        %v1169 = vpop.f32.mrf.mxu0
        %1170 = vmatprep.mubr.f32.mxu0 0.0
        %1171 = vmatmul.mubr.f32.gmra.mxu0 %v766
        %v1172 = vpop.f32.mrf.mxu0
        %v1173 = vadd.f32 0.0, %v1172
        %v1174 = vpop.f32.mrf.mxu0
        %1175 = vmatprep.mubr.f32.mxu0 0.0
        %1176 = vmatmul.mubr.f32.gmra.mxu0 %v767
        %v1177 = vpop.f32.mrf.mxu0
        %v1178 = vadd.f32 0.0, %v1177
        %v1179 = vpop.f32.mrf.mxu0
        %1180 = vmatprep.mubr.f32.mxu0 0.0
        %1181 = vmatmul.mubr.f32.gmra.mxu0 %v768
        %v1182 = vpop.f32.mrf.mxu0
        %v1183 = vadd.f32 0.0, %v1182
        %v1184 = vpop.f32.mrf.mxu0
        %1185 = vmatprep.mubr.f32.mxu0 0.0
        %1186 = vmatmul.mubr.f32.gmra.mxu0 %v769
        %v1187 = vpop.f32.mrf.mxu0
        %v1188 = vadd.f32 0.0, %v1187
        %v1189 = vpop.f32.mrf.mxu0
        %1190 = vmatprep.mubr.f32.mxu0 0.0
        %1191 = vmatmul.mubr.f32.gmra.mxu0 %v770
        %v1192 = vpop.f32.mrf.mxu0
        %v1193 = vadd.f32 0.0, %v1192
        %v1194 = vpop.f32.mrf.mxu0
        %1195 = vmatprep.mubr.f32.mxu0 0.0
        %1196 = vmatmul.mubr.f32.gmra.mxu0 %v771
        %v1197 = vpop.f32.mrf.mxu0
        %v1198 = vadd.f32 0.0, %v1197
        %v1199 = vpop.f32.mrf.mxu0
        %1200 = vmatprep.mubr.f32.mxu0 0.0
        %1201 = vmatmul.mubr.f32.gmra.mxu0 %v772
        %v1202 = vpop.f32.mrf.mxu0
        %v1203 = vadd.f32 0.0, %v1202
        %v1204 = vpop.f32.mrf.mxu0
        %1205 = vmatprep.mubr.f32.mxu0 0.0
        %1206 = vmatmul.mubr.f32.gmra.mxu0 %v773
        %v1207 = vpop.f32.mrf.mxu0
        %v1208 = vadd.f32 0.0, %v1207
        %v1209 = vpop.f32.mrf.mxu0
        %1210 = vmatprep.mubr.f32.mxu0 0.0
        %1211 = vmatmul.mubr.f32.gmra.mxu0 %v774
        %v1212 = vpop.f32.mrf.mxu0
        %v1213 = vadd.f32 0.0, %v1212
        %v1214 = vpop.f32.mrf.mxu0
        %1215 = vmatprep.mubr.f32.mxu0 0.0
        %1216 = vmatmul.mubr.f32.gmra.mxu0 %v775
        %v1217 = vpop.f32.mrf.mxu0
        %v1218 = vadd.f32 0.0, %v1217
        %v1219 = vpop.f32.mrf.mxu0
        %1220 = vmatprep.mubr.f32.mxu0 0.0
        %1221 = vmatmul.mubr.f32.gmra.mxu0 %v776
        %v1222 = vpop.f32.mrf.mxu0
        %v1223 = vadd.f32 0.0, %v1222
        %v1224 = vpop.f32.mrf.mxu0
        %1225 = vmatprep.mubr.f32.mxu0 0.0
        %1226 = vmatmul.mubr.f32.gmra.mxu0 %v777
        %v1227 = vpop.f32.mrf.mxu0
        %v1228 = vadd.f32 0.0, %v1227
        %v1229 = vpop.f32.mrf.mxu0
        %1230 = vmatprep.mubr.f32.mxu0 0.0
        %1231 = vmatmul.mubr.f32.gmra.mxu0 %v778
        %v1232 = vpop.f32.mrf.mxu0
        %v1233 = vadd.f32 0.0, %v1232
        %v1234 = vpop.f32.mrf.mxu0
        %1235 = vmatprep.mubr.f32.mxu0 0.0
        %1236 = vmatmul.mubr.f32.gmra.mxu0 %v779
        %v1237 = vpop.f32.mrf.mxu0
        %v1238 = vadd.f32 0.0, %v1237
        %v1239 = vpop.f32.mrf.mxu0
        %1240 = vmatprep.mubr.f32.mxu0 0.0
        %1241 = vmatmul.mubr.f32.gmra.mxu0 %v780
        %v1242 = vpop.f32.mrf.mxu0
        %v1243 = vadd.f32 0.0, %v1242
        %v1244 = vpop.f32.mrf.mxu0
        %1245 = vmatprep.mubr.f32.mxu0 0.0
        %1246 = vmatmul.mubr.f32.gmra.mxu0 %v781
        %v1247 = vpop.f32.mrf.mxu0
        %v1248 = vadd.f32 0.0, %v1247
        %v1249 = vpop.f32.mrf.mxu0
        %1250 = vmatprep.mubr.f32.mxu0 0.0
        %1251 = vmatmul.mubr.f32.gmra.mxu0 %v782
        %v1252 = vpop.f32.mrf.mxu0
        %v1253 = vadd.f32 0.0, %v1252
        %v1254 = vpop.f32.mrf.mxu0
        %1255 = vmatprep.mubr.f32.mxu0 0.0
        %1256 = vmatmul.mubr.f32.gmra.mxu0 %v783
        %v1257 = vpop.f32.mrf.mxu0
        %v1258 = vadd.f32 0.0, %v1257
        %v1259 = vpop.f32.mrf.mxu0
        %1260 = vmatprep.mubr.f32.mxu0 0.0
        %1261 = vmatmul.mubr.f32.gmra.mxu0 %v784
        %v1262 = vpop.f32.mrf.mxu0
        %v1263 = vadd.f32 0.0, %v1262
        %v1264 = vpop.f32.mrf.mxu0
        %1265 = vmatprep.mubr.f32.mxu0 0.0
        %1266 = vmatmul.mubr.f32.gmra.mxu0 %v785
        %v1267 = vpop.f32.mrf.mxu0
        %v1268 = vadd.f32 0.0, %v1267
        %v1269 = vpop.f32.mrf.mxu0
        %1270 = vmatprep.mubr.f32.mxu0 0.0
        %1271 = vmatmul.mubr.f32.gmra.mxu0 %v786
        %v1272 = vpop.f32.mrf.mxu0
        %v1273 = vadd.f32 0.0, %v1272
        %v1274 = vpop.f32.mrf.mxu0
        %1275 = vmatprep.mubr.f32.mxu0 0.0
        %1276 = vmatmul.mubr.f32.gmra.mxu0 %v787
        %v1277 = vpop.f32.mrf.mxu0
        %v1278 = vadd.f32 0.0, %v1277
        %v1279 = vpop.f32.mrf.mxu0
        %1280 = vmatprep.mubr.f32.mxu0 0.0
        %1281 = vmatmul.mubr.f32.gmra.mxu0 %v788
        %v1282 = vpop.f32.mrf.mxu0
        %v1283 = vadd.f32 0.0, %v1282
        %v1284 = vpop.f32.mrf.mxu0
        %1285 = vmatprep.mubr.f32.mxu0 0.0
        %1286 = vmatmul.mubr.f32.gmra.mxu0 %v789
        %v1287 = vpop.f32.mrf.mxu0
        %v1288 = vadd.f32 0.0, %v1287
        %v1289 = vpop.f32.mrf.mxu0
        %1290 = vmatprep.mubr.f32.mxu0 0.0
        %1291 = vmatmul.mubr.f32.gmra.mxu0 %v790
        %v1292 = vpop.f32.mrf.mxu0
        %v1293 = vadd.f32 0.0, %v1292
        %v1294 = vpop.f32.mrf.mxu0
        %1295 = vmatprep.mubr.f32.mxu0 0.0
        %1296 = vmatmul.mubr.f32.gmra.mxu0 %v791
        %v1297 = vpop.f32.mrf.mxu0
        %v1298 = vadd.f32 0.0, %v1297
        %v1299 = vpop.f32.mrf.mxu0
        %1300 = vmatprep.mubr.f32.mxu0 0.0
        %1301 = vmatmul.mubr.f32.gmra.mxu0 %v792
        %v1302 = vpop.f32.mrf.mxu0
        %v1303 = vadd.f32 0.0, %v1302
        %v1304 = vpop.f32.mrf.mxu0
        %1305 = vmatprep.mubr.f32.mxu0 0.0
        %1306 = vmatmul.mubr.f32.gmra.mxu0 %v793
        %v1307 = vpop.f32.mrf.mxu0
        %v1308 = vadd.f32 0.0, %v1307
        %v1309 = vpop.f32.mrf.mxu0
        %1310 = vmatprep.mubr.f32.mxu0 0.0
        %1311 = vmatmul.mubr.f32.gmra.mxu0 %v794
        %v1312 = vpop.f32.mrf.mxu0
        %v1313 = vadd.f32 0.0, %v1312
        %v1314 = vpop.f32.mrf.mxu0
        %1315 = vmatprep.mubr.f32.mxu0 0.0
        %1316 = vmatmul.mubr.f32.gmra.mxu0 %v795
        %v1317 = vpop.f32.mrf.mxu0
        %v1318 = vadd.f32 0.0, %v1317
        %v1319 = vpop.f32.mrf.mxu0
        %1320 = vmatprep.mubr.f32.mxu0 0.0
        %1321 = vmatmul.mubr.f32.gmra.mxu0 %v796
        %v1322 = vpop.f32.mrf.mxu0
        %v1323 = vadd.f32 0.0, %v1322
        %v1324 = vpop.f32.mrf.mxu0
        %1325 = vmatprep.mubr.f32.mxu0 0.0
        %1326 = vmatmul.mubr.f32.gmra.mxu0 %v797
        %v1327 = vpop.f32.mrf.mxu0
        %v1328 = vadd.f32 0.0, %v1327
        %v1329 = vpop.f32.mrf.mxu0
        %1330 = vmatprep.mubr.f32.mxu0 0.0
        %1331 = vmatmul.mubr.f32.gmra.mxu0 %v798
        %v1332 = vpop.f32.mrf.mxu0
        %v1333 = vadd.f32 0.0, %v1332
        %v1334 = vpop.f32.mrf.mxu0
        %1335 = vmatprep.mubr.f32.mxu0 0.0
        %1336 = vmatmul.mubr.f32.gmra.mxu0 %v799
        %v1337 = vpop.f32.mrf.mxu0
        %v1338 = vadd.f32 0.0, %v1337
        %v1339 = vpop.f32.mrf.mxu0
        %1340 = vmatprep.mubr.f32.mxu0 0.0
        %1341 = vmatmul.mubr.f32.gmra.mxu0 %v800
        %v1342 = vpop.f32.mrf.mxu0
        %v1343 = vadd.f32 0.0, %v1342
        %v1344 = vpop.f32.mrf.mxu0
        %1345 = vmatprep.mubr.f32.mxu0 0.0
        %1346 = vmatmul.mubr.f32.gmra.mxu0 %v801
        %v1347 = vpop.f32.mrf.mxu0
        %v1348 = vadd.f32 0.0, %v1347
        %v1349 = vpop.f32.mrf.mxu0
        %1350 = vmatprep.mubr.f32.mxu0 0.0
        %1351 = vmatmul.mubr.f32.gmra.mxu0 %v802
        %v1352 = vpop.f32.mrf.mxu0
        %v1353 = vadd.f32 0.0, %v1352
        %v1354 = vpop.f32.mrf.mxu0
        %1355 = vmatprep.mubr.f32.mxu0 0.0
        %1356 = vmatmul.mubr.f32.gmra.mxu0 %v803
        %v1357 = vpop.f32.mrf.mxu0
        %v1358 = vadd.f32 0.0, %v1357
        %v1359 = vpop.f32.mrf.mxu0
        %1360 = vmatprep.mubr.f32.mxu0 0.0
        %1361 = vmatmul.mubr.f32.gmra.mxu0 %v804
        %v1362 = vpop.f32.mrf.mxu0
        %v1363 = vadd.f32 0.0, %v1362
        %v1364 = vpop.f32.mrf.mxu0
        %1365 = vmatprep.mubr.f32.mxu0 0.0
        %1366 = vmatmul.mubr.f32.gmra.mxu0 %v805
        %v1367 = vpop.f32.mrf.mxu0
        %v1368 = vadd.f32 0.0, %v1367
        %v1369 = vpop.f32.mrf.mxu0
        %1370 = vmatprep.mubr.f32.mxu0 0.0
        %1371 = vmatmul.mubr.f32.gmra.mxu0 %v806
        %v1372 = vpop.f32.mrf.mxu0
        %v1373 = vadd.f32 0.0, %v1372
        %v1374 = vpop.f32.mrf.mxu0
        %1375 = vmatprep.mubr.f32.mxu0 0.0
        %1376 = vmatmul.mubr.f32.gmra.mxu0 %v807
        %v1377 = vpop.f32.mrf.mxu0
        %v1378 = vadd.f32 0.0, %v1377
        %v1379 = vpop.f32.mrf.mxu0
        %1380 = vmatprep.mubr.f32.mxu0 0.0
        %1381 = vmatmul.mubr.f32.gmra.mxu0 %v808
        %v1382 = vpop.f32.mrf.mxu0
        %v1383 = vadd.f32 0.0, %v1382
        %v1384 = vpop.f32.mrf.mxu0
        %1385 = vmatprep.mubr.f32.mxu0 0.0
        %1386 = vmatmul.mubr.f32.gmra.mxu0 %v809
        %v1387 = vpop.f32.mrf.mxu0
        %v1388 = vadd.f32 0.0, %v1387
        %v1389 = vpop.f32.mrf.mxu0
        %1390 = vmatprep.mubr.f32.mxu0 0.0
        %1391 = vmatmul.mubr.f32.gmra.mxu0 %v810
        %v1392 = vpop.f32.mrf.mxu0
        %v1393 = vadd.f32 0.0, %v1392
        %v1394 = vpop.f32.mrf.mxu0
        %1395 = vmatprep.mubr.f32.mxu0 0.0
        %1396 = vmatmul.mubr.f32.gmra.mxu0 %v811
        %v1397 = vpop.f32.mrf.mxu0
        %v1398 = vadd.f32 0.0, %v1397
        %v1399 = vpop.f32.mrf.mxu0
        %1400 = vmatprep.mubr.f32.mxu0 0.0
        %1401 = vmatmul.mubr.f32.gmra.mxu0 %v812
        %v1402 = vpop.f32.mrf.mxu0
        %v1403 = vadd.f32 0.0, %v1402
        %v1404 = vpop.f32.mrf.mxu0
        %1405 = vmatprep.mubr.f32.mxu0 0.0
        %1406 = vmatmul.mubr.f32.gmra.mxu0 %v813
        %v1407 = vpop.f32.mrf.mxu0
        %v1408 = vadd.f32 0.0, %v1407
        %v1409 = vpop.f32.mrf.mxu0
        %1410 = vmatprep.mubr.f32.mxu0 0.0
        %1411 = vmatmul.mubr.f32.gmra.mxu0 %v814
        %v1412 = vpop.f32.mrf.mxu0
        %v1413 = vadd.f32 0.0, %v1412
        %v1414 = vpop.f32.mrf.mxu0
        %1415 = vmatprep.mubr.f32.mxu0 0.0
        %1416 = vmatmul.mubr.f32.gmra.mxu0 %v815
        %v1417 = vpop.f32.mrf.mxu0
        %v1418 = vadd.f32 0.0, %v1417
        %v1419 = vpop.f32.mrf.mxu0
        %1420 = vmatprep.mubr.f32.mxu0 0.0
        %1421 = vmatmul.mubr.f32.gmra.mxu0 %v816
        %v1422 = vpop.f32.mrf.mxu0
        %v1423 = vadd.f32 0.0, %v1422
        %v1424 = vpop.f32.mrf.mxu0
        %1425 = vmatprep.mubr.f32.mxu0 0.0
        %1426 = vmatmul.mubr.f32.gmra.mxu0 %v817
        %v1427 = vpop.f32.mrf.mxu0
        %v1428 = vadd.f32 0.0, %v1427
        %v1429 = vpop.f32.mrf.mxu0
        %1430 = vmatprep.mubr.f32.mxu0 0.0
        %1431 = vmatmul.mubr.f32.gmra.mxu0 %v818
        %v1432 = vpop.f32.mrf.mxu0
        %v1433 = vadd.f32 0.0, %v1432
        %v1434 = vpop.f32.mrf.mxu0
        %1435 = vmatprep.mubr.f32.mxu0 0.0
        %1436 = vmatmul.mubr.f32.gmra.mxu0 %v819
        %v1437 = vpop.f32.mrf.mxu0
        %v1438 = vadd.f32 0.0, %v1437
        %v1439 = vpop.f32.mrf.mxu0
        %1440 = vmatprep.mubr.f32.mxu0 0.0
        %1441 = vmatmul.mubr.f32.gmra.mxu0 %v820
        %v1442 = vpop.f32.mrf.mxu0
        %v1443 = vadd.f32 0.0, %v1442
        %v1444 = vpop.f32.mrf.mxu0
        %1445 = vmatprep.mubr.f32.mxu0 0.0
        %1446 = vmatmul.mubr.f32.gmra.mxu0 %v821
        %v1447 = vpop.f32.mrf.mxu0
        %v1448 = vadd.f32 0.0, %v1447
        %v1449 = vpop.f32.mrf.mxu0
        %1450 = vmatprep.mubr.f32.mxu0 0.0
        %1451 = vmatmul.mubr.f32.gmra.mxu0 %v822
        %v1452 = vpop.f32.mrf.mxu0
        %v1453 = vadd.f32 0.0, %v1452
        %v1454 = vpop.f32.mrf.mxu0
        %1455 = vmatprep.mubr.f32.mxu0 0.0
        %1456 = vmatmul.mubr.f32.gmra.mxu0 %v823
        %v1457 = vpop.f32.mrf.mxu0
        %v1458 = vadd.f32 0.0, %v1457
        %v1459 = vpop.f32.mrf.mxu0
        %1460 = vmatprep.mubr.f32.mxu0 0.0
        %1461 = vmatmul.mubr.f32.gmra.mxu0 %v824
        %v1462 = vpop.f32.mrf.mxu0
        %v1463 = vadd.f32 0.0, %v1462
        %v1464 = vpop.f32.mrf.mxu0
        %1465 = vmatprep.mubr.f32.mxu0 0.0
        %1466 = vmatmul.mubr.f32.gmra.mxu0 %v825
        %v1467 = vpop.f32.mrf.mxu0
        %v1468 = vadd.f32 0.0, %v1467
        %v1469 = vpop.f32.mrf.mxu0
        %1470 = vmatprep.mubr.f32.mxu0 0.0
        %1471 = vmatmul.mubr.f32.gmra.mxu0 %v826
        %v1472 = vpop.f32.mrf.mxu0
        %v1473 = vadd.f32 0.0, %v1472
        %v1474 = vpop.f32.mrf.mxu0
        %1475 = vmatprep.mubr.f32.mxu0 0.0
        %1476 = vmatmul.mubr.f32.gmra.mxu0 %v827
        %v1477 = vpop.f32.mrf.mxu0
        %v1478 = vadd.f32 0.0, %v1477
        %v1479 = vpop.f32.mrf.mxu0
        %1480 = vmatprep.mubr.f32.mxu0 0.0
        %1481 = vmatmul.mubr.f32.gmra.mxu0 %v828
        %v1482 = vpop.f32.mrf.mxu0
        %v1483 = vadd.f32 0.0, %v1482
        %v1484 = vpop.f32.mrf.mxu0
        %1485 = vmatprep.mubr.f32.mxu0 0.0
        %1486 = vmatmul.mubr.f32.gmra.mxu0 %v829
        %v1487 = vpop.f32.mrf.mxu0
        %v1488 = vadd.f32 0.0, %v1487
        %v1489 = vpop.f32.mrf.mxu0
        %1490 = vmatprep.mubr.f32.mxu0 0.0
        %1491 = vmatmul.mubr.f32.gmra.mxu0 %v830
        %v1492 = vpop.f32.mrf.mxu0
        %v1493 = vadd.f32 0.0, %v1492
        %v1494 = vpop.f32.mrf.mxu0
        %1495 = vmatprep.mubr.f32.mxu0 0.0
        %1496 = vmatmul.mubr.f32.gmra.mxu0 %v831
        %v1497 = vpop.f32.mrf.mxu0
        %v1498 = vadd.f32 0.0, %v1497
        %v1499 = vpop.f32.mrf.mxu0
        %1500 = vmatprep.mubr.f32.mxu0 0.0
        %1501 = vmatmul.mubr.f32.gmra.mxu0 %v832
        %v1502 = vpop.f32.mrf.mxu0
        %v1503 = vadd.f32 0.0, %v1502
        %v1504 = vpop.f32.mrf.mxu0
        %1505 = vmatprep.mubr.f32.mxu0 0.0
        %1506 = vmatmul.mubr.f32.gmra.mxu0 %v833
        %v1507 = vpop.f32.mrf.mxu0
        %v1508 = vadd.f32 0.0, %v1507
        %v1509 = vpop.f32.mrf.mxu0
        %1510 = vmatprep.mubr.f32.mxu0 0.0
        %1511 = vmatmul.mubr.f32.gmra.mxu0 %v834
        %v1512 = vpop.f32.mrf.mxu0
        %v1513 = vadd.f32 0.0, %v1512
        %v1514 = vpop.f32.mrf.mxu0
        %1515 = vmatprep.mubr.f32.mxu0 0.0
        %1516 = vmatmul.mubr.f32.gmra.mxu0 %v835
        %v1517 = vpop.f32.mrf.mxu0
        %v1518 = vadd.f32 0.0, %v1517
        %v1519 = vpop.f32.mrf.mxu0
        %1520 = vmatprep.mubr.f32.mxu0 0.0
        %1521 = vmatmul.mubr.f32.gmra.mxu0 %v836
        %v1522 = vpop.f32.mrf.mxu0
        %v1523 = vadd.f32 0.0, %v1522
        %v1524 = vpop.f32.mrf.mxu0
        %1525 = vmatprep.mubr.f32.mxu0 0.0
        %1526 = vmatmul.mubr.f32.gmra.mxu0 %v837
        %v1527 = vpop.f32.mrf.mxu0
        %v1528 = vadd.f32 0.0, %v1527
        %v1529 = vpop.f32.mrf.mxu0
        %1530 = vmatprep.mubr.f32.mxu0 0.0
        %1531 = vmatmul.mubr.f32.gmra.mxu0 %v838
        %v1532 = vpop.f32.mrf.mxu0
        %v1533 = vadd.f32 0.0, %v1532
        %v1534 = vpop.f32.mrf.mxu0
        %1535 = vmatprep.mubr.f32.mxu0 0.0
        %1536 = vmatmul.mubr.f32.gmra.mxu0 %v839
        %v1537 = vpop.f32.mrf.mxu0
        %v1538 = vadd.f32 0.0, %v1537
        %v1539 = vpop.f32.mrf.mxu0
        %1540 = vmatprep.mubr.f32.mxu0 0.0
        %1541 = vmatmul.mubr.f32.gmra.mxu0 %v840
        %v1542 = vpop.f32.mrf.mxu0
        %v1543 = vadd.f32 0.0, %v1542
        %v1544 = vpop.f32.mrf.mxu0
        %1545 = vmatprep.mubr.f32.mxu0 0.0
        %1546 = vmatmul.mubr.f32.gmra.mxu0 %v841
        %v1547 = vpop.f32.mrf.mxu0
        %v1548 = vadd.f32 0.0, %v1547
        %v1549 = vpop.f32.mrf.mxu0
        %1550 = vmatprep.mubr.f32.mxu0 0.0
        %1551 = vmatmul.mubr.f32.gmra.mxu0 %v842
        %v1552 = vpop.f32.mrf.mxu0
        %v1553 = vadd.f32 0.0, %v1552
        %v1554 = vpop.f32.mrf.mxu0
        %1555 = vmatprep.mubr.f32.mxu0 0.0
        %1556 = vmatmul.mubr.f32.gmra.mxu0 %v843
        %v1557 = vpop.f32.mrf.mxu0
        %v1558 = vadd.f32 0.0, %v1557
        %v1559 = vpop.f32.mrf.mxu0
        %1560 = vmatprep.mubr.f32.mxu0 0.0
        %1561 = vmatmul.mubr.f32.gmra.mxu0 %v844
        %v1562 = vpop.f32.mrf.mxu0
        %v1563 = vadd.f32 0.0, %v1562
        %v1564 = vpop.f32.mrf.mxu0
        %1565 = vdwg.mxu0
        %v1566 = vmax.f32 %v928, %v1088
        %v1567 = vmax.f32 %v933, %v1093
        %v1568 = vmax.f32 %v938, %v1098
        %v1569 = vmax.f32 %v943, %v1103
        %v1570 = vmax.f32 %v948, %v1108
        %v1571 = vmax.f32 %v953, %v1113
        %v1572 = vmax.f32 %v958, %v1118
        %v1573 = vmax.f32 %v963, %v1123
        %v1574 = vmax.f32 %v968, %v1128
        %v1575 = vmax.f32 %v973, %v1133
        %v1576 = vmax.f32 %v978, %v1138
        %v1577 = vmax.f32 %v983, %v1143
        %v1578 = vmax.f32 %v988, %v1148
        %v1579 = vmax.f32 %v993, %v1153
        %v1580 = vmax.f32 %v998, %v1158
        %v1581 = vmax.f32 %v1003, %v1163
        %v1582 = vmax.f32 %v1008, %v1168
        %v1583 = vmax.f32 %v1013, %v1173
        %v1584 = vmax.f32 %v1018, %v1178
        %v1585 = vmax.f32 %v1023, %v1183
        %v1586 = vmax.f32 %v1028, %v1188
        %v1587 = vmax.f32 %v1033, %v1193
        %v1588 = vmax.f32 %v1038, %v1198
        %v1589 = vmax.f32 %v1043, %v1203
        %v1590 = vmax.f32 %v1048, %v1208
        %v1591 = vmax.f32 %v1053, %v1213
        %v1592 = vmax.f32 %v1058, %v1218
        %v1593 = vmax.f32 %v1063, %v1223
        %v1594 = vmax.f32 %v1068, %v1228
        %v1595 = vmax.f32 %v1073, %v1233
        %v1596 = vmax.f32 %v1078, %v1238
        %v1597 = vmax.f32 %v1083, %v1243
        %v1598 = vmax.f32 %v1566, %v1248
        %v1599 = vmax.f32 %v1567, %v1253
        %v1600 = vmax.f32 %v1568, %v1258
        %v1601 = vmax.f32 %v1569, %v1263
        %v1602 = vmax.f32 %v1570, %v1268
        %v1603 = vmax.f32 %v1571, %v1273
        %v1604 = vmax.f32 %v1572, %v1278
        %v1605 = vmax.f32 %v1573, %v1283
        %v1606 = vmax.f32 %v1574, %v1288
        %v1607 = vmax.f32 %v1575, %v1293
        %v1608 = vmax.f32 %v1576, %v1298
        %v1609 = vmax.f32 %v1577, %v1303
        %v1610 = vmax.f32 %v1578, %v1308
        %v1611 = vmax.f32 %v1579, %v1313
        %v1612 = vmax.f32 %v1580, %v1318
        %v1613 = vmax.f32 %v1581, %v1323
        %v1614 = vmax.f32 %v1582, %v1328
        %v1615 = vmax.f32 %v1583, %v1333
        %v1616 = vmax.f32 %v1584, %v1338
        %v1617 = vmax.f32 %v1585, %v1343
        %v1618 = vmax.f32 %v1586, %v1348
        %v1619 = vmax.f32 %v1587, %v1353
        %v1620 = vmax.f32 %v1588, %v1358
        %v1621 = vmax.f32 %v1589, %v1363
        %v1622 = vmax.f32 %v1590, %v1368
        %v1623 = vmax.f32 %v1591, %v1373
        %v1624 = vmax.f32 %v1592, %v1378
        %v1625 = vmax.f32 %v1593, %v1383
        %v1626 = vmax.f32 %v1594, %v1388
        %v1627 = vmax.f32 %v1595, %v1393
        %v1628 = vmax.f32 %v1596, %v1398
        %v1629 = vmax.f32 %v1597, %v1403
        %v1630 = vmax.f32 %v1598, %v1408
        %v1631 = vmax.f32 %v1599, %v1413
        %v1632 = vmax.f32 %v1600, %v1418
        %v1633 = vmax.f32 %v1601, %v1423
        %v1634 = vmax.f32 %v1602, %v1428
        %v1635 = vmax.f32 %v1603, %v1433
        %v1636 = vmax.f32 %v1604, %v1438
        %v1637 = vmax.f32 %v1605, %v1443
        %v1638 = vmax.f32 %v1606, %v1448
        %v1639 = vmax.f32 %v1607, %v1453
        %v1640 = vmax.f32 %v1608, %v1458
        %v1641 = vmax.f32 %v1609, %v1463
        %v1642 = vmax.f32 %v1610, %v1468
        %v1643 = vmax.f32 %v1611, %v1473
        %v1644 = vmax.f32 %v1612, %v1478
        %v1645 = vmax.f32 %v1613, %v1483
        %v1646 = vmax.f32 %v1614, %v1488
        %v1647 = vmax.f32 %v1615, %v1493
        %v1648 = vmax.f32 %v1616, %v1498
        %v1649 = vmax.f32 %v1617, %v1503
        %v1650 = vmax.f32 %v1618, %v1508
        %v1651 = vmax.f32 %v1619, %v1513
        %v1652 = vmax.f32 %v1620, %v1518
        %v1653 = vmax.f32 %v1621, %v1523
        %v1654 = vmax.f32 %v1622, %v1528
        %v1655 = vmax.f32 %v1623, %v1533
        %v1656 = vmax.f32 %v1624, %v1538
        %v1657 = vmax.f32 %v1625, %v1543
        %v1658 = vmax.f32 %v1626, %v1548
        %v1659 = vmax.f32 %v1627, %v1553
        %v1660 = vmax.f32 %v1628, %v1558
        %v1661 = vmax.f32 %v1629, %v1563
        %v1662 = vld [vmem:[%s2] sm:$0x1]
        %v1664 = vlaneseq
        %v1665 = vshrl.u32 %v1664, 7
        %v1666 = vsub.s32 0, %v1665
        %v1667 = vrot.slane %v1662, %v1666
        %v1669 = vadd.f32 %v1630, %v1667
        %v1670 = vadd.f32 %v1631, %v1667
        %v1671 = vadd.f32 %v1632, %v1667
        %v1672 = vadd.f32 %v1633, %v1667
        %v1673 = vadd.f32 %v1634, %v1667
        %v1674 = vadd.f32 %v1635, %v1667
        %v1675 = vadd.f32 %v1636, %v1667
        %v1676 = vadd.f32 %v1637, %v1667
        %v1677 = vadd.f32 %v1638, %v1667
        %v1678 = vadd.f32 %v1639, %v1667
        %v1679 = vadd.f32 %v1640, %v1667
        %v1680 = vadd.f32 %v1641, %v1667
        %v1681 = vadd.f32 %v1642, %v1667
        %v1682 = vadd.f32 %v1643, %v1667
        %v1683 = vadd.f32 %v1644, %v1667
        %v1684 = vadd.f32 %v1645, %v1667
        %v1685 = vadd.f32 %v1646, %v1667
        %v1686 = vadd.f32 %v1647, %v1667
        %v1687 = vadd.f32 %v1648, %v1667
        %v1688 = vadd.f32 %v1649, %v1667
        %v1689 = vadd.f32 %v1650, %v1667
        %v1690 = vadd.f32 %v1651, %v1667
        %v1691 = vadd.f32 %v1652, %v1667
        %v1692 = vadd.f32 %v1653, %v1667
        %v1693 = vadd.f32 %v1654, %v1667
        %v1694 = vadd.f32 %v1655, %v1667
        %v1695 = vadd.f32 %v1656, %v1667
        %v1696 = vadd.f32 %v1657, %v1667
        %v1697 = vadd.f32 %v1658, %v1667
        %v1698 = vadd.f32 %v1659, %v1667
        %v1699 = vadd.f32 %v1660, %v1667
        %v1700 = vadd.f32 %v1661, %v1667
        %v1701 = vmax.f32 %v1669, 0.0
        %v1702 = vmax.f32 %v1670, 0.0
        %v1703 = vmax.f32 %v1671, 0.0
        %v1704 = vmax.f32 %v1672, 0.0
        %v1705 = vmax.f32 %v1673, 0.0
        %v1706 = vmax.f32 %v1674, 0.0
        %v1707 = vmax.f32 %v1675, 0.0
        %v1708 = vmax.f32 %v1676, 0.0
        %v1709 = vmax.f32 %v1677, 0.0
        %v1710 = vmax.f32 %v1678, 0.0
        %v1711 = vmax.f32 %v1679, 0.0
        %v1712 = vmax.f32 %v1680, 0.0
        %v1713 = vmax.f32 %v1681, 0.0
        %v1714 = vmax.f32 %v1682, 0.0
        %v1715 = vmax.f32 %v1683, 0.0
        %v1716 = vmax.f32 %v1684, 0.0
        %v1717 = vmax.f32 %v1685, 0.0
        %v1718 = vmax.f32 %v1686, 0.0
        %v1719 = vmax.f32 %v1687, 0.0
        %v1720 = vmax.f32 %v1688, 0.0
        %v1721 = vmax.f32 %v1689, 0.0
        %v1722 = vmax.f32 %v1690, 0.0
        %v1723 = vmax.f32 %v1691, 0.0
        %v1724 = vmax.f32 %v1692, 0.0
        %v1725 = vmax.f32 %v1693, 0.0
        %v1726 = vmax.f32 %v1694, 0.0
        %v1727 = vmax.f32 %v1695, 0.0
        %v1728 = vmax.f32 %v1696, 0.0
        %v1729 = vmax.f32 %v1697, 0.0
        %v1730 = vmax.f32 %v1698, 0.0
        %v1731 = vmax.f32 %v1699, 0.0
        %v1732 = vmax.f32 %v1700, 0.0
        %1733 = vst [vmem:[%s715] sm:$0xff] %v1701
        %1734 = vst [vmem:[%s715 + $0x8] sm:$0xff] %v1702
        %1735 = vst [vmem:[%s715 + $0x10] sm:$0xff] %v1703
        %1736 = vst [vmem:[%s715 + $0x18] sm:$0xff] %v1704
        %1737 = vst [vmem:[%s715 + $0x20] sm:$0xff] %v1705
        %1738 = vst [vmem:[%s715 + $0x28] sm:$0xff] %v1706
        %1739 = vst [vmem:[%s715 + $0x30] sm:$0xff] %v1707
        %1740 = vst [vmem:[%s715 + $0x38] sm:$0xff] %v1708
        %1741 = vst [vmem:[%s715 + $0x40] sm:$0xff] %v1709
        %1742 = vst [vmem:[%s715 + $0x48] sm:$0xff] %v1710
        %1743 = vst [vmem:[%s715 + $0x50] sm:$0xff] %v1711
        %1744 = vst [vmem:[%s715 + $0x58] sm:$0xff] %v1712
        %1745 = vst [vmem:[%s715 + $0x60] sm:$0xff] %v1713
        %1746 = vst [vmem:[%s715 + $0x68] sm:$0xff] %v1714
        %1747 = vst [vmem:[%s715 + $0x70] sm:$0xff] %v1715
        %1748 = vst [vmem:[%s715 + $0x78] sm:$0xff] %v1716
        %1749 = vst [vmem:[%s715 + $0x80] sm:$0xff] %v1717
        %1750 = vst [vmem:[%s715 + $0x88] sm:$0xff] %v1718
        %1751 = vst [vmem:[%s715 + $0x90] sm:$0xff] %v1719
        %1752 = vst [vmem:[%s715 + $0x98] sm:$0xff] %v1720
        %1753 = vst [vmem:[%s715 + $0xa0] sm:$0xff] %v1721
        %1754 = vst [vmem:[%s715 + $0xa8] sm:$0xff] %v1722
        %1755 = vst [vmem:[%s715 + $0xb0] sm:$0xff] %v1723
        %1756 = vst [vmem:[%s715 + $0xb8] sm:$0xff] %v1724
        %1757 = vst [vmem:[%s715 + $0xc0] sm:$0xff] %v1725
        %1758 = vst [vmem:[%s715 + $0xc8] sm:$0xff] %v1726
        %1759 = vst [vmem:[%s715 + $0xd0] sm:$0xff] %v1727
        %1760 = vst [vmem:[%s715 + $0xd8] sm:$0xff] %v1728
        %1761 = vst [vmem:[%s715 + $0xe0] sm:$0xff] %v1729
        %1762 = vst [vmem:[%s715 + $0xe8] sm:$0xff] %v1730
        %1763 = vst [vmem:[%s715 + $0xf0] sm:$0xff] %v1731
        %1764 = vst [vmem:[%s715 + $0xf8] sm:$0xff] %v1732
        %s1765 = smul.u32 32, %s14
        %p1766 = scmp.lt.s32.totalorder %s1765, 63
        %s1767 = scalar_select %p1766, %s1765, 63
        %s1768 = smul.addr %s1767, 8
        %s1769 = scalar_lea.vmem %s3, %s1768
        // Predicated region
        $region71: #{_lambda_.3} parent=65 // pred_check
          %p1770 = pneg %p100
        $region72: #{_lambda_.3} parent=65 // pred_check_branch
          %1772 = sbr.rel (%p1770) target = $region74
        $region73: #{_lambda_.3} parent=65 // pred_region
          %s1773 = smul.u32 32, %s14
        $region74: #{_lambda_.3} parent=65 // pred_fallthru
          _
      $region66: #{_lambda_.3} parent=5 // pred_fallthru
        _
      %p1774 = scmp.le.s32.totalorder 2, %s9
      // Predicated region
      $region75: #{_lambda_.3} parent=5 // pred_check
        %p1775 = pneg %p1774
      $region76: #{_lambda_.3} parent=5 // pred_check_branch
        %1777 = sbr.rel (%p1775) target = $region78
      $region77: #{_lambda_.3} parent=5 // pred_region
        %s1778 = ssub.s32 %s9, 2
        // Predicated region
        $region79: #{_lambda_.3} parent=77 // pred_check
          %p1779 = pneg %p106
        $region80: #{_lambda_.3} parent=77 // pred_check_branch
          %1781 = sbr.rel (%p1779) target = $region82
        $region81: #{_lambda_.3} parent=77 // pred_region
          %s1782 = smul.u32 32, %s15
          %p1783 = scmp.lt.s32.totalorder %s1782, 63
          %s1784 = scalar_select %p1783, %s1782, 63
          %s1785 = smul.addr %s1784, 8
          %s1786 = scalar_lea.vmem %s3, %s1785
        $region82: #{_lambda_.3} parent=77 // pred_fallthru
          _
      $region78: #{_lambda_.3} parent=5 // pred_fallthru
        _
    $region6: #{_lambda_.3} parent=1 // loop_footer
      %s13 = sadd.s32 1, %s9
    $region7: #{_lambda_.3} parent=1 // loop_footer_branch
      %8 = sbr.rel target = $region3
    $region8: #{_lambda_.3} parent=1 // loop_exit
      _

// kernel: _lambda_.4
$region0: #{_lambda_.4}
  #allocation0 [shape = 'u32[]', space=smem, size = 0x4, offset = 0x4, fixed_abs, tag = 'smem constant byte address 0x4 - core index']
  #allocation1 [shape = 'u32[144,128]{1,0:T(1,128)}', space=vmem, size = 0x12000, scoped, tag = 'internal scratch']
  %s0 = inlined_call_operand.vmem [shape: f32[4,128,512], index: 0, kind: input, shape index: {}]
  %s1 = inlined_call_operand.vmem [shape: f32[512,128], index: 1, kind: input, shape index: {}]
  %s2 = inlined_call_operand.vmem [shape: f32[1,128], index: 2, kind: input, shape index: {}]
  %s3 = inlined_call_operand.vmem [shape: f32[128,128], index: 3, kind: output, shape index: {}]
  %s4 = sld [smem:[#allocation0]]
  $region22: #{_lambda_.4} parent=0
    _
  %s6 = ssub.s32 1, %s4
  %s7 = scalar_select 0, %s6, %s4
  // Predicated region
  $region2: #{_lambda_.4} parent=0 // pred_check
    _
  $region3: #{_lambda_.4} parent=0 // pred_check_branch
    %9 = sbr.rel (0) target = $region5
  $region4: #{_lambda_.4} parent=0 // pred_region
    _
  $region5: #{_lambda_.4} parent=0 // pred_fallthru
    _
  // Predicated region
  $region6: #{_lambda_.4} parent=0 // pred_check
    _
  $region7: #{_lambda_.4} parent=0 // pred_check_branch
    %11 = sbr.rel (0) target = $region9
  $region8: #{_lambda_.4} parent=0 // pred_region
    _
  $region9: #{_lambda_.4} parent=0 // pred_fallthru
    _
  // Predicated region
  $region10: #{_lambda_.4} parent=0 // pred_check
    _
  $region11: #{_lambda_.4} parent=0 // pred_check_branch
    %13 = sbr.rel (0) target = $region13
  $region12: #{_lambda_.4} parent=0 // pred_region
    _
  $region13: #{_lambda_.4} parent=0 // pred_fallthru
    _
  %v14 = vld [vmem:[%s0] sm:$0xff]
  %v15 = vld [vmem:[%s0 + $0x8] sm:$0xff]
  %v16 = vld [vmem:[%s0 + $0x10] sm:$0xff]
  %v17 = vld [vmem:[%s0 + $0x18] sm:$0xff]
  %v18 = vld [vmem:[%s0 + $0x20] sm:$0xff]
  %v19 = vld [vmem:[%s0 + $0x28] sm:$0xff]
  %v20 = vld [vmem:[%s0 + $0x30] sm:$0xff]
  %v21 = vld [vmem:[%s0 + $0x38] sm:$0xff]
  %v22 = vld [vmem:[%s0 + $0x40] sm:$0xff]
  %v23 = vld [vmem:[%s0 + $0x48] sm:$0xff]
  %v24 = vld [vmem:[%s0 + $0x50] sm:$0xff]
  %v25 = vld [vmem:[%s0 + $0x58] sm:$0xff]
  %v26 = vld [vmem:[%s0 + $0x60] sm:$0xff]
  %v27 = vld [vmem:[%s0 + $0x68] sm:$0xff]
  %v28 = vld [vmem:[%s0 + $0x70] sm:$0xff]
  %v29 = vld [vmem:[%s0 + $0x78] sm:$0xff]
  %v30 = vld [vmem:[%s0 + $0x80] sm:$0xff]
  %v31 = vld [vmem:[%s0 + $0x88] sm:$0xff]
  %v32 = vld [vmem:[%s0 + $0x90] sm:$0xff]
  %v33 = vld [vmem:[%s0 + $0x98] sm:$0xff]
  %v34 = vld [vmem:[%s0 + $0xa0] sm:$0xff]
  %v35 = vld [vmem:[%s0 + $0xa8] sm:$0xff]
  %v36 = vld [vmem:[%s0 + $0xb0] sm:$0xff]
  %v37 = vld [vmem:[%s0 + $0xb8] sm:$0xff]
  %v38 = vld [vmem:[%s0 + $0xc0] sm:$0xff]
  %v39 = vld [vmem:[%s0 + $0xc8] sm:$0xff]
  %v40 = vld [vmem:[%s0 + $0xd0] sm:$0xff]
  %v41 = vld [vmem:[%s0 + $0xd8] sm:$0xff]
  %v42 = vld [vmem:[%s0 + $0xe0] sm:$0xff]
  %v43 = vld [vmem:[%s0 + $0xe8] sm:$0xff]
  %v44 = vld [vmem:[%s0 + $0xf0] sm:$0xff]
  %v45 = vld [vmem:[%s0 + $0xf8] sm:$0xff]
  %v46 = vld [vmem:[%s0 + $0x100] sm:$0xff]
  %v47 = vld [vmem:[%s0 + $0x108] sm:$0xff]
  %v48 = vld [vmem:[%s0 + $0x110] sm:$0xff]
  %v49 = vld [vmem:[%s0 + $0x118] sm:$0xff]
  %v50 = vld [vmem:[%s0 + $0x120] sm:$0xff]
  %v51 = vld [vmem:[%s0 + $0x128] sm:$0xff]
  %v52 = vld [vmem:[%s0 + $0x130] sm:$0xff]
  %v53 = vld [vmem:[%s0 + $0x138] sm:$0xff]
  %v54 = vld [vmem:[%s0 + $0x140] sm:$0xff]
  %v55 = vld [vmem:[%s0 + $0x148] sm:$0xff]
  %v56 = vld [vmem:[%s0 + $0x150] sm:$0xff]
  %v57 = vld [vmem:[%s0 + $0x158] sm:$0xff]
  %v58 = vld [vmem:[%s0 + $0x160] sm:$0xff]
  %v59 = vld [vmem:[%s0 + $0x168] sm:$0xff]
  %v60 = vld [vmem:[%s0 + $0x170] sm:$0xff]
  %v61 = vld [vmem:[%s0 + $0x178] sm:$0xff]
  %v62 = vld [vmem:[%s0 + $0x180] sm:$0xff]
  %v63 = vld [vmem:[%s0 + $0x188] sm:$0xff]
  %v64 = vld [vmem:[%s0 + $0x190] sm:$0xff]
  %v65 = vld [vmem:[%s0 + $0x198] sm:$0xff]
  %v66 = vld [vmem:[%s0 + $0x1a0] sm:$0xff]
  %v67 = vld [vmem:[%s0 + $0x1a8] sm:$0xff]
  %v68 = vld [vmem:[%s0 + $0x1b0] sm:$0xff]
  %v69 = vld [vmem:[%s0 + $0x1b8] sm:$0xff]
  %v70 = vld [vmem:[%s0 + $0x1c0] sm:$0xff]
  %v71 = vld [vmem:[%s0 + $0x1c8] sm:$0xff]
  %v72 = vld [vmem:[%s0 + $0x1d0] sm:$0xff]
  %v73 = vld [vmem:[%s0 + $0x1d8] sm:$0xff]
  %v74 = vld [vmem:[%s0 + $0x1e0] sm:$0xff]
  %v75 = vld [vmem:[%s0 + $0x1e8] sm:$0xff]
  %v76 = vld [vmem:[%s0 + $0x1f0] sm:$0xff]
  %v77 = vld [vmem:[%s0 + $0x1f8] sm:$0xff]
  %v78 = vld [vmem:[%s0 + $0x200] sm:$0xff]
  %v79 = vld [vmem:[%s0 + $0x208] sm:$0xff]
  %v80 = vld [vmem:[%s0 + $0x210] sm:$0xff]
  %v81 = vld [vmem:[%s0 + $0x218] sm:$0xff]
  %v82 = vld [vmem:[%s0 + $0x220] sm:$0xff]
  %v83 = vld [vmem:[%s0 + $0x228] sm:$0xff]
  %v84 = vld [vmem:[%s0 + $0x230] sm:$0xff]
  %v85 = vld [vmem:[%s0 + $0x238] sm:$0xff]
  %v86 = vld [vmem:[%s0 + $0x240] sm:$0xff]
  %v87 = vld [vmem:[%s0 + $0x248] sm:$0xff]
  %v88 = vld [vmem:[%s0 + $0x250] sm:$0xff]
  %v89 = vld [vmem:[%s0 + $0x258] sm:$0xff]
  %v90 = vld [vmem:[%s0 + $0x260] sm:$0xff]
  %v91 = vld [vmem:[%s0 + $0x268] sm:$0xff]
  %v92 = vld [vmem:[%s0 + $0x270] sm:$0xff]
  %v93 = vld [vmem:[%s0 + $0x278] sm:$0xff]
  %v94 = vld [vmem:[%s0 + $0x280] sm:$0xff]
  %v95 = vld [vmem:[%s0 + $0x288] sm:$0xff]
  %v96 = vld [vmem:[%s0 + $0x290] sm:$0xff]
  %v97 = vld [vmem:[%s0 + $0x298] sm:$0xff]
  %v98 = vld [vmem:[%s0 + $0x2a0] sm:$0xff]
  %v99 = vld [vmem:[%s0 + $0x2a8] sm:$0xff]
  %v100 = vld [vmem:[%s0 + $0x2b0] sm:$0xff]
  %v101 = vld [vmem:[%s0 + $0x2b8] sm:$0xff]
  %v102 = vld [vmem:[%s0 + $0x2c0] sm:$0xff]
  %v103 = vld [vmem:[%s0 + $0x2c8] sm:$0xff]
  %v104 = vld [vmem:[%s0 + $0x2d0] sm:$0xff]
  %v105 = vld [vmem:[%s0 + $0x2d8] sm:$0xff]
  %v106 = vld [vmem:[%s0 + $0x2e0] sm:$0xff]
  %v107 = vld [vmem:[%s0 + $0x2e8] sm:$0xff]
  %v108 = vld [vmem:[%s0 + $0x2f0] sm:$0xff]
  %v109 = vld [vmem:[%s0 + $0x2f8] sm:$0xff]
  %v110 = vld [vmem:[%s0 + $0x300] sm:$0xff]
  %v111 = vld [vmem:[%s0 + $0x308] sm:$0xff]
  %v112 = vld [vmem:[%s0 + $0x310] sm:$0xff]
  %v113 = vld [vmem:[%s0 + $0x318] sm:$0xff]
  %v114 = vld [vmem:[%s0 + $0x320] sm:$0xff]
  %v115 = vld [vmem:[%s0 + $0x328] sm:$0xff]
  %v116 = vld [vmem:[%s0 + $0x330] sm:$0xff]
  %v117 = vld [vmem:[%s0 + $0x338] sm:$0xff]
  %v118 = vld [vmem:[%s0 + $0x340] sm:$0xff]
  %v119 = vld [vmem:[%s0 + $0x348] sm:$0xff]
  %v120 = vld [vmem:[%s0 + $0x350] sm:$0xff]
  %v121 = vld [vmem:[%s0 + $0x358] sm:$0xff]
  %v122 = vld [vmem:[%s0 + $0x360] sm:$0xff]
  %v123 = vld [vmem:[%s0 + $0x368] sm:$0xff]
  %v124 = vld [vmem:[%s0 + $0x370] sm:$0xff]
  %v125 = vld [vmem:[%s0 + $0x378] sm:$0xff]
  %v126 = vld [vmem:[%s0 + $0x380] sm:$0xff]
  %v127 = vld [vmem:[%s0 + $0x388] sm:$0xff]
  %v128 = vld [vmem:[%s0 + $0x390] sm:$0xff]
  %v129 = vld [vmem:[%s0 + $0x398] sm:$0xff]
  %v130 = vld [vmem:[%s0 + $0x3a0] sm:$0xff]
  %v131 = vld [vmem:[%s0 + $0x3a8] sm:$0xff]
  %v132 = vld [vmem:[%s0 + $0x3b0] sm:$0xff]
  %v133 = vld [vmem:[%s0 + $0x3b8] sm:$0xff]
  %v134 = vld [vmem:[%s0 + $0x3c0] sm:$0xff]
  %v135 = vld [vmem:[%s0 + $0x3c8] sm:$0xff]
  %v136 = vld [vmem:[%s0 + $0x3d0] sm:$0xff]
  %v137 = vld [vmem:[%s0 + $0x3d8] sm:$0xff]
  %v138 = vld [vmem:[%s0 + $0x3e0] sm:$0xff]
  %v139 = vld [vmem:[%s0 + $0x3e8] sm:$0xff]
  %v140 = vld [vmem:[%s0 + $0x3f0] sm:$0xff]
  %v141 = vld [vmem:[%s0 + $0x3f8] sm:$0xff]
  %v142 = vld [vmem:[%s0 + $0x400] sm:$0xff]
  %v143 = vld [vmem:[%s0 + $0x408] sm:$0xff]
  %v144 = vld [vmem:[%s0 + $0x410] sm:$0xff]
  %v145 = vld [vmem:[%s0 + $0x418] sm:$0xff]
  %v146 = vld [vmem:[%s0 + $0x420] sm:$0xff]
  %v147 = vld [vmem:[%s0 + $0x428] sm:$0xff]
  %v148 = vld [vmem:[%s0 + $0x430] sm:$0xff]
  %v149 = vld [vmem:[%s0 + $0x438] sm:$0xff]
  %v150 = vld [vmem:[%s0 + $0x440] sm:$0xff]
  %v151 = vld [vmem:[%s0 + $0x448] sm:$0xff]
  %v152 = vld [vmem:[%s0 + $0x450] sm:$0xff]
  %v153 = vld [vmem:[%s0 + $0x458] sm:$0xff]
  %v154 = vld [vmem:[%s0 + $0x460] sm:$0xff]
  %v155 = vld [vmem:[%s0 + $0x468] sm:$0xff]
  %v156 = vld [vmem:[%s0 + $0x470] sm:$0xff]
  %v157 = vld [vmem:[%s0 + $0x478] sm:$0xff]
  %v158 = vld [vmem:[%s0 + $0x480] sm:$0xff]
  %v159 = vld [vmem:[%s0 + $0x488] sm:$0xff]
  %v160 = vld [vmem:[%s0 + $0x490] sm:$0xff]
  %v161 = vld [vmem:[%s0 + $0x498] sm:$0xff]
  %v162 = vld [vmem:[%s0 + $0x4a0] sm:$0xff]
  %v163 = vld [vmem:[%s0 + $0x4a8] sm:$0xff]
  %v164 = vld [vmem:[%s0 + $0x4b0] sm:$0xff]
  %v165 = vld [vmem:[%s0 + $0x4b8] sm:$0xff]
  %v166 = vld [vmem:[%s0 + $0x4c0] sm:$0xff]
  %v167 = vld [vmem:[%s0 + $0x4c8] sm:$0xff]
  %v168 = vld [vmem:[%s0 + $0x4d0] sm:$0xff]
  %v169 = vld [vmem:[%s0 + $0x4d8] sm:$0xff]
  %v170 = vld [vmem:[%s0 + $0x4e0] sm:$0xff]
  %v171 = vld [vmem:[%s0 + $0x4e8] sm:$0xff]
  %v172 = vld [vmem:[%s0 + $0x4f0] sm:$0xff]
  %v173 = vld [vmem:[%s0 + $0x4f8] sm:$0xff]
  %v174 = vld [vmem:[%s0 + $0x500] sm:$0xff]
  %v175 = vld [vmem:[%s0 + $0x508] sm:$0xff]
  %v176 = vld [vmem:[%s0 + $0x510] sm:$0xff]
  %v177 = vld [vmem:[%s0 + $0x518] sm:$0xff]
  %v178 = vld [vmem:[%s0 + $0x520] sm:$0xff]
  %v179 = vld [vmem:[%s0 + $0x528] sm:$0xff]
  %v180 = vld [vmem:[%s0 + $0x530] sm:$0xff]
  %v181 = vld [vmem:[%s0 + $0x538] sm:$0xff]
  %v182 = vld [vmem:[%s0 + $0x540] sm:$0xff]
  %v183 = vld [vmem:[%s0 + $0x548] sm:$0xff]
  %v184 = vld [vmem:[%s0 + $0x550] sm:$0xff]
  %v185 = vld [vmem:[%s0 + $0x558] sm:$0xff]
  %v186 = vld [vmem:[%s0 + $0x560] sm:$0xff]
  %v187 = vld [vmem:[%s0 + $0x568] sm:$0xff]
  %v188 = vld [vmem:[%s0 + $0x570] sm:$0xff]
  %v189 = vld [vmem:[%s0 + $0x578] sm:$0xff]
  %v190 = vld [vmem:[%s0 + $0x580] sm:$0xff]
  %v191 = vld [vmem:[%s0 + $0x588] sm:$0xff]
  %v192 = vld [vmem:[%s0 + $0x590] sm:$0xff]
  %v193 = vld [vmem:[%s0 + $0x598] sm:$0xff]
  %v194 = vld [vmem:[%s0 + $0x5a0] sm:$0xff]
  %v195 = vld [vmem:[%s0 + $0x5a8] sm:$0xff]
  %v196 = vld [vmem:[%s0 + $0x5b0] sm:$0xff]
  %v197 = vld [vmem:[%s0 + $0x5b8] sm:$0xff]
  %v198 = vld [vmem:[%s0 + $0x5c0] sm:$0xff]
  %v199 = vld [vmem:[%s0 + $0x5c8] sm:$0xff]
  %v200 = vld [vmem:[%s0 + $0x5d0] sm:$0xff]
  %v201 = vld [vmem:[%s0 + $0x5d8] sm:$0xff]
  %v202 = vld [vmem:[%s0 + $0x5e0] sm:$0xff]
  %v203 = vld [vmem:[%s0 + $0x5e8] sm:$0xff]
  %v204 = vld [vmem:[%s0 + $0x5f0] sm:$0xff]
  %v205 = vld [vmem:[%s0 + $0x5f8] sm:$0xff]
  %v206 = vld [vmem:[%s0 + $0x600] sm:$0xff]
  %v207 = vld [vmem:[%s0 + $0x608] sm:$0xff]
  %v208 = vld [vmem:[%s0 + $0x610] sm:$0xff]
  %v209 = vld [vmem:[%s0 + $0x618] sm:$0xff]
  %v210 = vld [vmem:[%s0 + $0x620] sm:$0xff]
  %v211 = vld [vmem:[%s0 + $0x628] sm:$0xff]
  %v212 = vld [vmem:[%s0 + $0x630] sm:$0xff]
  %v213 = vld [vmem:[%s0 + $0x638] sm:$0xff]
  %v214 = vld [vmem:[%s0 + $0x640] sm:$0xff]
  %v215 = vld [vmem:[%s0 + $0x648] sm:$0xff]
  %v216 = vld [vmem:[%s0 + $0x650] sm:$0xff]
  %v217 = vld [vmem:[%s0 + $0x658] sm:$0xff]
  %v218 = vld [vmem:[%s0 + $0x660] sm:$0xff]
  %v219 = vld [vmem:[%s0 + $0x668] sm:$0xff]
  %v220 = vld [vmem:[%s0 + $0x670] sm:$0xff]
  %v221 = vld [vmem:[%s0 + $0x678] sm:$0xff]
  %v222 = vld [vmem:[%s0 + $0x680] sm:$0xff]
  %v223 = vld [vmem:[%s0 + $0x688] sm:$0xff]
  %v224 = vld [vmem:[%s0 + $0x690] sm:$0xff]
  %v225 = vld [vmem:[%s0 + $0x698] sm:$0xff]
  %v226 = vld [vmem:[%s0 + $0x6a0] sm:$0xff]
  %v227 = vld [vmem:[%s0 + $0x6a8] sm:$0xff]
  %v228 = vld [vmem:[%s0 + $0x6b0] sm:$0xff]
  %v229 = vld [vmem:[%s0 + $0x6b8] sm:$0xff]
  %v230 = vld [vmem:[%s0 + $0x6c0] sm:$0xff]
  %v231 = vld [vmem:[%s0 + $0x6c8] sm:$0xff]
  %v232 = vld [vmem:[%s0 + $0x6d0] sm:$0xff]
  %v233 = vld [vmem:[%s0 + $0x6d8] sm:$0xff]
  %v234 = vld [vmem:[%s0 + $0x6e0] sm:$0xff]
  %v235 = vld [vmem:[%s0 + $0x6e8] sm:$0xff]
  %v236 = vld [vmem:[%s0 + $0x6f0] sm:$0xff]
  %v237 = vld [vmem:[%s0 + $0x6f8] sm:$0xff]
  %v238 = vld [vmem:[%s0 + $0x700] sm:$0xff]
  %v239 = vld [vmem:[%s0 + $0x708] sm:$0xff]
  %v240 = vld [vmem:[%s0 + $0x710] sm:$0xff]
  %v241 = vld [vmem:[%s0 + $0x718] sm:$0xff]
  %v242 = vld [vmem:[%s0 + $0x720] sm:$0xff]
  %v243 = vld [vmem:[%s0 + $0x728] sm:$0xff]
  %v244 = vld [vmem:[%s0 + $0x730] sm:$0xff]
  %v245 = vld [vmem:[%s0 + $0x738] sm:$0xff]
  %v246 = vld [vmem:[%s0 + $0x740] sm:$0xff]
  %v247 = vld [vmem:[%s0 + $0x748] sm:$0xff]
  %v248 = vld [vmem:[%s0 + $0x750] sm:$0xff]
  %v249 = vld [vmem:[%s0 + $0x758] sm:$0xff]
  %v250 = vld [vmem:[%s0 + $0x760] sm:$0xff]
  %v251 = vld [vmem:[%s0 + $0x768] sm:$0xff]
  %v252 = vld [vmem:[%s0 + $0x770] sm:$0xff]
  %v253 = vld [vmem:[%s0 + $0x778] sm:$0xff]
  %v254 = vld [vmem:[%s0 + $0x780] sm:$0xff]
  %v255 = vld [vmem:[%s0 + $0x788] sm:$0xff]
  %v256 = vld [vmem:[%s0 + $0x790] sm:$0xff]
  %v257 = vld [vmem:[%s0 + $0x798] sm:$0xff]
  %v258 = vld [vmem:[%s0 + $0x7a0] sm:$0xff]
  %v259 = vld [vmem:[%s0 + $0x7a8] sm:$0xff]
  %v260 = vld [vmem:[%s0 + $0x7b0] sm:$0xff]
  %v261 = vld [vmem:[%s0 + $0x7b8] sm:$0xff]
  %v262 = vld [vmem:[%s0 + $0x7c0] sm:$0xff]
  %v263 = vld [vmem:[%s0 + $0x7c8] sm:$0xff]
  %v264 = vld [vmem:[%s0 + $0x7d0] sm:$0xff]
  %v265 = vld [vmem:[%s0 + $0x7d8] sm:$0xff]
  %v266 = vld [vmem:[%s0 + $0x7e0] sm:$0xff]
  %v267 = vld [vmem:[%s0 + $0x7e8] sm:$0xff]
  %v268 = vld [vmem:[%s0 + $0x7f0] sm:$0xff]
  %v269 = vld [vmem:[%s0 + $0x7f8] sm:$0xff]
  %v270 = vld [vmem:[%s1] sm:$0xff]
  %v271 = vld [vmem:[%s1 + $0x8] sm:$0xff]
  %v272 = vld [vmem:[%s1 + $0x10] sm:$0xff]
  %v273 = vld [vmem:[%s1 + $0x18] sm:$0xff]
  %v274 = vld [vmem:[%s1 + $0x20] sm:$0xff]
  %v275 = vld [vmem:[%s1 + $0x28] sm:$0xff]
  %v276 = vld [vmem:[%s1 + $0x30] sm:$0xff]
  %v277 = vld [vmem:[%s1 + $0x38] sm:$0xff]
  %v278 = vld [vmem:[%s1 + $0x40] sm:$0xff]
  %v279 = vld [vmem:[%s1 + $0x48] sm:$0xff]
  %v280 = vld [vmem:[%s1 + $0x50] sm:$0xff]
  %v281 = vld [vmem:[%s1 + $0x58] sm:$0xff]
  %v282 = vld [vmem:[%s1 + $0x60] sm:$0xff]
  %v283 = vld [vmem:[%s1 + $0x68] sm:$0xff]
  %v284 = vld [vmem:[%s1 + $0x70] sm:$0xff]
  %v285 = vld [vmem:[%s1 + $0x78] sm:$0xff]
  %v286 = vld [vmem:[%s1 + $0x80] sm:$0xff]
  %v287 = vld [vmem:[%s1 + $0x88] sm:$0xff]
  %v288 = vld [vmem:[%s1 + $0x90] sm:$0xff]
  %v289 = vld [vmem:[%s1 + $0x98] sm:$0xff]
  %v290 = vld [vmem:[%s1 + $0xa0] sm:$0xff]
  %v291 = vld [vmem:[%s1 + $0xa8] sm:$0xff]
  %v292 = vld [vmem:[%s1 + $0xb0] sm:$0xff]
  %v293 = vld [vmem:[%s1 + $0xb8] sm:$0xff]
  %v294 = vld [vmem:[%s1 + $0xc0] sm:$0xff]
  %v295 = vld [vmem:[%s1 + $0xc8] sm:$0xff]
  %v296 = vld [vmem:[%s1 + $0xd0] sm:$0xff]
  %v297 = vld [vmem:[%s1 + $0xd8] sm:$0xff]
  %v298 = vld [vmem:[%s1 + $0xe0] sm:$0xff]
  %v299 = vld [vmem:[%s1 + $0xe8] sm:$0xff]
  %v300 = vld [vmem:[%s1 + $0xf0] sm:$0xff]
  %v301 = vld [vmem:[%s1 + $0xf8] sm:$0xff]
  %v302 = vld [vmem:[%s1 + $0x100] sm:$0xff]
  %v303 = vld [vmem:[%s1 + $0x108] sm:$0xff]
  %v304 = vld [vmem:[%s1 + $0x110] sm:$0xff]
  %v305 = vld [vmem:[%s1 + $0x118] sm:$0xff]
  %v306 = vld [vmem:[%s1 + $0x120] sm:$0xff]
  %v307 = vld [vmem:[%s1 + $0x128] sm:$0xff]
  %v308 = vld [vmem:[%s1 + $0x130] sm:$0xff]
  %v309 = vld [vmem:[%s1 + $0x138] sm:$0xff]
  %v310 = vld [vmem:[%s1 + $0x140] sm:$0xff]
  %v311 = vld [vmem:[%s1 + $0x148] sm:$0xff]
  %v312 = vld [vmem:[%s1 + $0x150] sm:$0xff]
  %v313 = vld [vmem:[%s1 + $0x158] sm:$0xff]
  %v314 = vld [vmem:[%s1 + $0x160] sm:$0xff]
  %v315 = vld [vmem:[%s1 + $0x168] sm:$0xff]
  %v316 = vld [vmem:[%s1 + $0x170] sm:$0xff]
  %v317 = vld [vmem:[%s1 + $0x178] sm:$0xff]
  %v318 = vld [vmem:[%s1 + $0x180] sm:$0xff]
  %v319 = vld [vmem:[%s1 + $0x188] sm:$0xff]
  %v320 = vld [vmem:[%s1 + $0x190] sm:$0xff]
  %v321 = vld [vmem:[%s1 + $0x198] sm:$0xff]
  %v322 = vld [vmem:[%s1 + $0x1a0] sm:$0xff]
  %v323 = vld [vmem:[%s1 + $0x1a8] sm:$0xff]
  %v324 = vld [vmem:[%s1 + $0x1b0] sm:$0xff]
  %v325 = vld [vmem:[%s1 + $0x1b8] sm:$0xff]
  %v326 = vld [vmem:[%s1 + $0x1c0] sm:$0xff]
  %v327 = vld [vmem:[%s1 + $0x1c8] sm:$0xff]
  %v328 = vld [vmem:[%s1 + $0x1d0] sm:$0xff]
  %v329 = vld [vmem:[%s1 + $0x1d8] sm:$0xff]
  %v330 = vld [vmem:[%s1 + $0x1e0] sm:$0xff]
  %v331 = vld [vmem:[%s1 + $0x1e8] sm:$0xff]
  %v332 = vld [vmem:[%s1 + $0x1f0] sm:$0xff]
  %v333 = vld [vmem:[%s1 + $0x1f8] sm:$0xff]
  %334 = vmatprep.subr.mxu0 0.0
  %335 = vmatpush1.msra.mxu0 %v285
  %336 = vmatprep.subr.mxu0 0.0
  %337 = vmatpush1.msra.mxu0 %v284
  %338 = vmatprep.subr.mxu0 0.0
  %339 = vmatpush1.msra.mxu0 %v283
  %340 = vmatprep.subr.mxu0 0.0
  %341 = vmatpush1.msra.mxu0 %v282
  %342 = vmatprep.subr.mxu0 0.0
  %343 = vmatpush1.msra.mxu0 %v281
  %344 = vmatprep.subr.mxu0 0.0
  %345 = vmatpush1.msra.mxu0 %v280
  %346 = vmatprep.subr.mxu0 0.0
  %347 = vmatpush1.msra.mxu0 %v279
  %348 = vmatprep.subr.mxu0 0.0
  %349 = vmatpush1.msra.mxu0 %v278
  %350 = vmatprep.subr.mxu0 0.0
  %351 = vmatpush1.msra.mxu0 %v277
  %352 = vmatprep.subr.mxu0 0.0
  %353 = vmatpush1.msra.mxu0 %v276
  %354 = vmatprep.subr.mxu0 0.0
  %355 = vmatpush1.msra.mxu0 %v275
  %356 = vmatprep.subr.mxu0 0.0
  %357 = vmatpush1.msra.mxu0 %v274
  %358 = vmatprep.subr.mxu0 0.0
  %359 = vmatpush1.msra.mxu0 %v273
  %360 = vmatprep.subr.mxu0 0.0
  %361 = vmatpush1.msra.mxu0 %v272
  %362 = vmatprep.subr.mxu0 0.0
  %363 = vmatpush1.msra.mxu0 %v271
  %364 = vmatprep.subr.mxu0 0.0
  %365 = vmatpush1.msra.mxu0 %v270
  %366 = vmatprep.subr.mxu0 0.0
  %367 = vmatpush2.msra.mxu0 %v301
  %368 = vmatprep.subr.mxu0 0.0
  %369 = vmatpush2.msra.mxu0 %v300
  %370 = vmatprep.subr.mxu0 0.0
  %371 = vmatpush2.msra.mxu0 %v299
  %372 = vmatprep.subr.mxu0 0.0
  %373 = vmatpush2.msra.mxu0 %v298
  %374 = vmatprep.subr.mxu0 0.0
  %375 = vmatpush2.msra.mxu0 %v297
  %376 = vmatprep.subr.mxu0 0.0
  %377 = vmatpush2.msra.mxu0 %v296
  %378 = vmatprep.subr.mxu0 0.0
  %379 = vmatpush2.msra.mxu0 %v295
  %380 = vmatprep.subr.mxu0 0.0
  %381 = vmatpush2.msra.mxu0 %v294
  %382 = vmatprep.subr.mxu0 0.0
  %383 = vmatpush2.msra.mxu0 %v293
  %384 = vmatprep.subr.mxu0 0.0
  %385 = vmatpush2.msra.mxu0 %v292
  %386 = vmatprep.subr.mxu0 0.0
  %387 = vmatpush2.msra.mxu0 %v291
  %388 = vmatprep.subr.mxu0 0.0
  %389 = vmatpush2.msra.mxu0 %v290
  %390 = vmatprep.subr.mxu0 0.0
  %391 = vmatpush2.msra.mxu0 %v289
  %392 = vmatprep.subr.mxu0 0.0
  %393 = vmatpush2.msra.mxu0 %v288
  %394 = vmatprep.subr.mxu0 0.0
  %395 = vmatpush2.msra.mxu0 %v287
  %396 = vmatprep.subr.mxu0 0.0
  %397 = vmatpush2.msra.mxu0 %v286
  %398 = vmatprep.mubr.f32.mxu0 %v15
  %399 = vmatmul.mubr.f32.gmra.mxu0 %v14
  %v400 = vpop.f32.mrf.mxu0
  %v401 = vadd.f32 0.0, %v400
  %v402 = vpop.f32.mrf.mxu0
  %403 = vmatprep.mubr.f32.mxu0 %v19
  %404 = vmatmul.mubr.f32.gmra.mxu0 %v18
  %v405 = vpop.f32.mrf.mxu0
  %v406 = vadd.f32 0.0, %v405
  %v407 = vpop.f32.mrf.mxu0
  %408 = vmatprep.mubr.f32.mxu0 %v23
  %409 = vmatmul.mubr.f32.gmra.mxu0 %v22
  %v410 = vpop.f32.mrf.mxu0
  %v411 = vadd.f32 0.0, %v410
  %v412 = vpop.f32.mrf.mxu0
  %413 = vmatprep.mubr.f32.mxu0 %v27
  %414 = vmatmul.mubr.f32.gmra.mxu0 %v26
  %v415 = vpop.f32.mrf.mxu0
  %v416 = vadd.f32 0.0, %v415
  %v417 = vpop.f32.mrf.mxu0
  %418 = vmatprep.mubr.f32.mxu0 %v31
  %419 = vmatmul.mubr.f32.gmra.mxu0 %v30
  %v420 = vpop.f32.mrf.mxu0
  %v421 = vadd.f32 0.0, %v420
  %v422 = vpop.f32.mrf.mxu0
  %423 = vmatprep.mubr.f32.mxu0 %v35
  %424 = vmatmul.mubr.f32.gmra.mxu0 %v34
  %v425 = vpop.f32.mrf.mxu0
  %v426 = vadd.f32 0.0, %v425
  %v427 = vpop.f32.mrf.mxu0
  %428 = vmatprep.mubr.f32.mxu0 %v39
  %429 = vmatmul.mubr.f32.gmra.mxu0 %v38
  %v430 = vpop.f32.mrf.mxu0
  %v431 = vadd.f32 0.0, %v430
  %v432 = vpop.f32.mrf.mxu0
  %433 = vmatprep.mubr.f32.mxu0 %v43
  %434 = vmatmul.mubr.f32.gmra.mxu0 %v42
  %v435 = vpop.f32.mrf.mxu0
  %v436 = vadd.f32 0.0, %v435
  %v437 = vpop.f32.mrf.mxu0
  %438 = vmatprep.mubr.f32.mxu0 %v47
  %439 = vmatmul.mubr.f32.gmra.mxu0 %v46
  %v440 = vpop.f32.mrf.mxu0
  %v441 = vadd.f32 0.0, %v440
  %v442 = vpop.f32.mrf.mxu0
  %443 = vmatprep.mubr.f32.mxu0 %v51
  %444 = vmatmul.mubr.f32.gmra.mxu0 %v50
  %v445 = vpop.f32.mrf.mxu0
  %v446 = vadd.f32 0.0, %v445
  %v447 = vpop.f32.mrf.mxu0
  %448 = vmatprep.mubr.f32.mxu0 %v55
  %449 = vmatmul.mubr.f32.gmra.mxu0 %v54
  %v450 = vpop.f32.mrf.mxu0
  %v451 = vadd.f32 0.0, %v450
  %v452 = vpop.f32.mrf.mxu0
  %453 = vmatprep.mubr.f32.mxu0 %v59
  %454 = vmatmul.mubr.f32.gmra.mxu0 %v58
  %v455 = vpop.f32.mrf.mxu0
  %v456 = vadd.f32 0.0, %v455
  %v457 = vpop.f32.mrf.mxu0
  %458 = vmatprep.mubr.f32.mxu0 %v63
  %459 = vmatmul.mubr.f32.gmra.mxu0 %v62
  %v460 = vpop.f32.mrf.mxu0
  %v461 = vadd.f32 0.0, %v460
  %v462 = vpop.f32.mrf.mxu0
  %463 = vmatprep.mubr.f32.mxu0 %v67
  %464 = vmatmul.mubr.f32.gmra.mxu0 %v66
  %v465 = vpop.f32.mrf.mxu0
  %v466 = vadd.f32 0.0, %v465
  %v467 = vpop.f32.mrf.mxu0
  %468 = vmatprep.mubr.f32.mxu0 %v71
  %469 = vmatmul.mubr.f32.gmra.mxu0 %v70
  %v470 = vpop.f32.mrf.mxu0
  %v471 = vadd.f32 0.0, %v470
  %v472 = vpop.f32.mrf.mxu0
  %473 = vmatprep.mubr.f32.mxu0 %v75
  %474 = vmatmul.mubr.f32.gmra.mxu0 %v74
  %v475 = vpop.f32.mrf.mxu0
  %v476 = vadd.f32 0.0, %v475
  %v477 = vpop.f32.mrf.mxu0
  %478 = vmatprep.mubr.f32.mxu0 %v79
  %479 = vmatmul.mubr.f32.gmra.mxu0 %v78
  %v480 = vpop.f32.mrf.mxu0
  %v481 = vadd.f32 0.0, %v480
  %v482 = vpop.f32.mrf.mxu0
  %483 = vmatprep.mubr.f32.mxu0 %v83
  %484 = vmatmul.mubr.f32.gmra.mxu0 %v82
  %v485 = vpop.f32.mrf.mxu0
  %v486 = vadd.f32 0.0, %v485
  %v487 = vpop.f32.mrf.mxu0
  %488 = vmatprep.mubr.f32.mxu0 %v87
  %489 = vmatmul.mubr.f32.gmra.mxu0 %v86
  %v490 = vpop.f32.mrf.mxu0
  %v491 = vadd.f32 0.0, %v490
  %v492 = vpop.f32.mrf.mxu0
  %493 = vmatprep.mubr.f32.mxu0 %v91
  %494 = vmatmul.mubr.f32.gmra.mxu0 %v90
  %v495 = vpop.f32.mrf.mxu0
  %v496 = vadd.f32 0.0, %v495
  %v497 = vpop.f32.mrf.mxu0
  %498 = vmatprep.mubr.f32.mxu0 %v95
  %499 = vmatmul.mubr.f32.gmra.mxu0 %v94
  %v500 = vpop.f32.mrf.mxu0
  %v501 = vadd.f32 0.0, %v500
  %v502 = vpop.f32.mrf.mxu0
  %503 = vmatprep.mubr.f32.mxu0 %v99
  %504 = vmatmul.mubr.f32.gmra.mxu0 %v98
  %v505 = vpop.f32.mrf.mxu0
  %v506 = vadd.f32 0.0, %v505
  %v507 = vpop.f32.mrf.mxu0
  %508 = vmatprep.mubr.f32.mxu0 %v103
  %509 = vmatmul.mubr.f32.gmra.mxu0 %v102
  %v510 = vpop.f32.mrf.mxu0
  %v511 = vadd.f32 0.0, %v510
  %v512 = vpop.f32.mrf.mxu0
  %513 = vmatprep.mubr.f32.mxu0 %v107
  %514 = vmatmul.mubr.f32.gmra.mxu0 %v106
  %v515 = vpop.f32.mrf.mxu0
  %v516 = vadd.f32 0.0, %v515
  %v517 = vpop.f32.mrf.mxu0
  %518 = vmatprep.mubr.f32.mxu0 %v111
  %519 = vmatmul.mubr.f32.gmra.mxu0 %v110
  %v520 = vpop.f32.mrf.mxu0
  %v521 = vadd.f32 0.0, %v520
  %v522 = vpop.f32.mrf.mxu0
  %523 = vmatprep.mubr.f32.mxu0 %v115
  %524 = vmatmul.mubr.f32.gmra.mxu0 %v114
  %v525 = vpop.f32.mrf.mxu0
  %v526 = vadd.f32 0.0, %v525
  %v527 = vpop.f32.mrf.mxu0
  %528 = vmatprep.mubr.f32.mxu0 %v119
  %529 = vmatmul.mubr.f32.gmra.mxu0 %v118
  %v530 = vpop.f32.mrf.mxu0
  %v531 = vadd.f32 0.0, %v530
  %v532 = vpop.f32.mrf.mxu0
  %533 = vmatprep.mubr.f32.mxu0 %v123
  %534 = vmatmul.mubr.f32.gmra.mxu0 %v122
  %v535 = vpop.f32.mrf.mxu0
  %v536 = vadd.f32 0.0, %v535
  %v537 = vpop.f32.mrf.mxu0
  %538 = vmatprep.mubr.f32.mxu0 %v127
  %539 = vmatmul.mubr.f32.gmra.mxu0 %v126
  %v540 = vpop.f32.mrf.mxu0
  %v541 = vadd.f32 0.0, %v540
  %v542 = vpop.f32.mrf.mxu0
  %543 = vmatprep.mubr.f32.mxu0 %v131
  %544 = vmatmul.mubr.f32.gmra.mxu0 %v130
  %v545 = vpop.f32.mrf.mxu0
  %v546 = vadd.f32 0.0, %v545
  %v547 = vpop.f32.mrf.mxu0
  %548 = vmatprep.mubr.f32.mxu0 %v135
  %549 = vmatmul.mubr.f32.gmra.mxu0 %v134
  %v550 = vpop.f32.mrf.mxu0
  %v551 = vadd.f32 0.0, %v550
  %v552 = vpop.f32.mrf.mxu0
  %553 = vmatprep.mubr.f32.mxu0 %v139
  %554 = vmatmul.mubr.f32.gmra.mxu0 %v138
  %v555 = vpop.f32.mrf.mxu0
  %v556 = vadd.f32 0.0, %v555
  %v557 = vpop.f32.mrf.mxu0
  %558 = vmatprep.mubr.f32.mxu0 %v143
  %559 = vmatmul.mubr.f32.gmra.mxu0 %v142
  %v560 = vpop.f32.mrf.mxu0
  %v561 = vadd.f32 0.0, %v560
  %v562 = vpop.f32.mrf.mxu0
  %563 = vmatprep.mubr.f32.mxu0 %v147
  %564 = vmatmul.mubr.f32.gmra.mxu0 %v146
  %v565 = vpop.f32.mrf.mxu0
  %v566 = vadd.f32 0.0, %v565
  %v567 = vpop.f32.mrf.mxu0
  %568 = vmatprep.mubr.f32.mxu0 %v151
  %569 = vmatmul.mubr.f32.gmra.mxu0 %v150
  %v570 = vpop.f32.mrf.mxu0
  %v571 = vadd.f32 0.0, %v570
  %v572 = vpop.f32.mrf.mxu0
  %573 = vmatprep.mubr.f32.mxu0 %v155
  %574 = vmatmul.mubr.f32.gmra.mxu0 %v154
  %v575 = vpop.f32.mrf.mxu0
  %v576 = vadd.f32 0.0, %v575
  %v577 = vpop.f32.mrf.mxu0
  %578 = vmatprep.mubr.f32.mxu0 %v159
  %579 = vmatmul.mubr.f32.gmra.mxu0 %v158
  %v580 = vpop.f32.mrf.mxu0
  %v581 = vadd.f32 0.0, %v580
  %v582 = vpop.f32.mrf.mxu0
  %583 = vmatprep.mubr.f32.mxu0 %v163
  %584 = vmatmul.mubr.f32.gmra.mxu0 %v162
  %v585 = vpop.f32.mrf.mxu0
  %v586 = vadd.f32 0.0, %v585
  %v587 = vpop.f32.mrf.mxu0
  %588 = vmatprep.mubr.f32.mxu0 %v167
  %589 = vmatmul.mubr.f32.gmra.mxu0 %v166
  %v590 = vpop.f32.mrf.mxu0
  %v591 = vadd.f32 0.0, %v590
  %v592 = vpop.f32.mrf.mxu0
  %593 = vmatprep.mubr.f32.mxu0 %v171
  %594 = vmatmul.mubr.f32.gmra.mxu0 %v170
  %v595 = vpop.f32.mrf.mxu0
  %v596 = vadd.f32 0.0, %v595
  %v597 = vpop.f32.mrf.mxu0
  %598 = vmatprep.mubr.f32.mxu0 %v175
  %599 = vmatmul.mubr.f32.gmra.mxu0 %v174
  %v600 = vpop.f32.mrf.mxu0
  %v601 = vadd.f32 0.0, %v600
  %v602 = vpop.f32.mrf.mxu0
  %603 = vmatprep.mubr.f32.mxu0 %v179
  %604 = vmatmul.mubr.f32.gmra.mxu0 %v178
  %v605 = vpop.f32.mrf.mxu0
  %v606 = vadd.f32 0.0, %v605
  %v607 = vpop.f32.mrf.mxu0
  %608 = vmatprep.mubr.f32.mxu0 %v183
  %609 = vmatmul.mubr.f32.gmra.mxu0 %v182
  %v610 = vpop.f32.mrf.mxu0
  %v611 = vadd.f32 0.0, %v610
  %v612 = vpop.f32.mrf.mxu0
  %613 = vmatprep.mubr.f32.mxu0 %v187
  %614 = vmatmul.mubr.f32.gmra.mxu0 %v186
  %v615 = vpop.f32.mrf.mxu0
  %v616 = vadd.f32 0.0, %v615
  %v617 = vpop.f32.mrf.mxu0
  %618 = vmatprep.mubr.f32.mxu0 %v191
  %619 = vmatmul.mubr.f32.gmra.mxu0 %v190
  %v620 = vpop.f32.mrf.mxu0
  %v621 = vadd.f32 0.0, %v620
  %v622 = vpop.f32.mrf.mxu0
  %623 = vmatprep.mubr.f32.mxu0 %v195
  %624 = vmatmul.mubr.f32.gmra.mxu0 %v194
  %v625 = vpop.f32.mrf.mxu0
  %v626 = vadd.f32 0.0, %v625
  %v627 = vpop.f32.mrf.mxu0
  %628 = vmatprep.mubr.f32.mxu0 %v199
  %629 = vmatmul.mubr.f32.gmra.mxu0 %v198
  %v630 = vpop.f32.mrf.mxu0
  %v631 = vadd.f32 0.0, %v630
  %v632 = vpop.f32.mrf.mxu0
  %633 = vmatprep.mubr.f32.mxu0 %v203
  %634 = vmatmul.mubr.f32.gmra.mxu0 %v202
  %v635 = vpop.f32.mrf.mxu0
  %v636 = vadd.f32 0.0, %v635
  %v637 = vpop.f32.mrf.mxu0
  %638 = vmatprep.mubr.f32.mxu0 %v207
  %639 = vmatmul.mubr.f32.gmra.mxu0 %v206
  %v640 = vpop.f32.mrf.mxu0
  %v641 = vadd.f32 0.0, %v640
  %v642 = vpop.f32.mrf.mxu0
  %643 = vmatprep.mubr.f32.mxu0 %v211
  %644 = vmatmul.mubr.f32.gmra.mxu0 %v210
  %v645 = vpop.f32.mrf.mxu0
  %v646 = vadd.f32 0.0, %v645
  %v647 = vpop.f32.mrf.mxu0
  %648 = vmatprep.mubr.f32.mxu0 %v215
  %649 = vmatmul.mubr.f32.gmra.mxu0 %v214
  %v650 = vpop.f32.mrf.mxu0
  %v651 = vadd.f32 0.0, %v650
  %v652 = vpop.f32.mrf.mxu0
  %653 = vmatprep.mubr.f32.mxu0 %v219
  %654 = vmatmul.mubr.f32.gmra.mxu0 %v218
  %v655 = vpop.f32.mrf.mxu0
  %v656 = vadd.f32 0.0, %v655
  %v657 = vpop.f32.mrf.mxu0
  %658 = vmatprep.mubr.f32.mxu0 %v223
  %659 = vmatmul.mubr.f32.gmra.mxu0 %v222
  %v660 = vpop.f32.mrf.mxu0
  %v661 = vadd.f32 0.0, %v660
  %v662 = vpop.f32.mrf.mxu0
  %663 = vmatprep.mubr.f32.mxu0 %v227
  %664 = vmatmul.mubr.f32.gmra.mxu0 %v226
  %v665 = vpop.f32.mrf.mxu0
  %v666 = vadd.f32 0.0, %v665
  %v667 = vpop.f32.mrf.mxu0
  %668 = vmatprep.mubr.f32.mxu0 %v231
  %669 = vmatmul.mubr.f32.gmra.mxu0 %v230
  %v670 = vpop.f32.mrf.mxu0
  %v671 = vadd.f32 0.0, %v670
  %v672 = vpop.f32.mrf.mxu0
  %673 = vmatprep.mubr.f32.mxu0 %v235
  %674 = vmatmul.mubr.f32.gmra.mxu0 %v234
  %v675 = vpop.f32.mrf.mxu0
  %v676 = vadd.f32 0.0, %v675
  %v677 = vpop.f32.mrf.mxu0
  %678 = vmatprep.mubr.f32.mxu0 %v239
  %679 = vmatmul.mubr.f32.gmra.mxu0 %v238
  %v680 = vpop.f32.mrf.mxu0
  %v681 = vadd.f32 0.0, %v680
  %v682 = vpop.f32.mrf.mxu0
  %683 = vmatprep.mubr.f32.mxu0 %v243
  %684 = vmatmul.mubr.f32.gmra.mxu0 %v242
  %v685 = vpop.f32.mrf.mxu0
  %v686 = vadd.f32 0.0, %v685
  %v687 = vpop.f32.mrf.mxu0
  %688 = vmatprep.mubr.f32.mxu0 %v247
  %689 = vmatmul.mubr.f32.gmra.mxu0 %v246
  %v690 = vpop.f32.mrf.mxu0
  %v691 = vadd.f32 0.0, %v690
  %v692 = vpop.f32.mrf.mxu0
  %693 = vmatprep.mubr.f32.mxu0 %v251
  %694 = vmatmul.mubr.f32.gmra.mxu0 %v250
  %v695 = vpop.f32.mrf.mxu0
  %v696 = vadd.f32 0.0, %v695
  %v697 = vpop.f32.mrf.mxu0
  %698 = vmatprep.mubr.f32.mxu0 %v255
  %699 = vmatmul.mubr.f32.gmra.mxu0 %v254
  %v700 = vpop.f32.mrf.mxu0
  %v701 = vadd.f32 0.0, %v700
  %v702 = vpop.f32.mrf.mxu0
  %703 = vmatprep.mubr.f32.mxu0 %v259
  %704 = vmatmul.mubr.f32.gmra.mxu0 %v258
  %v705 = vpop.f32.mrf.mxu0
  %v706 = vadd.f32 0.0, %v705
  %v707 = vpop.f32.mrf.mxu0
  %708 = vmatprep.mubr.f32.mxu0 %v263
  %709 = vmatmul.mubr.f32.gmra.mxu0 %v262
  %v710 = vpop.f32.mrf.mxu0
  %v711 = vadd.f32 0.0, %v710
  %v712 = vpop.f32.mrf.mxu0
  %713 = vmatprep.mubr.f32.mxu0 %v267
  %714 = vmatmul.mubr.f32.gmra.mxu0 %v266
  %v715 = vpop.f32.mrf.mxu0
  %v716 = vadd.f32 0.0, %v715
  %v717 = vpop.f32.mrf.mxu0
  %718 = vdwg.mxu0
  %719 = vmatprep.subr.mxu0 0.0
  %720 = vmatpush1.msra.mxu0 %v317
  %721 = vmatprep.subr.mxu0 0.0
  %722 = vmatpush1.msra.mxu0 %v316
  %723 = vmatprep.subr.mxu0 0.0
  %724 = vmatpush1.msra.mxu0 %v315
  %725 = vmatprep.subr.mxu0 0.0
  %726 = vmatpush1.msra.mxu0 %v314
  %727 = vmatprep.subr.mxu0 0.0
  %728 = vmatpush1.msra.mxu0 %v313
  %729 = vmatprep.subr.mxu0 0.0
  %730 = vmatpush1.msra.mxu0 %v312
  %731 = vmatprep.subr.mxu0 0.0
  %732 = vmatpush1.msra.mxu0 %v311
  %733 = vmatprep.subr.mxu0 0.0
  %734 = vmatpush1.msra.mxu0 %v310
  %735 = vmatprep.subr.mxu0 0.0
  %736 = vmatpush1.msra.mxu0 %v309
  %737 = vmatprep.subr.mxu0 0.0
  %738 = vmatpush1.msra.mxu0 %v308
  %739 = vmatprep.subr.mxu0 0.0
  %740 = vmatpush1.msra.mxu0 %v307
  %741 = vmatprep.subr.mxu0 0.0
  %742 = vmatpush1.msra.mxu0 %v306
  %743 = vmatprep.subr.mxu0 0.0
  %744 = vmatpush1.msra.mxu0 %v305
  %745 = vmatprep.subr.mxu0 0.0
  %746 = vmatpush1.msra.mxu0 %v304
  %747 = vmatprep.subr.mxu0 0.0
  %748 = vmatpush1.msra.mxu0 %v303
  %749 = vmatprep.subr.mxu0 0.0
  %750 = vmatpush1.msra.mxu0 %v302
  %751 = vmatprep.subr.mxu0 0.0
  %752 = vmatpush2.msra.mxu0 %v333
  %753 = vmatprep.subr.mxu0 0.0
  %754 = vmatpush2.msra.mxu0 %v332
  %755 = vmatprep.subr.mxu0 0.0
  %756 = vmatpush2.msra.mxu0 %v331
  %757 = vmatprep.subr.mxu0 0.0
  %758 = vmatpush2.msra.mxu0 %v330
  %759 = vmatprep.subr.mxu0 0.0
  %760 = vmatpush2.msra.mxu0 %v329
  %761 = vmatprep.subr.mxu0 0.0
  %762 = vmatpush2.msra.mxu0 %v328
  %763 = vmatprep.subr.mxu0 0.0
  %764 = vmatpush2.msra.mxu0 %v327
  %765 = vmatprep.subr.mxu0 0.0
  %766 = vmatpush2.msra.mxu0 %v326
  %767 = vmatprep.subr.mxu0 0.0
  %768 = vmatpush2.msra.mxu0 %v325
  %769 = vmatprep.subr.mxu0 0.0
  %770 = vmatpush2.msra.mxu0 %v324
  %771 = vmatprep.subr.mxu0 0.0
  %772 = vmatpush2.msra.mxu0 %v323
  %773 = vmatprep.subr.mxu0 0.0
  %774 = vmatpush2.msra.mxu0 %v322
  %775 = vmatprep.subr.mxu0 0.0
  %776 = vmatpush2.msra.mxu0 %v321
  %777 = vmatprep.subr.mxu0 0.0
  %778 = vmatpush2.msra.mxu0 %v320
  %779 = vmatprep.subr.mxu0 0.0
  %780 = vmatpush2.msra.mxu0 %v319
  %781 = vmatprep.subr.mxu0 0.0
  %782 = vmatpush2.msra.mxu0 %v318
  %783 = vmatprep.mubr.f32.mxu0 %v17
  %784 = vmatmul.mubr.f32.gmra.mxu0 %v16
  %v785 = vpop.f32.mrf.mxu0
  %v786 = vadd.f32 %v401, %v785
  %v787 = vpop.f32.mrf.mxu0
  %788 = vmatprep.mubr.f32.mxu0 %v21
  %789 = vmatmul.mubr.f32.gmra.mxu0 %v20
  %v790 = vpop.f32.mrf.mxu0
  %v791 = vadd.f32 %v406, %v790
  %v792 = vpop.f32.mrf.mxu0
  %793 = vmatprep.mubr.f32.mxu0 %v25
  %794 = vmatmul.mubr.f32.gmra.mxu0 %v24
  %v795 = vpop.f32.mrf.mxu0
  %v796 = vadd.f32 %v411, %v795
  %v797 = vpop.f32.mrf.mxu0
  %798 = vmatprep.mubr.f32.mxu0 %v29
  %799 = vmatmul.mubr.f32.gmra.mxu0 %v28
  %v800 = vpop.f32.mrf.mxu0
  %v801 = vadd.f32 %v416, %v800
  %v802 = vpop.f32.mrf.mxu0
  %803 = vmatprep.mubr.f32.mxu0 %v33
  %804 = vmatmul.mubr.f32.gmra.mxu0 %v32
  %v805 = vpop.f32.mrf.mxu0
  %v806 = vadd.f32 %v421, %v805
  %v807 = vpop.f32.mrf.mxu0
  %808 = vmatprep.mubr.f32.mxu0 %v37
  %809 = vmatmul.mubr.f32.gmra.mxu0 %v36
  %v810 = vpop.f32.mrf.mxu0
  %v811 = vadd.f32 %v426, %v810
  %v812 = vpop.f32.mrf.mxu0
  %813 = vmatprep.mubr.f32.mxu0 %v41
  %814 = vmatmul.mubr.f32.gmra.mxu0 %v40
  %v815 = vpop.f32.mrf.mxu0
  %v816 = vadd.f32 %v431, %v815
  %v817 = vpop.f32.mrf.mxu0
  %818 = vmatprep.mubr.f32.mxu0 %v45
  %819 = vmatmul.mubr.f32.gmra.mxu0 %v44
  %v820 = vpop.f32.mrf.mxu0
  %v821 = vadd.f32 %v436, %v820
  %v822 = vpop.f32.mrf.mxu0
  %823 = vmatprep.mubr.f32.mxu0 %v49
  %824 = vmatmul.mubr.f32.gmra.mxu0 %v48
  %v825 = vpop.f32.mrf.mxu0
  %v826 = vadd.f32 %v441, %v825
  %v827 = vpop.f32.mrf.mxu0
  %828 = vmatprep.mubr.f32.mxu0 %v53
  %829 = vmatmul.mubr.f32.gmra.mxu0 %v52
  %v830 = vpop.f32.mrf.mxu0
  %v831 = vadd.f32 %v446, %v830
  %v832 = vpop.f32.mrf.mxu0
  %833 = vmatprep.mubr.f32.mxu0 %v57
  %834 = vmatmul.mubr.f32.gmra.mxu0 %v56
  %v835 = vpop.f32.mrf.mxu0
  %v836 = vadd.f32 %v451, %v835
  %v837 = vpop.f32.mrf.mxu0
  %838 = vmatprep.mubr.f32.mxu0 %v61
  %839 = vmatmul.mubr.f32.gmra.mxu0 %v60
  %v840 = vpop.f32.mrf.mxu0
  %v841 = vadd.f32 %v456, %v840
  %v842 = vpop.f32.mrf.mxu0
  %843 = vmatprep.mubr.f32.mxu0 %v65
  %844 = vmatmul.mubr.f32.gmra.mxu0 %v64
  %v845 = vpop.f32.mrf.mxu0
  %v846 = vadd.f32 %v461, %v845
  %v847 = vpop.f32.mrf.mxu0
  %848 = vmatprep.mubr.f32.mxu0 %v69
  %849 = vmatmul.mubr.f32.gmra.mxu0 %v68
  %v850 = vpop.f32.mrf.mxu0
  %v851 = vadd.f32 %v466, %v850
  %v852 = vpop.f32.mrf.mxu0
  %853 = vmatprep.mubr.f32.mxu0 %v73
  %854 = vmatmul.mubr.f32.gmra.mxu0 %v72
  %v855 = vpop.f32.mrf.mxu0
  %v856 = vadd.f32 %v471, %v855
  %v857 = vpop.f32.mrf.mxu0
  %858 = vmatprep.mubr.f32.mxu0 %v77
  %859 = vmatmul.mubr.f32.gmra.mxu0 %v76
  %v860 = vpop.f32.mrf.mxu0
  %v861 = vadd.f32 %v476, %v860
  %v862 = vpop.f32.mrf.mxu0
  %863 = vmatprep.mubr.f32.mxu0 %v81
  %864 = vmatmul.mubr.f32.gmra.mxu0 %v80
  %v865 = vpop.f32.mrf.mxu0
  %v866 = vadd.f32 %v481, %v865
  %v867 = vpop.f32.mrf.mxu0
  %868 = vmatprep.mubr.f32.mxu0 %v85
  %869 = vmatmul.mubr.f32.gmra.mxu0 %v84
  %v870 = vpop.f32.mrf.mxu0
  %v871 = vadd.f32 %v486, %v870
  %v872 = vpop.f32.mrf.mxu0
  %873 = vmatprep.mubr.f32.mxu0 %v89
  %874 = vmatmul.mubr.f32.gmra.mxu0 %v88
  %v875 = vpop.f32.mrf.mxu0
  %v876 = vadd.f32 %v491, %v875
  %v877 = vpop.f32.mrf.mxu0
  %878 = vmatprep.mubr.f32.mxu0 %v93
  %879 = vmatmul.mubr.f32.gmra.mxu0 %v92
  %v880 = vpop.f32.mrf.mxu0
  %v881 = vadd.f32 %v496, %v880
  %v882 = vpop.f32.mrf.mxu0
  %883 = vmatprep.mubr.f32.mxu0 %v97
  %884 = vmatmul.mubr.f32.gmra.mxu0 %v96
  %v885 = vpop.f32.mrf.mxu0
  %v886 = vadd.f32 %v501, %v885
  %v887 = vpop.f32.mrf.mxu0
  %888 = vmatprep.mubr.f32.mxu0 %v101
  %889 = vmatmul.mubr.f32.gmra.mxu0 %v100
  %v890 = vpop.f32.mrf.mxu0
  %v891 = vadd.f32 %v506, %v890
  %v892 = vpop.f32.mrf.mxu0
  %893 = vmatprep.mubr.f32.mxu0 %v105
  %894 = vmatmul.mubr.f32.gmra.mxu0 %v104
  %v895 = vpop.f32.mrf.mxu0
  %v896 = vadd.f32 %v511, %v895
  %v897 = vpop.f32.mrf.mxu0
  %898 = vmatprep.mubr.f32.mxu0 %v109
  %899 = vmatmul.mubr.f32.gmra.mxu0 %v108
  %v900 = vpop.f32.mrf.mxu0
  %v901 = vadd.f32 %v516, %v900
  %v902 = vpop.f32.mrf.mxu0
  %903 = vmatprep.mubr.f32.mxu0 %v113
  %904 = vmatmul.mubr.f32.gmra.mxu0 %v112
  %v905 = vpop.f32.mrf.mxu0
  %v906 = vadd.f32 %v521, %v905
  %v907 = vpop.f32.mrf.mxu0
  %908 = vmatprep.mubr.f32.mxu0 %v117
  %909 = vmatmul.mubr.f32.gmra.mxu0 %v116
  %v910 = vpop.f32.mrf.mxu0
  %v911 = vadd.f32 %v526, %v910
  %v912 = vpop.f32.mrf.mxu0
  %913 = vmatprep.mubr.f32.mxu0 %v121
  %914 = vmatmul.mubr.f32.gmra.mxu0 %v120
  %v915 = vpop.f32.mrf.mxu0
  %v916 = vadd.f32 %v531, %v915
  %v917 = vpop.f32.mrf.mxu0
  %918 = vmatprep.mubr.f32.mxu0 %v125
  %919 = vmatmul.mubr.f32.gmra.mxu0 %v124
  %v920 = vpop.f32.mrf.mxu0
  %v921 = vadd.f32 %v536, %v920
  %v922 = vpop.f32.mrf.mxu0
  %923 = vmatprep.mubr.f32.mxu0 %v129
  %924 = vmatmul.mubr.f32.gmra.mxu0 %v128
  %v925 = vpop.f32.mrf.mxu0
  %v926 = vadd.f32 %v541, %v925
  %v927 = vpop.f32.mrf.mxu0
  %928 = vmatprep.mubr.f32.mxu0 %v133
  %929 = vmatmul.mubr.f32.gmra.mxu0 %v132
  %v930 = vpop.f32.mrf.mxu0
  %v931 = vadd.f32 %v546, %v930
  %v932 = vpop.f32.mrf.mxu0
  %933 = vmatprep.mubr.f32.mxu0 %v137
  %934 = vmatmul.mubr.f32.gmra.mxu0 %v136
  %v935 = vpop.f32.mrf.mxu0
  %v936 = vadd.f32 %v551, %v935
  %v937 = vpop.f32.mrf.mxu0
  %938 = vmatprep.mubr.f32.mxu0 %v141
  %939 = vmatmul.mubr.f32.gmra.mxu0 %v140
  %v940 = vpop.f32.mrf.mxu0
  %v941 = vadd.f32 %v556, %v940
  %v942 = vpop.f32.mrf.mxu0
  %943 = vmatprep.mubr.f32.mxu0 %v145
  %944 = vmatmul.mubr.f32.gmra.mxu0 %v144
  %v945 = vpop.f32.mrf.mxu0
  %v946 = vadd.f32 %v561, %v945
  %v947 = vpop.f32.mrf.mxu0
  %948 = vmatprep.mubr.f32.mxu0 %v149
  %949 = vmatmul.mubr.f32.gmra.mxu0 %v148
  %v950 = vpop.f32.mrf.mxu0
  %v951 = vadd.f32 %v566, %v950
  %v952 = vpop.f32.mrf.mxu0
  %953 = vmatprep.mubr.f32.mxu0 %v153
  %954 = vmatmul.mubr.f32.gmra.mxu0 %v152
  %v955 = vpop.f32.mrf.mxu0
  %v956 = vadd.f32 %v571, %v955
  %v957 = vpop.f32.mrf.mxu0
  %958 = vmatprep.mubr.f32.mxu0 %v157
  %959 = vmatmul.mubr.f32.gmra.mxu0 %v156
  %v960 = vpop.f32.mrf.mxu0
  %v961 = vadd.f32 %v576, %v960
  %v962 = vpop.f32.mrf.mxu0
  %963 = vmatprep.mubr.f32.mxu0 %v161
  %964 = vmatmul.mubr.f32.gmra.mxu0 %v160
  %v965 = vpop.f32.mrf.mxu0
  %v966 = vadd.f32 %v581, %v965
  %v967 = vpop.f32.mrf.mxu0
  %968 = vmatprep.mubr.f32.mxu0 %v165
  %969 = vmatmul.mubr.f32.gmra.mxu0 %v164
  %v970 = vpop.f32.mrf.mxu0
  %v971 = vadd.f32 %v586, %v970
  %v972 = vpop.f32.mrf.mxu0
  %973 = vmatprep.mubr.f32.mxu0 %v169
  %974 = vmatmul.mubr.f32.gmra.mxu0 %v168
  %v975 = vpop.f32.mrf.mxu0
  %v976 = vadd.f32 %v591, %v975
  %v977 = vpop.f32.mrf.mxu0
  %978 = vmatprep.mubr.f32.mxu0 %v173
  %979 = vmatmul.mubr.f32.gmra.mxu0 %v172
  %v980 = vpop.f32.mrf.mxu0
  %v981 = vadd.f32 %v596, %v980
  %v982 = vpop.f32.mrf.mxu0
  %983 = vmatprep.mubr.f32.mxu0 %v177
  %984 = vmatmul.mubr.f32.gmra.mxu0 %v176
  %v985 = vpop.f32.mrf.mxu0
  %v986 = vadd.f32 %v601, %v985
  %v987 = vpop.f32.mrf.mxu0
  %988 = vmatprep.mubr.f32.mxu0 %v181
  %989 = vmatmul.mubr.f32.gmra.mxu0 %v180
  %v990 = vpop.f32.mrf.mxu0
  %v991 = vadd.f32 %v606, %v990
  %v992 = vpop.f32.mrf.mxu0
  %993 = vmatprep.mubr.f32.mxu0 %v185
  %994 = vmatmul.mubr.f32.gmra.mxu0 %v184
  %v995 = vpop.f32.mrf.mxu0
  %v996 = vadd.f32 %v611, %v995
  %v997 = vpop.f32.mrf.mxu0
  %998 = vmatprep.mubr.f32.mxu0 %v189
  %999 = vmatmul.mubr.f32.gmra.mxu0 %v188
  %v1000 = vpop.f32.mrf.mxu0
  %v1001 = vadd.f32 %v616, %v1000
  %v1002 = vpop.f32.mrf.mxu0
  %1003 = vmatprep.mubr.f32.mxu0 %v193
  %1004 = vmatmul.mubr.f32.gmra.mxu0 %v192
  %v1005 = vpop.f32.mrf.mxu0
  %v1006 = vadd.f32 %v621, %v1005
  %v1007 = vpop.f32.mrf.mxu0
  %1008 = vmatprep.mubr.f32.mxu0 %v197
  %1009 = vmatmul.mubr.f32.gmra.mxu0 %v196
  %v1010 = vpop.f32.mrf.mxu0
  %v1011 = vadd.f32 %v626, %v1010
  %v1012 = vpop.f32.mrf.mxu0
  %1013 = vmatprep.mubr.f32.mxu0 %v201
  %1014 = vmatmul.mubr.f32.gmra.mxu0 %v200
  %v1015 = vpop.f32.mrf.mxu0
  %v1016 = vadd.f32 %v631, %v1015
  %v1017 = vpop.f32.mrf.mxu0
  %1018 = vmatprep.mubr.f32.mxu0 %v205
  %1019 = vmatmul.mubr.f32.gmra.mxu0 %v204
  %v1020 = vpop.f32.mrf.mxu0
  %v1021 = vadd.f32 %v636, %v1020
  %v1022 = vpop.f32.mrf.mxu0
  %1023 = vmatprep.mubr.f32.mxu0 %v209
  %1024 = vmatmul.mubr.f32.gmra.mxu0 %v208
  %v1025 = vpop.f32.mrf.mxu0
  %v1026 = vadd.f32 %v641, %v1025
  %v1027 = vpop.f32.mrf.mxu0
  %1028 = vmatprep.mubr.f32.mxu0 %v213
  %1029 = vmatmul.mubr.f32.gmra.mxu0 %v212
  %v1030 = vpop.f32.mrf.mxu0
  %v1031 = vadd.f32 %v646, %v1030
  %v1032 = vpop.f32.mrf.mxu0
  %1033 = vmatprep.mubr.f32.mxu0 %v217
  %1034 = vmatmul.mubr.f32.gmra.mxu0 %v216
  %v1035 = vpop.f32.mrf.mxu0
  %v1036 = vadd.f32 %v651, %v1035
  %v1037 = vpop.f32.mrf.mxu0
  %1038 = vmatprep.mubr.f32.mxu0 %v221
  %1039 = vmatmul.mubr.f32.gmra.mxu0 %v220
  %v1040 = vpop.f32.mrf.mxu0
  %v1041 = vadd.f32 %v656, %v1040
  %v1042 = vpop.f32.mrf.mxu0
  %1043 = vmatprep.mubr.f32.mxu0 %v225
  %1044 = vmatmul.mubr.f32.gmra.mxu0 %v224
  %v1045 = vpop.f32.mrf.mxu0
  %v1046 = vadd.f32 %v661, %v1045
  %v1047 = vpop.f32.mrf.mxu0
  %1048 = vmatprep.mubr.f32.mxu0 %v229
  %1049 = vmatmul.mubr.f32.gmra.mxu0 %v228
  %v1050 = vpop.f32.mrf.mxu0
  %v1051 = vadd.f32 %v666, %v1050
  %v1052 = vpop.f32.mrf.mxu0
  %1053 = vmatprep.mubr.f32.mxu0 %v233
  %1054 = vmatmul.mubr.f32.gmra.mxu0 %v232
  %v1055 = vpop.f32.mrf.mxu0
  %v1056 = vadd.f32 %v671, %v1055
  %v1057 = vpop.f32.mrf.mxu0
  %1058 = vmatprep.mubr.f32.mxu0 %v237
  %1059 = vmatmul.mubr.f32.gmra.mxu0 %v236
  %v1060 = vpop.f32.mrf.mxu0
  %v1061 = vadd.f32 %v676, %v1060
  %v1062 = vpop.f32.mrf.mxu0
  %1063 = vmatprep.mubr.f32.mxu0 %v241
  %1064 = vmatmul.mubr.f32.gmra.mxu0 %v240
  %v1065 = vpop.f32.mrf.mxu0
  %v1066 = vadd.f32 %v681, %v1065
  %v1067 = vpop.f32.mrf.mxu0
  %1068 = vmatprep.mubr.f32.mxu0 %v245
  %1069 = vmatmul.mubr.f32.gmra.mxu0 %v244
  %v1070 = vpop.f32.mrf.mxu0
  %v1071 = vadd.f32 %v686, %v1070
  %v1072 = vpop.f32.mrf.mxu0
  %1073 = vmatprep.mubr.f32.mxu0 %v249
  %1074 = vmatmul.mubr.f32.gmra.mxu0 %v248
  %v1075 = vpop.f32.mrf.mxu0
  %v1076 = vadd.f32 %v691, %v1075
  %v1077 = vpop.f32.mrf.mxu0
  %1078 = vmatprep.mubr.f32.mxu0 %v253
  %1079 = vmatmul.mubr.f32.gmra.mxu0 %v252
  %v1080 = vpop.f32.mrf.mxu0
  %v1081 = vadd.f32 %v696, %v1080
  %v1082 = vpop.f32.mrf.mxu0
  %1083 = vmatprep.mubr.f32.mxu0 %v257
  %1084 = vmatmul.mubr.f32.gmra.mxu0 %v256
  %v1085 = vpop.f32.mrf.mxu0
  %v1086 = vadd.f32 %v701, %v1085
  %v1087 = vpop.f32.mrf.mxu0
  %1088 = vmatprep.mubr.f32.mxu0 %v261
  %1089 = vmatmul.mubr.f32.gmra.mxu0 %v260
  %v1090 = vpop.f32.mrf.mxu0
  %v1091 = vadd.f32 %v706, %v1090
  %v1092 = vpop.f32.mrf.mxu0
  %1093 = vmatprep.mubr.f32.mxu0 %v265
  %1094 = vmatmul.mubr.f32.gmra.mxu0 %v264
  %v1095 = vpop.f32.mrf.mxu0
  %v1096 = vadd.f32 %v711, %v1095
  %v1097 = vpop.f32.mrf.mxu0
  %1098 = vmatprep.mubr.f32.mxu0 %v269
  %1099 = vmatmul.mubr.f32.gmra.mxu0 %v268
  %v1100 = vpop.f32.mrf.mxu0
  %v1101 = vadd.f32 %v716, %v1100
  %v1102 = vpop.f32.mrf.mxu0
  %1103 = vdwg.mxu0
  %v1104 = vmax.f32 %v786, %v866
  %v1105 = vmax.f32 %v791, %v871
  %v1106 = vmax.f32 %v796, %v876
  %v1107 = vmax.f32 %v801, %v881
  %v1108 = vmax.f32 %v806, %v886
  %v1109 = vmax.f32 %v811, %v891
  %v1110 = vmax.f32 %v816, %v896
  %v1111 = vmax.f32 %v821, %v901
  %v1112 = vmax.f32 %v826, %v906
  %v1113 = vmax.f32 %v831, %v911
  %v1114 = vmax.f32 %v836, %v916
  %v1115 = vmax.f32 %v841, %v921
  %v1116 = vmax.f32 %v846, %v926
  %v1117 = vmax.f32 %v851, %v931
  %v1118 = vmax.f32 %v856, %v936
  %v1119 = vmax.f32 %v861, %v941
  %v1120 = vmax.f32 %v1104, %v946
  %v1121 = vmax.f32 %v1105, %v951
  %v1122 = vmax.f32 %v1106, %v956
  %v1123 = vmax.f32 %v1107, %v961
  %v1124 = vmax.f32 %v1108, %v966
  %v1125 = vmax.f32 %v1109, %v971
  %v1126 = vmax.f32 %v1110, %v976
  %v1127 = vmax.f32 %v1111, %v981
  %v1128 = vmax.f32 %v1112, %v986
  %v1129 = vmax.f32 %v1113, %v991
  %v1130 = vmax.f32 %v1114, %v996
  %v1131 = vmax.f32 %v1115, %v1001
  %v1132 = vmax.f32 %v1116, %v1006
  %v1133 = vmax.f32 %v1117, %v1011
  %v1134 = vmax.f32 %v1118, %v1016
  %v1135 = vmax.f32 %v1119, %v1021
  %v1136 = vmax.f32 %v1120, %v1026
  %v1137 = vmax.f32 %v1121, %v1031
  %v1138 = vmax.f32 %v1122, %v1036
  %v1139 = vmax.f32 %v1123, %v1041
  %v1140 = vmax.f32 %v1124, %v1046
  %v1141 = vmax.f32 %v1125, %v1051
  %v1142 = vmax.f32 %v1126, %v1056
  %v1143 = vmax.f32 %v1127, %v1061
  %v1144 = vmax.f32 %v1128, %v1066
  %v1145 = vmax.f32 %v1129, %v1071
  %v1146 = vmax.f32 %v1130, %v1076
  %v1147 = vmax.f32 %v1131, %v1081
  %v1148 = vmax.f32 %v1132, %v1086
  %v1149 = vmax.f32 %v1133, %v1091
  %v1150 = vmax.f32 %v1134, %v1096
  %v1151 = vmax.f32 %v1135, %v1101
  %v1152 = vld [vmem:[%s2] sm:$0x1]
  %v1154 = vlaneseq
  %v1155 = vshrl.u32 %v1154, 7
  %v1156 = vsub.s32 0, %v1155
  %v1157 = vrot.slane %v1152, %v1156
  %v1159 = vadd.f32 %v1136, %v1157
  %v1160 = vadd.f32 %v1137, %v1157
  %v1161 = vadd.f32 %v1138, %v1157
  %v1162 = vadd.f32 %v1139, %v1157
  %v1163 = vadd.f32 %v1140, %v1157
  %v1164 = vadd.f32 %v1141, %v1157
  %v1165 = vadd.f32 %v1142, %v1157
  %v1166 = vadd.f32 %v1143, %v1157
  %v1167 = vadd.f32 %v1144, %v1157
  %v1168 = vadd.f32 %v1145, %v1157
  %v1169 = vadd.f32 %v1146, %v1157
  %v1170 = vadd.f32 %v1147, %v1157
  %v1171 = vadd.f32 %v1148, %v1157
  %v1172 = vadd.f32 %v1149, %v1157
  %v1173 = vadd.f32 %v1150, %v1157
  %v1174 = vadd.f32 %v1151, %v1157
  %v1175 = vmax.f32 %v1159, 0.0
  %v1176 = vmax.f32 %v1160, 0.0
  %v1177 = vmax.f32 %v1161, 0.0
  %v1178 = vmax.f32 %v1162, 0.0
  %v1179 = vmax.f32 %v1163, 0.0
  %v1180 = vmax.f32 %v1164, 0.0
  %v1181 = vmax.f32 %v1165, 0.0
  %v1182 = vmax.f32 %v1166, 0.0
  %v1183 = vmax.f32 %v1167, 0.0
  %v1184 = vmax.f32 %v1168, 0.0
  %v1185 = vmax.f32 %v1169, 0.0
  %v1186 = vmax.f32 %v1170, 0.0
  %v1187 = vmax.f32 %v1171, 0.0
  %v1188 = vmax.f32 %v1172, 0.0
  %v1189 = vmax.f32 %v1173, 0.0
  %v1190 = vmax.f32 %v1174, 0.0
  %1191 = vst [vmem:[%s3] sm:$0xff] %v1175
  %1192 = vst [vmem:[%s3 + $0x8] sm:$0xff] %v1176
  %1193 = vst [vmem:[%s3 + $0x10] sm:$0xff] %v1177
  %1194 = vst [vmem:[%s3 + $0x18] sm:$0xff] %v1178
  %1195 = vst [vmem:[%s3 + $0x20] sm:$0xff] %v1179
  %1196 = vst [vmem:[%s3 + $0x28] sm:$0xff] %v1180
  %1197 = vst [vmem:[%s3 + $0x30] sm:$0xff] %v1181
  %1198 = vst [vmem:[%s3 + $0x38] sm:$0xff] %v1182
  %1199 = vst [vmem:[%s3 + $0x40] sm:$0xff] %v1183
  %1200 = vst [vmem:[%s3 + $0x48] sm:$0xff] %v1184
  %1201 = vst [vmem:[%s3 + $0x50] sm:$0xff] %v1185
  %1202 = vst [vmem:[%s3 + $0x58] sm:$0xff] %v1186
  %1203 = vst [vmem:[%s3 + $0x60] sm:$0xff] %v1187
  %1204 = vst [vmem:[%s3 + $0x68] sm:$0xff] %v1188
  %1205 = vst [vmem:[%s3 + $0x70] sm:$0xff] %v1189
  %1206 = vst [vmem:[%s3 + $0x78] sm:$0xff] %v1190
  // Predicated region
  $region14: #{_lambda_.4} parent=0 // pred_check
    _
  $region15: #{_lambda_.4} parent=0 // pred_check_branch
    %1208 = sbr.rel (0) target = $region17
  $region16: #{_lambda_.4} parent=0 // pred_region
    _
  $region17: #{_lambda_.4} parent=0 // pred_fallthru
    _
  // Predicated region
  $region18: #{_lambda_.4} parent=0 // pred_check
    _
  $region19: #{_lambda_.4} parent=0 // pred_check_branch
    %1210 = sbr.rel (0) target = $region21
  $region20: #{_lambda_.4} parent=0 // pred_region
    _
  $region21: #{_lambda_.4} parent=0 // pred_fallthru
    _

// kernel: _lambda_.5
$region0: #{_lambda_.5}
  #allocation0 [shape = 'u32[]', space=smem, size = 0x4, offset = 0x4, fixed_abs, tag = 'smem constant byte address 0x4 - core index']
  #allocation1 [shape = 'u32[144,128]{1,0:T(1,128)}', space=vmem, size = 0x12000, scoped, tag = 'internal scratch']
  %s0 = inlined_call_operand.vmem [shape: f32[32,6272], index: 0, kind: input, shape index: {}]
  %s1 = inlined_call_operand.vmem [shape: f32[6272,128], index: 1, kind: input, shape index: {}]
  %s2 = inlined_call_operand.vmem [shape: f32[1,128], index: 2, kind: input, shape index: {}]
  %s3 = inlined_call_operand.vmem [shape: f32[32,128], index: 3, kind: output, shape index: {}]
  %s4 = sld [smem:[#allocation0]]
  $region22: #{_lambda_.5} parent=0
    _
  %s6 = ssub.s32 1, %s4
  %s7 = scalar_select 0, %s6, %s4
  // Predicated region
  $region2: #{_lambda_.5} parent=0 // pred_check
    _
  $region3: #{_lambda_.5} parent=0 // pred_check_branch
    %9 = sbr.rel (0) target = $region5
  $region4: #{_lambda_.5} parent=0 // pred_region
    _
  $region5: #{_lambda_.5} parent=0 // pred_fallthru
    _
  // Predicated region
  $region6: #{_lambda_.5} parent=0 // pred_check
    _
  $region7: #{_lambda_.5} parent=0 // pred_check_branch
    %11 = sbr.rel (0) target = $region9
  $region8: #{_lambda_.5} parent=0 // pred_region
    _
  $region9: #{_lambda_.5} parent=0 // pred_fallthru
    _
  // Predicated region
  $region10: #{_lambda_.5} parent=0 // pred_check
    _
  $region11: #{_lambda_.5} parent=0 // pred_check_branch
    %13 = sbr.rel (0) target = $region13
  $region12: #{_lambda_.5} parent=0 // pred_region
    _
  $region13: #{_lambda_.5} parent=0 // pred_fallthru
    _
  %v14 = vld [vmem:[%s0] sm:$0xff]
  %v15 = vld [vmem:[%s0 + $0x8] sm:$0xff]
  %v16 = vld [vmem:[%s0 + $0x10] sm:$0xff]
  %v17 = vld [vmem:[%s0 + $0x18] sm:$0xff]
  %v18 = vld [vmem:[%s0 + $0x20] sm:$0xff]
  %v19 = vld [vmem:[%s0 + $0x28] sm:$0xff]
  %v20 = vld [vmem:[%s0 + $0x30] sm:$0xff]
  %v21 = vld [vmem:[%s0 + $0x38] sm:$0xff]
  %v22 = vld [vmem:[%s0 + $0x40] sm:$0xff]
  %v23 = vld [vmem:[%s0 + $0x48] sm:$0xff]
  %v24 = vld [vmem:[%s0 + $0x50] sm:$0xff]
  %v25 = vld [vmem:[%s0 + $0x58] sm:$0xff]
  %v26 = vld [vmem:[%s0 + $0x60] sm:$0xff]
  %v27 = vld [vmem:[%s0 + $0x68] sm:$0xff]
  %v28 = vld [vmem:[%s0 + $0x70] sm:$0xff]
  %v29 = vld [vmem:[%s0 + $0x78] sm:$0xff]
  %v30 = vld [vmem:[%s0 + $0x80] sm:$0xff]
  %v31 = vld [vmem:[%s0 + $0x88] sm:$0xff]
  %v32 = vld [vmem:[%s0 + $0x90] sm:$0xff]
  %v33 = vld [vmem:[%s0 + $0x98] sm:$0xff]
  %v34 = vld [vmem:[%s0 + $0xa0] sm:$0xff]
  %v35 = vld [vmem:[%s0 + $0xa8] sm:$0xff]
  %v36 = vld [vmem:[%s0 + $0xb0] sm:$0xff]
  %v37 = vld [vmem:[%s0 + $0xb8] sm:$0xff]
  %v38 = vld [vmem:[%s0 + $0xc0] sm:$0xff]
  %v39 = vld [vmem:[%s0 + $0xc8] sm:$0xff]
  %v40 = vld [vmem:[%s0 + $0xd0] sm:$0xff]
  %v41 = vld [vmem:[%s0 + $0xd8] sm:$0xff]
  %v42 = vld [vmem:[%s0 + $0xe0] sm:$0xff]
  %v43 = vld [vmem:[%s0 + $0xe8] sm:$0xff]
  %v44 = vld [vmem:[%s0 + $0xf0] sm:$0xff]
  %v45 = vld [vmem:[%s0 + $0xf8] sm:$0xff]
  %v46 = vld [vmem:[%s0 + $0x100] sm:$0xff]
  %v47 = vld [vmem:[%s0 + $0x108] sm:$0xff]
  %v48 = vld [vmem:[%s0 + $0x110] sm:$0xff]
  %v49 = vld [vmem:[%s0 + $0x118] sm:$0xff]
  %v50 = vld [vmem:[%s0 + $0x120] sm:$0xff]
  %v51 = vld [vmem:[%s0 + $0x128] sm:$0xff]
  %v52 = vld [vmem:[%s0 + $0x130] sm:$0xff]
  %v53 = vld [vmem:[%s0 + $0x138] sm:$0xff]
  %v54 = vld [vmem:[%s0 + $0x140] sm:$0xff]
  %v55 = vld [vmem:[%s0 + $0x148] sm:$0xff]
  %v56 = vld [vmem:[%s0 + $0x150] sm:$0xff]
  %v57 = vld [vmem:[%s0 + $0x158] sm:$0xff]
  %v58 = vld [vmem:[%s0 + $0x160] sm:$0xff]
  %v59 = vld [vmem:[%s0 + $0x168] sm:$0xff]
  %v60 = vld [vmem:[%s0 + $0x170] sm:$0xff]
  %v61 = vld [vmem:[%s0 + $0x178] sm:$0xff]
  %v62 = vld [vmem:[%s0 + $0x180] sm:$0xff]
  %v63 = vld [vmem:[%s0 + $0x188] sm:$0xff]
  %v64 = vld [vmem:[%s0 + $0x190] sm:$0xff]
  %v65 = vld [vmem:[%s0 + $0x198] sm:$0xff]
  %v66 = vld [vmem:[%s0 + $0x1a0] sm:$0xff]
  %v67 = vld [vmem:[%s0 + $0x1a8] sm:$0xff]
  %v68 = vld [vmem:[%s0 + $0x1b0] sm:$0xff]
  %v69 = vld [vmem:[%s0 + $0x1b8] sm:$0xff]
  %v70 = vld [vmem:[%s0 + $0x1c0] sm:$0xff]
  %v71 = vld [vmem:[%s0 + $0x1c8] sm:$0xff]
  %v72 = vld [vmem:[%s0 + $0x1d0] sm:$0xff]
  %v73 = vld [vmem:[%s0 + $0x1d8] sm:$0xff]
  %v74 = vld [vmem:[%s0 + $0x1e0] sm:$0xff]
  %v75 = vld [vmem:[%s0 + $0x1e8] sm:$0xff]
  %v76 = vld [vmem:[%s0 + $0x1f0] sm:$0xff]
  %v77 = vld [vmem:[%s0 + $0x1f8] sm:$0xff]
  %v78 = vld [vmem:[%s0 + $0x200] sm:$0xff]
  %v79 = vld [vmem:[%s0 + $0x208] sm:$0xff]
  %v80 = vld [vmem:[%s0 + $0x210] sm:$0xff]
  %v81 = vld [vmem:[%s0 + $0x218] sm:$0xff]
  %v82 = vld [vmem:[%s0 + $0x220] sm:$0xff]
  %v83 = vld [vmem:[%s0 + $0x228] sm:$0xff]
  %v84 = vld [vmem:[%s0 + $0x230] sm:$0xff]
  %v85 = vld [vmem:[%s0 + $0x238] sm:$0xff]
  %v86 = vld [vmem:[%s0 + $0x240] sm:$0xff]
  %v87 = vld [vmem:[%s0 + $0x248] sm:$0xff]
  %v88 = vld [vmem:[%s0 + $0x250] sm:$0xff]
  %v89 = vld [vmem:[%s0 + $0x258] sm:$0xff]
  %v90 = vld [vmem:[%s0 + $0x260] sm:$0xff]
  %v91 = vld [vmem:[%s0 + $0x268] sm:$0xff]
  %v92 = vld [vmem:[%s0 + $0x270] sm:$0xff]
  %v93 = vld [vmem:[%s0 + $0x278] sm:$0xff]
  %v94 = vld [vmem:[%s0 + $0x280] sm:$0xff]
  %v95 = vld [vmem:[%s0 + $0x288] sm:$0xff]
  %v96 = vld [vmem:[%s0 + $0x290] sm:$0xff]
  %v97 = vld [vmem:[%s0 + $0x298] sm:$0xff]
  %v98 = vld [vmem:[%s0 + $0x2a0] sm:$0xff]
  %v99 = vld [vmem:[%s0 + $0x2a8] sm:$0xff]
  %v100 = vld [vmem:[%s0 + $0x2b0] sm:$0xff]
  %v101 = vld [vmem:[%s0 + $0x2b8] sm:$0xff]
  %v102 = vld [vmem:[%s0 + $0x2c0] sm:$0xff]
  %v103 = vld [vmem:[%s0 + $0x2c8] sm:$0xff]
  %v104 = vld [vmem:[%s0 + $0x2d0] sm:$0xff]
  %v105 = vld [vmem:[%s0 + $0x2d8] sm:$0xff]
  %v106 = vld [vmem:[%s0 + $0x2e0] sm:$0xff]
  %v107 = vld [vmem:[%s0 + $0x2e8] sm:$0xff]
  %v108 = vld [vmem:[%s0 + $0x2f0] sm:$0xff]
  %v109 = vld [vmem:[%s0 + $0x2f8] sm:$0xff]
  %v110 = vld [vmem:[%s0 + $0x300] sm:$0xff]
  %v111 = vld [vmem:[%s0 + $0x308] sm:$0xff]
  %v112 = vld [vmem:[%s0 + $0x310] sm:$0xff]
  %v113 = vld [vmem:[%s0 + $0x318] sm:$0xff]
  %v114 = vld [vmem:[%s0 + $0x320] sm:$0xff]
  %v115 = vld [vmem:[%s0 + $0x328] sm:$0xff]
  %v116 = vld [vmem:[%s0 + $0x330] sm:$0xff]
  %v117 = vld [vmem:[%s0 + $0x338] sm:$0xff]
  %v118 = vld [vmem:[%s0 + $0x340] sm:$0xff]
  %v119 = vld [vmem:[%s0 + $0x348] sm:$0xff]
  %v120 = vld [vmem:[%s0 + $0x350] sm:$0xff]
  %v121 = vld [vmem:[%s0 + $0x358] sm:$0xff]
  %v122 = vld [vmem:[%s0 + $0x360] sm:$0xff]
  %v123 = vld [vmem:[%s0 + $0x368] sm:$0xff]
  %v124 = vld [vmem:[%s0 + $0x370] sm:$0xff]
  %v125 = vld [vmem:[%s0 + $0x378] sm:$0xff]
  %v126 = vld [vmem:[%s0 + $0x380] sm:$0xff]
  %v127 = vld [vmem:[%s0 + $0x388] sm:$0xff]
  %v128 = vld [vmem:[%s0 + $0x390] sm:$0xff]
  %v129 = vld [vmem:[%s0 + $0x398] sm:$0xff]
  %v130 = vld [vmem:[%s0 + $0x3a0] sm:$0xff]
  %v131 = vld [vmem:[%s0 + $0x3a8] sm:$0xff]
  %v132 = vld [vmem:[%s0 + $0x3b0] sm:$0xff]
  %v133 = vld [vmem:[%s0 + $0x3b8] sm:$0xff]
  %v134 = vld [vmem:[%s0 + $0x3c0] sm:$0xff]
  %v135 = vld [vmem:[%s0 + $0x3c8] sm:$0xff]
  %v136 = vld [vmem:[%s0 + $0x3d0] sm:$0xff]
  %v137 = vld [vmem:[%s0 + $0x3d8] sm:$0xff]
  %v138 = vld [vmem:[%s0 + $0x3e0] sm:$0xff]
  %v139 = vld [vmem:[%s0 + $0x3e8] sm:$0xff]
  %v140 = vld [vmem:[%s0 + $0x3f0] sm:$0xff]
  %v141 = vld [vmem:[%s0 + $0x3f8] sm:$0xff]
  %v142 = vld [vmem:[%s0 + $0x400] sm:$0xff]
  %v143 = vld [vmem:[%s0 + $0x408] sm:$0xff]
  %v144 = vld [vmem:[%s0 + $0x410] sm:$0xff]
  %v145 = vld [vmem:[%s0 + $0x418] sm:$0xff]
  %v146 = vld [vmem:[%s0 + $0x420] sm:$0xff]
  %v147 = vld [vmem:[%s0 + $0x428] sm:$0xff]
  %v148 = vld [vmem:[%s0 + $0x430] sm:$0xff]
  %v149 = vld [vmem:[%s0 + $0x438] sm:$0xff]
  %v150 = vld [vmem:[%s0 + $0x440] sm:$0xff]
  %v151 = vld [vmem:[%s0 + $0x448] sm:$0xff]
  %v152 = vld [vmem:[%s0 + $0x450] sm:$0xff]
  %v153 = vld [vmem:[%s0 + $0x458] sm:$0xff]
  %v154 = vld [vmem:[%s0 + $0x460] sm:$0xff]
  %v155 = vld [vmem:[%s0 + $0x468] sm:$0xff]
  %v156 = vld [vmem:[%s0 + $0x470] sm:$0xff]
  %v157 = vld [vmem:[%s0 + $0x478] sm:$0xff]
  %v158 = vld [vmem:[%s0 + $0x480] sm:$0xff]
  %v159 = vld [vmem:[%s0 + $0x488] sm:$0xff]
  %v160 = vld [vmem:[%s0 + $0x490] sm:$0xff]
  %v161 = vld [vmem:[%s0 + $0x498] sm:$0xff]
  %v162 = vld [vmem:[%s0 + $0x4a0] sm:$0xff]
  %v163 = vld [vmem:[%s0 + $0x4a8] sm:$0xff]
  %v164 = vld [vmem:[%s0 + $0x4b0] sm:$0xff]
  %v165 = vld [vmem:[%s0 + $0x4b8] sm:$0xff]
  %v166 = vld [vmem:[%s0 + $0x4c0] sm:$0xff]
  %v167 = vld [vmem:[%s0 + $0x4c8] sm:$0xff]
  %v168 = vld [vmem:[%s0 + $0x4d0] sm:$0xff]
  %v169 = vld [vmem:[%s0 + $0x4d8] sm:$0xff]
  %v170 = vld [vmem:[%s0 + $0x4e0] sm:$0xff]
  %v171 = vld [vmem:[%s0 + $0x4e8] sm:$0xff]
  %v172 = vld [vmem:[%s0 + $0x4f0] sm:$0xff]
  %v173 = vld [vmem:[%s0 + $0x4f8] sm:$0xff]
  %v174 = vld [vmem:[%s0 + $0x500] sm:$0xff]
  %v175 = vld [vmem:[%s0 + $0x508] sm:$0xff]
  %v176 = vld [vmem:[%s0 + $0x510] sm:$0xff]
  %v177 = vld [vmem:[%s0 + $0x518] sm:$0xff]
  %v178 = vld [vmem:[%s0 + $0x520] sm:$0xff]
  %v179 = vld [vmem:[%s0 + $0x528] sm:$0xff]
  %v180 = vld [vmem:[%s0 + $0x530] sm:$0xff]
  %v181 = vld [vmem:[%s0 + $0x538] sm:$0xff]
  %v182 = vld [vmem:[%s0 + $0x540] sm:$0xff]
  %v183 = vld [vmem:[%s0 + $0x548] sm:$0xff]
  %v184 = vld [vmem:[%s0 + $0x550] sm:$0xff]
  %v185 = vld [vmem:[%s0 + $0x558] sm:$0xff]
  %v186 = vld [vmem:[%s0 + $0x560] sm:$0xff]
  %v187 = vld [vmem:[%s0 + $0x568] sm:$0xff]
  %v188 = vld [vmem:[%s0 + $0x570] sm:$0xff]
  %v189 = vld [vmem:[%s0 + $0x578] sm:$0xff]
  %v190 = vld [vmem:[%s0 + $0x580] sm:$0xff]
  %v191 = vld [vmem:[%s0 + $0x588] sm:$0xff]
  %v192 = vld [vmem:[%s0 + $0x590] sm:$0xff]
  %v193 = vld [vmem:[%s0 + $0x598] sm:$0xff]
  %v194 = vld [vmem:[%s0 + $0x5a0] sm:$0xff]
  %v195 = vld [vmem:[%s0 + $0x5a8] sm:$0xff]
  %v196 = vld [vmem:[%s0 + $0x5b0] sm:$0xff]
  %v197 = vld [vmem:[%s0 + $0x5b8] sm:$0xff]
  %v198 = vld [vmem:[%s0 + $0x5c0] sm:$0xff]
  %v199 = vld [vmem:[%s0 + $0x5c8] sm:$0xff]
  %v200 = vld [vmem:[%s0 + $0x5d0] sm:$0xff]
  %v201 = vld [vmem:[%s0 + $0x5d8] sm:$0xff]
  %v202 = vld [vmem:[%s0 + $0x5e0] sm:$0xff]
  %v203 = vld [vmem:[%s0 + $0x5e8] sm:$0xff]
  %v204 = vld [vmem:[%s0 + $0x5f0] sm:$0xff]
  %v205 = vld [vmem:[%s0 + $0x5f8] sm:$0xff]
  %v206 = vld [vmem:[%s0 + $0x600] sm:$0xff]
  %v207 = vld [vmem:[%s0 + $0x608] sm:$0xff]
  %v208 = vld [vmem:[%s0 + $0x610] sm:$0xff]
  %v209 = vld [vmem:[%s0 + $0x618] sm:$0xff]
  %v210 = vld [vmem:[%s1] sm:$0xff]
  %v211 = vld [vmem:[%s1 + $0x8] sm:$0xff]
  %v212 = vld [vmem:[%s1 + $0x10] sm:$0xff]
  %v213 = vld [vmem:[%s1 + $0x18] sm:$0xff]
  %v214 = vld [vmem:[%s1 + $0x20] sm:$0xff]
  %v215 = vld [vmem:[%s1 + $0x28] sm:$0xff]
  %v216 = vld [vmem:[%s1 + $0x30] sm:$0xff]
  %v217 = vld [vmem:[%s1 + $0x38] sm:$0xff]
  %v218 = vld [vmem:[%s1 + $0x40] sm:$0xff]
  %v219 = vld [vmem:[%s1 + $0x48] sm:$0xff]
  %v220 = vld [vmem:[%s1 + $0x50] sm:$0xff]
  %v221 = vld [vmem:[%s1 + $0x58] sm:$0xff]
  %v222 = vld [vmem:[%s1 + $0x60] sm:$0xff]
  %v223 = vld [vmem:[%s1 + $0x68] sm:$0xff]
  %v224 = vld [vmem:[%s1 + $0x70] sm:$0xff]
  %v225 = vld [vmem:[%s1 + $0x78] sm:$0xff]
  %v226 = vld [vmem:[%s1 + $0x80] sm:$0xff]
  %v227 = vld [vmem:[%s1 + $0x88] sm:$0xff]
  %v228 = vld [vmem:[%s1 + $0x90] sm:$0xff]
  %v229 = vld [vmem:[%s1 + $0x98] sm:$0xff]
  %v230 = vld [vmem:[%s1 + $0xa0] sm:$0xff]
  %v231 = vld [vmem:[%s1 + $0xa8] sm:$0xff]
  %v232 = vld [vmem:[%s1 + $0xb0] sm:$0xff]
  %v233 = vld [vmem:[%s1 + $0xb8] sm:$0xff]
  %v234 = vld [vmem:[%s1 + $0xc0] sm:$0xff]
  %v235 = vld [vmem:[%s1 + $0xc8] sm:$0xff]
  %v236 = vld [vmem:[%s1 + $0xd0] sm:$0xff]
  %v237 = vld [vmem:[%s1 + $0xd8] sm:$0xff]
  %v238 = vld [vmem:[%s1 + $0xe0] sm:$0xff]
  %v239 = vld [vmem:[%s1 + $0xe8] sm:$0xff]
  %v240 = vld [vmem:[%s1 + $0xf0] sm:$0xff]
  %v241 = vld [vmem:[%s1 + $0xf8] sm:$0xff]
  %v242 = vld [vmem:[%s1 + $0x100] sm:$0xff]
  %v243 = vld [vmem:[%s1 + $0x108] sm:$0xff]
  %v244 = vld [vmem:[%s1 + $0x110] sm:$0xff]
  %v245 = vld [vmem:[%s1 + $0x118] sm:$0xff]
  %v246 = vld [vmem:[%s1 + $0x120] sm:$0xff]
  %v247 = vld [vmem:[%s1 + $0x128] sm:$0xff]
  %v248 = vld [vmem:[%s1 + $0x130] sm:$0xff]
  %v249 = vld [vmem:[%s1 + $0x138] sm:$0xff]
  %v250 = vld [vmem:[%s1 + $0x140] sm:$0xff]
  %v251 = vld [vmem:[%s1 + $0x148] sm:$0xff]
  %v252 = vld [vmem:[%s1 + $0x150] sm:$0xff]
  %v253 = vld [vmem:[%s1 + $0x158] sm:$0xff]
  %v254 = vld [vmem:[%s1 + $0x160] sm:$0xff]
  %v255 = vld [vmem:[%s1 + $0x168] sm:$0xff]
  %v256 = vld [vmem:[%s1 + $0x170] sm:$0xff]
  %v257 = vld [vmem:[%s1 + $0x178] sm:$0xff]
  %v258 = vld [vmem:[%s1 + $0x180] sm:$0xff]
  %v259 = vld [vmem:[%s1 + $0x188] sm:$0xff]
  %v260 = vld [vmem:[%s1 + $0x190] sm:$0xff]
  %v261 = vld [vmem:[%s1 + $0x198] sm:$0xff]
  %v262 = vld [vmem:[%s1 + $0x1a0] sm:$0xff]
  %v263 = vld [vmem:[%s1 + $0x1a8] sm:$0xff]
  %v264 = vld [vmem:[%s1 + $0x1b0] sm:$0xff]
  %v265 = vld [vmem:[%s1 + $0x1b8] sm:$0xff]
  %v266 = vld [vmem:[%s1 + $0x1c0] sm:$0xff]
  %v267 = vld [vmem:[%s1 + $0x1c8] sm:$0xff]
  %v268 = vld [vmem:[%s1 + $0x1d0] sm:$0xff]
  %v269 = vld [vmem:[%s1 + $0x1d8] sm:$0xff]
  %v270 = vld [vmem:[%s1 + $0x1e0] sm:$0xff]
  %v271 = vld [vmem:[%s1 + $0x1e8] sm:$0xff]
  %v272 = vld [vmem:[%s1 + $0x1f0] sm:$0xff]
  %v273 = vld [vmem:[%s1 + $0x1f8] sm:$0xff]
  %v274 = vld [vmem:[%s1 + $0x200] sm:$0xff]
  %v275 = vld [vmem:[%s1 + $0x208] sm:$0xff]
  %v276 = vld [vmem:[%s1 + $0x210] sm:$0xff]
  %v277 = vld [vmem:[%s1 + $0x218] sm:$0xff]
  %v278 = vld [vmem:[%s1 + $0x220] sm:$0xff]
  %v279 = vld [vmem:[%s1 + $0x228] sm:$0xff]
  %v280 = vld [vmem:[%s1 + $0x230] sm:$0xff]
  %v281 = vld [vmem:[%s1 + $0x238] sm:$0xff]
  %v282 = vld [vmem:[%s1 + $0x240] sm:$0xff]
  %v283 = vld [vmem:[%s1 + $0x248] sm:$0xff]
  %v284 = vld [vmem:[%s1 + $0x250] sm:$0xff]
  %v285 = vld [vmem:[%s1 + $0x258] sm:$0xff]
  %v286 = vld [vmem:[%s1 + $0x260] sm:$0xff]
  %v287 = vld [vmem:[%s1 + $0x268] sm:$0xff]
  %v288 = vld [vmem:[%s1 + $0x270] sm:$0xff]
  %v289 = vld [vmem:[%s1 + $0x278] sm:$0xff]
  %v290 = vld [vmem:[%s1 + $0x280] sm:$0xff]
  %v291 = vld [vmem:[%s1 + $0x288] sm:$0xff]
  %v292 = vld [vmem:[%s1 + $0x290] sm:$0xff]
  %v293 = vld [vmem:[%s1 + $0x298] sm:$0xff]
  %v294 = vld [vmem:[%s1 + $0x2a0] sm:$0xff]
  %v295 = vld [vmem:[%s1 + $0x2a8] sm:$0xff]
  %v296 = vld [vmem:[%s1 + $0x2b0] sm:$0xff]
  %v297 = vld [vmem:[%s1 + $0x2b8] sm:$0xff]
  %v298 = vld [vmem:[%s1 + $0x2c0] sm:$0xff]
  %v299 = vld [vmem:[%s1 + $0x2c8] sm:$0xff]
  %v300 = vld [vmem:[%s1 + $0x2d0] sm:$0xff]
  %v301 = vld [vmem:[%s1 + $0x2d8] sm:$0xff]
  %v302 = vld [vmem:[%s1 + $0x2e0] sm:$0xff]
  %v303 = vld [vmem:[%s1 + $0x2e8] sm:$0xff]
  %v304 = vld [vmem:[%s1 + $0x2f0] sm:$0xff]
  %v305 = vld [vmem:[%s1 + $0x2f8] sm:$0xff]
  %v306 = vld [vmem:[%s1 + $0x300] sm:$0xff]
  %v307 = vld [vmem:[%s1 + $0x308] sm:$0xff]
  %v308 = vld [vmem:[%s1 + $0x310] sm:$0xff]
  %v309 = vld [vmem:[%s1 + $0x318] sm:$0xff]
  %v310 = vld [vmem:[%s1 + $0x320] sm:$0xff]
  %v311 = vld [vmem:[%s1 + $0x328] sm:$0xff]
  %v312 = vld [vmem:[%s1 + $0x330] sm:$0xff]
  %v313 = vld [vmem:[%s1 + $0x338] sm:$0xff]
  %v314 = vld [vmem:[%s1 + $0x340] sm:$0xff]
  %v315 = vld [vmem:[%s1 + $0x348] sm:$0xff]
  %v316 = vld [vmem:[%s1 + $0x350] sm:$0xff]
  %v317 = vld [vmem:[%s1 + $0x358] sm:$0xff]
  %v318 = vld [vmem:[%s1 + $0x360] sm:$0xff]
  %v319 = vld [vmem:[%s1 + $0x368] sm:$0xff]
  %v320 = vld [vmem:[%s1 + $0x370] sm:$0xff]
  %v321 = vld [vmem:[%s1 + $0x378] sm:$0xff]
  %v322 = vld [vmem:[%s1 + $0x380] sm:$0xff]
  %v323 = vld [vmem:[%s1 + $0x388] sm:$0xff]
  %v324 = vld [vmem:[%s1 + $0x390] sm:$0xff]
  %v325 = vld [vmem:[%s1 + $0x398] sm:$0xff]
  %v326 = vld [vmem:[%s1 + $0x3a0] sm:$0xff]
  %v327 = vld [vmem:[%s1 + $0x3a8] sm:$0xff]
  %v328 = vld [vmem:[%s1 + $0x3b0] sm:$0xff]
  %v329 = vld [vmem:[%s1 + $0x3b8] sm:$0xff]
  %v330 = vld [vmem:[%s1 + $0x3c0] sm:$0xff]
  %v331 = vld [vmem:[%s1 + $0x3c8] sm:$0xff]
  %v332 = vld [vmem:[%s1 + $0x3d0] sm:$0xff]
  %v333 = vld [vmem:[%s1 + $0x3d8] sm:$0xff]
  %v334 = vld [vmem:[%s1 + $0x3e0] sm:$0xff]
  %v335 = vld [vmem:[%s1 + $0x3e8] sm:$0xff]
  %v336 = vld [vmem:[%s1 + $0x3f0] sm:$0xff]
  %v337 = vld [vmem:[%s1 + $0x3f8] sm:$0xff]
  %v338 = vld [vmem:[%s1 + $0x400] sm:$0xff]
  %v339 = vld [vmem:[%s1 + $0x408] sm:$0xff]
  %v340 = vld [vmem:[%s1 + $0x410] sm:$0xff]
  %v341 = vld [vmem:[%s1 + $0x418] sm:$0xff]
  %v342 = vld [vmem:[%s1 + $0x420] sm:$0xff]
  %v343 = vld [vmem:[%s1 + $0x428] sm:$0xff]
  %v344 = vld [vmem:[%s1 + $0x430] sm:$0xff]
  %v345 = vld [vmem:[%s1 + $0x438] sm:$0xff]
  %v346 = vld [vmem:[%s1 + $0x440] sm:$0xff]
  %v347 = vld [vmem:[%s1 + $0x448] sm:$0xff]
  %v348 = vld [vmem:[%s1 + $0x450] sm:$0xff]
  %v349 = vld [vmem:[%s1 + $0x458] sm:$0xff]
  %v350 = vld [vmem:[%s1 + $0x460] sm:$0xff]
  %v351 = vld [vmem:[%s1 + $0x468] sm:$0xff]
  %v352 = vld [vmem:[%s1 + $0x470] sm:$0xff]
  %v353 = vld [vmem:[%s1 + $0x478] sm:$0xff]
  %v354 = vld [vmem:[%s1 + $0x480] sm:$0xff]
  %v355 = vld [vmem:[%s1 + $0x488] sm:$0xff]
  %v356 = vld [vmem:[%s1 + $0x490] sm:$0xff]
  %v357 = vld [vmem:[%s1 + $0x498] sm:$0xff]
  %v358 = vld [vmem:[%s1 + $0x4a0] sm:$0xff]
  %v359 = vld [vmem:[%s1 + $0x4a8] sm:$0xff]
  %v360 = vld [vmem:[%s1 + $0x4b0] sm:$0xff]
  %v361 = vld [vmem:[%s1 + $0x4b8] sm:$0xff]
  %v362 = vld [vmem:[%s1 + $0x4c0] sm:$0xff]
  %v363 = vld [vmem:[%s1 + $0x4c8] sm:$0xff]
  %v364 = vld [vmem:[%s1 + $0x4d0] sm:$0xff]
  %v365 = vld [vmem:[%s1 + $0x4d8] sm:$0xff]
  %v366 = vld [vmem:[%s1 + $0x4e0] sm:$0xff]
  %v367 = vld [vmem:[%s1 + $0x4e8] sm:$0xff]
  %v368 = vld [vmem:[%s1 + $0x4f0] sm:$0xff]
  %v369 = vld [vmem:[%s1 + $0x4f8] sm:$0xff]
  %v370 = vld [vmem:[%s1 + $0x500] sm:$0xff]
  %v371 = vld [vmem:[%s1 + $0x508] sm:$0xff]
  %v372 = vld [vmem:[%s1 + $0x510] sm:$0xff]
  %v373 = vld [vmem:[%s1 + $0x518] sm:$0xff]
  %v374 = vld [vmem:[%s1 + $0x520] sm:$0xff]
  %v375 = vld [vmem:[%s1 + $0x528] sm:$0xff]
  %v376 = vld [vmem:[%s1 + $0x530] sm:$0xff]
  %v377 = vld [vmem:[%s1 + $0x538] sm:$0xff]
  %v378 = vld [vmem:[%s1 + $0x540] sm:$0xff]
  %v379 = vld [vmem:[%s1 + $0x548] sm:$0xff]
  %v380 = vld [vmem:[%s1 + $0x550] sm:$0xff]
  %v381 = vld [vmem:[%s1 + $0x558] sm:$0xff]
  %v382 = vld [vmem:[%s1 + $0x560] sm:$0xff]
  %v383 = vld [vmem:[%s1 + $0x568] sm:$0xff]
  %v384 = vld [vmem:[%s1 + $0x570] sm:$0xff]
  %v385 = vld [vmem:[%s1 + $0x578] sm:$0xff]
  %v386 = vld [vmem:[%s1 + $0x580] sm:$0xff]
  %v387 = vld [vmem:[%s1 + $0x588] sm:$0xff]
  %v388 = vld [vmem:[%s1 + $0x590] sm:$0xff]
  %v389 = vld [vmem:[%s1 + $0x598] sm:$0xff]
  %v390 = vld [vmem:[%s1 + $0x5a0] sm:$0xff]
  %v391 = vld [vmem:[%s1 + $0x5a8] sm:$0xff]
  %v392 = vld [vmem:[%s1 + $0x5b0] sm:$0xff]
  %v393 = vld [vmem:[%s1 + $0x5b8] sm:$0xff]
  %v394 = vld [vmem:[%s1 + $0x5c0] sm:$0xff]
  %v395 = vld [vmem:[%s1 + $0x5c8] sm:$0xff]
  %v396 = vld [vmem:[%s1 + $0x5d0] sm:$0xff]
  %v397 = vld [vmem:[%s1 + $0x5d8] sm:$0xff]
  %v398 = vld [vmem:[%s1 + $0x5e0] sm:$0xff]
  %v399 = vld [vmem:[%s1 + $0x5e8] sm:$0xff]
  %v400 = vld [vmem:[%s1 + $0x5f0] sm:$0xff]
  %v401 = vld [vmem:[%s1 + $0x5f8] sm:$0xff]
  %v402 = vld [vmem:[%s1 + $0x600] sm:$0xff]
  %v403 = vld [vmem:[%s1 + $0x608] sm:$0xff]
  %v404 = vld [vmem:[%s1 + $0x610] sm:$0xff]
  %v405 = vld [vmem:[%s1 + $0x618] sm:$0xff]
  %v406 = vld [vmem:[%s1 + $0x620] sm:$0xff]
  %v407 = vld [vmem:[%s1 + $0x628] sm:$0xff]
  %v408 = vld [vmem:[%s1 + $0x630] sm:$0xff]
  %v409 = vld [vmem:[%s1 + $0x638] sm:$0xff]
  %v410 = vld [vmem:[%s1 + $0x640] sm:$0xff]
  %v411 = vld [vmem:[%s1 + $0x648] sm:$0xff]
  %v412 = vld [vmem:[%s1 + $0x650] sm:$0xff]
  %v413 = vld [vmem:[%s1 + $0x658] sm:$0xff]
  %v414 = vld [vmem:[%s1 + $0x660] sm:$0xff]
  %v415 = vld [vmem:[%s1 + $0x668] sm:$0xff]
  %v416 = vld [vmem:[%s1 + $0x670] sm:$0xff]
  %v417 = vld [vmem:[%s1 + $0x678] sm:$0xff]
  %v418 = vld [vmem:[%s1 + $0x680] sm:$0xff]
  %v419 = vld [vmem:[%s1 + $0x688] sm:$0xff]
  %v420 = vld [vmem:[%s1 + $0x690] sm:$0xff]
  %v421 = vld [vmem:[%s1 + $0x698] sm:$0xff]
  %v422 = vld [vmem:[%s1 + $0x6a0] sm:$0xff]
  %v423 = vld [vmem:[%s1 + $0x6a8] sm:$0xff]
  %v424 = vld [vmem:[%s1 + $0x6b0] sm:$0xff]
  %v425 = vld [vmem:[%s1 + $0x6b8] sm:$0xff]
  %v426 = vld [vmem:[%s1 + $0x6c0] sm:$0xff]
  %v427 = vld [vmem:[%s1 + $0x6c8] sm:$0xff]
  %v428 = vld [vmem:[%s1 + $0x6d0] sm:$0xff]
  %v429 = vld [vmem:[%s1 + $0x6d8] sm:$0xff]
  %v430 = vld [vmem:[%s1 + $0x6e0] sm:$0xff]
  %v431 = vld [vmem:[%s1 + $0x6e8] sm:$0xff]
  %v432 = vld [vmem:[%s1 + $0x6f0] sm:$0xff]
  %v433 = vld [vmem:[%s1 + $0x6f8] sm:$0xff]
  %v434 = vld [vmem:[%s1 + $0x700] sm:$0xff]
  %v435 = vld [vmem:[%s1 + $0x708] sm:$0xff]
  %v436 = vld [vmem:[%s1 + $0x710] sm:$0xff]
  %v437 = vld [vmem:[%s1 + $0x718] sm:$0xff]
  %v438 = vld [vmem:[%s1 + $0x720] sm:$0xff]
  %v439 = vld [vmem:[%s1 + $0x728] sm:$0xff]
  %v440 = vld [vmem:[%s1 + $0x730] sm:$0xff]
  %v441 = vld [vmem:[%s1 + $0x738] sm:$0xff]
  %v442 = vld [vmem:[%s1 + $0x740] sm:$0xff]
  %v443 = vld [vmem:[%s1 + $0x748] sm:$0xff]
  %v444 = vld [vmem:[%s1 + $0x750] sm:$0xff]
  %v445 = vld [vmem:[%s1 + $0x758] sm:$0xff]
  %v446 = vld [vmem:[%s1 + $0x760] sm:$0xff]
  %v447 = vld [vmem:[%s1 + $0x768] sm:$0xff]
  %v448 = vld [vmem:[%s1 + $0x770] sm:$0xff]
  %v449 = vld [vmem:[%s1 + $0x778] sm:$0xff]
  %v450 = vld [vmem:[%s1 + $0x780] sm:$0xff]
  %v451 = vld [vmem:[%s1 + $0x788] sm:$0xff]
  %v452 = vld [vmem:[%s1 + $0x790] sm:$0xff]
  %v453 = vld [vmem:[%s1 + $0x798] sm:$0xff]
  %v454 = vld [vmem:[%s1 + $0x7a0] sm:$0xff]
  %v455 = vld [vmem:[%s1 + $0x7a8] sm:$0xff]
  %v456 = vld [vmem:[%s1 + $0x7b0] sm:$0xff]
  %v457 = vld [vmem:[%s1 + $0x7b8] sm:$0xff]
  %v458 = vld [vmem:[%s1 + $0x7c0] sm:$0xff]
  %v459 = vld [vmem:[%s1 + $0x7c8] sm:$0xff]
  %v460 = vld [vmem:[%s1 + $0x7d0] sm:$0xff]
  %v461 = vld [vmem:[%s1 + $0x7d8] sm:$0xff]
  %v462 = vld [vmem:[%s1 + $0x7e0] sm:$0xff]
  %v463 = vld [vmem:[%s1 + $0x7e8] sm:$0xff]
  %v464 = vld [vmem:[%s1 + $0x7f0] sm:$0xff]
  %v465 = vld [vmem:[%s1 + $0x7f8] sm:$0xff]
  %v466 = vld [vmem:[%s1 + $0x800] sm:$0xff]
  %v467 = vld [vmem:[%s1 + $0x808] sm:$0xff]
  %v468 = vld [vmem:[%s1 + $0x810] sm:$0xff]
  %v469 = vld [vmem:[%s1 + $0x818] sm:$0xff]
  %v470 = vld [vmem:[%s1 + $0x820] sm:$0xff]
  %v471 = vld [vmem:[%s1 + $0x828] sm:$0xff]
  %v472 = vld [vmem:[%s1 + $0x830] sm:$0xff]
  %v473 = vld [vmem:[%s1 + $0x838] sm:$0xff]
  %v474 = vld [vmem:[%s1 + $0x840] sm:$0xff]
  %v475 = vld [vmem:[%s1 + $0x848] sm:$0xff]
  %v476 = vld [vmem:[%s1 + $0x850] sm:$0xff]
  %v477 = vld [vmem:[%s1 + $0x858] sm:$0xff]
  %v478 = vld [vmem:[%s1 + $0x860] sm:$0xff]
  %v479 = vld [vmem:[%s1 + $0x868] sm:$0xff]
  %v480 = vld [vmem:[%s1 + $0x870] sm:$0xff]
  %v481 = vld [vmem:[%s1 + $0x878] sm:$0xff]
  %v482 = vld [vmem:[%s1 + $0x880] sm:$0xff]
  %v483 = vld [vmem:[%s1 + $0x888] sm:$0xff]
  %v484 = vld [vmem:[%s1 + $0x890] sm:$0xff]
  %v485 = vld [vmem:[%s1 + $0x898] sm:$0xff]
  %v486 = vld [vmem:[%s1 + $0x8a0] sm:$0xff]
  %v487 = vld [vmem:[%s1 + $0x8a8] sm:$0xff]
  %v488 = vld [vmem:[%s1 + $0x8b0] sm:$0xff]
  %v489 = vld [vmem:[%s1 + $0x8b8] sm:$0xff]
  %v490 = vld [vmem:[%s1 + $0x8c0] sm:$0xff]
  %v491 = vld [vmem:[%s1 + $0x8c8] sm:$0xff]
  %v492 = vld [vmem:[%s1 + $0x8d0] sm:$0xff]
  %v493 = vld [vmem:[%s1 + $0x8d8] sm:$0xff]
  %v494 = vld [vmem:[%s1 + $0x8e0] sm:$0xff]
  %v495 = vld [vmem:[%s1 + $0x8e8] sm:$0xff]
  %v496 = vld [vmem:[%s1 + $0x8f0] sm:$0xff]
  %v497 = vld [vmem:[%s1 + $0x8f8] sm:$0xff]
  %v498 = vld [vmem:[%s1 + $0x900] sm:$0xff]
  %v499 = vld [vmem:[%s1 + $0x908] sm:$0xff]
  %v500 = vld [vmem:[%s1 + $0x910] sm:$0xff]
  %v501 = vld [vmem:[%s1 + $0x918] sm:$0xff]
  %v502 = vld [vmem:[%s1 + $0x920] sm:$0xff]
  %v503 = vld [vmem:[%s1 + $0x928] sm:$0xff]
  %v504 = vld [vmem:[%s1 + $0x930] sm:$0xff]
  %v505 = vld [vmem:[%s1 + $0x938] sm:$0xff]
  %v506 = vld [vmem:[%s1 + $0x940] sm:$0xff]
  %v507 = vld [vmem:[%s1 + $0x948] sm:$0xff]
  %v508 = vld [vmem:[%s1 + $0x950] sm:$0xff]
  %v509 = vld [vmem:[%s1 + $0x958] sm:$0xff]
  %v510 = vld [vmem:[%s1 + $0x960] sm:$0xff]
  %v511 = vld [vmem:[%s1 + $0x968] sm:$0xff]
  %v512 = vld [vmem:[%s1 + $0x970] sm:$0xff]
  %v513 = vld [vmem:[%s1 + $0x978] sm:$0xff]
  %v514 = vld [vmem:[%s1 + $0x980] sm:$0xff]
  %v515 = vld [vmem:[%s1 + $0x988] sm:$0xff]
  %v516 = vld [vmem:[%s1 + $0x990] sm:$0xff]
  %v517 = vld [vmem:[%s1 + $0x998] sm:$0xff]
  %v518 = vld [vmem:[%s1 + $0x9a0] sm:$0xff]
  %v519 = vld [vmem:[%s1 + $0x9a8] sm:$0xff]
  %v520 = vld [vmem:[%s1 + $0x9b0] sm:$0xff]
  %v521 = vld [vmem:[%s1 + $0x9b8] sm:$0xff]
  %v522 = vld [vmem:[%s1 + $0x9c0] sm:$0xff]
  %v523 = vld [vmem:[%s1 + $0x9c8] sm:$0xff]
  %v524 = vld [vmem:[%s1 + $0x9d0] sm:$0xff]
  %v525 = vld [vmem:[%s1 + $0x9d8] sm:$0xff]
  %v526 = vld [vmem:[%s1 + $0x9e0] sm:$0xff]
  %v527 = vld [vmem:[%s1 + $0x9e8] sm:$0xff]
  %v528 = vld [vmem:[%s1 + $0x9f0] sm:$0xff]
  %v529 = vld [vmem:[%s1 + $0x9f8] sm:$0xff]
  %v530 = vld [vmem:[%s1 + $0xa00] sm:$0xff]
  %v531 = vld [vmem:[%s1 + $0xa08] sm:$0xff]
  %v532 = vld [vmem:[%s1 + $0xa10] sm:$0xff]
  %v533 = vld [vmem:[%s1 + $0xa18] sm:$0xff]
  %v534 = vld [vmem:[%s1 + $0xa20] sm:$0xff]
  %v535 = vld [vmem:[%s1 + $0xa28] sm:$0xff]
  %v536 = vld [vmem:[%s1 + $0xa30] sm:$0xff]
  %v537 = vld [vmem:[%s1 + $0xa38] sm:$0xff]
  %v538 = vld [vmem:[%s1 + $0xa40] sm:$0xff]
  %v539 = vld [vmem:[%s1 + $0xa48] sm:$0xff]
  %v540 = vld [vmem:[%s1 + $0xa50] sm:$0xff]
  %v541 = vld [vmem:[%s1 + $0xa58] sm:$0xff]
  %v542 = vld [vmem:[%s1 + $0xa60] sm:$0xff]
  %v543 = vld [vmem:[%s1 + $0xa68] sm:$0xff]
  %v544 = vld [vmem:[%s1 + $0xa70] sm:$0xff]
  %v545 = vld [vmem:[%s1 + $0xa78] sm:$0xff]
  %v546 = vld [vmem:[%s1 + $0xa80] sm:$0xff]
  %v547 = vld [vmem:[%s1 + $0xa88] sm:$0xff]
  %v548 = vld [vmem:[%s1 + $0xa90] sm:$0xff]
  %v549 = vld [vmem:[%s1 + $0xa98] sm:$0xff]
  %v550 = vld [vmem:[%s1 + $0xaa0] sm:$0xff]
  %v551 = vld [vmem:[%s1 + $0xaa8] sm:$0xff]
  %v552 = vld [vmem:[%s1 + $0xab0] sm:$0xff]
  %v553 = vld [vmem:[%s1 + $0xab8] sm:$0xff]
  %v554 = vld [vmem:[%s1 + $0xac0] sm:$0xff]
  %v555 = vld [vmem:[%s1 + $0xac8] sm:$0xff]
  %v556 = vld [vmem:[%s1 + $0xad0] sm:$0xff]
  %v557 = vld [vmem:[%s1 + $0xad8] sm:$0xff]
  %v558 = vld [vmem:[%s1 + $0xae0] sm:$0xff]
  %v559 = vld [vmem:[%s1 + $0xae8] sm:$0xff]
  %v560 = vld [vmem:[%s1 + $0xaf0] sm:$0xff]
  %v561 = vld [vmem:[%s1 + $0xaf8] sm:$0xff]
  %v562 = vld [vmem:[%s1 + $0xb00] sm:$0xff]
  %v563 = vld [vmem:[%s1 + $0xb08] sm:$0xff]
  %v564 = vld [vmem:[%s1 + $0xb10] sm:$0xff]
  %v565 = vld [vmem:[%s1 + $0xb18] sm:$0xff]
  %v566 = vld [vmem:[%s1 + $0xb20] sm:$0xff]
  %v567 = vld [vmem:[%s1 + $0xb28] sm:$0xff]
  %v568 = vld [vmem:[%s1 + $0xb30] sm:$0xff]
  %v569 = vld [vmem:[%s1 + $0xb38] sm:$0xff]
  %v570 = vld [vmem:[%s1 + $0xb40] sm:$0xff]
  %v571 = vld [vmem:[%s1 + $0xb48] sm:$0xff]
  %v572 = vld [vmem:[%s1 + $0xb50] sm:$0xff]
  %v573 = vld [vmem:[%s1 + $0xb58] sm:$0xff]
  %v574 = vld [vmem:[%s1 + $0xb60] sm:$0xff]
  %v575 = vld [vmem:[%s1 + $0xb68] sm:$0xff]
  %v576 = vld [vmem:[%s1 + $0xb70] sm:$0xff]
  %v577 = vld [vmem:[%s1 + $0xb78] sm:$0xff]
  %v578 = vld [vmem:[%s1 + $0xb80] sm:$0xff]
  %v579 = vld [vmem:[%s1 + $0xb88] sm:$0xff]
  %v580 = vld [vmem:[%s1 + $0xb90] sm:$0xff]
  %v581 = vld [vmem:[%s1 + $0xb98] sm:$0xff]
  %v582 = vld [vmem:[%s1 + $0xba0] sm:$0xff]
  %v583 = vld [vmem:[%s1 + $0xba8] sm:$0xff]
  %v584 = vld [vmem:[%s1 + $0xbb0] sm:$0xff]
  %v585 = vld [vmem:[%s1 + $0xbb8] sm:$0xff]
  %v586 = vld [vmem:[%s1 + $0xbc0] sm:$0xff]
  %v587 = vld [vmem:[%s1 + $0xbc8] sm:$0xff]
  %v588 = vld [vmem:[%s1 + $0xbd0] sm:$0xff]
  %v589 = vld [vmem:[%s1 + $0xbd8] sm:$0xff]
  %v590 = vld [vmem:[%s1 + $0xbe0] sm:$0xff]
  %v591 = vld [vmem:[%s1 + $0xbe8] sm:$0xff]
  %v592 = vld [vmem:[%s1 + $0xbf0] sm:$0xff]
  %v593 = vld [vmem:[%s1 + $0xbf8] sm:$0xff]
  %v594 = vld [vmem:[%s1 + $0xc00] sm:$0xff]
  %v595 = vld [vmem:[%s1 + $0xc08] sm:$0xff]
  %v596 = vld [vmem:[%s1 + $0xc10] sm:$0xff]
  %v597 = vld [vmem:[%s1 + $0xc18] sm:$0xff]
  %v598 = vld [vmem:[%s1 + $0xc20] sm:$0xff]
  %v599 = vld [vmem:[%s1 + $0xc28] sm:$0xff]
  %v600 = vld [vmem:[%s1 + $0xc30] sm:$0xff]
  %v601 = vld [vmem:[%s1 + $0xc38] sm:$0xff]
  %v602 = vld [vmem:[%s1 + $0xc40] sm:$0xff]
  %v603 = vld [vmem:[%s1 + $0xc48] sm:$0xff]
  %v604 = vld [vmem:[%s1 + $0xc50] sm:$0xff]
  %v605 = vld [vmem:[%s1 + $0xc58] sm:$0xff]
  %v606 = vld [vmem:[%s1 + $0xc60] sm:$0xff]
  %v607 = vld [vmem:[%s1 + $0xc68] sm:$0xff]
  %v608 = vld [vmem:[%s1 + $0xc70] sm:$0xff]
  %v609 = vld [vmem:[%s1 + $0xc78] sm:$0xff]
  %v610 = vld [vmem:[%s1 + $0xc80] sm:$0xff]
  %v611 = vld [vmem:[%s1 + $0xc88] sm:$0xff]
  %v612 = vld [vmem:[%s1 + $0xc90] sm:$0xff]
  %v613 = vld [vmem:[%s1 + $0xc98] sm:$0xff]
  %v614 = vld [vmem:[%s1 + $0xca0] sm:$0xff]
  %v615 = vld [vmem:[%s1 + $0xca8] sm:$0xff]
  %v616 = vld [vmem:[%s1 + $0xcb0] sm:$0xff]
  %v617 = vld [vmem:[%s1 + $0xcb8] sm:$0xff]
  %v618 = vld [vmem:[%s1 + $0xcc0] sm:$0xff]
  %v619 = vld [vmem:[%s1 + $0xcc8] sm:$0xff]
  %v620 = vld [vmem:[%s1 + $0xcd0] sm:$0xff]
  %v621 = vld [vmem:[%s1 + $0xcd8] sm:$0xff]
  %v622 = vld [vmem:[%s1 + $0xce0] sm:$0xff]
  %v623 = vld [vmem:[%s1 + $0xce8] sm:$0xff]
  %v624 = vld [vmem:[%s1 + $0xcf0] sm:$0xff]
  %v625 = vld [vmem:[%s1 + $0xcf8] sm:$0xff]
  %v626 = vld [vmem:[%s1 + $0xd00] sm:$0xff]
  %v627 = vld [vmem:[%s1 + $0xd08] sm:$0xff]
  %v628 = vld [vmem:[%s1 + $0xd10] sm:$0xff]
  %v629 = vld [vmem:[%s1 + $0xd18] sm:$0xff]
  %v630 = vld [vmem:[%s1 + $0xd20] sm:$0xff]
  %v631 = vld [vmem:[%s1 + $0xd28] sm:$0xff]
  %v632 = vld [vmem:[%s1 + $0xd30] sm:$0xff]
  %v633 = vld [vmem:[%s1 + $0xd38] sm:$0xff]
  %v634 = vld [vmem:[%s1 + $0xd40] sm:$0xff]
  %v635 = vld [vmem:[%s1 + $0xd48] sm:$0xff]
  %v636 = vld [vmem:[%s1 + $0xd50] sm:$0xff]
  %v637 = vld [vmem:[%s1 + $0xd58] sm:$0xff]
  %v638 = vld [vmem:[%s1 + $0xd60] sm:$0xff]
  %v639 = vld [vmem:[%s1 + $0xd68] sm:$0xff]
  %v640 = vld [vmem:[%s1 + $0xd70] sm:$0xff]
  %v641 = vld [vmem:[%s1 + $0xd78] sm:$0xff]
  %v642 = vld [vmem:[%s1 + $0xd80] sm:$0xff]
  %v643 = vld [vmem:[%s1 + $0xd88] sm:$0xff]
  %v644 = vld [vmem:[%s1 + $0xd90] sm:$0xff]
  %v645 = vld [vmem:[%s1 + $0xd98] sm:$0xff]
  %v646 = vld [vmem:[%s1 + $0xda0] sm:$0xff]
  %v647 = vld [vmem:[%s1 + $0xda8] sm:$0xff]
  %v648 = vld [vmem:[%s1 + $0xdb0] sm:$0xff]
  %v649 = vld [vmem:[%s1 + $0xdb8] sm:$0xff]
  %v650 = vld [vmem:[%s1 + $0xdc0] sm:$0xff]
  %v651 = vld [vmem:[%s1 + $0xdc8] sm:$0xff]
  %v652 = vld [vmem:[%s1 + $0xdd0] sm:$0xff]
  %v653 = vld [vmem:[%s1 + $0xdd8] sm:$0xff]
  %v654 = vld [vmem:[%s1 + $0xde0] sm:$0xff]
  %v655 = vld [vmem:[%s1 + $0xde8] sm:$0xff]
  %v656 = vld [vmem:[%s1 + $0xdf0] sm:$0xff]
  %v657 = vld [vmem:[%s1 + $0xdf8] sm:$0xff]
  %v658 = vld [vmem:[%s1 + $0xe00] sm:$0xff]
  %v659 = vld [vmem:[%s1 + $0xe08] sm:$0xff]
  %v660 = vld [vmem:[%s1 + $0xe10] sm:$0xff]
  %v661 = vld [vmem:[%s1 + $0xe18] sm:$0xff]
  %v662 = vld [vmem:[%s1 + $0xe20] sm:$0xff]
  %v663 = vld [vmem:[%s1 + $0xe28] sm:$0xff]
  %v664 = vld [vmem:[%s1 + $0xe30] sm:$0xff]
  %v665 = vld [vmem:[%s1 + $0xe38] sm:$0xff]
  %v666 = vld [vmem:[%s1 + $0xe40] sm:$0xff]
  %v667 = vld [vmem:[%s1 + $0xe48] sm:$0xff]
  %v668 = vld [vmem:[%s1 + $0xe50] sm:$0xff]
  %v669 = vld [vmem:[%s1 + $0xe58] sm:$0xff]
  %v670 = vld [vmem:[%s1 + $0xe60] sm:$0xff]
  %v671 = vld [vmem:[%s1 + $0xe68] sm:$0xff]
  %v672 = vld [vmem:[%s1 + $0xe70] sm:$0xff]
  %v673 = vld [vmem:[%s1 + $0xe78] sm:$0xff]
  %v674 = vld [vmem:[%s1 + $0xe80] sm:$0xff]
  %v675 = vld [vmem:[%s1 + $0xe88] sm:$0xff]
  %v676 = vld [vmem:[%s1 + $0xe90] sm:$0xff]
  %v677 = vld [vmem:[%s1 + $0xe98] sm:$0xff]
  %v678 = vld [vmem:[%s1 + $0xea0] sm:$0xff]
  %v679 = vld [vmem:[%s1 + $0xea8] sm:$0xff]
  %v680 = vld [vmem:[%s1 + $0xeb0] sm:$0xff]
  %v681 = vld [vmem:[%s1 + $0xeb8] sm:$0xff]
  %v682 = vld [vmem:[%s1 + $0xec0] sm:$0xff]
  %v683 = vld [vmem:[%s1 + $0xec8] sm:$0xff]
  %v684 = vld [vmem:[%s1 + $0xed0] sm:$0xff]
  %v685 = vld [vmem:[%s1 + $0xed8] sm:$0xff]
  %v686 = vld [vmem:[%s1 + $0xee0] sm:$0xff]
  %v687 = vld [vmem:[%s1 + $0xee8] sm:$0xff]
  %v688 = vld [vmem:[%s1 + $0xef0] sm:$0xff]
  %v689 = vld [vmem:[%s1 + $0xef8] sm:$0xff]
  %v690 = vld [vmem:[%s1 + $0xf00] sm:$0xff]
  %v691 = vld [vmem:[%s1 + $0xf08] sm:$0xff]
  %v692 = vld [vmem:[%s1 + $0xf10] sm:$0xff]
  %v693 = vld [vmem:[%s1 + $0xf18] sm:$0xff]
  %v694 = vld [vmem:[%s1 + $0xf20] sm:$0xff]
  %v695 = vld [vmem:[%s1 + $0xf28] sm:$0xff]
  %v696 = vld [vmem:[%s1 + $0xf30] sm:$0xff]
  %v697 = vld [vmem:[%s1 + $0xf38] sm:$0xff]
  %v698 = vld [vmem:[%s1 + $0xf40] sm:$0xff]
  %v699 = vld [vmem:[%s1 + $0xf48] sm:$0xff]
  %v700 = vld [vmem:[%s1 + $0xf50] sm:$0xff]
  %v701 = vld [vmem:[%s1 + $0xf58] sm:$0xff]
  %v702 = vld [vmem:[%s1 + $0xf60] sm:$0xff]
  %v703 = vld [vmem:[%s1 + $0xf68] sm:$0xff]
  %v704 = vld [vmem:[%s1 + $0xf70] sm:$0xff]
  %v705 = vld [vmem:[%s1 + $0xf78] sm:$0xff]
  %v706 = vld [vmem:[%s1 + $0xf80] sm:$0xff]
  %v707 = vld [vmem:[%s1 + $0xf88] sm:$0xff]
  %v708 = vld [vmem:[%s1 + $0xf90] sm:$0xff]
  %v709 = vld [vmem:[%s1 + $0xf98] sm:$0xff]
  %v710 = vld [vmem:[%s1 + $0xfa0] sm:$0xff]
  %v711 = vld [vmem:[%s1 + $0xfa8] sm:$0xff]
  %v712 = vld [vmem:[%s1 + $0xfb0] sm:$0xff]
  %v713 = vld [vmem:[%s1 + $0xfb8] sm:$0xff]
  %v714 = vld [vmem:[%s1 + $0xfc0] sm:$0xff]
  %v715 = vld [vmem:[%s1 + $0xfc8] sm:$0xff]
  %v716 = vld [vmem:[%s1 + $0xfd0] sm:$0xff]
  %v717 = vld [vmem:[%s1 + $0xfd8] sm:$0xff]
  %v718 = vld [vmem:[%s1 + $0xfe0] sm:$0xff]
  %v719 = vld [vmem:[%s1 + $0xfe8] sm:$0xff]
  %v720 = vld [vmem:[%s1 + $0xff0] sm:$0xff]
  %v721 = vld [vmem:[%s1 + $0xff8] sm:$0xff]
  %v722 = vld [vmem:[%s1 + $0x1000] sm:$0xff]
  %v723 = vld [vmem:[%s1 + $0x1008] sm:$0xff]
  %v724 = vld [vmem:[%s1 + $0x1010] sm:$0xff]
  %v725 = vld [vmem:[%s1 + $0x1018] sm:$0xff]
  %v726 = vld [vmem:[%s1 + $0x1020] sm:$0xff]
  %v727 = vld [vmem:[%s1 + $0x1028] sm:$0xff]
  %v728 = vld [vmem:[%s1 + $0x1030] sm:$0xff]
  %v729 = vld [vmem:[%s1 + $0x1038] sm:$0xff]
  %v730 = vld [vmem:[%s1 + $0x1040] sm:$0xff]
  %v731 = vld [vmem:[%s1 + $0x1048] sm:$0xff]
  %v732 = vld [vmem:[%s1 + $0x1050] sm:$0xff]
  %v733 = vld [vmem:[%s1 + $0x1058] sm:$0xff]
  %v734 = vld [vmem:[%s1 + $0x1060] sm:$0xff]
  %v735 = vld [vmem:[%s1 + $0x1068] sm:$0xff]
  %v736 = vld [vmem:[%s1 + $0x1070] sm:$0xff]
  %v737 = vld [vmem:[%s1 + $0x1078] sm:$0xff]
  %v738 = vld [vmem:[%s1 + $0x1080] sm:$0xff]
  %v739 = vld [vmem:[%s1 + $0x1088] sm:$0xff]
  %v740 = vld [vmem:[%s1 + $0x1090] sm:$0xff]
  %v741 = vld [vmem:[%s1 + $0x1098] sm:$0xff]
  %v742 = vld [vmem:[%s1 + $0x10a0] sm:$0xff]
  %v743 = vld [vmem:[%s1 + $0x10a8] sm:$0xff]
  %v744 = vld [vmem:[%s1 + $0x10b0] sm:$0xff]
  %v745 = vld [vmem:[%s1 + $0x10b8] sm:$0xff]
  %v746 = vld [vmem:[%s1 + $0x10c0] sm:$0xff]
  %v747 = vld [vmem:[%s1 + $0x10c8] sm:$0xff]
  %v748 = vld [vmem:[%s1 + $0x10d0] sm:$0xff]
  %v749 = vld [vmem:[%s1 + $0x10d8] sm:$0xff]
  %v750 = vld [vmem:[%s1 + $0x10e0] sm:$0xff]
  %v751 = vld [vmem:[%s1 + $0x10e8] sm:$0xff]
  %v752 = vld [vmem:[%s1 + $0x10f0] sm:$0xff]
  %v753 = vld [vmem:[%s1 + $0x10f8] sm:$0xff]
  %v754 = vld [vmem:[%s1 + $0x1100] sm:$0xff]
  %v755 = vld [vmem:[%s1 + $0x1108] sm:$0xff]
  %v756 = vld [vmem:[%s1 + $0x1110] sm:$0xff]
  %v757 = vld [vmem:[%s1 + $0x1118] sm:$0xff]
  %v758 = vld [vmem:[%s1 + $0x1120] sm:$0xff]
  %v759 = vld [vmem:[%s1 + $0x1128] sm:$0xff]
  %v760 = vld [vmem:[%s1 + $0x1130] sm:$0xff]
  %v761 = vld [vmem:[%s1 + $0x1138] sm:$0xff]
  %v762 = vld [vmem:[%s1 + $0x1140] sm:$0xff]
  %v763 = vld [vmem:[%s1 + $0x1148] sm:$0xff]
  %v764 = vld [vmem:[%s1 + $0x1150] sm:$0xff]
  %v765 = vld [vmem:[%s1 + $0x1158] sm:$0xff]
  %v766 = vld [vmem:[%s1 + $0x1160] sm:$0xff]
  %v767 = vld [vmem:[%s1 + $0x1168] sm:$0xff]
  %v768 = vld [vmem:[%s1 + $0x1170] sm:$0xff]
  %v769 = vld [vmem:[%s1 + $0x1178] sm:$0xff]
  %v770 = vld [vmem:[%s1 + $0x1180] sm:$0xff]
  %v771 = vld [vmem:[%s1 + $0x1188] sm:$0xff]
  %v772 = vld [vmem:[%s1 + $0x1190] sm:$0xff]
  %v773 = vld [vmem:[%s1 + $0x1198] sm:$0xff]
  %v774 = vld [vmem:[%s1 + $0x11a0] sm:$0xff]
  %v775 = vld [vmem:[%s1 + $0x11a8] sm:$0xff]
  %v776 = vld [vmem:[%s1 + $0x11b0] sm:$0xff]
  %v777 = vld [vmem:[%s1 + $0x11b8] sm:$0xff]
  %v778 = vld [vmem:[%s1 + $0x11c0] sm:$0xff]
  %v779 = vld [vmem:[%s1 + $0x11c8] sm:$0xff]
  %v780 = vld [vmem:[%s1 + $0x11d0] sm:$0xff]
  %v781 = vld [vmem:[%s1 + $0x11d8] sm:$0xff]
  %v782 = vld [vmem:[%s1 + $0x11e0] sm:$0xff]
  %v783 = vld [vmem:[%s1 + $0x11e8] sm:$0xff]
  %v784 = vld [vmem:[%s1 + $0x11f0] sm:$0xff]
  %v785 = vld [vmem:[%s1 + $0x11f8] sm:$0xff]
  %v786 = vld [vmem:[%s1 + $0x1200] sm:$0xff]
  %v787 = vld [vmem:[%s1 + $0x1208] sm:$0xff]
  %v788 = vld [vmem:[%s1 + $0x1210] sm:$0xff]
  %v789 = vld [vmem:[%s1 + $0x1218] sm:$0xff]
  %v790 = vld [vmem:[%s1 + $0x1220] sm:$0xff]
  %v791 = vld [vmem:[%s1 + $0x1228] sm:$0xff]
  %v792 = vld [vmem:[%s1 + $0x1230] sm:$0xff]
  %v793 = vld [vmem:[%s1 + $0x1238] sm:$0xff]
  %v794 = vld [vmem:[%s1 + $0x1240] sm:$0xff]
  %v795 = vld [vmem:[%s1 + $0x1248] sm:$0xff]
  %v796 = vld [vmem:[%s1 + $0x1250] sm:$0xff]
  %v797 = vld [vmem:[%s1 + $0x1258] sm:$0xff]
  %v798 = vld [vmem:[%s1 + $0x1260] sm:$0xff]
  %v799 = vld [vmem:[%s1 + $0x1268] sm:$0xff]
  %v800 = vld [vmem:[%s1 + $0x1270] sm:$0xff]
  %v801 = vld [vmem:[%s1 + $0x1278] sm:$0xff]
  %v802 = vld [vmem:[%s1 + $0x1280] sm:$0xff]
  %v803 = vld [vmem:[%s1 + $0x1288] sm:$0xff]
  %v804 = vld [vmem:[%s1 + $0x1290] sm:$0xff]
  %v805 = vld [vmem:[%s1 + $0x1298] sm:$0xff]
  %v806 = vld [vmem:[%s1 + $0x12a0] sm:$0xff]
  %v807 = vld [vmem:[%s1 + $0x12a8] sm:$0xff]
  %v808 = vld [vmem:[%s1 + $0x12b0] sm:$0xff]
  %v809 = vld [vmem:[%s1 + $0x12b8] sm:$0xff]
  %v810 = vld [vmem:[%s1 + $0x12c0] sm:$0xff]
  %v811 = vld [vmem:[%s1 + $0x12c8] sm:$0xff]
  %v812 = vld [vmem:[%s1 + $0x12d0] sm:$0xff]
  %v813 = vld [vmem:[%s1 + $0x12d8] sm:$0xff]
  %v814 = vld [vmem:[%s1 + $0x12e0] sm:$0xff]
  %v815 = vld [vmem:[%s1 + $0x12e8] sm:$0xff]
  %v816 = vld [vmem:[%s1 + $0x12f0] sm:$0xff]
  %v817 = vld [vmem:[%s1 + $0x12f8] sm:$0xff]
  %v818 = vld [vmem:[%s1 + $0x1300] sm:$0xff]
  %v819 = vld [vmem:[%s1 + $0x1308] sm:$0xff]
  %v820 = vld [vmem:[%s1 + $0x1310] sm:$0xff]
  %v821 = vld [vmem:[%s1 + $0x1318] sm:$0xff]
  %v822 = vld [vmem:[%s1 + $0x1320] sm:$0xff]
  %v823 = vld [vmem:[%s1 + $0x1328] sm:$0xff]
  %v824 = vld [vmem:[%s1 + $0x1330] sm:$0xff]
  %v825 = vld [vmem:[%s1 + $0x1338] sm:$0xff]
  %v826 = vld [vmem:[%s1 + $0x1340] sm:$0xff]
  %v827 = vld [vmem:[%s1 + $0x1348] sm:$0xff]
  %v828 = vld [vmem:[%s1 + $0x1350] sm:$0xff]
  %v829 = vld [vmem:[%s1 + $0x1358] sm:$0xff]
  %v830 = vld [vmem:[%s1 + $0x1360] sm:$0xff]
  %v831 = vld [vmem:[%s1 + $0x1368] sm:$0xff]
  %v832 = vld [vmem:[%s1 + $0x1370] sm:$0xff]
  %v833 = vld [vmem:[%s1 + $0x1378] sm:$0xff]
  %v834 = vld [vmem:[%s1 + $0x1380] sm:$0xff]
  %v835 = vld [vmem:[%s1 + $0x1388] sm:$0xff]
  %v836 = vld [vmem:[%s1 + $0x1390] sm:$0xff]
  %v837 = vld [vmem:[%s1 + $0x1398] sm:$0xff]
  %v838 = vld [vmem:[%s1 + $0x13a0] sm:$0xff]
  %v839 = vld [vmem:[%s1 + $0x13a8] sm:$0xff]
  %v840 = vld [vmem:[%s1 + $0x13b0] sm:$0xff]
  %v841 = vld [vmem:[%s1 + $0x13b8] sm:$0xff]
  %v842 = vld [vmem:[%s1 + $0x13c0] sm:$0xff]
  %v843 = vld [vmem:[%s1 + $0x13c8] sm:$0xff]
  %v844 = vld [vmem:[%s1 + $0x13d0] sm:$0xff]
  %v845 = vld [vmem:[%s1 + $0x13d8] sm:$0xff]
  %v846 = vld [vmem:[%s1 + $0x13e0] sm:$0xff]
  %v847 = vld [vmem:[%s1 + $0x13e8] sm:$0xff]
  %v848 = vld [vmem:[%s1 + $0x13f0] sm:$0xff]
  %v849 = vld [vmem:[%s1 + $0x13f8] sm:$0xff]
  %v850 = vld [vmem:[%s1 + $0x1400] sm:$0xff]
  %v851 = vld [vmem:[%s1 + $0x1408] sm:$0xff]
  %v852 = vld [vmem:[%s1 + $0x1410] sm:$0xff]
  %v853 = vld [vmem:[%s1 + $0x1418] sm:$0xff]
  %v854 = vld [vmem:[%s1 + $0x1420] sm:$0xff]
  %v855 = vld [vmem:[%s1 + $0x1428] sm:$0xff]
  %v856 = vld [vmem:[%s1 + $0x1430] sm:$0xff]
  %v857 = vld [vmem:[%s1 + $0x1438] sm:$0xff]
  %v858 = vld [vmem:[%s1 + $0x1440] sm:$0xff]
  %v859 = vld [vmem:[%s1 + $0x1448] sm:$0xff]
  %v860 = vld [vmem:[%s1 + $0x1450] sm:$0xff]
  %v861 = vld [vmem:[%s1 + $0x1458] sm:$0xff]
  %v862 = vld [vmem:[%s1 + $0x1460] sm:$0xff]
  %v863 = vld [vmem:[%s1 + $0x1468] sm:$0xff]
  %v864 = vld [vmem:[%s1 + $0x1470] sm:$0xff]
  %v865 = vld [vmem:[%s1 + $0x1478] sm:$0xff]
  %v866 = vld [vmem:[%s1 + $0x1480] sm:$0xff]
  %v867 = vld [vmem:[%s1 + $0x1488] sm:$0xff]
  %v868 = vld [vmem:[%s1 + $0x1490] sm:$0xff]
  %v869 = vld [vmem:[%s1 + $0x1498] sm:$0xff]
  %v870 = vld [vmem:[%s1 + $0x14a0] sm:$0xff]
  %v871 = vld [vmem:[%s1 + $0x14a8] sm:$0xff]
  %v872 = vld [vmem:[%s1 + $0x14b0] sm:$0xff]
  %v873 = vld [vmem:[%s1 + $0x14b8] sm:$0xff]
  %v874 = vld [vmem:[%s1 + $0x14c0] sm:$0xff]
  %v875 = vld [vmem:[%s1 + $0x14c8] sm:$0xff]
  %v876 = vld [vmem:[%s1 + $0x14d0] sm:$0xff]
  %v877 = vld [vmem:[%s1 + $0x14d8] sm:$0xff]
  %v878 = vld [vmem:[%s1 + $0x14e0] sm:$0xff]
  %v879 = vld [vmem:[%s1 + $0x14e8] sm:$0xff]
  %v880 = vld [vmem:[%s1 + $0x14f0] sm:$0xff]
  %v881 = vld [vmem:[%s1 + $0x14f8] sm:$0xff]
  %v882 = vld [vmem:[%s1 + $0x1500] sm:$0xff]
  %v883 = vld [vmem:[%s1 + $0x1508] sm:$0xff]
  %v884 = vld [vmem:[%s1 + $0x1510] sm:$0xff]
  %v885 = vld [vmem:[%s1 + $0x1518] sm:$0xff]
  %v886 = vld [vmem:[%s1 + $0x1520] sm:$0xff]
  %v887 = vld [vmem:[%s1 + $0x1528] sm:$0xff]
  %v888 = vld [vmem:[%s1 + $0x1530] sm:$0xff]
  %v889 = vld [vmem:[%s1 + $0x1538] sm:$0xff]
  %v890 = vld [vmem:[%s1 + $0x1540] sm:$0xff]
  %v891 = vld [vmem:[%s1 + $0x1548] sm:$0xff]
  %v892 = vld [vmem:[%s1 + $0x1550] sm:$0xff]
  %v893 = vld [vmem:[%s1 + $0x1558] sm:$0xff]
  %v894 = vld [vmem:[%s1 + $0x1560] sm:$0xff]
  %v895 = vld [vmem:[%s1 + $0x1568] sm:$0xff]
  %v896 = vld [vmem:[%s1 + $0x1570] sm:$0xff]
  %v897 = vld [vmem:[%s1 + $0x1578] sm:$0xff]
  %v898 = vld [vmem:[%s1 + $0x1580] sm:$0xff]
  %v899 = vld [vmem:[%s1 + $0x1588] sm:$0xff]
  %v900 = vld [vmem:[%s1 + $0x1590] sm:$0xff]
  %v901 = vld [vmem:[%s1 + $0x1598] sm:$0xff]
  %v902 = vld [vmem:[%s1 + $0x15a0] sm:$0xff]
  %v903 = vld [vmem:[%s1 + $0x15a8] sm:$0xff]
  %v904 = vld [vmem:[%s1 + $0x15b0] sm:$0xff]
  %v905 = vld [vmem:[%s1 + $0x15b8] sm:$0xff]
  %v906 = vld [vmem:[%s1 + $0x15c0] sm:$0xff]
  %v907 = vld [vmem:[%s1 + $0x15c8] sm:$0xff]
  %v908 = vld [vmem:[%s1 + $0x15d0] sm:$0xff]
  %v909 = vld [vmem:[%s1 + $0x15d8] sm:$0xff]
  %v910 = vld [vmem:[%s1 + $0x15e0] sm:$0xff]
  %v911 = vld [vmem:[%s1 + $0x15e8] sm:$0xff]
  %v912 = vld [vmem:[%s1 + $0x15f0] sm:$0xff]
  %v913 = vld [vmem:[%s1 + $0x15f8] sm:$0xff]
  %v914 = vld [vmem:[%s1 + $0x1600] sm:$0xff]
  %v915 = vld [vmem:[%s1 + $0x1608] sm:$0xff]
  %v916 = vld [vmem:[%s1 + $0x1610] sm:$0xff]
  %v917 = vld [vmem:[%s1 + $0x1618] sm:$0xff]
  %v918 = vld [vmem:[%s1 + $0x1620] sm:$0xff]
  %v919 = vld [vmem:[%s1 + $0x1628] sm:$0xff]
  %v920 = vld [vmem:[%s1 + $0x1630] sm:$0xff]
  %v921 = vld [vmem:[%s1 + $0x1638] sm:$0xff]
  %v922 = vld [vmem:[%s1 + $0x1640] sm:$0xff]
  %v923 = vld [vmem:[%s1 + $0x1648] sm:$0xff]
  %v924 = vld [vmem:[%s1 + $0x1650] sm:$0xff]
  %v925 = vld [vmem:[%s1 + $0x1658] sm:$0xff]
  %v926 = vld [vmem:[%s1 + $0x1660] sm:$0xff]
  %v927 = vld [vmem:[%s1 + $0x1668] sm:$0xff]
  %v928 = vld [vmem:[%s1 + $0x1670] sm:$0xff]
  %v929 = vld [vmem:[%s1 + $0x1678] sm:$0xff]
  %v930 = vld [vmem:[%s1 + $0x1680] sm:$0xff]
  %v931 = vld [vmem:[%s1 + $0x1688] sm:$0xff]
  %v932 = vld [vmem:[%s1 + $0x1690] sm:$0xff]
  %v933 = vld [vmem:[%s1 + $0x1698] sm:$0xff]
  %v934 = vld [vmem:[%s1 + $0x16a0] sm:$0xff]
  %v935 = vld [vmem:[%s1 + $0x16a8] sm:$0xff]
  %v936 = vld [vmem:[%s1 + $0x16b0] sm:$0xff]
  %v937 = vld [vmem:[%s1 + $0x16b8] sm:$0xff]
  %v938 = vld [vmem:[%s1 + $0x16c0] sm:$0xff]
  %v939 = vld [vmem:[%s1 + $0x16c8] sm:$0xff]
  %v940 = vld [vmem:[%s1 + $0x16d0] sm:$0xff]
  %v941 = vld [vmem:[%s1 + $0x16d8] sm:$0xff]
  %v942 = vld [vmem:[%s1 + $0x16e0] sm:$0xff]
  %v943 = vld [vmem:[%s1 + $0x16e8] sm:$0xff]
  %v944 = vld [vmem:[%s1 + $0x16f0] sm:$0xff]
  %v945 = vld [vmem:[%s1 + $0x16f8] sm:$0xff]
  %v946 = vld [vmem:[%s1 + $0x1700] sm:$0xff]
  %v947 = vld [vmem:[%s1 + $0x1708] sm:$0xff]
  %v948 = vld [vmem:[%s1 + $0x1710] sm:$0xff]
  %v949 = vld [vmem:[%s1 + $0x1718] sm:$0xff]
  %v950 = vld [vmem:[%s1 + $0x1720] sm:$0xff]
  %v951 = vld [vmem:[%s1 + $0x1728] sm:$0xff]
  %v952 = vld [vmem:[%s1 + $0x1730] sm:$0xff]
  %v953 = vld [vmem:[%s1 + $0x1738] sm:$0xff]
  %v954 = vld [vmem:[%s1 + $0x1740] sm:$0xff]
  %v955 = vld [vmem:[%s1 + $0x1748] sm:$0xff]
  %v956 = vld [vmem:[%s1 + $0x1750] sm:$0xff]
  %v957 = vld [vmem:[%s1 + $0x1758] sm:$0xff]
  %v958 = vld [vmem:[%s1 + $0x1760] sm:$0xff]
  %v959 = vld [vmem:[%s1 + $0x1768] sm:$0xff]
  %v960 = vld [vmem:[%s1 + $0x1770] sm:$0xff]
  %v961 = vld [vmem:[%s1 + $0x1778] sm:$0xff]
  %v962 = vld [vmem:[%s1 + $0x1780] sm:$0xff]
  %v963 = vld [vmem:[%s1 + $0x1788] sm:$0xff]
  %v964 = vld [vmem:[%s1 + $0x1790] sm:$0xff]
  %v965 = vld [vmem:[%s1 + $0x1798] sm:$0xff]
  %v966 = vld [vmem:[%s1 + $0x17a0] sm:$0xff]
  %v967 = vld [vmem:[%s1 + $0x17a8] sm:$0xff]
  %v968 = vld [vmem:[%s1 + $0x17b0] sm:$0xff]
  %v969 = vld [vmem:[%s1 + $0x17b8] sm:$0xff]
  %v970 = vld [vmem:[%s1 + $0x17c0] sm:$0xff]
  %v971 = vld [vmem:[%s1 + $0x17c8] sm:$0xff]
  %v972 = vld [vmem:[%s1 + $0x17d0] sm:$0xff]
  %v973 = vld [vmem:[%s1 + $0x17d8] sm:$0xff]
  %v974 = vld [vmem:[%s1 + $0x17e0] sm:$0xff]
  %v975 = vld [vmem:[%s1 + $0x17e8] sm:$0xff]
  %v976 = vld [vmem:[%s1 + $0x17f0] sm:$0xff]
  %v977 = vld [vmem:[%s1 + $0x17f8] sm:$0xff]
  %v978 = vld [vmem:[%s1 + $0x1800] sm:$0xff]
  %v979 = vld [vmem:[%s1 + $0x1808] sm:$0xff]
  %v980 = vld [vmem:[%s1 + $0x1810] sm:$0xff]
  %v981 = vld [vmem:[%s1 + $0x1818] sm:$0xff]
  %v982 = vld [vmem:[%s1 + $0x1820] sm:$0xff]
  %v983 = vld [vmem:[%s1 + $0x1828] sm:$0xff]
  %v984 = vld [vmem:[%s1 + $0x1830] sm:$0xff]
  %v985 = vld [vmem:[%s1 + $0x1838] sm:$0xff]
  %v986 = vld [vmem:[%s1 + $0x1840] sm:$0xff]
  %v987 = vld [vmem:[%s1 + $0x1848] sm:$0xff]
  %v988 = vld [vmem:[%s1 + $0x1850] sm:$0xff]
  %v989 = vld [vmem:[%s1 + $0x1858] sm:$0xff]
  %v990 = vld [vmem:[%s1 + $0x1860] sm:$0xff]
  %v991 = vld [vmem:[%s1 + $0x1868] sm:$0xff]
  %v992 = vld [vmem:[%s1 + $0x1870] sm:$0xff]
  %v993 = vld [vmem:[%s1 + $0x1878] sm:$0xff]
  %v994 = vld [vmem:[%s2] sm:$0x1]
  %v996 = vlaneseq
  %v997 = vshrl.u32 %v996, 7
  %v998 = vsub.s32 0, %v997
  %v999 = vrot.slane %v994, %v998
  %1001 = vmatprep.subr.mxu0 0.0
  %1002 = vmatpush1.msra.mxu0 %v225
  %1003 = vmatprep.subr.mxu0 0.0
  %1004 = vmatpush1.msra.mxu0 %v224
  %1005 = vmatprep.subr.mxu0 0.0
  %1006 = vmatpush1.msra.mxu0 %v223
  %1007 = vmatprep.subr.mxu0 0.0
  %1008 = vmatpush1.msra.mxu0 %v222
  %1009 = vmatprep.subr.mxu0 0.0
  %1010 = vmatpush1.msra.mxu0 %v221
  %1011 = vmatprep.subr.mxu0 0.0
  %1012 = vmatpush1.msra.mxu0 %v220
  %1013 = vmatprep.subr.mxu0 0.0
  %1014 = vmatpush1.msra.mxu0 %v219
  %1015 = vmatprep.subr.mxu0 0.0
  %1016 = vmatpush1.msra.mxu0 %v218
  %1017 = vmatprep.subr.mxu0 0.0
  %1018 = vmatpush1.msra.mxu0 %v217
  %1019 = vmatprep.subr.mxu0 0.0
  %1020 = vmatpush1.msra.mxu0 %v216
  %1021 = vmatprep.subr.mxu0 0.0
  %1022 = vmatpush1.msra.mxu0 %v215
  %1023 = vmatprep.subr.mxu0 0.0
  %1024 = vmatpush1.msra.mxu0 %v214
  %1025 = vmatprep.subr.mxu0 0.0
  %1026 = vmatpush1.msra.mxu0 %v213
  %1027 = vmatprep.subr.mxu0 0.0
  %1028 = vmatpush1.msra.mxu0 %v212
  %1029 = vmatprep.subr.mxu0 0.0
  %1030 = vmatpush1.msra.mxu0 %v211
  %1031 = vmatprep.subr.mxu0 0.0
  %1032 = vmatpush1.msra.mxu0 %v210
  %1033 = vmatprep.subr.mxu0 0.0
  %1034 = vmatpush2.msra.mxu0 %v241
  %1035 = vmatprep.subr.mxu0 0.0
  %1036 = vmatpush2.msra.mxu0 %v240
  %1037 = vmatprep.subr.mxu0 0.0
  %1038 = vmatpush2.msra.mxu0 %v239
  %1039 = vmatprep.subr.mxu0 0.0
  %1040 = vmatpush2.msra.mxu0 %v238
  %1041 = vmatprep.subr.mxu0 0.0
  %1042 = vmatpush2.msra.mxu0 %v237
  %1043 = vmatprep.subr.mxu0 0.0
  %1044 = vmatpush2.msra.mxu0 %v236
  %1045 = vmatprep.subr.mxu0 0.0
  %1046 = vmatpush2.msra.mxu0 %v235
  %1047 = vmatprep.subr.mxu0 0.0
  %1048 = vmatpush2.msra.mxu0 %v234
  %1049 = vmatprep.subr.mxu0 0.0
  %1050 = vmatpush2.msra.mxu0 %v233
  %1051 = vmatprep.subr.mxu0 0.0
  %1052 = vmatpush2.msra.mxu0 %v232
  %1053 = vmatprep.subr.mxu0 0.0
  %1054 = vmatpush2.msra.mxu0 %v231
  %1055 = vmatprep.subr.mxu0 0.0
  %1056 = vmatpush2.msra.mxu0 %v230
  %1057 = vmatprep.subr.mxu0 0.0
  %1058 = vmatpush2.msra.mxu0 %v229
  %1059 = vmatprep.subr.mxu0 0.0
  %1060 = vmatpush2.msra.mxu0 %v228
  %1061 = vmatprep.subr.mxu0 0.0
  %1062 = vmatpush2.msra.mxu0 %v227
  %1063 = vmatprep.subr.mxu0 0.0
  %1064 = vmatpush2.msra.mxu0 %v226
  %1065 = vmatprep.mubr.f32.mxu0 %v15
  %1066 = vmatmul.mubr.f32.gmra.mxu0 %v14
  %v1067 = vpop.f32.mrf.mxu0
  %v1068 = vadd.f32 %v999, %v1067
  %v1069 = vpop.f32.mrf.mxu0
  %1070 = vmatprep.mubr.f32.mxu0 %v64
  %1071 = vmatmul.mubr.f32.gmra.mxu0 %v63
  %v1072 = vpop.f32.mrf.mxu0
  %v1073 = vadd.f32 %v999, %v1072
  %v1074 = vpop.f32.mrf.mxu0
  %1075 = vmatprep.mubr.f32.mxu0 %v113
  %1076 = vmatmul.mubr.f32.gmra.mxu0 %v112
  %v1077 = vpop.f32.mrf.mxu0
  %v1078 = vadd.f32 %v999, %v1077
  %v1079 = vpop.f32.mrf.mxu0
  %1080 = vmatprep.mubr.f32.mxu0 %v162
  %1081 = vmatmul.mubr.f32.gmra.mxu0 %v161
  %v1082 = vpop.f32.mrf.mxu0
  %v1083 = vadd.f32 %v999, %v1082
  %v1084 = vpop.f32.mrf.mxu0
  %1085 = vdwg.mxu0
  %1086 = vmatprep.subr.mxu0 0.0
  %1087 = vmatpush1.msra.mxu0 %v257
  %1088 = vmatprep.subr.mxu0 0.0
  %1089 = vmatpush1.msra.mxu0 %v256
  %1090 = vmatprep.subr.mxu0 0.0
  %1091 = vmatpush1.msra.mxu0 %v255
  %1092 = vmatprep.subr.mxu0 0.0
  %1093 = vmatpush1.msra.mxu0 %v254
  %1094 = vmatprep.subr.mxu0 0.0
  %1095 = vmatpush1.msra.mxu0 %v253
  %1096 = vmatprep.subr.mxu0 0.0
  %1097 = vmatpush1.msra.mxu0 %v252
  %1098 = vmatprep.subr.mxu0 0.0
  %1099 = vmatpush1.msra.mxu0 %v251
  %1100 = vmatprep.subr.mxu0 0.0
  %1101 = vmatpush1.msra.mxu0 %v250
  %1102 = vmatprep.subr.mxu0 0.0
  %1103 = vmatpush1.msra.mxu0 %v249
  %1104 = vmatprep.subr.mxu0 0.0
  %1105 = vmatpush1.msra.mxu0 %v248
  %1106 = vmatprep.subr.mxu0 0.0
  %1107 = vmatpush1.msra.mxu0 %v247
  %1108 = vmatprep.subr.mxu0 0.0
  %1109 = vmatpush1.msra.mxu0 %v246
  %1110 = vmatprep.subr.mxu0 0.0
  %1111 = vmatpush1.msra.mxu0 %v245
  %1112 = vmatprep.subr.mxu0 0.0
  %1113 = vmatpush1.msra.mxu0 %v244
  %1114 = vmatprep.subr.mxu0 0.0
  %1115 = vmatpush1.msra.mxu0 %v243
  %1116 = vmatprep.subr.mxu0 0.0
  %1117 = vmatpush1.msra.mxu0 %v242
  %1118 = vmatprep.subr.mxu0 0.0
  %1119 = vmatpush2.msra.mxu0 %v273
  %1120 = vmatprep.subr.mxu0 0.0
  %1121 = vmatpush2.msra.mxu0 %v272
  %1122 = vmatprep.subr.mxu0 0.0
  %1123 = vmatpush2.msra.mxu0 %v271
  %1124 = vmatprep.subr.mxu0 0.0
  %1125 = vmatpush2.msra.mxu0 %v270
  %1126 = vmatprep.subr.mxu0 0.0
  %1127 = vmatpush2.msra.mxu0 %v269
  %1128 = vmatprep.subr.mxu0 0.0
  %1129 = vmatpush2.msra.mxu0 %v268
  %1130 = vmatprep.subr.mxu0 0.0
  %1131 = vmatpush2.msra.mxu0 %v267
  %1132 = vmatprep.subr.mxu0 0.0
  %1133 = vmatpush2.msra.mxu0 %v266
  %1134 = vmatprep.subr.mxu0 0.0
  %1135 = vmatpush2.msra.mxu0 %v265
  %1136 = vmatprep.subr.mxu0 0.0
  %1137 = vmatpush2.msra.mxu0 %v264
  %1138 = vmatprep.subr.mxu0 0.0
  %1139 = vmatpush2.msra.mxu0 %v263
  %1140 = vmatprep.subr.mxu0 0.0
  %1141 = vmatpush2.msra.mxu0 %v262
  %1142 = vmatprep.subr.mxu0 0.0
  %1143 = vmatpush2.msra.mxu0 %v261
  %1144 = vmatprep.subr.mxu0 0.0
  %1145 = vmatpush2.msra.mxu0 %v260
  %1146 = vmatprep.subr.mxu0 0.0
  %1147 = vmatpush2.msra.mxu0 %v259
  %1148 = vmatprep.subr.mxu0 0.0
  %1149 = vmatpush2.msra.mxu0 %v258
  %1150 = vmatprep.mubr.f32.mxu0 %v17
  %1151 = vmatmul.mubr.f32.gmra.mxu0 %v16
  %v1152 = vpop.f32.mrf.mxu0
  %v1153 = vadd.f32 %v1068, %v1152
  %v1154 = vpop.f32.mrf.mxu0
  %1155 = vmatprep.mubr.f32.mxu0 %v66
  %1156 = vmatmul.mubr.f32.gmra.mxu0 %v65
  %v1157 = vpop.f32.mrf.mxu0
  %v1158 = vadd.f32 %v1073, %v1157
  %v1159 = vpop.f32.mrf.mxu0
  %1160 = vmatprep.mubr.f32.mxu0 %v115
  %1161 = vmatmul.mubr.f32.gmra.mxu0 %v114
  %v1162 = vpop.f32.mrf.mxu0
  %v1163 = vadd.f32 %v1078, %v1162
  %v1164 = vpop.f32.mrf.mxu0
  %1165 = vmatprep.mubr.f32.mxu0 %v164
  %1166 = vmatmul.mubr.f32.gmra.mxu0 %v163
  %v1167 = vpop.f32.mrf.mxu0
  %v1168 = vadd.f32 %v1083, %v1167
  %v1169 = vpop.f32.mrf.mxu0
  %1170 = vdwg.mxu0
  %1171 = vmatprep.subr.mxu0 0.0
  %1172 = vmatpush1.msra.mxu0 %v289
  %1173 = vmatprep.subr.mxu0 0.0
  %1174 = vmatpush1.msra.mxu0 %v288
  %1175 = vmatprep.subr.mxu0 0.0
  %1176 = vmatpush1.msra.mxu0 %v287
  %1177 = vmatprep.subr.mxu0 0.0
  %1178 = vmatpush1.msra.mxu0 %v286
  %1179 = vmatprep.subr.mxu0 0.0
  %1180 = vmatpush1.msra.mxu0 %v285
  %1181 = vmatprep.subr.mxu0 0.0
  %1182 = vmatpush1.msra.mxu0 %v284
  %1183 = vmatprep.subr.mxu0 0.0
  %1184 = vmatpush1.msra.mxu0 %v283
  %1185 = vmatprep.subr.mxu0 0.0
  %1186 = vmatpush1.msra.mxu0 %v282
  %1187 = vmatprep.subr.mxu0 0.0
  %1188 = vmatpush1.msra.mxu0 %v281
  %1189 = vmatprep.subr.mxu0 0.0
  %1190 = vmatpush1.msra.mxu0 %v280
  %1191 = vmatprep.subr.mxu0 0.0
  %1192 = vmatpush1.msra.mxu0 %v279
  %1193 = vmatprep.subr.mxu0 0.0
  %1194 = vmatpush1.msra.mxu0 %v278
  %1195 = vmatprep.subr.mxu0 0.0
  %1196 = vmatpush1.msra.mxu0 %v277
  %1197 = vmatprep.subr.mxu0 0.0
  %1198 = vmatpush1.msra.mxu0 %v276
  %1199 = vmatprep.subr.mxu0 0.0
  %1200 = vmatpush1.msra.mxu0 %v275
  %1201 = vmatprep.subr.mxu0 0.0
  %1202 = vmatpush1.msra.mxu0 %v274
  %1203 = vmatprep.subr.mxu0 0.0
  %1204 = vmatpush2.msra.mxu0 %v305
  %1205 = vmatprep.subr.mxu0 0.0
  %1206 = vmatpush2.msra.mxu0 %v304
  %1207 = vmatprep.subr.mxu0 0.0
  %1208 = vmatpush2.msra.mxu0 %v303
  %1209 = vmatprep.subr.mxu0 0.0
  %1210 = vmatpush2.msra.mxu0 %v302
  %1211 = vmatprep.subr.mxu0 0.0
  %1212 = vmatpush2.msra.mxu0 %v301
  %1213 = vmatprep.subr.mxu0 0.0
  %1214 = vmatpush2.msra.mxu0 %v300
  %1215 = vmatprep.subr.mxu0 0.0
  %1216 = vmatpush2.msra.mxu0 %v299
  %1217 = vmatprep.subr.mxu0 0.0
  %1218 = vmatpush2.msra.mxu0 %v298
  %1219 = vmatprep.subr.mxu0 0.0
  %1220 = vmatpush2.msra.mxu0 %v297
  %1221 = vmatprep.subr.mxu0 0.0
  %1222 = vmatpush2.msra.mxu0 %v296
  %1223 = vmatprep.subr.mxu0 0.0
  %1224 = vmatpush2.msra.mxu0 %v295
  %1225 = vmatprep.subr.mxu0 0.0
  %1226 = vmatpush2.msra.mxu0 %v294
  %1227 = vmatprep.subr.mxu0 0.0
  %1228 = vmatpush2.msra.mxu0 %v293
  %1229 = vmatprep.subr.mxu0 0.0
  %1230 = vmatpush2.msra.mxu0 %v292
  %1231 = vmatprep.subr.mxu0 0.0
  %1232 = vmatpush2.msra.mxu0 %v291
  %1233 = vmatprep.subr.mxu0 0.0
  %1234 = vmatpush2.msra.mxu0 %v290
  %1235 = vmatprep.mubr.f32.mxu0 %v19
  %1236 = vmatmul.mubr.f32.gmra.mxu0 %v18
  %v1237 = vpop.f32.mrf.mxu0
  %v1238 = vadd.f32 %v1153, %v1237
  %v1239 = vpop.f32.mrf.mxu0
  %1240 = vmatprep.mubr.f32.mxu0 %v68
  %1241 = vmatmul.mubr.f32.gmra.mxu0 %v67
  %v1242 = vpop.f32.mrf.mxu0
  %v1243 = vadd.f32 %v1158, %v1242
  %v1244 = vpop.f32.mrf.mxu0
  %1245 = vmatprep.mubr.f32.mxu0 %v117
  %1246 = vmatmul.mubr.f32.gmra.mxu0 %v116
  %v1247 = vpop.f32.mrf.mxu0
  %v1248 = vadd.f32 %v1163, %v1247
  %v1249 = vpop.f32.mrf.mxu0
  %1250 = vmatprep.mubr.f32.mxu0 %v166
  %1251 = vmatmul.mubr.f32.gmra.mxu0 %v165
  %v1252 = vpop.f32.mrf.mxu0
  %v1253 = vadd.f32 %v1168, %v1252
  %v1254 = vpop.f32.mrf.mxu0
  %1255 = vdwg.mxu0
  %1256 = vmatprep.subr.mxu0 0.0
  %1257 = vmatpush1.msra.mxu0 %v321
  %1258 = vmatprep.subr.mxu0 0.0
  %1259 = vmatpush1.msra.mxu0 %v320
  %1260 = vmatprep.subr.mxu0 0.0
  %1261 = vmatpush1.msra.mxu0 %v319
  %1262 = vmatprep.subr.mxu0 0.0
  %1263 = vmatpush1.msra.mxu0 %v318
  %1264 = vmatprep.subr.mxu0 0.0
  %1265 = vmatpush1.msra.mxu0 %v317
  %1266 = vmatprep.subr.mxu0 0.0
  %1267 = vmatpush1.msra.mxu0 %v316
  %1268 = vmatprep.subr.mxu0 0.0
  %1269 = vmatpush1.msra.mxu0 %v315
  %1270 = vmatprep.subr.mxu0 0.0
  %1271 = vmatpush1.msra.mxu0 %v314
  %1272 = vmatprep.subr.mxu0 0.0
  %1273 = vmatpush1.msra.mxu0 %v313
  %1274 = vmatprep.subr.mxu0 0.0
  %1275 = vmatpush1.msra.mxu0 %v312
  %1276 = vmatprep.subr.mxu0 0.0
  %1277 = vmatpush1.msra.mxu0 %v311
  %1278 = vmatprep.subr.mxu0 0.0
  %1279 = vmatpush1.msra.mxu0 %v310
  %1280 = vmatprep.subr.mxu0 0.0
  %1281 = vmatpush1.msra.mxu0 %v309
  %1282 = vmatprep.subr.mxu0 0.0
  %1283 = vmatpush1.msra.mxu0 %v308
  %1284 = vmatprep.subr.mxu0 0.0
  %1285 = vmatpush1.msra.mxu0 %v307
  %1286 = vmatprep.subr.mxu0 0.0
  %1287 = vmatpush1.msra.mxu0 %v306
  %1288 = vmatprep.subr.mxu0 0.0
  %1289 = vmatpush2.msra.mxu0 %v337
  %1290 = vmatprep.subr.mxu0 0.0
  %1291 = vmatpush2.msra.mxu0 %v336
  %1292 = vmatprep.subr.mxu0 0.0
  %1293 = vmatpush2.msra.mxu0 %v335
  %1294 = vmatprep.subr.mxu0 0.0
  %1295 = vmatpush2.msra.mxu0 %v334
  %1296 = vmatprep.subr.mxu0 0.0
  %1297 = vmatpush2.msra.mxu0 %v333
  %1298 = vmatprep.subr.mxu0 0.0
  %1299 = vmatpush2.msra.mxu0 %v332
  %1300 = vmatprep.subr.mxu0 0.0
  %1301 = vmatpush2.msra.mxu0 %v331
  %1302 = vmatprep.subr.mxu0 0.0
  %1303 = vmatpush2.msra.mxu0 %v330
  %1304 = vmatprep.subr.mxu0 0.0
  %1305 = vmatpush2.msra.mxu0 %v329
  %1306 = vmatprep.subr.mxu0 0.0
  %1307 = vmatpush2.msra.mxu0 %v328
  %1308 = vmatprep.subr.mxu0 0.0
  %1309 = vmatpush2.msra.mxu0 %v327
  %1310 = vmatprep.subr.mxu0 0.0
  %1311 = vmatpush2.msra.mxu0 %v326
  %1312 = vmatprep.subr.mxu0 0.0
  %1313 = vmatpush2.msra.mxu0 %v325
  %1314 = vmatprep.subr.mxu0 0.0
  %1315 = vmatpush2.msra.mxu0 %v324
  %1316 = vmatprep.subr.mxu0 0.0
  %1317 = vmatpush2.msra.mxu0 %v323
  %1318 = vmatprep.subr.mxu0 0.0
  %1319 = vmatpush2.msra.mxu0 %v322
  %1320 = vmatprep.mubr.f32.mxu0 %v21
  %1321 = vmatmul.mubr.f32.gmra.mxu0 %v20
  %v1322 = vpop.f32.mrf.mxu0
  %v1323 = vadd.f32 %v1238, %v1322
  %v1324 = vpop.f32.mrf.mxu0
  %1325 = vmatprep.mubr.f32.mxu0 %v70
  %1326 = vmatmul.mubr.f32.gmra.mxu0 %v69
  %v1327 = vpop.f32.mrf.mxu0
  %v1328 = vadd.f32 %v1243, %v1327
  %v1329 = vpop.f32.mrf.mxu0
  %1330 = vmatprep.mubr.f32.mxu0 %v119
  %1331 = vmatmul.mubr.f32.gmra.mxu0 %v118
  %v1332 = vpop.f32.mrf.mxu0
  %v1333 = vadd.f32 %v1248, %v1332
  %v1334 = vpop.f32.mrf.mxu0
  %1335 = vmatprep.mubr.f32.mxu0 %v168
  %1336 = vmatmul.mubr.f32.gmra.mxu0 %v167
  %v1337 = vpop.f32.mrf.mxu0
  %v1338 = vadd.f32 %v1253, %v1337
  %v1339 = vpop.f32.mrf.mxu0
  %1340 = vdwg.mxu0
  %1341 = vmatprep.subr.mxu0 0.0
  %1342 = vmatpush1.msra.mxu0 %v353
  %1343 = vmatprep.subr.mxu0 0.0
  %1344 = vmatpush1.msra.mxu0 %v352
  %1345 = vmatprep.subr.mxu0 0.0
  %1346 = vmatpush1.msra.mxu0 %v351
  %1347 = vmatprep.subr.mxu0 0.0
  %1348 = vmatpush1.msra.mxu0 %v350
  %1349 = vmatprep.subr.mxu0 0.0
  %1350 = vmatpush1.msra.mxu0 %v349
  %1351 = vmatprep.subr.mxu0 0.0
  %1352 = vmatpush1.msra.mxu0 %v348
  %1353 = vmatprep.subr.mxu0 0.0
  %1354 = vmatpush1.msra.mxu0 %v347
  %1355 = vmatprep.subr.mxu0 0.0
  %1356 = vmatpush1.msra.mxu0 %v346
  %1357 = vmatprep.subr.mxu0 0.0
  %1358 = vmatpush1.msra.mxu0 %v345
  %1359 = vmatprep.subr.mxu0 0.0
  %1360 = vmatpush1.msra.mxu0 %v344
  %1361 = vmatprep.subr.mxu0 0.0
  %1362 = vmatpush1.msra.mxu0 %v343
  %1363 = vmatprep.subr.mxu0 0.0
  %1364 = vmatpush1.msra.mxu0 %v342
  %1365 = vmatprep.subr.mxu0 0.0
  %1366 = vmatpush1.msra.mxu0 %v341
  %1367 = vmatprep.subr.mxu0 0.0
  %1368 = vmatpush1.msra.mxu0 %v340
  %1369 = vmatprep.subr.mxu0 0.0
  %1370 = vmatpush1.msra.mxu0 %v339
  %1371 = vmatprep.subr.mxu0 0.0
  %1372 = vmatpush1.msra.mxu0 %v338
  %1373 = vmatprep.subr.mxu0 0.0
  %1374 = vmatpush2.msra.mxu0 %v369
  %1375 = vmatprep.subr.mxu0 0.0
  %1376 = vmatpush2.msra.mxu0 %v368
  %1377 = vmatprep.subr.mxu0 0.0
  %1378 = vmatpush2.msra.mxu0 %v367
  %1379 = vmatprep.subr.mxu0 0.0
  %1380 = vmatpush2.msra.mxu0 %v366
  %1381 = vmatprep.subr.mxu0 0.0
  %1382 = vmatpush2.msra.mxu0 %v365
  %1383 = vmatprep.subr.mxu0 0.0
  %1384 = vmatpush2.msra.mxu0 %v364
  %1385 = vmatprep.subr.mxu0 0.0
  %1386 = vmatpush2.msra.mxu0 %v363
  %1387 = vmatprep.subr.mxu0 0.0
  %1388 = vmatpush2.msra.mxu0 %v362
  %1389 = vmatprep.subr.mxu0 0.0
  %1390 = vmatpush2.msra.mxu0 %v361
  %1391 = vmatprep.subr.mxu0 0.0
  %1392 = vmatpush2.msra.mxu0 %v360
  %1393 = vmatprep.subr.mxu0 0.0
  %1394 = vmatpush2.msra.mxu0 %v359
  %1395 = vmatprep.subr.mxu0 0.0
  %1396 = vmatpush2.msra.mxu0 %v358
  %1397 = vmatprep.subr.mxu0 0.0
  %1398 = vmatpush2.msra.mxu0 %v357
  %1399 = vmatprep.subr.mxu0 0.0
  %1400 = vmatpush2.msra.mxu0 %v356
  %1401 = vmatprep.subr.mxu0 0.0
  %1402 = vmatpush2.msra.mxu0 %v355
  %1403 = vmatprep.subr.mxu0 0.0
  %1404 = vmatpush2.msra.mxu0 %v354
  %1405 = vmatprep.mubr.f32.mxu0 %v23
  %1406 = vmatmul.mubr.f32.gmra.mxu0 %v22
  %v1407 = vpop.f32.mrf.mxu0
  %v1408 = vadd.f32 %v1323, %v1407
  %v1409 = vpop.f32.mrf.mxu0
  %1410 = vmatprep.mubr.f32.mxu0 %v72
  %1411 = vmatmul.mubr.f32.gmra.mxu0 %v71
  %v1412 = vpop.f32.mrf.mxu0
  %v1413 = vadd.f32 %v1328, %v1412
  %v1414 = vpop.f32.mrf.mxu0
  %1415 = vmatprep.mubr.f32.mxu0 %v121
  %1416 = vmatmul.mubr.f32.gmra.mxu0 %v120
  %v1417 = vpop.f32.mrf.mxu0
  %v1418 = vadd.f32 %v1333, %v1417
  %v1419 = vpop.f32.mrf.mxu0
  %1420 = vmatprep.mubr.f32.mxu0 %v170
  %1421 = vmatmul.mubr.f32.gmra.mxu0 %v169
  %v1422 = vpop.f32.mrf.mxu0
  %v1423 = vadd.f32 %v1338, %v1422
  %v1424 = vpop.f32.mrf.mxu0
  %1425 = vdwg.mxu0
  %1426 = vmatprep.subr.mxu0 0.0
  %1427 = vmatpush1.msra.mxu0 %v385
  %1428 = vmatprep.subr.mxu0 0.0
  %1429 = vmatpush1.msra.mxu0 %v384
  %1430 = vmatprep.subr.mxu0 0.0
  %1431 = vmatpush1.msra.mxu0 %v383
  %1432 = vmatprep.subr.mxu0 0.0
  %1433 = vmatpush1.msra.mxu0 %v382
  %1434 = vmatprep.subr.mxu0 0.0
  %1435 = vmatpush1.msra.mxu0 %v381
  %1436 = vmatprep.subr.mxu0 0.0
  %1437 = vmatpush1.msra.mxu0 %v380
  %1438 = vmatprep.subr.mxu0 0.0
  %1439 = vmatpush1.msra.mxu0 %v379
  %1440 = vmatprep.subr.mxu0 0.0
  %1441 = vmatpush1.msra.mxu0 %v378
  %1442 = vmatprep.subr.mxu0 0.0
  %1443 = vmatpush1.msra.mxu0 %v377
  %1444 = vmatprep.subr.mxu0 0.0
  %1445 = vmatpush1.msra.mxu0 %v376
  %1446 = vmatprep.subr.mxu0 0.0
  %1447 = vmatpush1.msra.mxu0 %v375
  %1448 = vmatprep.subr.mxu0 0.0
  %1449 = vmatpush1.msra.mxu0 %v374
  %1450 = vmatprep.subr.mxu0 0.0
  %1451 = vmatpush1.msra.mxu0 %v373
  %1452 = vmatprep.subr.mxu0 0.0
  %1453 = vmatpush1.msra.mxu0 %v372
  %1454 = vmatprep.subr.mxu0 0.0
  %1455 = vmatpush1.msra.mxu0 %v371
  %1456 = vmatprep.subr.mxu0 0.0
  %1457 = vmatpush1.msra.mxu0 %v370
  %1458 = vmatprep.subr.mxu0 0.0
  %1459 = vmatpush2.msra.mxu0 %v401
  %1460 = vmatprep.subr.mxu0 0.0
  %1461 = vmatpush2.msra.mxu0 %v400
  %1462 = vmatprep.subr.mxu0 0.0
  %1463 = vmatpush2.msra.mxu0 %v399
  %1464 = vmatprep.subr.mxu0 0.0
  %1465 = vmatpush2.msra.mxu0 %v398
  %1466 = vmatprep.subr.mxu0 0.0
  %1467 = vmatpush2.msra.mxu0 %v397
  %1468 = vmatprep.subr.mxu0 0.0
  %1469 = vmatpush2.msra.mxu0 %v396
  %1470 = vmatprep.subr.mxu0 0.0
  %1471 = vmatpush2.msra.mxu0 %v395
  %1472 = vmatprep.subr.mxu0 0.0
  %1473 = vmatpush2.msra.mxu0 %v394
  %1474 = vmatprep.subr.mxu0 0.0
  %1475 = vmatpush2.msra.mxu0 %v393
  %1476 = vmatprep.subr.mxu0 0.0
  %1477 = vmatpush2.msra.mxu0 %v392
  %1478 = vmatprep.subr.mxu0 0.0
  %1479 = vmatpush2.msra.mxu0 %v391
  %1480 = vmatprep.subr.mxu0 0.0
  %1481 = vmatpush2.msra.mxu0 %v390
  %1482 = vmatprep.subr.mxu0 0.0
  %1483 = vmatpush2.msra.mxu0 %v389
  %1484 = vmatprep.subr.mxu0 0.0
  %1485 = vmatpush2.msra.mxu0 %v388
  %1486 = vmatprep.subr.mxu0 0.0
  %1487 = vmatpush2.msra.mxu0 %v387
  %1488 = vmatprep.subr.mxu0 0.0
  %1489 = vmatpush2.msra.mxu0 %v386
  %1490 = vmatprep.mubr.f32.mxu0 %v25
  %1491 = vmatmul.mubr.f32.gmra.mxu0 %v24
  %v1492 = vpop.f32.mrf.mxu0
  %v1493 = vadd.f32 %v1408, %v1492
  %v1494 = vpop.f32.mrf.mxu0
  %1495 = vmatprep.mubr.f32.mxu0 %v74
  %1496 = vmatmul.mubr.f32.gmra.mxu0 %v73
  %v1497 = vpop.f32.mrf.mxu0
  %v1498 = vadd.f32 %v1413, %v1497
  %v1499 = vpop.f32.mrf.mxu0
  %1500 = vmatprep.mubr.f32.mxu0 %v123
  %1501 = vmatmul.mubr.f32.gmra.mxu0 %v122
  %v1502 = vpop.f32.mrf.mxu0
  %v1503 = vadd.f32 %v1418, %v1502
  %v1504 = vpop.f32.mrf.mxu0
  %1505 = vmatprep.mubr.f32.mxu0 %v172
  %1506 = vmatmul.mubr.f32.gmra.mxu0 %v171
  %v1507 = vpop.f32.mrf.mxu0
  %v1508 = vadd.f32 %v1423, %v1507
  %v1509 = vpop.f32.mrf.mxu0
  %1510 = vdwg.mxu0
  %1511 = vmatprep.subr.mxu0 0.0
  %1512 = vmatpush1.msra.mxu0 %v417
  %1513 = vmatprep.subr.mxu0 0.0
  %1514 = vmatpush1.msra.mxu0 %v416
  %1515 = vmatprep.subr.mxu0 0.0
  %1516 = vmatpush1.msra.mxu0 %v415
  %1517 = vmatprep.subr.mxu0 0.0
  %1518 = vmatpush1.msra.mxu0 %v414
  %1519 = vmatprep.subr.mxu0 0.0
  %1520 = vmatpush1.msra.mxu0 %v413
  %1521 = vmatprep.subr.mxu0 0.0
  %1522 = vmatpush1.msra.mxu0 %v412
  %1523 = vmatprep.subr.mxu0 0.0
  %1524 = vmatpush1.msra.mxu0 %v411
  %1525 = vmatprep.subr.mxu0 0.0
  %1526 = vmatpush1.msra.mxu0 %v410
  %1527 = vmatprep.subr.mxu0 0.0
  %1528 = vmatpush1.msra.mxu0 %v409
  %1529 = vmatprep.subr.mxu0 0.0
  %1530 = vmatpush1.msra.mxu0 %v408
  %1531 = vmatprep.subr.mxu0 0.0
  %1532 = vmatpush1.msra.mxu0 %v407
  %1533 = vmatprep.subr.mxu0 0.0
  %1534 = vmatpush1.msra.mxu0 %v406
  %1535 = vmatprep.subr.mxu0 0.0
  %1536 = vmatpush1.msra.mxu0 %v405
  %1537 = vmatprep.subr.mxu0 0.0
  %1538 = vmatpush1.msra.mxu0 %v404
  %1539 = vmatprep.subr.mxu0 0.0
  %1540 = vmatpush1.msra.mxu0 %v403
  %1541 = vmatprep.subr.mxu0 0.0
  %1542 = vmatpush1.msra.mxu0 %v402
  %1543 = vmatprep.subr.mxu0 0.0
  %1544 = vmatpush2.msra.mxu0 %v433
  %1545 = vmatprep.subr.mxu0 0.0
  %1546 = vmatpush2.msra.mxu0 %v432
  %1547 = vmatprep.subr.mxu0 0.0
  %1548 = vmatpush2.msra.mxu0 %v431
  %1549 = vmatprep.subr.mxu0 0.0
  %1550 = vmatpush2.msra.mxu0 %v430
  %1551 = vmatprep.subr.mxu0 0.0
  %1552 = vmatpush2.msra.mxu0 %v429
  %1553 = vmatprep.subr.mxu0 0.0
  %1554 = vmatpush2.msra.mxu0 %v428
  %1555 = vmatprep.subr.mxu0 0.0
  %1556 = vmatpush2.msra.mxu0 %v427
  %1557 = vmatprep.subr.mxu0 0.0
  %1558 = vmatpush2.msra.mxu0 %v426
  %1559 = vmatprep.subr.mxu0 0.0
  %1560 = vmatpush2.msra.mxu0 %v425
  %1561 = vmatprep.subr.mxu0 0.0
  %1562 = vmatpush2.msra.mxu0 %v424
  %1563 = vmatprep.subr.mxu0 0.0
  %1564 = vmatpush2.msra.mxu0 %v423
  %1565 = vmatprep.subr.mxu0 0.0
  %1566 = vmatpush2.msra.mxu0 %v422
  %1567 = vmatprep.subr.mxu0 0.0
  %1568 = vmatpush2.msra.mxu0 %v421
  %1569 = vmatprep.subr.mxu0 0.0
  %1570 = vmatpush2.msra.mxu0 %v420
  %1571 = vmatprep.subr.mxu0 0.0
  %1572 = vmatpush2.msra.mxu0 %v419
  %1573 = vmatprep.subr.mxu0 0.0
  %1574 = vmatpush2.msra.mxu0 %v418
  %1575 = vmatprep.mubr.f32.mxu0 %v27
  %1576 = vmatmul.mubr.f32.gmra.mxu0 %v26
  %v1577 = vpop.f32.mrf.mxu0
  %v1578 = vadd.f32 %v1493, %v1577
  %v1579 = vpop.f32.mrf.mxu0
  %1580 = vmatprep.mubr.f32.mxu0 %v76
  %1581 = vmatmul.mubr.f32.gmra.mxu0 %v75
  %v1582 = vpop.f32.mrf.mxu0
  %v1583 = vadd.f32 %v1498, %v1582
  %v1584 = vpop.f32.mrf.mxu0
  %1585 = vmatprep.mubr.f32.mxu0 %v125
  %1586 = vmatmul.mubr.f32.gmra.mxu0 %v124
  %v1587 = vpop.f32.mrf.mxu0
  %v1588 = vadd.f32 %v1503, %v1587
  %v1589 = vpop.f32.mrf.mxu0
  %1590 = vmatprep.mubr.f32.mxu0 %v174
  %1591 = vmatmul.mubr.f32.gmra.mxu0 %v173
  %v1592 = vpop.f32.mrf.mxu0
  %v1593 = vadd.f32 %v1508, %v1592
  %v1594 = vpop.f32.mrf.mxu0
  %1595 = vdwg.mxu0
  %1596 = vmatprep.subr.mxu0 0.0
  %1597 = vmatpush1.msra.mxu0 %v449
  %1598 = vmatprep.subr.mxu0 0.0
  %1599 = vmatpush1.msra.mxu0 %v448
  %1600 = vmatprep.subr.mxu0 0.0
  %1601 = vmatpush1.msra.mxu0 %v447
  %1602 = vmatprep.subr.mxu0 0.0
  %1603 = vmatpush1.msra.mxu0 %v446
  %1604 = vmatprep.subr.mxu0 0.0
  %1605 = vmatpush1.msra.mxu0 %v445
  %1606 = vmatprep.subr.mxu0 0.0
  %1607 = vmatpush1.msra.mxu0 %v444
  %1608 = vmatprep.subr.mxu0 0.0
  %1609 = vmatpush1.msra.mxu0 %v443
  %1610 = vmatprep.subr.mxu0 0.0
  %1611 = vmatpush1.msra.mxu0 %v442
  %1612 = vmatprep.subr.mxu0 0.0
  %1613 = vmatpush1.msra.mxu0 %v441
  %1614 = vmatprep.subr.mxu0 0.0
  %1615 = vmatpush1.msra.mxu0 %v440
  %1616 = vmatprep.subr.mxu0 0.0
  %1617 = vmatpush1.msra.mxu0 %v439
  %1618 = vmatprep.subr.mxu0 0.0
  %1619 = vmatpush1.msra.mxu0 %v438
  %1620 = vmatprep.subr.mxu0 0.0
  %1621 = vmatpush1.msra.mxu0 %v437
  %1622 = vmatprep.subr.mxu0 0.0
  %1623 = vmatpush1.msra.mxu0 %v436
  %1624 = vmatprep.subr.mxu0 0.0
  %1625 = vmatpush1.msra.mxu0 %v435
  %1626 = vmatprep.subr.mxu0 0.0
  %1627 = vmatpush1.msra.mxu0 %v434
  %1628 = vmatprep.subr.mxu0 0.0
  %1629 = vmatpush2.msra.mxu0 %v465
  %1630 = vmatprep.subr.mxu0 0.0
  %1631 = vmatpush2.msra.mxu0 %v464
  %1632 = vmatprep.subr.mxu0 0.0
  %1633 = vmatpush2.msra.mxu0 %v463
  %1634 = vmatprep.subr.mxu0 0.0
  %1635 = vmatpush2.msra.mxu0 %v462
  %1636 = vmatprep.subr.mxu0 0.0
  %1637 = vmatpush2.msra.mxu0 %v461
  %1638 = vmatprep.subr.mxu0 0.0
  %1639 = vmatpush2.msra.mxu0 %v460
  %1640 = vmatprep.subr.mxu0 0.0
  %1641 = vmatpush2.msra.mxu0 %v459
  %1642 = vmatprep.subr.mxu0 0.0
  %1643 = vmatpush2.msra.mxu0 %v458
  %1644 = vmatprep.subr.mxu0 0.0
  %1645 = vmatpush2.msra.mxu0 %v457
  %1646 = vmatprep.subr.mxu0 0.0
  %1647 = vmatpush2.msra.mxu0 %v456
  %1648 = vmatprep.subr.mxu0 0.0
  %1649 = vmatpush2.msra.mxu0 %v455
  %1650 = vmatprep.subr.mxu0 0.0
  %1651 = vmatpush2.msra.mxu0 %v454
  %1652 = vmatprep.subr.mxu0 0.0
  %1653 = vmatpush2.msra.mxu0 %v453
  %1654 = vmatprep.subr.mxu0 0.0
  %1655 = vmatpush2.msra.mxu0 %v452
  %1656 = vmatprep.subr.mxu0 0.0
  %1657 = vmatpush2.msra.mxu0 %v451
  %1658 = vmatprep.subr.mxu0 0.0
  %1659 = vmatpush2.msra.mxu0 %v450
  %1660 = vmatprep.mubr.f32.mxu0 %v29
  %1661 = vmatmul.mubr.f32.gmra.mxu0 %v28
  %v1662 = vpop.f32.mrf.mxu0
  %v1663 = vadd.f32 %v1578, %v1662
  %v1664 = vpop.f32.mrf.mxu0
  %1665 = vmatprep.mubr.f32.mxu0 %v78
  %1666 = vmatmul.mubr.f32.gmra.mxu0 %v77
  %v1667 = vpop.f32.mrf.mxu0
  %v1668 = vadd.f32 %v1583, %v1667
  %v1669 = vpop.f32.mrf.mxu0
  %1670 = vmatprep.mubr.f32.mxu0 %v127
  %1671 = vmatmul.mubr.f32.gmra.mxu0 %v126
  %v1672 = vpop.f32.mrf.mxu0
  %v1673 = vadd.f32 %v1588, %v1672
  %v1674 = vpop.f32.mrf.mxu0
  %1675 = vmatprep.mubr.f32.mxu0 %v176
  %1676 = vmatmul.mubr.f32.gmra.mxu0 %v175
  %v1677 = vpop.f32.mrf.mxu0
  %v1678 = vadd.f32 %v1593, %v1677
  %v1679 = vpop.f32.mrf.mxu0
  %1680 = vdwg.mxu0
  %1681 = vmatprep.subr.mxu0 0.0
  %1682 = vmatpush1.msra.mxu0 %v481
  %1683 = vmatprep.subr.mxu0 0.0
  %1684 = vmatpush1.msra.mxu0 %v480
  %1685 = vmatprep.subr.mxu0 0.0
  %1686 = vmatpush1.msra.mxu0 %v479
  %1687 = vmatprep.subr.mxu0 0.0
  %1688 = vmatpush1.msra.mxu0 %v478
  %1689 = vmatprep.subr.mxu0 0.0
  %1690 = vmatpush1.msra.mxu0 %v477
  %1691 = vmatprep.subr.mxu0 0.0
  %1692 = vmatpush1.msra.mxu0 %v476
  %1693 = vmatprep.subr.mxu0 0.0
  %1694 = vmatpush1.msra.mxu0 %v475
  %1695 = vmatprep.subr.mxu0 0.0
  %1696 = vmatpush1.msra.mxu0 %v474
  %1697 = vmatprep.subr.mxu0 0.0
  %1698 = vmatpush1.msra.mxu0 %v473
  %1699 = vmatprep.subr.mxu0 0.0
  %1700 = vmatpush1.msra.mxu0 %v472
  %1701 = vmatprep.subr.mxu0 0.0
  %1702 = vmatpush1.msra.mxu0 %v471
  %1703 = vmatprep.subr.mxu0 0.0
  %1704 = vmatpush1.msra.mxu0 %v470
  %1705 = vmatprep.subr.mxu0 0.0
  %1706 = vmatpush1.msra.mxu0 %v469
  %1707 = vmatprep.subr.mxu0 0.0
  %1708 = vmatpush1.msra.mxu0 %v468
  %1709 = vmatprep.subr.mxu0 0.0
  %1710 = vmatpush1.msra.mxu0 %v467
  %1711 = vmatprep.subr.mxu0 0.0
  %1712 = vmatpush1.msra.mxu0 %v466
  %1713 = vmatprep.subr.mxu0 0.0
  %1714 = vmatpush2.msra.mxu0 %v497
  %1715 = vmatprep.subr.mxu0 0.0
  %1716 = vmatpush2.msra.mxu0 %v496
  %1717 = vmatprep.subr.mxu0 0.0
  %1718 = vmatpush2.msra.mxu0 %v495
  %1719 = vmatprep.subr.mxu0 0.0
  %1720 = vmatpush2.msra.mxu0 %v494
  %1721 = vmatprep.subr.mxu0 0.0
  %1722 = vmatpush2.msra.mxu0 %v493
  %1723 = vmatprep.subr.mxu0 0.0
  %1724 = vmatpush2.msra.mxu0 %v492
  %1725 = vmatprep.subr.mxu0 0.0
  %1726 = vmatpush2.msra.mxu0 %v491
  %1727 = vmatprep.subr.mxu0 0.0
  %1728 = vmatpush2.msra.mxu0 %v490
  %1729 = vmatprep.subr.mxu0 0.0
  %1730 = vmatpush2.msra.mxu0 %v489
  %1731 = vmatprep.subr.mxu0 0.0
  %1732 = vmatpush2.msra.mxu0 %v488
  %1733 = vmatprep.subr.mxu0 0.0
  %1734 = vmatpush2.msra.mxu0 %v487
  %1735 = vmatprep.subr.mxu0 0.0
  %1736 = vmatpush2.msra.mxu0 %v486
  %1737 = vmatprep.subr.mxu0 0.0
  %1738 = vmatpush2.msra.mxu0 %v485
  %1739 = vmatprep.subr.mxu0 0.0
  %1740 = vmatpush2.msra.mxu0 %v484
  %1741 = vmatprep.subr.mxu0 0.0
  %1742 = vmatpush2.msra.mxu0 %v483
  %1743 = vmatprep.subr.mxu0 0.0
  %1744 = vmatpush2.msra.mxu0 %v482
  %1745 = vmatprep.mubr.f32.mxu0 %v31
  %1746 = vmatmul.mubr.f32.gmra.mxu0 %v30
  %v1747 = vpop.f32.mrf.mxu0
  %v1748 = vadd.f32 %v1663, %v1747
  %v1749 = vpop.f32.mrf.mxu0
  %1750 = vmatprep.mubr.f32.mxu0 %v80
  %1751 = vmatmul.mubr.f32.gmra.mxu0 %v79
  %v1752 = vpop.f32.mrf.mxu0
  %v1753 = vadd.f32 %v1668, %v1752
  %v1754 = vpop.f32.mrf.mxu0
  %1755 = vmatprep.mubr.f32.mxu0 %v129
  %1756 = vmatmul.mubr.f32.gmra.mxu0 %v128
  %v1757 = vpop.f32.mrf.mxu0
  %v1758 = vadd.f32 %v1673, %v1757
  %v1759 = vpop.f32.mrf.mxu0
  %1760 = vmatprep.mubr.f32.mxu0 %v178
  %1761 = vmatmul.mubr.f32.gmra.mxu0 %v177
  %v1762 = vpop.f32.mrf.mxu0
  %v1763 = vadd.f32 %v1678, %v1762
  %v1764 = vpop.f32.mrf.mxu0
  %1765 = vdwg.mxu0
  %1766 = vmatprep.subr.mxu0 0.0
  %1767 = vmatpush1.msra.mxu0 %v513
  %1768 = vmatprep.subr.mxu0 0.0
  %1769 = vmatpush1.msra.mxu0 %v512
  %1770 = vmatprep.subr.mxu0 0.0
  %1771 = vmatpush1.msra.mxu0 %v511
  %1772 = vmatprep.subr.mxu0 0.0
  %1773 = vmatpush1.msra.mxu0 %v510
  %1774 = vmatprep.subr.mxu0 0.0
  %1775 = vmatpush1.msra.mxu0 %v509
  %1776 = vmatprep.subr.mxu0 0.0
  %1777 = vmatpush1.msra.mxu0 %v508
  %1778 = vmatprep.subr.mxu0 0.0
  %1779 = vmatpush1.msra.mxu0 %v507
  %1780 = vmatprep.subr.mxu0 0.0
  %1781 = vmatpush1.msra.mxu0 %v506
  %1782 = vmatprep.subr.mxu0 0.0
  %1783 = vmatpush1.msra.mxu0 %v505
  %1784 = vmatprep.subr.mxu0 0.0
  %1785 = vmatpush1.msra.mxu0 %v504
  %1786 = vmatprep.subr.mxu0 0.0
  %1787 = vmatpush1.msra.mxu0 %v503
  %1788 = vmatprep.subr.mxu0 0.0
  %1789 = vmatpush1.msra.mxu0 %v502
  %1790 = vmatprep.subr.mxu0 0.0
  %1791 = vmatpush1.msra.mxu0 %v501
  %1792 = vmatprep.subr.mxu0 0.0
  %1793 = vmatpush1.msra.mxu0 %v500
  %1794 = vmatprep.subr.mxu0 0.0
  %1795 = vmatpush1.msra.mxu0 %v499
  %1796 = vmatprep.subr.mxu0 0.0
  %1797 = vmatpush1.msra.mxu0 %v498
  %1798 = vmatprep.subr.mxu0 0.0
  %1799 = vmatpush2.msra.mxu0 %v529
  %1800 = vmatprep.subr.mxu0 0.0
  %1801 = vmatpush2.msra.mxu0 %v528
  %1802 = vmatprep.subr.mxu0 0.0
  %1803 = vmatpush2.msra.mxu0 %v527
  %1804 = vmatprep.subr.mxu0 0.0
  %1805 = vmatpush2.msra.mxu0 %v526
  %1806 = vmatprep.subr.mxu0 0.0
  %1807 = vmatpush2.msra.mxu0 %v525
  %1808 = vmatprep.subr.mxu0 0.0
  %1809 = vmatpush2.msra.mxu0 %v524
  %1810 = vmatprep.subr.mxu0 0.0
  %1811 = vmatpush2.msra.mxu0 %v523
  %1812 = vmatprep.subr.mxu0 0.0
  %1813 = vmatpush2.msra.mxu0 %v522
  %1814 = vmatprep.subr.mxu0 0.0
  %1815 = vmatpush2.msra.mxu0 %v521
  %1816 = vmatprep.subr.mxu0 0.0
  %1817 = vmatpush2.msra.mxu0 %v520
  %1818 = vmatprep.subr.mxu0 0.0
  %1819 = vmatpush2.msra.mxu0 %v519
  %1820 = vmatprep.subr.mxu0 0.0
  %1821 = vmatpush2.msra.mxu0 %v518
  %1822 = vmatprep.subr.mxu0 0.0
  %1823 = vmatpush2.msra.mxu0 %v517
  %1824 = vmatprep.subr.mxu0 0.0
  %1825 = vmatpush2.msra.mxu0 %v516
  %1826 = vmatprep.subr.mxu0 0.0
  %1827 = vmatpush2.msra.mxu0 %v515
  %1828 = vmatprep.subr.mxu0 0.0
  %1829 = vmatpush2.msra.mxu0 %v514
  %1830 = vmatprep.mubr.f32.mxu0 %v33
  %1831 = vmatmul.mubr.f32.gmra.mxu0 %v32
  %v1832 = vpop.f32.mrf.mxu0
  %v1833 = vadd.f32 %v1748, %v1832
  %v1834 = vpop.f32.mrf.mxu0
  %1835 = vmatprep.mubr.f32.mxu0 %v82
  %1836 = vmatmul.mubr.f32.gmra.mxu0 %v81
  %v1837 = vpop.f32.mrf.mxu0
  %v1838 = vadd.f32 %v1753, %v1837
  %v1839 = vpop.f32.mrf.mxu0
  %1840 = vmatprep.mubr.f32.mxu0 %v131
  %1841 = vmatmul.mubr.f32.gmra.mxu0 %v130
  %v1842 = vpop.f32.mrf.mxu0
  %v1843 = vadd.f32 %v1758, %v1842
  %v1844 = vpop.f32.mrf.mxu0
  %1845 = vmatprep.mubr.f32.mxu0 %v180
  %1846 = vmatmul.mubr.f32.gmra.mxu0 %v179
  %v1847 = vpop.f32.mrf.mxu0
  %v1848 = vadd.f32 %v1763, %v1847
  %v1849 = vpop.f32.mrf.mxu0
  %1850 = vdwg.mxu0
  %1851 = vmatprep.subr.mxu0 0.0
  %1852 = vmatpush1.msra.mxu0 %v545
  %1853 = vmatprep.subr.mxu0 0.0
  %1854 = vmatpush1.msra.mxu0 %v544
  %1855 = vmatprep.subr.mxu0 0.0
  %1856 = vmatpush1.msra.mxu0 %v543
  %1857 = vmatprep.subr.mxu0 0.0
  %1858 = vmatpush1.msra.mxu0 %v542
  %1859 = vmatprep.subr.mxu0 0.0
  %1860 = vmatpush1.msra.mxu0 %v541
  %1861 = vmatprep.subr.mxu0 0.0
  %1862 = vmatpush1.msra.mxu0 %v540
  %1863 = vmatprep.subr.mxu0 0.0
  %1864 = vmatpush1.msra.mxu0 %v539
  %1865 = vmatprep.subr.mxu0 0.0
  %1866 = vmatpush1.msra.mxu0 %v538
  %1867 = vmatprep.subr.mxu0 0.0
  %1868 = vmatpush1.msra.mxu0 %v537
  %1869 = vmatprep.subr.mxu0 0.0
  %1870 = vmatpush1.msra.mxu0 %v536
  %1871 = vmatprep.subr.mxu0 0.0
  %1872 = vmatpush1.msra.mxu0 %v535
  %1873 = vmatprep.subr.mxu0 0.0
  %1874 = vmatpush1.msra.mxu0 %v534
  %1875 = vmatprep.subr.mxu0 0.0
  %1876 = vmatpush1.msra.mxu0 %v533
  %1877 = vmatprep.subr.mxu0 0.0
  %1878 = vmatpush1.msra.mxu0 %v532
  %1879 = vmatprep.subr.mxu0 0.0
  %1880 = vmatpush1.msra.mxu0 %v531
  %1881 = vmatprep.subr.mxu0 0.0
  %1882 = vmatpush1.msra.mxu0 %v530
  %1883 = vmatprep.subr.mxu0 0.0
  %1884 = vmatpush2.msra.mxu0 %v561
  %1885 = vmatprep.subr.mxu0 0.0
  %1886 = vmatpush2.msra.mxu0 %v560
  %1887 = vmatprep.subr.mxu0 0.0
  %1888 = vmatpush2.msra.mxu0 %v559
  %1889 = vmatprep.subr.mxu0 0.0
  %1890 = vmatpush2.msra.mxu0 %v558
  %1891 = vmatprep.subr.mxu0 0.0
  %1892 = vmatpush2.msra.mxu0 %v557
  %1893 = vmatprep.subr.mxu0 0.0
  %1894 = vmatpush2.msra.mxu0 %v556
  %1895 = vmatprep.subr.mxu0 0.0
  %1896 = vmatpush2.msra.mxu0 %v555
  %1897 = vmatprep.subr.mxu0 0.0
  %1898 = vmatpush2.msra.mxu0 %v554
  %1899 = vmatprep.subr.mxu0 0.0
  %1900 = vmatpush2.msra.mxu0 %v553
  %1901 = vmatprep.subr.mxu0 0.0
  %1902 = vmatpush2.msra.mxu0 %v552
  %1903 = vmatprep.subr.mxu0 0.0
  %1904 = vmatpush2.msra.mxu0 %v551
  %1905 = vmatprep.subr.mxu0 0.0
  %1906 = vmatpush2.msra.mxu0 %v550
  %1907 = vmatprep.subr.mxu0 0.0
  %1908 = vmatpush2.msra.mxu0 %v549
  %1909 = vmatprep.subr.mxu0 0.0
  %1910 = vmatpush2.msra.mxu0 %v548
  %1911 = vmatprep.subr.mxu0 0.0
  %1912 = vmatpush2.msra.mxu0 %v547
  %1913 = vmatprep.subr.mxu0 0.0
  %1914 = vmatpush2.msra.mxu0 %v546
  %1915 = vmatprep.mubr.f32.mxu0 %v35
  %1916 = vmatmul.mubr.f32.gmra.mxu0 %v34
  %v1917 = vpop.f32.mrf.mxu0
  %v1918 = vadd.f32 %v1833, %v1917
  %v1919 = vpop.f32.mrf.mxu0
  %1920 = vmatprep.mubr.f32.mxu0 %v84
  %1921 = vmatmul.mubr.f32.gmra.mxu0 %v83
  %v1922 = vpop.f32.mrf.mxu0
  %v1923 = vadd.f32 %v1838, %v1922
  %v1924 = vpop.f32.mrf.mxu0
  %1925 = vmatprep.mubr.f32.mxu0 %v133
  %1926 = vmatmul.mubr.f32.gmra.mxu0 %v132
  %v1927 = vpop.f32.mrf.mxu0
  %v1928 = vadd.f32 %v1843, %v1927
  %v1929 = vpop.f32.mrf.mxu0
  %1930 = vmatprep.mubr.f32.mxu0 %v182
  %1931 = vmatmul.mubr.f32.gmra.mxu0 %v181
  %v1932 = vpop.f32.mrf.mxu0
  %v1933 = vadd.f32 %v1848, %v1932
  %v1934 = vpop.f32.mrf.mxu0
  %1935 = vdwg.mxu0
  %1936 = vmatprep.subr.mxu0 0.0
  %1937 = vmatpush1.msra.mxu0 %v577
  %1938 = vmatprep.subr.mxu0 0.0
  %1939 = vmatpush1.msra.mxu0 %v576
  %1940 = vmatprep.subr.mxu0 0.0
  %1941 = vmatpush1.msra.mxu0 %v575
  %1942 = vmatprep.subr.mxu0 0.0
  %1943 = vmatpush1.msra.mxu0 %v574
  %1944 = vmatprep.subr.mxu0 0.0
  %1945 = vmatpush1.msra.mxu0 %v573
  %1946 = vmatprep.subr.mxu0 0.0
  %1947 = vmatpush1.msra.mxu0 %v572
  %1948 = vmatprep.subr.mxu0 0.0
  %1949 = vmatpush1.msra.mxu0 %v571
  %1950 = vmatprep.subr.mxu0 0.0
  %1951 = vmatpush1.msra.mxu0 %v570
  %1952 = vmatprep.subr.mxu0 0.0
  %1953 = vmatpush1.msra.mxu0 %v569
  %1954 = vmatprep.subr.mxu0 0.0
  %1955 = vmatpush1.msra.mxu0 %v568
  %1956 = vmatprep.subr.mxu0 0.0
  %1957 = vmatpush1.msra.mxu0 %v567
  %1958 = vmatprep.subr.mxu0 0.0
  %1959 = vmatpush1.msra.mxu0 %v566
  %1960 = vmatprep.subr.mxu0 0.0
  %1961 = vmatpush1.msra.mxu0 %v565
  %1962 = vmatprep.subr.mxu0 0.0
  %1963 = vmatpush1.msra.mxu0 %v564
  %1964 = vmatprep.subr.mxu0 0.0
  %1965 = vmatpush1.msra.mxu0 %v563
  %1966 = vmatprep.subr.mxu0 0.0
  %1967 = vmatpush1.msra.mxu0 %v562
  %1968 = vmatprep.subr.mxu0 0.0
  %1969 = vmatpush2.msra.mxu0 %v593
  %1970 = vmatprep.subr.mxu0 0.0
  %1971 = vmatpush2.msra.mxu0 %v592
  %1972 = vmatprep.subr.mxu0 0.0
  %1973 = vmatpush2.msra.mxu0 %v591
  %1974 = vmatprep.subr.mxu0 0.0
  %1975 = vmatpush2.msra.mxu0 %v590
  %1976 = vmatprep.subr.mxu0 0.0
  %1977 = vmatpush2.msra.mxu0 %v589
  %1978 = vmatprep.subr.mxu0 0.0
  %1979 = vmatpush2.msra.mxu0 %v588
  %1980 = vmatprep.subr.mxu0 0.0
  %1981 = vmatpush2.msra.mxu0 %v587
  %1982 = vmatprep.subr.mxu0 0.0
  %1983 = vmatpush2.msra.mxu0 %v586
  %1984 = vmatprep.subr.mxu0 0.0
  %1985 = vmatpush2.msra.mxu0 %v585
  %1986 = vmatprep.subr.mxu0 0.0
  %1987 = vmatpush2.msra.mxu0 %v584
  %1988 = vmatprep.subr.mxu0 0.0
  %1989 = vmatpush2.msra.mxu0 %v583
  %1990 = vmatprep.subr.mxu0 0.0
  %1991 = vmatpush2.msra.mxu0 %v582
  %1992 = vmatprep.subr.mxu0 0.0
  %1993 = vmatpush2.msra.mxu0 %v581
  %1994 = vmatprep.subr.mxu0 0.0
  %1995 = vmatpush2.msra.mxu0 %v580
  %1996 = vmatprep.subr.mxu0 0.0
  %1997 = vmatpush2.msra.mxu0 %v579
  %1998 = vmatprep.subr.mxu0 0.0
  %1999 = vmatpush2.msra.mxu0 %v578
  %2000 = vmatprep.mubr.f32.mxu0 %v37
  %2001 = vmatmul.mubr.f32.gmra.mxu0 %v36
  %v2002 = vpop.f32.mrf.mxu0
  %v2003 = vadd.f32 %v1918, %v2002
  %v2004 = vpop.f32.mrf.mxu0
  %2005 = vmatprep.mubr.f32.mxu0 %v86
  %2006 = vmatmul.mubr.f32.gmra.mxu0 %v85
  %v2007 = vpop.f32.mrf.mxu0
  %v2008 = vadd.f32 %v1923, %v2007
  %v2009 = vpop.f32.mrf.mxu0
  %2010 = vmatprep.mubr.f32.mxu0 %v135
  %2011 = vmatmul.mubr.f32.gmra.mxu0 %v134
  %v2012 = vpop.f32.mrf.mxu0
  %v2013 = vadd.f32 %v1928, %v2012
  %v2014 = vpop.f32.mrf.mxu0
  %2015 = vmatprep.mubr.f32.mxu0 %v184
  %2016 = vmatmul.mubr.f32.gmra.mxu0 %v183
  %v2017 = vpop.f32.mrf.mxu0
  %v2018 = vadd.f32 %v1933, %v2017
  %v2019 = vpop.f32.mrf.mxu0
  %2020 = vdwg.mxu0
  %2021 = vmatprep.subr.mxu0 0.0
  %2022 = vmatpush1.msra.mxu0 %v609
  %2023 = vmatprep.subr.mxu0 0.0
  %2024 = vmatpush1.msra.mxu0 %v608
  %2025 = vmatprep.subr.mxu0 0.0
  %2026 = vmatpush1.msra.mxu0 %v607
  %2027 = vmatprep.subr.mxu0 0.0
  %2028 = vmatpush1.msra.mxu0 %v606
  %2029 = vmatprep.subr.mxu0 0.0
  %2030 = vmatpush1.msra.mxu0 %v605
  %2031 = vmatprep.subr.mxu0 0.0
  %2032 = vmatpush1.msra.mxu0 %v604
  %2033 = vmatprep.subr.mxu0 0.0
  %2034 = vmatpush1.msra.mxu0 %v603
  %2035 = vmatprep.subr.mxu0 0.0
  %2036 = vmatpush1.msra.mxu0 %v602
  %2037 = vmatprep.subr.mxu0 0.0
  %2038 = vmatpush1.msra.mxu0 %v601
  %2039 = vmatprep.subr.mxu0 0.0
  %2040 = vmatpush1.msra.mxu0 %v600
  %2041 = vmatprep.subr.mxu0 0.0
  %2042 = vmatpush1.msra.mxu0 %v599
  %2043 = vmatprep.subr.mxu0 0.0
  %2044 = vmatpush1.msra.mxu0 %v598
  %2045 = vmatprep.subr.mxu0 0.0
  %2046 = vmatpush1.msra.mxu0 %v597
  %2047 = vmatprep.subr.mxu0 0.0
  %2048 = vmatpush1.msra.mxu0 %v596
  %2049 = vmatprep.subr.mxu0 0.0
  %2050 = vmatpush1.msra.mxu0 %v595
  %2051 = vmatprep.subr.mxu0 0.0
  %2052 = vmatpush1.msra.mxu0 %v594
  %2053 = vmatprep.subr.mxu0 0.0
  %2054 = vmatpush2.msra.mxu0 %v625
  %2055 = vmatprep.subr.mxu0 0.0
  %2056 = vmatpush2.msra.mxu0 %v624
  %2057 = vmatprep.subr.mxu0 0.0
  %2058 = vmatpush2.msra.mxu0 %v623
  %2059 = vmatprep.subr.mxu0 0.0
  %2060 = vmatpush2.msra.mxu0 %v622
  %2061 = vmatprep.subr.mxu0 0.0
  %2062 = vmatpush2.msra.mxu0 %v621
  %2063 = vmatprep.subr.mxu0 0.0
  %2064 = vmatpush2.msra.mxu0 %v620
  %2065 = vmatprep.subr.mxu0 0.0
  %2066 = vmatpush2.msra.mxu0 %v619
  %2067 = vmatprep.subr.mxu0 0.0
  %2068 = vmatpush2.msra.mxu0 %v618
  %2069 = vmatprep.subr.mxu0 0.0
  %2070 = vmatpush2.msra.mxu0 %v617
  %2071 = vmatprep.subr.mxu0 0.0
  %2072 = vmatpush2.msra.mxu0 %v616
  %2073 = vmatprep.subr.mxu0 0.0
  %2074 = vmatpush2.msra.mxu0 %v615
  %2075 = vmatprep.subr.mxu0 0.0
  %2076 = vmatpush2.msra.mxu0 %v614
  %2077 = vmatprep.subr.mxu0 0.0
  %2078 = vmatpush2.msra.mxu0 %v613
  %2079 = vmatprep.subr.mxu0 0.0
  %2080 = vmatpush2.msra.mxu0 %v612
  %2081 = vmatprep.subr.mxu0 0.0
  %2082 = vmatpush2.msra.mxu0 %v611
  %2083 = vmatprep.subr.mxu0 0.0
  %2084 = vmatpush2.msra.mxu0 %v610
  %2085 = vmatprep.mubr.f32.mxu0 %v39
  %2086 = vmatmul.mubr.f32.gmra.mxu0 %v38
  %v2087 = vpop.f32.mrf.mxu0
  %v2088 = vadd.f32 %v2003, %v2087
  %v2089 = vpop.f32.mrf.mxu0
  %2090 = vmatprep.mubr.f32.mxu0 %v88
  %2091 = vmatmul.mubr.f32.gmra.mxu0 %v87
  %v2092 = vpop.f32.mrf.mxu0
  %v2093 = vadd.f32 %v2008, %v2092
  %v2094 = vpop.f32.mrf.mxu0
  %2095 = vmatprep.mubr.f32.mxu0 %v137
  %2096 = vmatmul.mubr.f32.gmra.mxu0 %v136
  %v2097 = vpop.f32.mrf.mxu0
  %v2098 = vadd.f32 %v2013, %v2097
  %v2099 = vpop.f32.mrf.mxu0
  %2100 = vmatprep.mubr.f32.mxu0 %v186
  %2101 = vmatmul.mubr.f32.gmra.mxu0 %v185
  %v2102 = vpop.f32.mrf.mxu0
  %v2103 = vadd.f32 %v2018, %v2102
  %v2104 = vpop.f32.mrf.mxu0
  %2105 = vdwg.mxu0
  %2106 = vmatprep.subr.mxu0 0.0
  %2107 = vmatpush1.msra.mxu0 %v641
  %2108 = vmatprep.subr.mxu0 0.0
  %2109 = vmatpush1.msra.mxu0 %v640
  %2110 = vmatprep.subr.mxu0 0.0
  %2111 = vmatpush1.msra.mxu0 %v639
  %2112 = vmatprep.subr.mxu0 0.0
  %2113 = vmatpush1.msra.mxu0 %v638
  %2114 = vmatprep.subr.mxu0 0.0
  %2115 = vmatpush1.msra.mxu0 %v637
  %2116 = vmatprep.subr.mxu0 0.0
  %2117 = vmatpush1.msra.mxu0 %v636
  %2118 = vmatprep.subr.mxu0 0.0
  %2119 = vmatpush1.msra.mxu0 %v635
  %2120 = vmatprep.subr.mxu0 0.0
  %2121 = vmatpush1.msra.mxu0 %v634
  %2122 = vmatprep.subr.mxu0 0.0
  %2123 = vmatpush1.msra.mxu0 %v633
  %2124 = vmatprep.subr.mxu0 0.0
  %2125 = vmatpush1.msra.mxu0 %v632
  %2126 = vmatprep.subr.mxu0 0.0
  %2127 = vmatpush1.msra.mxu0 %v631
  %2128 = vmatprep.subr.mxu0 0.0
  %2129 = vmatpush1.msra.mxu0 %v630
  %2130 = vmatprep.subr.mxu0 0.0
  %2131 = vmatpush1.msra.mxu0 %v629
  %2132 = vmatprep.subr.mxu0 0.0
  %2133 = vmatpush1.msra.mxu0 %v628
  %2134 = vmatprep.subr.mxu0 0.0
  %2135 = vmatpush1.msra.mxu0 %v627
  %2136 = vmatprep.subr.mxu0 0.0
  %2137 = vmatpush1.msra.mxu0 %v626
  %2138 = vmatprep.subr.mxu0 0.0
  %2139 = vmatpush2.msra.mxu0 %v657
  %2140 = vmatprep.subr.mxu0 0.0
  %2141 = vmatpush2.msra.mxu0 %v656
  %2142 = vmatprep.subr.mxu0 0.0
  %2143 = vmatpush2.msra.mxu0 %v655
  %2144 = vmatprep.subr.mxu0 0.0
  %2145 = vmatpush2.msra.mxu0 %v654
  %2146 = vmatprep.subr.mxu0 0.0
  %2147 = vmatpush2.msra.mxu0 %v653
  %2148 = vmatprep.subr.mxu0 0.0
  %2149 = vmatpush2.msra.mxu0 %v652
  %2150 = vmatprep.subr.mxu0 0.0
  %2151 = vmatpush2.msra.mxu0 %v651
  %2152 = vmatprep.subr.mxu0 0.0
  %2153 = vmatpush2.msra.mxu0 %v650
  %2154 = vmatprep.subr.mxu0 0.0
  %2155 = vmatpush2.msra.mxu0 %v649
  %2156 = vmatprep.subr.mxu0 0.0
  %2157 = vmatpush2.msra.mxu0 %v648
  %2158 = vmatprep.subr.mxu0 0.0
  %2159 = vmatpush2.msra.mxu0 %v647
  %2160 = vmatprep.subr.mxu0 0.0
  %2161 = vmatpush2.msra.mxu0 %v646
  %2162 = vmatprep.subr.mxu0 0.0
  %2163 = vmatpush2.msra.mxu0 %v645
  %2164 = vmatprep.subr.mxu0 0.0
  %2165 = vmatpush2.msra.mxu0 %v644
  %2166 = vmatprep.subr.mxu0 0.0
  %2167 = vmatpush2.msra.mxu0 %v643
  %2168 = vmatprep.subr.mxu0 0.0
  %2169 = vmatpush2.msra.mxu0 %v642
  %2170 = vmatprep.mubr.f32.mxu0 %v41
  %2171 = vmatmul.mubr.f32.gmra.mxu0 %v40
  %v2172 = vpop.f32.mrf.mxu0
  %v2173 = vadd.f32 %v2088, %v2172
  %v2174 = vpop.f32.mrf.mxu0
  %2175 = vmatprep.mubr.f32.mxu0 %v90
  %2176 = vmatmul.mubr.f32.gmra.mxu0 %v89
  %v2177 = vpop.f32.mrf.mxu0
  %v2178 = vadd.f32 %v2093, %v2177
  %v2179 = vpop.f32.mrf.mxu0
  %2180 = vmatprep.mubr.f32.mxu0 %v139
  %2181 = vmatmul.mubr.f32.gmra.mxu0 %v138
  %v2182 = vpop.f32.mrf.mxu0
  %v2183 = vadd.f32 %v2098, %v2182
  %v2184 = vpop.f32.mrf.mxu0
  %2185 = vmatprep.mubr.f32.mxu0 %v188
  %2186 = vmatmul.mubr.f32.gmra.mxu0 %v187
  %v2187 = vpop.f32.mrf.mxu0
  %v2188 = vadd.f32 %v2103, %v2187
  %v2189 = vpop.f32.mrf.mxu0
  %2190 = vdwg.mxu0
  %2191 = vmatprep.subr.mxu0 0.0
  %2192 = vmatpush1.msra.mxu0 %v673
  %2193 = vmatprep.subr.mxu0 0.0
  %2194 = vmatpush1.msra.mxu0 %v672
  %2195 = vmatprep.subr.mxu0 0.0
  %2196 = vmatpush1.msra.mxu0 %v671
  %2197 = vmatprep.subr.mxu0 0.0
  %2198 = vmatpush1.msra.mxu0 %v670
  %2199 = vmatprep.subr.mxu0 0.0
  %2200 = vmatpush1.msra.mxu0 %v669
  %2201 = vmatprep.subr.mxu0 0.0
  %2202 = vmatpush1.msra.mxu0 %v668
  %2203 = vmatprep.subr.mxu0 0.0
  %2204 = vmatpush1.msra.mxu0 %v667
  %2205 = vmatprep.subr.mxu0 0.0
  %2206 = vmatpush1.msra.mxu0 %v666
  %2207 = vmatprep.subr.mxu0 0.0
  %2208 = vmatpush1.msra.mxu0 %v665
  %2209 = vmatprep.subr.mxu0 0.0
  %2210 = vmatpush1.msra.mxu0 %v664
  %2211 = vmatprep.subr.mxu0 0.0
  %2212 = vmatpush1.msra.mxu0 %v663
  %2213 = vmatprep.subr.mxu0 0.0
  %2214 = vmatpush1.msra.mxu0 %v662
  %2215 = vmatprep.subr.mxu0 0.0
  %2216 = vmatpush1.msra.mxu0 %v661
  %2217 = vmatprep.subr.mxu0 0.0
  %2218 = vmatpush1.msra.mxu0 %v660
  %2219 = vmatprep.subr.mxu0 0.0
  %2220 = vmatpush1.msra.mxu0 %v659
  %2221 = vmatprep.subr.mxu0 0.0
  %2222 = vmatpush1.msra.mxu0 %v658
  %2223 = vmatprep.subr.mxu0 0.0
  %2224 = vmatpush2.msra.mxu0 %v689
  %2225 = vmatprep.subr.mxu0 0.0
  %2226 = vmatpush2.msra.mxu0 %v688
  %2227 = vmatprep.subr.mxu0 0.0
  %2228 = vmatpush2.msra.mxu0 %v687
  %2229 = vmatprep.subr.mxu0 0.0
  %2230 = vmatpush2.msra.mxu0 %v686
  %2231 = vmatprep.subr.mxu0 0.0
  %2232 = vmatpush2.msra.mxu0 %v685
  %2233 = vmatprep.subr.mxu0 0.0
  %2234 = vmatpush2.msra.mxu0 %v684
  %2235 = vmatprep.subr.mxu0 0.0
  %2236 = vmatpush2.msra.mxu0 %v683
  %2237 = vmatprep.subr.mxu0 0.0
  %2238 = vmatpush2.msra.mxu0 %v682
  %2239 = vmatprep.subr.mxu0 0.0
  %2240 = vmatpush2.msra.mxu0 %v681
  %2241 = vmatprep.subr.mxu0 0.0
  %2242 = vmatpush2.msra.mxu0 %v680
  %2243 = vmatprep.subr.mxu0 0.0
  %2244 = vmatpush2.msra.mxu0 %v679
  %2245 = vmatprep.subr.mxu0 0.0
  %2246 = vmatpush2.msra.mxu0 %v678
  %2247 = vmatprep.subr.mxu0 0.0
  %2248 = vmatpush2.msra.mxu0 %v677
  %2249 = vmatprep.subr.mxu0 0.0
  %2250 = vmatpush2.msra.mxu0 %v676
  %2251 = vmatprep.subr.mxu0 0.0
  %2252 = vmatpush2.msra.mxu0 %v675
  %2253 = vmatprep.subr.mxu0 0.0
  %2254 = vmatpush2.msra.mxu0 %v674
  %2255 = vmatprep.mubr.f32.mxu0 %v43
  %2256 = vmatmul.mubr.f32.gmra.mxu0 %v42
  %v2257 = vpop.f32.mrf.mxu0
  %v2258 = vadd.f32 %v2173, %v2257
  %v2259 = vpop.f32.mrf.mxu0
  %2260 = vmatprep.mubr.f32.mxu0 %v92
  %2261 = vmatmul.mubr.f32.gmra.mxu0 %v91
  %v2262 = vpop.f32.mrf.mxu0
  %v2263 = vadd.f32 %v2178, %v2262
  %v2264 = vpop.f32.mrf.mxu0
  %2265 = vmatprep.mubr.f32.mxu0 %v141
  %2266 = vmatmul.mubr.f32.gmra.mxu0 %v140
  %v2267 = vpop.f32.mrf.mxu0
  %v2268 = vadd.f32 %v2183, %v2267
  %v2269 = vpop.f32.mrf.mxu0
  %2270 = vmatprep.mubr.f32.mxu0 %v190
  %2271 = vmatmul.mubr.f32.gmra.mxu0 %v189
  %v2272 = vpop.f32.mrf.mxu0
  %v2273 = vadd.f32 %v2188, %v2272
  %v2274 = vpop.f32.mrf.mxu0
  %2275 = vdwg.mxu0
  %2276 = vmatprep.subr.mxu0 0.0
  %2277 = vmatpush1.msra.mxu0 %v705
  %2278 = vmatprep.subr.mxu0 0.0
  %2279 = vmatpush1.msra.mxu0 %v704
  %2280 = vmatprep.subr.mxu0 0.0
  %2281 = vmatpush1.msra.mxu0 %v703
  %2282 = vmatprep.subr.mxu0 0.0
  %2283 = vmatpush1.msra.mxu0 %v702
  %2284 = vmatprep.subr.mxu0 0.0
  %2285 = vmatpush1.msra.mxu0 %v701
  %2286 = vmatprep.subr.mxu0 0.0
  %2287 = vmatpush1.msra.mxu0 %v700
  %2288 = vmatprep.subr.mxu0 0.0
  %2289 = vmatpush1.msra.mxu0 %v699
  %2290 = vmatprep.subr.mxu0 0.0
  %2291 = vmatpush1.msra.mxu0 %v698
  %2292 = vmatprep.subr.mxu0 0.0
  %2293 = vmatpush1.msra.mxu0 %v697
  %2294 = vmatprep.subr.mxu0 0.0
  %2295 = vmatpush1.msra.mxu0 %v696
  %2296 = vmatprep.subr.mxu0 0.0
  %2297 = vmatpush1.msra.mxu0 %v695
  %2298 = vmatprep.subr.mxu0 0.0
  %2299 = vmatpush1.msra.mxu0 %v694
  %2300 = vmatprep.subr.mxu0 0.0
  %2301 = vmatpush1.msra.mxu0 %v693
  %2302 = vmatprep.subr.mxu0 0.0
  %2303 = vmatpush1.msra.mxu0 %v692
  %2304 = vmatprep.subr.mxu0 0.0
  %2305 = vmatpush1.msra.mxu0 %v691
  %2306 = vmatprep.subr.mxu0 0.0
  %2307 = vmatpush1.msra.mxu0 %v690
  %2308 = vmatprep.subr.mxu0 0.0
  %2309 = vmatpush2.msra.mxu0 %v721
  %2310 = vmatprep.subr.mxu0 0.0
  %2311 = vmatpush2.msra.mxu0 %v720
  %2312 = vmatprep.subr.mxu0 0.0
  %2313 = vmatpush2.msra.mxu0 %v719
  %2314 = vmatprep.subr.mxu0 0.0
  %2315 = vmatpush2.msra.mxu0 %v718
  %2316 = vmatprep.subr.mxu0 0.0
  %2317 = vmatpush2.msra.mxu0 %v717
  %2318 = vmatprep.subr.mxu0 0.0
  %2319 = vmatpush2.msra.mxu0 %v716
  %2320 = vmatprep.subr.mxu0 0.0
  %2321 = vmatpush2.msra.mxu0 %v715
  %2322 = vmatprep.subr.mxu0 0.0
  %2323 = vmatpush2.msra.mxu0 %v714
  %2324 = vmatprep.subr.mxu0 0.0
  %2325 = vmatpush2.msra.mxu0 %v713
  %2326 = vmatprep.subr.mxu0 0.0
  %2327 = vmatpush2.msra.mxu0 %v712
  %2328 = vmatprep.subr.mxu0 0.0
  %2329 = vmatpush2.msra.mxu0 %v711
  %2330 = vmatprep.subr.mxu0 0.0
  %2331 = vmatpush2.msra.mxu0 %v710
  %2332 = vmatprep.subr.mxu0 0.0
  %2333 = vmatpush2.msra.mxu0 %v709
  %2334 = vmatprep.subr.mxu0 0.0
  %2335 = vmatpush2.msra.mxu0 %v708
  %2336 = vmatprep.subr.mxu0 0.0
  %2337 = vmatpush2.msra.mxu0 %v707
  %2338 = vmatprep.subr.mxu0 0.0
  %2339 = vmatpush2.msra.mxu0 %v706
  %2340 = vmatprep.mubr.f32.mxu0 %v45
  %2341 = vmatmul.mubr.f32.gmra.mxu0 %v44
  %v2342 = vpop.f32.mrf.mxu0
  %v2343 = vadd.f32 %v2258, %v2342
  %v2344 = vpop.f32.mrf.mxu0
  %2345 = vmatprep.mubr.f32.mxu0 %v94
  %2346 = vmatmul.mubr.f32.gmra.mxu0 %v93
  %v2347 = vpop.f32.mrf.mxu0
  %v2348 = vadd.f32 %v2263, %v2347
  %v2349 = vpop.f32.mrf.mxu0
  %2350 = vmatprep.mubr.f32.mxu0 %v143
  %2351 = vmatmul.mubr.f32.gmra.mxu0 %v142
  %v2352 = vpop.f32.mrf.mxu0
  %v2353 = vadd.f32 %v2268, %v2352
  %v2354 = vpop.f32.mrf.mxu0
  %2355 = vmatprep.mubr.f32.mxu0 %v192
  %2356 = vmatmul.mubr.f32.gmra.mxu0 %v191
  %v2357 = vpop.f32.mrf.mxu0
  %v2358 = vadd.f32 %v2273, %v2357
  %v2359 = vpop.f32.mrf.mxu0
  %2360 = vdwg.mxu0
  %2361 = vmatprep.subr.mxu0 0.0
  %2362 = vmatpush1.msra.mxu0 %v737
  %2363 = vmatprep.subr.mxu0 0.0
  %2364 = vmatpush1.msra.mxu0 %v736
  %2365 = vmatprep.subr.mxu0 0.0
  %2366 = vmatpush1.msra.mxu0 %v735
  %2367 = vmatprep.subr.mxu0 0.0
  %2368 = vmatpush1.msra.mxu0 %v734
  %2369 = vmatprep.subr.mxu0 0.0
  %2370 = vmatpush1.msra.mxu0 %v733
  %2371 = vmatprep.subr.mxu0 0.0
  %2372 = vmatpush1.msra.mxu0 %v732
  %2373 = vmatprep.subr.mxu0 0.0
  %2374 = vmatpush1.msra.mxu0 %v731
  %2375 = vmatprep.subr.mxu0 0.0
  %2376 = vmatpush1.msra.mxu0 %v730
  %2377 = vmatprep.subr.mxu0 0.0
  %2378 = vmatpush1.msra.mxu0 %v729
  %2379 = vmatprep.subr.mxu0 0.0
  %2380 = vmatpush1.msra.mxu0 %v728
  %2381 = vmatprep.subr.mxu0 0.0
  %2382 = vmatpush1.msra.mxu0 %v727
  %2383 = vmatprep.subr.mxu0 0.0
  %2384 = vmatpush1.msra.mxu0 %v726
  %2385 = vmatprep.subr.mxu0 0.0
  %2386 = vmatpush1.msra.mxu0 %v725
  %2387 = vmatprep.subr.mxu0 0.0
  %2388 = vmatpush1.msra.mxu0 %v724
  %2389 = vmatprep.subr.mxu0 0.0
  %2390 = vmatpush1.msra.mxu0 %v723
  %2391 = vmatprep.subr.mxu0 0.0
  %2392 = vmatpush1.msra.mxu0 %v722
  %2393 = vmatprep.subr.mxu0 0.0
  %2394 = vmatpush2.msra.mxu0 %v753
  %2395 = vmatprep.subr.mxu0 0.0
  %2396 = vmatpush2.msra.mxu0 %v752
  %2397 = vmatprep.subr.mxu0 0.0
  %2398 = vmatpush2.msra.mxu0 %v751
  %2399 = vmatprep.subr.mxu0 0.0
  %2400 = vmatpush2.msra.mxu0 %v750
  %2401 = vmatprep.subr.mxu0 0.0
  %2402 = vmatpush2.msra.mxu0 %v749
  %2403 = vmatprep.subr.mxu0 0.0
  %2404 = vmatpush2.msra.mxu0 %v748
  %2405 = vmatprep.subr.mxu0 0.0
  %2406 = vmatpush2.msra.mxu0 %v747
  %2407 = vmatprep.subr.mxu0 0.0
  %2408 = vmatpush2.msra.mxu0 %v746
  %2409 = vmatprep.subr.mxu0 0.0
  %2410 = vmatpush2.msra.mxu0 %v745
  %2411 = vmatprep.subr.mxu0 0.0
  %2412 = vmatpush2.msra.mxu0 %v744
  %2413 = vmatprep.subr.mxu0 0.0
  %2414 = vmatpush2.msra.mxu0 %v743
  %2415 = vmatprep.subr.mxu0 0.0
  %2416 = vmatpush2.msra.mxu0 %v742
  %2417 = vmatprep.subr.mxu0 0.0
  %2418 = vmatpush2.msra.mxu0 %v741
  %2419 = vmatprep.subr.mxu0 0.0
  %2420 = vmatpush2.msra.mxu0 %v740
  %2421 = vmatprep.subr.mxu0 0.0
  %2422 = vmatpush2.msra.mxu0 %v739
  %2423 = vmatprep.subr.mxu0 0.0
  %2424 = vmatpush2.msra.mxu0 %v738
  %2425 = vmatprep.mubr.f32.mxu0 %v47
  %2426 = vmatmul.mubr.f32.gmra.mxu0 %v46
  %v2427 = vpop.f32.mrf.mxu0
  %v2428 = vadd.f32 %v2343, %v2427
  %v2429 = vpop.f32.mrf.mxu0
  %2430 = vmatprep.mubr.f32.mxu0 %v96
  %2431 = vmatmul.mubr.f32.gmra.mxu0 %v95
  %v2432 = vpop.f32.mrf.mxu0
  %v2433 = vadd.f32 %v2348, %v2432
  %v2434 = vpop.f32.mrf.mxu0
  %2435 = vmatprep.mubr.f32.mxu0 %v145
  %2436 = vmatmul.mubr.f32.gmra.mxu0 %v144
  %v2437 = vpop.f32.mrf.mxu0
  %v2438 = vadd.f32 %v2353, %v2437
  %v2439 = vpop.f32.mrf.mxu0
  %2440 = vmatprep.mubr.f32.mxu0 %v194
  %2441 = vmatmul.mubr.f32.gmra.mxu0 %v193
  %v2442 = vpop.f32.mrf.mxu0
  %v2443 = vadd.f32 %v2358, %v2442
  %v2444 = vpop.f32.mrf.mxu0
  %2445 = vdwg.mxu0
  %2446 = vmatprep.subr.mxu0 0.0
  %2447 = vmatpush1.msra.mxu0 %v769
  %2448 = vmatprep.subr.mxu0 0.0
  %2449 = vmatpush1.msra.mxu0 %v768
  %2450 = vmatprep.subr.mxu0 0.0
  %2451 = vmatpush1.msra.mxu0 %v767
  %2452 = vmatprep.subr.mxu0 0.0
  %2453 = vmatpush1.msra.mxu0 %v766
  %2454 = vmatprep.subr.mxu0 0.0
  %2455 = vmatpush1.msra.mxu0 %v765
  %2456 = vmatprep.subr.mxu0 0.0
  %2457 = vmatpush1.msra.mxu0 %v764
  %2458 = vmatprep.subr.mxu0 0.0
  %2459 = vmatpush1.msra.mxu0 %v763
  %2460 = vmatprep.subr.mxu0 0.0
  %2461 = vmatpush1.msra.mxu0 %v762
  %2462 = vmatprep.subr.mxu0 0.0
  %2463 = vmatpush1.msra.mxu0 %v761
  %2464 = vmatprep.subr.mxu0 0.0
  %2465 = vmatpush1.msra.mxu0 %v760
  %2466 = vmatprep.subr.mxu0 0.0
  %2467 = vmatpush1.msra.mxu0 %v759
  %2468 = vmatprep.subr.mxu0 0.0
  %2469 = vmatpush1.msra.mxu0 %v758
  %2470 = vmatprep.subr.mxu0 0.0
  %2471 = vmatpush1.msra.mxu0 %v757
  %2472 = vmatprep.subr.mxu0 0.0
  %2473 = vmatpush1.msra.mxu0 %v756
  %2474 = vmatprep.subr.mxu0 0.0
  %2475 = vmatpush1.msra.mxu0 %v755
  %2476 = vmatprep.subr.mxu0 0.0
  %2477 = vmatpush1.msra.mxu0 %v754
  %2478 = vmatprep.subr.mxu0 0.0
  %2479 = vmatpush2.msra.mxu0 %v785
  %2480 = vmatprep.subr.mxu0 0.0
  %2481 = vmatpush2.msra.mxu0 %v784
  %2482 = vmatprep.subr.mxu0 0.0
  %2483 = vmatpush2.msra.mxu0 %v783
  %2484 = vmatprep.subr.mxu0 0.0
  %2485 = vmatpush2.msra.mxu0 %v782
  %2486 = vmatprep.subr.mxu0 0.0
  %2487 = vmatpush2.msra.mxu0 %v781
  %2488 = vmatprep.subr.mxu0 0.0
  %2489 = vmatpush2.msra.mxu0 %v780
  %2490 = vmatprep.subr.mxu0 0.0
  %2491 = vmatpush2.msra.mxu0 %v779
  %2492 = vmatprep.subr.mxu0 0.0
  %2493 = vmatpush2.msra.mxu0 %v778
  %2494 = vmatprep.subr.mxu0 0.0
  %2495 = vmatpush2.msra.mxu0 %v777
  %2496 = vmatprep.subr.mxu0 0.0
  %2497 = vmatpush2.msra.mxu0 %v776
  %2498 = vmatprep.subr.mxu0 0.0
  %2499 = vmatpush2.msra.mxu0 %v775
  %2500 = vmatprep.subr.mxu0 0.0
  %2501 = vmatpush2.msra.mxu0 %v774
  %2502 = vmatprep.subr.mxu0 0.0
  %2503 = vmatpush2.msra.mxu0 %v773
  %2504 = vmatprep.subr.mxu0 0.0
  %2505 = vmatpush2.msra.mxu0 %v772
  %2506 = vmatprep.subr.mxu0 0.0
  %2507 = vmatpush2.msra.mxu0 %v771
  %2508 = vmatprep.subr.mxu0 0.0
  %2509 = vmatpush2.msra.mxu0 %v770
  %2510 = vmatprep.mubr.f32.mxu0 %v49
  %2511 = vmatmul.mubr.f32.gmra.mxu0 %v48
  %v2512 = vpop.f32.mrf.mxu0
  %v2513 = vadd.f32 %v2428, %v2512
  %v2514 = vpop.f32.mrf.mxu0
  %2515 = vmatprep.mubr.f32.mxu0 %v98
  %2516 = vmatmul.mubr.f32.gmra.mxu0 %v97
  %v2517 = vpop.f32.mrf.mxu0
  %v2518 = vadd.f32 %v2433, %v2517
  %v2519 = vpop.f32.mrf.mxu0
  %2520 = vmatprep.mubr.f32.mxu0 %v147
  %2521 = vmatmul.mubr.f32.gmra.mxu0 %v146
  %v2522 = vpop.f32.mrf.mxu0
  %v2523 = vadd.f32 %v2438, %v2522
  %v2524 = vpop.f32.mrf.mxu0
  %2525 = vmatprep.mubr.f32.mxu0 %v196
  %2526 = vmatmul.mubr.f32.gmra.mxu0 %v195
  %v2527 = vpop.f32.mrf.mxu0
  %v2528 = vadd.f32 %v2443, %v2527
  %v2529 = vpop.f32.mrf.mxu0
  %2530 = vdwg.mxu0
  %2531 = vmatprep.subr.mxu0 0.0
  %2532 = vmatpush1.msra.mxu0 %v801
  %2533 = vmatprep.subr.mxu0 0.0
  %2534 = vmatpush1.msra.mxu0 %v800
  %2535 = vmatprep.subr.mxu0 0.0
  %2536 = vmatpush1.msra.mxu0 %v799
  %2537 = vmatprep.subr.mxu0 0.0
  %2538 = vmatpush1.msra.mxu0 %v798
  %2539 = vmatprep.subr.mxu0 0.0
  %2540 = vmatpush1.msra.mxu0 %v797
  %2541 = vmatprep.subr.mxu0 0.0
  %2542 = vmatpush1.msra.mxu0 %v796
  %2543 = vmatprep.subr.mxu0 0.0
  %2544 = vmatpush1.msra.mxu0 %v795
  %2545 = vmatprep.subr.mxu0 0.0
  %2546 = vmatpush1.msra.mxu0 %v794
  %2547 = vmatprep.subr.mxu0 0.0
  %2548 = vmatpush1.msra.mxu0 %v793
  %2549 = vmatprep.subr.mxu0 0.0
  %2550 = vmatpush1.msra.mxu0 %v792
  %2551 = vmatprep.subr.mxu0 0.0
  %2552 = vmatpush1.msra.mxu0 %v791
  %2553 = vmatprep.subr.mxu0 0.0
  %2554 = vmatpush1.msra.mxu0 %v790
  %2555 = vmatprep.subr.mxu0 0.0
  %2556 = vmatpush1.msra.mxu0 %v789
  %2557 = vmatprep.subr.mxu0 0.0
  %2558 = vmatpush1.msra.mxu0 %v788
  %2559 = vmatprep.subr.mxu0 0.0
  %2560 = vmatpush1.msra.mxu0 %v787
  %2561 = vmatprep.subr.mxu0 0.0
  %2562 = vmatpush1.msra.mxu0 %v786
  %2563 = vmatprep.subr.mxu0 0.0
  %2564 = vmatpush2.msra.mxu0 %v817
  %2565 = vmatprep.subr.mxu0 0.0
  %2566 = vmatpush2.msra.mxu0 %v816
  %2567 = vmatprep.subr.mxu0 0.0
  %2568 = vmatpush2.msra.mxu0 %v815
  %2569 = vmatprep.subr.mxu0 0.0
  %2570 = vmatpush2.msra.mxu0 %v814
  %2571 = vmatprep.subr.mxu0 0.0
  %2572 = vmatpush2.msra.mxu0 %v813
  %2573 = vmatprep.subr.mxu0 0.0
  %2574 = vmatpush2.msra.mxu0 %v812
  %2575 = vmatprep.subr.mxu0 0.0
  %2576 = vmatpush2.msra.mxu0 %v811
  %2577 = vmatprep.subr.mxu0 0.0
  %2578 = vmatpush2.msra.mxu0 %v810
  %2579 = vmatprep.subr.mxu0 0.0
  %2580 = vmatpush2.msra.mxu0 %v809
  %2581 = vmatprep.subr.mxu0 0.0
  %2582 = vmatpush2.msra.mxu0 %v808
  %2583 = vmatprep.subr.mxu0 0.0
  %2584 = vmatpush2.msra.mxu0 %v807
  %2585 = vmatprep.subr.mxu0 0.0
  %2586 = vmatpush2.msra.mxu0 %v806
  %2587 = vmatprep.subr.mxu0 0.0
  %2588 = vmatpush2.msra.mxu0 %v805
  %2589 = vmatprep.subr.mxu0 0.0
  %2590 = vmatpush2.msra.mxu0 %v804
  %2591 = vmatprep.subr.mxu0 0.0
  %2592 = vmatpush2.msra.mxu0 %v803
  %2593 = vmatprep.subr.mxu0 0.0
  %2594 = vmatpush2.msra.mxu0 %v802
  %2595 = vmatprep.mubr.f32.mxu0 %v51
  %2596 = vmatmul.mubr.f32.gmra.mxu0 %v50
  %v2597 = vpop.f32.mrf.mxu0
  %v2598 = vadd.f32 %v2513, %v2597
  %v2599 = vpop.f32.mrf.mxu0
  %2600 = vmatprep.mubr.f32.mxu0 %v100
  %2601 = vmatmul.mubr.f32.gmra.mxu0 %v99
  %v2602 = vpop.f32.mrf.mxu0
  %v2603 = vadd.f32 %v2518, %v2602
  %v2604 = vpop.f32.mrf.mxu0
  %2605 = vmatprep.mubr.f32.mxu0 %v149
  %2606 = vmatmul.mubr.f32.gmra.mxu0 %v148
  %v2607 = vpop.f32.mrf.mxu0
  %v2608 = vadd.f32 %v2523, %v2607
  %v2609 = vpop.f32.mrf.mxu0
  %2610 = vmatprep.mubr.f32.mxu0 %v198
  %2611 = vmatmul.mubr.f32.gmra.mxu0 %v197
  %v2612 = vpop.f32.mrf.mxu0
  %v2613 = vadd.f32 %v2528, %v2612
  %v2614 = vpop.f32.mrf.mxu0
  %2615 = vdwg.mxu0
  %2616 = vmatprep.subr.mxu0 0.0
  %2617 = vmatpush1.msra.mxu0 %v833
  %2618 = vmatprep.subr.mxu0 0.0
  %2619 = vmatpush1.msra.mxu0 %v832
  %2620 = vmatprep.subr.mxu0 0.0
  %2621 = vmatpush1.msra.mxu0 %v831
  %2622 = vmatprep.subr.mxu0 0.0
  %2623 = vmatpush1.msra.mxu0 %v830
  %2624 = vmatprep.subr.mxu0 0.0
  %2625 = vmatpush1.msra.mxu0 %v829
  %2626 = vmatprep.subr.mxu0 0.0
  %2627 = vmatpush1.msra.mxu0 %v828
  %2628 = vmatprep.subr.mxu0 0.0
  %2629 = vmatpush1.msra.mxu0 %v827
  %2630 = vmatprep.subr.mxu0 0.0
  %2631 = vmatpush1.msra.mxu0 %v826
  %2632 = vmatprep.subr.mxu0 0.0
  %2633 = vmatpush1.msra.mxu0 %v825
  %2634 = vmatprep.subr.mxu0 0.0
  %2635 = vmatpush1.msra.mxu0 %v824
  %2636 = vmatprep.subr.mxu0 0.0
  %2637 = vmatpush1.msra.mxu0 %v823
  %2638 = vmatprep.subr.mxu0 0.0
  %2639 = vmatpush1.msra.mxu0 %v822
  %2640 = vmatprep.subr.mxu0 0.0
  %2641 = vmatpush1.msra.mxu0 %v821
  %2642 = vmatprep.subr.mxu0 0.0
  %2643 = vmatpush1.msra.mxu0 %v820
  %2644 = vmatprep.subr.mxu0 0.0
  %2645 = vmatpush1.msra.mxu0 %v819
  %2646 = vmatprep.subr.mxu0 0.0
  %2647 = vmatpush1.msra.mxu0 %v818
  %2648 = vmatprep.subr.mxu0 0.0
  %2649 = vmatpush2.msra.mxu0 %v849
  %2650 = vmatprep.subr.mxu0 0.0
  %2651 = vmatpush2.msra.mxu0 %v848
  %2652 = vmatprep.subr.mxu0 0.0
  %2653 = vmatpush2.msra.mxu0 %v847
  %2654 = vmatprep.subr.mxu0 0.0
  %2655 = vmatpush2.msra.mxu0 %v846
  %2656 = vmatprep.subr.mxu0 0.0
  %2657 = vmatpush2.msra.mxu0 %v845
  %2658 = vmatprep.subr.mxu0 0.0
  %2659 = vmatpush2.msra.mxu0 %v844
  %2660 = vmatprep.subr.mxu0 0.0
  %2661 = vmatpush2.msra.mxu0 %v843
  %2662 = vmatprep.subr.mxu0 0.0
  %2663 = vmatpush2.msra.mxu0 %v842
  %2664 = vmatprep.subr.mxu0 0.0
  %2665 = vmatpush2.msra.mxu0 %v841
  %2666 = vmatprep.subr.mxu0 0.0
  %2667 = vmatpush2.msra.mxu0 %v840
  %2668 = vmatprep.subr.mxu0 0.0
  %2669 = vmatpush2.msra.mxu0 %v839
  %2670 = vmatprep.subr.mxu0 0.0
  %2671 = vmatpush2.msra.mxu0 %v838
  %2672 = vmatprep.subr.mxu0 0.0
  %2673 = vmatpush2.msra.mxu0 %v837
  %2674 = vmatprep.subr.mxu0 0.0
  %2675 = vmatpush2.msra.mxu0 %v836
  %2676 = vmatprep.subr.mxu0 0.0
  %2677 = vmatpush2.msra.mxu0 %v835
  %2678 = vmatprep.subr.mxu0 0.0
  %2679 = vmatpush2.msra.mxu0 %v834
  %2680 = vmatprep.mubr.f32.mxu0 %v53
  %2681 = vmatmul.mubr.f32.gmra.mxu0 %v52
  %v2682 = vpop.f32.mrf.mxu0
  %v2683 = vadd.f32 %v2598, %v2682
  %v2684 = vpop.f32.mrf.mxu0
  %2685 = vmatprep.mubr.f32.mxu0 %v102
  %2686 = vmatmul.mubr.f32.gmra.mxu0 %v101
  %v2687 = vpop.f32.mrf.mxu0
  %v2688 = vadd.f32 %v2603, %v2687
  %v2689 = vpop.f32.mrf.mxu0
  %2690 = vmatprep.mubr.f32.mxu0 %v151
  %2691 = vmatmul.mubr.f32.gmra.mxu0 %v150
  %v2692 = vpop.f32.mrf.mxu0
  %v2693 = vadd.f32 %v2608, %v2692
  %v2694 = vpop.f32.mrf.mxu0
  %2695 = vmatprep.mubr.f32.mxu0 %v200
  %2696 = vmatmul.mubr.f32.gmra.mxu0 %v199
  %v2697 = vpop.f32.mrf.mxu0
  %v2698 = vadd.f32 %v2613, %v2697
  %v2699 = vpop.f32.mrf.mxu0
  %2700 = vdwg.mxu0
  %2701 = vmatprep.subr.mxu0 0.0
  %2702 = vmatpush1.msra.mxu0 %v865
  %2703 = vmatprep.subr.mxu0 0.0
  %2704 = vmatpush1.msra.mxu0 %v864
  %2705 = vmatprep.subr.mxu0 0.0
  %2706 = vmatpush1.msra.mxu0 %v863
  %2707 = vmatprep.subr.mxu0 0.0
  %2708 = vmatpush1.msra.mxu0 %v862
  %2709 = vmatprep.subr.mxu0 0.0
  %2710 = vmatpush1.msra.mxu0 %v861
  %2711 = vmatprep.subr.mxu0 0.0
  %2712 = vmatpush1.msra.mxu0 %v860
  %2713 = vmatprep.subr.mxu0 0.0
  %2714 = vmatpush1.msra.mxu0 %v859
  %2715 = vmatprep.subr.mxu0 0.0
  %2716 = vmatpush1.msra.mxu0 %v858
  %2717 = vmatprep.subr.mxu0 0.0
  %2718 = vmatpush1.msra.mxu0 %v857
  %2719 = vmatprep.subr.mxu0 0.0
  %2720 = vmatpush1.msra.mxu0 %v856
  %2721 = vmatprep.subr.mxu0 0.0
  %2722 = vmatpush1.msra.mxu0 %v855
  %2723 = vmatprep.subr.mxu0 0.0
  %2724 = vmatpush1.msra.mxu0 %v854
  %2725 = vmatprep.subr.mxu0 0.0
  %2726 = vmatpush1.msra.mxu0 %v853
  %2727 = vmatprep.subr.mxu0 0.0
  %2728 = vmatpush1.msra.mxu0 %v852
  %2729 = vmatprep.subr.mxu0 0.0
  %2730 = vmatpush1.msra.mxu0 %v851
  %2731 = vmatprep.subr.mxu0 0.0
  %2732 = vmatpush1.msra.mxu0 %v850
  %2733 = vmatprep.subr.mxu0 0.0
  %2734 = vmatpush2.msra.mxu0 %v881
  %2735 = vmatprep.subr.mxu0 0.0
  %2736 = vmatpush2.msra.mxu0 %v880
  %2737 = vmatprep.subr.mxu0 0.0
  %2738 = vmatpush2.msra.mxu0 %v879
  %2739 = vmatprep.subr.mxu0 0.0
  %2740 = vmatpush2.msra.mxu0 %v878
  %2741 = vmatprep.subr.mxu0 0.0
  %2742 = vmatpush2.msra.mxu0 %v877
  %2743 = vmatprep.subr.mxu0 0.0
  %2744 = vmatpush2.msra.mxu0 %v876
  %2745 = vmatprep.subr.mxu0 0.0
  %2746 = vmatpush2.msra.mxu0 %v875
  %2747 = vmatprep.subr.mxu0 0.0
  %2748 = vmatpush2.msra.mxu0 %v874
  %2749 = vmatprep.subr.mxu0 0.0
  %2750 = vmatpush2.msra.mxu0 %v873
  %2751 = vmatprep.subr.mxu0 0.0
  %2752 = vmatpush2.msra.mxu0 %v872
  %2753 = vmatprep.subr.mxu0 0.0
  %2754 = vmatpush2.msra.mxu0 %v871
  %2755 = vmatprep.subr.mxu0 0.0
  %2756 = vmatpush2.msra.mxu0 %v870
  %2757 = vmatprep.subr.mxu0 0.0
  %2758 = vmatpush2.msra.mxu0 %v869
  %2759 = vmatprep.subr.mxu0 0.0
  %2760 = vmatpush2.msra.mxu0 %v868
  %2761 = vmatprep.subr.mxu0 0.0
  %2762 = vmatpush2.msra.mxu0 %v867
  %2763 = vmatprep.subr.mxu0 0.0
  %2764 = vmatpush2.msra.mxu0 %v866
  %2765 = vmatprep.mubr.f32.mxu0 %v55
  %2766 = vmatmul.mubr.f32.gmra.mxu0 %v54
  %v2767 = vpop.f32.mrf.mxu0
  %v2768 = vadd.f32 %v2683, %v2767
  %v2769 = vpop.f32.mrf.mxu0
  %2770 = vmatprep.mubr.f32.mxu0 %v104
  %2771 = vmatmul.mubr.f32.gmra.mxu0 %v103
  %v2772 = vpop.f32.mrf.mxu0
  %v2773 = vadd.f32 %v2688, %v2772
  %v2774 = vpop.f32.mrf.mxu0
  %2775 = vmatprep.mubr.f32.mxu0 %v153
  %2776 = vmatmul.mubr.f32.gmra.mxu0 %v152
  %v2777 = vpop.f32.mrf.mxu0
  %v2778 = vadd.f32 %v2693, %v2777
  %v2779 = vpop.f32.mrf.mxu0
  %2780 = vmatprep.mubr.f32.mxu0 %v202
  %2781 = vmatmul.mubr.f32.gmra.mxu0 %v201
  %v2782 = vpop.f32.mrf.mxu0
  %v2783 = vadd.f32 %v2698, %v2782
  %v2784 = vpop.f32.mrf.mxu0
  %2785 = vdwg.mxu0
  %2786 = vmatprep.subr.mxu0 0.0
  %2787 = vmatpush1.msra.mxu0 %v897
  %2788 = vmatprep.subr.mxu0 0.0
  %2789 = vmatpush1.msra.mxu0 %v896
  %2790 = vmatprep.subr.mxu0 0.0
  %2791 = vmatpush1.msra.mxu0 %v895
  %2792 = vmatprep.subr.mxu0 0.0
  %2793 = vmatpush1.msra.mxu0 %v894
  %2794 = vmatprep.subr.mxu0 0.0
  %2795 = vmatpush1.msra.mxu0 %v893
  %2796 = vmatprep.subr.mxu0 0.0
  %2797 = vmatpush1.msra.mxu0 %v892
  %2798 = vmatprep.subr.mxu0 0.0
  %2799 = vmatpush1.msra.mxu0 %v891
  %2800 = vmatprep.subr.mxu0 0.0
  %2801 = vmatpush1.msra.mxu0 %v890
  %2802 = vmatprep.subr.mxu0 0.0
  %2803 = vmatpush1.msra.mxu0 %v889
  %2804 = vmatprep.subr.mxu0 0.0
  %2805 = vmatpush1.msra.mxu0 %v888
  %2806 = vmatprep.subr.mxu0 0.0
  %2807 = vmatpush1.msra.mxu0 %v887
  %2808 = vmatprep.subr.mxu0 0.0
  %2809 = vmatpush1.msra.mxu0 %v886
  %2810 = vmatprep.subr.mxu0 0.0
  %2811 = vmatpush1.msra.mxu0 %v885
  %2812 = vmatprep.subr.mxu0 0.0
  %2813 = vmatpush1.msra.mxu0 %v884
  %2814 = vmatprep.subr.mxu0 0.0
  %2815 = vmatpush1.msra.mxu0 %v883
  %2816 = vmatprep.subr.mxu0 0.0
  %2817 = vmatpush1.msra.mxu0 %v882
  %2818 = vmatprep.subr.mxu0 0.0
  %2819 = vmatpush2.msra.mxu0 %v913
  %2820 = vmatprep.subr.mxu0 0.0
  %2821 = vmatpush2.msra.mxu0 %v912
  %2822 = vmatprep.subr.mxu0 0.0
  %2823 = vmatpush2.msra.mxu0 %v911
  %2824 = vmatprep.subr.mxu0 0.0
  %2825 = vmatpush2.msra.mxu0 %v910
  %2826 = vmatprep.subr.mxu0 0.0
  %2827 = vmatpush2.msra.mxu0 %v909
  %2828 = vmatprep.subr.mxu0 0.0
  %2829 = vmatpush2.msra.mxu0 %v908
  %2830 = vmatprep.subr.mxu0 0.0
  %2831 = vmatpush2.msra.mxu0 %v907
  %2832 = vmatprep.subr.mxu0 0.0
  %2833 = vmatpush2.msra.mxu0 %v906
  %2834 = vmatprep.subr.mxu0 0.0
  %2835 = vmatpush2.msra.mxu0 %v905
  %2836 = vmatprep.subr.mxu0 0.0
  %2837 = vmatpush2.msra.mxu0 %v904
  %2838 = vmatprep.subr.mxu0 0.0
  %2839 = vmatpush2.msra.mxu0 %v903
  %2840 = vmatprep.subr.mxu0 0.0
  %2841 = vmatpush2.msra.mxu0 %v902
  %2842 = vmatprep.subr.mxu0 0.0
  %2843 = vmatpush2.msra.mxu0 %v901
  %2844 = vmatprep.subr.mxu0 0.0
  %2845 = vmatpush2.msra.mxu0 %v900
  %2846 = vmatprep.subr.mxu0 0.0
  %2847 = vmatpush2.msra.mxu0 %v899
  %2848 = vmatprep.subr.mxu0 0.0
  %2849 = vmatpush2.msra.mxu0 %v898
  %2850 = vmatprep.mubr.f32.mxu0 %v57
  %2851 = vmatmul.mubr.f32.gmra.mxu0 %v56
  %v2852 = vpop.f32.mrf.mxu0
  %v2853 = vadd.f32 %v2768, %v2852
  %v2854 = vpop.f32.mrf.mxu0
  %2855 = vmatprep.mubr.f32.mxu0 %v106
  %2856 = vmatmul.mubr.f32.gmra.mxu0 %v105
  %v2857 = vpop.f32.mrf.mxu0
  %v2858 = vadd.f32 %v2773, %v2857
  %v2859 = vpop.f32.mrf.mxu0
  %2860 = vmatprep.mubr.f32.mxu0 %v155
  %2861 = vmatmul.mubr.f32.gmra.mxu0 %v154
  %v2862 = vpop.f32.mrf.mxu0
  %v2863 = vadd.f32 %v2778, %v2862
  %v2864 = vpop.f32.mrf.mxu0
  %2865 = vmatprep.mubr.f32.mxu0 %v204
  %2866 = vmatmul.mubr.f32.gmra.mxu0 %v203
  %v2867 = vpop.f32.mrf.mxu0
  %v2868 = vadd.f32 %v2783, %v2867
  %v2869 = vpop.f32.mrf.mxu0
  %2870 = vdwg.mxu0
  %2871 = vmatprep.subr.mxu0 0.0
  %2872 = vmatpush1.msra.mxu0 %v929
  %2873 = vmatprep.subr.mxu0 0.0
  %2874 = vmatpush1.msra.mxu0 %v928
  %2875 = vmatprep.subr.mxu0 0.0
  %2876 = vmatpush1.msra.mxu0 %v927
  %2877 = vmatprep.subr.mxu0 0.0
  %2878 = vmatpush1.msra.mxu0 %v926
  %2879 = vmatprep.subr.mxu0 0.0
  %2880 = vmatpush1.msra.mxu0 %v925
  %2881 = vmatprep.subr.mxu0 0.0
  %2882 = vmatpush1.msra.mxu0 %v924
  %2883 = vmatprep.subr.mxu0 0.0
  %2884 = vmatpush1.msra.mxu0 %v923
  %2885 = vmatprep.subr.mxu0 0.0
  %2886 = vmatpush1.msra.mxu0 %v922
  %2887 = vmatprep.subr.mxu0 0.0
  %2888 = vmatpush1.msra.mxu0 %v921
  %2889 = vmatprep.subr.mxu0 0.0
  %2890 = vmatpush1.msra.mxu0 %v920
  %2891 = vmatprep.subr.mxu0 0.0
  %2892 = vmatpush1.msra.mxu0 %v919
  %2893 = vmatprep.subr.mxu0 0.0
  %2894 = vmatpush1.msra.mxu0 %v918
  %2895 = vmatprep.subr.mxu0 0.0
  %2896 = vmatpush1.msra.mxu0 %v917
  %2897 = vmatprep.subr.mxu0 0.0
  %2898 = vmatpush1.msra.mxu0 %v916
  %2899 = vmatprep.subr.mxu0 0.0
  %2900 = vmatpush1.msra.mxu0 %v915
  %2901 = vmatprep.subr.mxu0 0.0
  %2902 = vmatpush1.msra.mxu0 %v914
  %2903 = vmatprep.subr.mxu0 0.0
  %2904 = vmatpush2.msra.mxu0 %v945
  %2905 = vmatprep.subr.mxu0 0.0
  %2906 = vmatpush2.msra.mxu0 %v944
  %2907 = vmatprep.subr.mxu0 0.0
  %2908 = vmatpush2.msra.mxu0 %v943
  %2909 = vmatprep.subr.mxu0 0.0
  %2910 = vmatpush2.msra.mxu0 %v942
  %2911 = vmatprep.subr.mxu0 0.0
  %2912 = vmatpush2.msra.mxu0 %v941
  %2913 = vmatprep.subr.mxu0 0.0
  %2914 = vmatpush2.msra.mxu0 %v940
  %2915 = vmatprep.subr.mxu0 0.0
  %2916 = vmatpush2.msra.mxu0 %v939
  %2917 = vmatprep.subr.mxu0 0.0
  %2918 = vmatpush2.msra.mxu0 %v938
  %2919 = vmatprep.subr.mxu0 0.0
  %2920 = vmatpush2.msra.mxu0 %v937
  %2921 = vmatprep.subr.mxu0 0.0
  %2922 = vmatpush2.msra.mxu0 %v936
  %2923 = vmatprep.subr.mxu0 0.0
  %2924 = vmatpush2.msra.mxu0 %v935
  %2925 = vmatprep.subr.mxu0 0.0
  %2926 = vmatpush2.msra.mxu0 %v934
  %2927 = vmatprep.subr.mxu0 0.0
  %2928 = vmatpush2.msra.mxu0 %v933
  %2929 = vmatprep.subr.mxu0 0.0
  %2930 = vmatpush2.msra.mxu0 %v932
  %2931 = vmatprep.subr.mxu0 0.0
  %2932 = vmatpush2.msra.mxu0 %v931
  %2933 = vmatprep.subr.mxu0 0.0
  %2934 = vmatpush2.msra.mxu0 %v930
  %2935 = vmatprep.mubr.f32.mxu0 %v59
  %2936 = vmatmul.mubr.f32.gmra.mxu0 %v58
  %v2937 = vpop.f32.mrf.mxu0
  %v2938 = vadd.f32 %v2853, %v2937
  %v2939 = vpop.f32.mrf.mxu0
  %2940 = vmatprep.mubr.f32.mxu0 %v108
  %2941 = vmatmul.mubr.f32.gmra.mxu0 %v107
  %v2942 = vpop.f32.mrf.mxu0
  %v2943 = vadd.f32 %v2858, %v2942
  %v2944 = vpop.f32.mrf.mxu0
  %2945 = vmatprep.mubr.f32.mxu0 %v157
  %2946 = vmatmul.mubr.f32.gmra.mxu0 %v156
  %v2947 = vpop.f32.mrf.mxu0
  %v2948 = vadd.f32 %v2863, %v2947
  %v2949 = vpop.f32.mrf.mxu0
  %2950 = vmatprep.mubr.f32.mxu0 %v206
  %2951 = vmatmul.mubr.f32.gmra.mxu0 %v205
  %v2952 = vpop.f32.mrf.mxu0
  %v2953 = vadd.f32 %v2868, %v2952
  %v2954 = vpop.f32.mrf.mxu0
  %2955 = vdwg.mxu0
  %2956 = vmatprep.subr.mxu0 0.0
  %2957 = vmatpush1.msra.mxu0 %v961
  %2958 = vmatprep.subr.mxu0 0.0
  %2959 = vmatpush1.msra.mxu0 %v960
  %2960 = vmatprep.subr.mxu0 0.0
  %2961 = vmatpush1.msra.mxu0 %v959
  %2962 = vmatprep.subr.mxu0 0.0
  %2963 = vmatpush1.msra.mxu0 %v958
  %2964 = vmatprep.subr.mxu0 0.0
  %2965 = vmatpush1.msra.mxu0 %v957
  %2966 = vmatprep.subr.mxu0 0.0
  %2967 = vmatpush1.msra.mxu0 %v956
  %2968 = vmatprep.subr.mxu0 0.0
  %2969 = vmatpush1.msra.mxu0 %v955
  %2970 = vmatprep.subr.mxu0 0.0
  %2971 = vmatpush1.msra.mxu0 %v954
  %2972 = vmatprep.subr.mxu0 0.0
  %2973 = vmatpush1.msra.mxu0 %v953
  %2974 = vmatprep.subr.mxu0 0.0
  %2975 = vmatpush1.msra.mxu0 %v952
  %2976 = vmatprep.subr.mxu0 0.0
  %2977 = vmatpush1.msra.mxu0 %v951
  %2978 = vmatprep.subr.mxu0 0.0
  %2979 = vmatpush1.msra.mxu0 %v950
  %2980 = vmatprep.subr.mxu0 0.0
  %2981 = vmatpush1.msra.mxu0 %v949
  %2982 = vmatprep.subr.mxu0 0.0
  %2983 = vmatpush1.msra.mxu0 %v948
  %2984 = vmatprep.subr.mxu0 0.0
  %2985 = vmatpush1.msra.mxu0 %v947
  %2986 = vmatprep.subr.mxu0 0.0
  %2987 = vmatpush1.msra.mxu0 %v946
  %2988 = vmatprep.subr.mxu0 0.0
  %2989 = vmatpush2.msra.mxu0 %v977
  %2990 = vmatprep.subr.mxu0 0.0
  %2991 = vmatpush2.msra.mxu0 %v976
  %2992 = vmatprep.subr.mxu0 0.0
  %2993 = vmatpush2.msra.mxu0 %v975
  %2994 = vmatprep.subr.mxu0 0.0
  %2995 = vmatpush2.msra.mxu0 %v974
  %2996 = vmatprep.subr.mxu0 0.0
  %2997 = vmatpush2.msra.mxu0 %v973
  %2998 = vmatprep.subr.mxu0 0.0
  %2999 = vmatpush2.msra.mxu0 %v972
  %3000 = vmatprep.subr.mxu0 0.0
  %3001 = vmatpush2.msra.mxu0 %v971
  %3002 = vmatprep.subr.mxu0 0.0
  %3003 = vmatpush2.msra.mxu0 %v970
  %3004 = vmatprep.subr.mxu0 0.0
  %3005 = vmatpush2.msra.mxu0 %v969
  %3006 = vmatprep.subr.mxu0 0.0
  %3007 = vmatpush2.msra.mxu0 %v968
  %3008 = vmatprep.subr.mxu0 0.0
  %3009 = vmatpush2.msra.mxu0 %v967
  %3010 = vmatprep.subr.mxu0 0.0
  %3011 = vmatpush2.msra.mxu0 %v966
  %3012 = vmatprep.subr.mxu0 0.0
  %3013 = vmatpush2.msra.mxu0 %v965
  %3014 = vmatprep.subr.mxu0 0.0
  %3015 = vmatpush2.msra.mxu0 %v964
  %3016 = vmatprep.subr.mxu0 0.0
  %3017 = vmatpush2.msra.mxu0 %v963
  %3018 = vmatprep.subr.mxu0 0.0
  %3019 = vmatpush2.msra.mxu0 %v962
  %3020 = vmatprep.mubr.f32.mxu0 %v61
  %3021 = vmatmul.mubr.f32.gmra.mxu0 %v60
  %v3022 = vpop.f32.mrf.mxu0
  %v3023 = vadd.f32 %v2938, %v3022
  %v3024 = vpop.f32.mrf.mxu0
  %3025 = vmatprep.mubr.f32.mxu0 %v110
  %3026 = vmatmul.mubr.f32.gmra.mxu0 %v109
  %v3027 = vpop.f32.mrf.mxu0
  %v3028 = vadd.f32 %v2943, %v3027
  %v3029 = vpop.f32.mrf.mxu0
  %3030 = vmatprep.mubr.f32.mxu0 %v159
  %3031 = vmatmul.mubr.f32.gmra.mxu0 %v158
  %v3032 = vpop.f32.mrf.mxu0
  %v3033 = vadd.f32 %v2948, %v3032
  %v3034 = vpop.f32.mrf.mxu0
  %3035 = vmatprep.mubr.f32.mxu0 %v208
  %3036 = vmatmul.mubr.f32.gmra.mxu0 %v207
  %v3037 = vpop.f32.mrf.mxu0
  %v3038 = vadd.f32 %v2953, %v3037
  %v3039 = vpop.f32.mrf.mxu0
  %3040 = vdwg.mxu0
  %3041 = vmatprep.subr.mxu0 0.0
  %3042 = vmatpush1.msra.mxu0 %v993
  %3043 = vmatprep.subr.mxu0 0.0
  %3044 = vmatpush1.msra.mxu0 %v992
  %3045 = vmatprep.subr.mxu0 0.0
  %3046 = vmatpush1.msra.mxu0 %v991
  %3047 = vmatprep.subr.mxu0 0.0
  %3048 = vmatpush1.msra.mxu0 %v990
  %3049 = vmatprep.subr.mxu0 0.0
  %3050 = vmatpush1.msra.mxu0 %v989
  %3051 = vmatprep.subr.mxu0 0.0
  %3052 = vmatpush1.msra.mxu0 %v988
  %3053 = vmatprep.subr.mxu0 0.0
  %3054 = vmatpush1.msra.mxu0 %v987
  %3055 = vmatprep.subr.mxu0 0.0
  %3056 = vmatpush1.msra.mxu0 %v986
  %3057 = vmatprep.subr.mxu0 0.0
  %3058 = vmatpush1.msra.mxu0 %v985
  %3059 = vmatprep.subr.mxu0 0.0
  %3060 = vmatpush1.msra.mxu0 %v984
  %3061 = vmatprep.subr.mxu0 0.0
  %3062 = vmatpush1.msra.mxu0 %v983
  %3063 = vmatprep.subr.mxu0 0.0
  %3064 = vmatpush1.msra.mxu0 %v982
  %3065 = vmatprep.subr.mxu0 0.0
  %3066 = vmatpush1.msra.mxu0 %v981
  %3067 = vmatprep.subr.mxu0 0.0
  %3068 = vmatpush1.msra.mxu0 %v980
  %3069 = vmatprep.subr.mxu0 0.0
  %3070 = vmatpush1.msra.mxu0 %v979
  %3071 = vmatprep.subr.mxu0 0.0
  %3072 = vmatpush1.msra.mxu0 %v978
  %3073 = vmatprep.subr.mxu0 0.0
  %3074 = vmatpush2.msra.mxu0 0.0
  %3075 = vmatprep.subr.mxu0 0.0
  %3076 = vmatpush2.msra.mxu0 0.0
  %3077 = vmatprep.subr.mxu0 0.0
  %3078 = vmatpush2.msra.mxu0 0.0
  %3079 = vmatprep.subr.mxu0 0.0
  %3080 = vmatpush2.msra.mxu0 0.0
  %3081 = vmatprep.subr.mxu0 0.0
  %3082 = vmatpush2.msra.mxu0 0.0
  %3083 = vmatprep.subr.mxu0 0.0
  %3084 = vmatpush2.msra.mxu0 0.0
  %3085 = vmatprep.subr.mxu0 0.0
  %3086 = vmatpush2.msra.mxu0 0.0
  %3087 = vmatprep.subr.mxu0 0.0
  %3088 = vmatpush2.msra.mxu0 0.0
  %3089 = vmatprep.subr.mxu0 0.0
  %3090 = vmatpush2.msra.mxu0 0.0
  %3091 = vmatprep.subr.mxu0 0.0
  %3092 = vmatpush2.msra.mxu0 0.0
  %3093 = vmatprep.subr.mxu0 0.0
  %3094 = vmatpush2.msra.mxu0 0.0
  %3095 = vmatprep.subr.mxu0 0.0
  %3096 = vmatpush2.msra.mxu0 0.0
  %3097 = vmatprep.subr.mxu0 0.0
  %3098 = vmatpush2.msra.mxu0 0.0
  %3099 = vmatprep.subr.mxu0 0.0
  %3100 = vmatpush2.msra.mxu0 0.0
  %3101 = vmatprep.subr.mxu0 0.0
  %3102 = vmatpush2.msra.mxu0 0.0
  %3103 = vmatprep.subr.mxu0 0.0
  %3104 = vmatpush2.msra.mxu0 0.0
  %3105 = vmatprep.mubr.f32.mxu0 0.0
  %3106 = vmatmul.mubr.f32.gmra.mxu0 %v62
  %v3107 = vpop.f32.mrf.mxu0
  %v3108 = vadd.f32 %v3023, %v3107
  %v3109 = vpop.f32.mrf.mxu0
  %3110 = vmatprep.mubr.f32.mxu0 0.0
  %3111 = vmatmul.mubr.f32.gmra.mxu0 %v111
  %v3112 = vpop.f32.mrf.mxu0
  %v3113 = vadd.f32 %v3028, %v3112
  %v3114 = vpop.f32.mrf.mxu0
  %3115 = vmatprep.mubr.f32.mxu0 0.0
  %3116 = vmatmul.mubr.f32.gmra.mxu0 %v160
  %v3117 = vpop.f32.mrf.mxu0
  %v3118 = vadd.f32 %v3033, %v3117
  %v3119 = vpop.f32.mrf.mxu0
  %3120 = vmatprep.mubr.f32.mxu0 0.0
  %3121 = vmatmul.mubr.f32.gmra.mxu0 %v209
  %v3122 = vpop.f32.mrf.mxu0
  %v3123 = vadd.f32 %v3038, %v3122
  %v3124 = vpop.f32.mrf.mxu0
  %3125 = vdwg.mxu0
  %3126 = vst [vmem:[%s3] sm:$0xff] %v3108
  %3127 = vst [vmem:[%s3 + $0x8] sm:$0xff] %v3113
  %3128 = vst [vmem:[%s3 + $0x10] sm:$0xff] %v3118
  %3129 = vst [vmem:[%s3 + $0x18] sm:$0xff] %v3123
  // Predicated region
  $region14: #{_lambda_.5} parent=0 // pred_check
    _
  $region15: #{_lambda_.5} parent=0 // pred_check_branch
    %3131 = sbr.rel (0) target = $region17
  $region16: #{_lambda_.5} parent=0 // pred_region
    _
  $region17: #{_lambda_.5} parent=0 // pred_fallthru
    _
  // Predicated region
  $region18: #{_lambda_.5} parent=0 // pred_check
    _
  $region19: #{_lambda_.5} parent=0 // pred_check_branch
    %3133 = sbr.rel (0) target = $region21
  $region20: #{_lambda_.5} parent=0 // pred_region
    _
  $region21: #{_lambda_.5} parent=0 // pred_fallthru
    _

</llo_original>
